<compile_context>
chip_gen: v6e
topology: v6e:2x2x1
jax: 0.10.0
libtpu: 0.0.40
codegen_flags: <defaults>
</compile_context>

<pallas_src>
import functools

import jax
import jax.numpy as jnp
from jax import lax
from jax.experimental import pallas as pl
from jax.experimental.pallas import tpu as pltpu

LANE = 128


# ----------------------------------------------------------------------------
# pass 1: conv1 + both SKConv branches + partial SE pooling sum
# ----------------------------------------------------------------------------
def _branch_kernel(x_ref, w1_ref, b1_ref, w5_ref, b5_ref, w3_ref, b3_ref,
                   feat1_ref, feat2_ref, usum_ref, *, img_h):
    s = pl.program_id(1)
    th_halo, w, cp = x_ref.shape[1], x_ref.shape[2], x_ref.shape[3]
    th = th_halo - 4
    hw = th * w
    cdt = w5_ref.dtype                       # bf16 MXU operand dtype

    # ---- SKBlock.conv1: 1x1 conv (no bias) + folded BN + ReLU (incl. halo) --
    x = x_ref[0].reshape(th_halo * w, cp)
    h1 = jnp.maximum(
        jnp.dot(x.astype(cdt), w1_ref[...], preferred_element_type=jnp.float32)
        + b1_ref[...], 0.0).reshape(th_halo, w, cp)

    # Conv zero padding applies to h1 (not to x): clear halo rows that fall
    # outside the real image (they would otherwise hold relu(b1)).
    ridx = lax.broadcasted_iota(jnp.int32, (th_halo, 1, 1), 0) + s * th
    h1 = jnp.where((ridx >= 2) & (ridx < img_h + 2), h1, 0.0).astype(cdt)

    # single width-padded buffer (pad=2) shared by both branches
    zc = jnp.zeros((th_halo, 2, cp), cdt)
    hpad = jnp.concatenate([zc, h1, zc], axis=1)          # (th+4, w+4, cp)

    feat1 = jnp.zeros((hw, cp), jnp.float32)
    feat2 = jnp.zeros((hw, cp), jnp.float32)
    for kh in range(5):
        # row-group patch (hw, 5*cp): K = 5*cp feeds the 256-deep MXU
        row_patch = jnp.concatenate(
            [hpad[kh:kh + th, kw:kw + w, :].reshape(hw, cp) for kw in range(5)],
            axis=-1)
        feat1 += jnp.dot(row_patch, w5_ref[kh * 5 * cp:(kh + 1) * 5 * cp, :],
                         preferred_element_type=jnp.float32)
        if 1 <= kh <= 3:
            # 3x3 taps are exactly the central 3x3 blocks of the 5x5 patch
            feat2 += jnp.dot(row_patch[:, cp:4 * cp],
                             w3_ref[(kh - 1) * 3 * cp:kh * 3 * cp, :],
                             preferred_element_type=jnp.float32)

    feat1 = jnp.maximum(feat1 + b5_ref[...], 0.0)          # 5x5 + BN + ReLU
    feat2 = jnp.maximum(feat2 + b3_ref[...], 0.0)          # 3x3 + BN + ReLU
    feat1_ref[...] = feat1.reshape(1, th, w, cp)
    feat2_ref[...] = feat2.reshape(1, th, w, cp)

    # partial spatial sum of U = feat1 + feat2, accumulated across strips
    @pl.when(s == 0)
    def _():
        usum_ref[...] = jnp.zeros_like(usum_ref)
    usum_ref[...] += jnp.sum(feat1 + feat2, axis=0,
                             keepdims=True).reshape(1, 1, cp)


# ----------------------------------------------------------------------------
# pass 2: SE attention, branch selection, BN+ReLU, conv3+BN, residual, ReLU
# ----------------------------------------------------------------------------
def _select_kernel(feat1_ref, feat2_ref, x_ref, usum_ref,
                   wse_ref, bse_ref, wex1_ref, bex1_ref, wex2_ref, bex2_ref,
                   ssk_ref, bsk_ref, w3b_ref, b3b_ref, o_ref, *, hw_total):
    th, w, cp = o_ref.shape[1], o_ref.shape[2], o_ref.shape[3]
    hw = th * w
    cdt = w3b_ref.dtype

    # ---- squeeze / excite (tiny (1,cp) math, recomputed per strip) ---------
    pool = usum_ref[0] * (1.0 / hw_total)                  # AdaptiveAvgPool2d(1)
    z = jnp.maximum(
        jnp.dot(pool, wse_ref[...], preferred_element_type=jnp.float32)
        + bse_ref[...], 0.0)
    a1 = jnp.dot(z, wex1_ref[...], preferred_element_type=jnp.float32) + bex1_ref[...]
    a2 = jnp.dot(z, wex2_ref[...], preferred_element_type=jnp.float32) + bex2_ref[...]
    m = jnp.maximum(a1, a2)                                # softmax over branches
    e1 = jnp.exp(a1 - m)
    e2 = jnp.exp(a2 - m)
    inv = 1.0 / (e1 + e2)
    att1 = e1 * inv
    att2 = e2 * inv

    feat1 = feat1_ref[0].reshape(hw, cp)
    feat2 = feat2_ref[0].reshape(hw, cp)
    v = feat1 * att1 + feat2 * att2                        # branch selection
    sk = jnp.maximum(v * ssk_ref[...] + bsk_ref[...], 0.0)  # BN + ReLU after SKConv
    h3 = jnp.dot(sk.astype(cdt), w3b_ref[...],
                 preferred_element_type=jnp.float32) + b3b_ref[...]  # conv3 + BN
    out = jnp.maximum(h3 + x_ref[0].reshape(hw, cp), 0.0)  # residual + ReLU
    o_ref[...] = out.reshape(1, th, w, cp)


# ----------------------------------------------------------------------------
# wrapper (NCHW public interface)
# ----------------------------------------------------------------------------
def _pad_axis(a, axis, target):
    pad = target - a.shape[axis]
    if pad <= 0:
        return a
    widths = [(0, 0)] * a.ndim
    widths[axis] = (0, pad)
    return jnp.pad(a, widths)


def _choose_strip(H, W, Cp, budget_bytes=12 << 20):
    """Largest divisor of H whose per-strip working set (~32 B / output elem:
    bf16 row patch + f32 accumulators + I/O blocks) fits the budget."""
    best = 1
    for th in range(1, H + 1):
        if H % th == 0 and th * W * Cp * 32 <= budget_bytes:
            best = th
    return best


def _vmem_limit_bytes():
    try:
        cap = int(pltpu.get_tpu_info().vmem_capacity_bytes)
    except Exception:
        cap = 64 * 1024 * 1024
    # ~60% of physical VMEM, clamped: ~38 MiB on v7x, ~77 MiB on v5e/v6e.
    return max(32 * 1024 * 1024, min(int(cap * 0.6), 100 * 1024 * 1024))


def skblock_pallas(x_nchw, params, lane=LANE, mxu_dtype=jnp.bfloat16):
    x = jnp.transpose(x_nchw, (0, 2, 3, 1)).astype(jnp.float32)   # -> NHWC
    N, H, W, Cin = x.shape
    C = params["w1"].shape[1]
    assert Cin == C, "residual add requires inplanes == planes (downsample=None)"
    Cp = ((C + lane - 1) // lane) * lane
    Cr = params["wse"].shape[1]
    Crp = ((Cr + lane - 1) // lane) * lane

    xp = _pad_axis(x, 3, Cp)                                      # (N, H, W, Cp)
    x_hpad = jnp.pad(xp, ((0, 0), (2, 2), (0, 0), (0, 0)))        # 2-row zero halo
    TH = _choose_strip(H, W, Cp)
    n_strips = H // TH
    # overlapped halo windows (built once in HBM; 4 extra rows per strip)
    x_win = jnp.concatenate(
        [x_hpad[:, s * TH:s * TH + TH + 4][:, None] for s in range(n_strips)],
        axis=1).reshape(N * n_strips, TH + 4, W, Cp)

    def pad_conv(wk, k):                       # (k*k*C, C) -> (k*k*Cp, Cp)
        wk = wk.reshape(k * k, C, C)
        wk = _pad_axis(_pad_axis(wk, 1, Cp), 2, Cp)
        return wk.reshape(k * k * Cp, Cp)

    P = params
    w1 = _pad_axis(_pad_axis(P["w1"], 0, Cp), 1, Cp).astype(mxu_dtype)
    b1 = _pad_axis(P["b1"], 1, Cp)
    w5 = pad_conv(P["w5"], 5).astype(mxu_dtype)
    b5 = _pad_axis(P["b5"], 1, Cp)
    w3 = pad_conv(P["w3"], 3).astype(mxu_dtype)
    b3 = _pad_axis(P["b3"], 1, Cp)
    wse = _pad_axis(_pad_axis(P["wse"], 0, Cp), 1, Crp)
    bse = _pad_axis(P["bse"], 1, Crp)
    wex1 = _pad_axis(_pad_axis(P["wex1"], 0, Crp), 1, Cp)
    bex1 = _pad_axis(P["bex1"], 1, Cp)
    wex2 = _pad_axis(_pad_axis(P["wex2"], 0, Crp), 1, Cp)
    bex2 = _pad_axis(P["bex2"], 1, Cp)
    ssk = _pad_axis(P["ssk"], 1, Cp)
    bsk = _pad_axis(P["bsk"], 1, Cp)
    w3b = _pad_axis(_pad_axis(P["w3b"], 0, Cp), 1, Cp).astype(mxu_dtype)
    b3b = _pad_axis(P["b3b"], 1, Cp)

    weights_a = [w1, b1, w5, b5, w3, b3]
    weights_b = [wse, bse, wex1, bex1, wex2, bex2, ssk, bsk, w3b, b3b]

    vmem_limit = _vmem_limit_bytes()
    nbytes = lambda a: int(a.size) * int(a.dtype.itemsize)

    def const_spec(p):
        nd = p.ndim
        return pl.BlockSpec(p.shape, lambda n, s, _nd=nd: (0,) * _nd)

    strip_spec = pl.BlockSpec((1, TH, W, Cp), lambda n, s: (n, s, 0, 0))
    usum_spec = pl.BlockSpec((1, 1, Cp), lambda n, s: (n, 0, 0))

    # ---- pass 1 -------------------------------------------------------------
    feat1, feat2, usum = pl.pallas_call(
        functools.partial(_branch_kernel, img_h=H),
        out_shape=(jax.ShapeDtypeStruct((N, H, W, Cp), jnp.float32),
                   jax.ShapeDtypeStruct((N, H, W, Cp), jnp.float32),
                   jax.ShapeDtypeStruct((N, 1, Cp), jnp.float32)),
        grid_spec=pltpu.PrefetchScalarGridSpec(
            num_scalar_prefetch=0,
            grid=(N, n_strips),
            in_specs=[pl.BlockSpec((1, TH + 4, W, Cp),
                                   lambda n, s, _ns=n_strips: (n * _ns + s, 0, 0, 0))]
                     + [const_spec(p) for p in weights_a],
            out_specs=[strip_spec, strip_spec, usum_spec]),
        compiler_params=pltpu.CompilerParams(
            dimension_semantics=("parallel", "arbitrary"),
            vmem_limit_bytes=vmem_limit),
        cost_estimate=pl.CostEstimate(
            flops=int(2 * N * H * W * Cp * Cp * (1 + 25 + 9)),
            transcendentals=0,
            bytes_accessed=int(nbytes(x_win) + sum(nbytes(a) for a in weights_a)
                               + 2 * N * H * W * Cp * 4 + N * Cp * 4)),
    )(x_win, *weights_a)

    # ---- pass 2 -------------------------------------------------------------
    out = pl.pallas_call(
        functools.partial(_select_kernel, hw_total=float(H * W)),
        out_shape=jax.ShapeDtypeStruct((N, H, W, Cp), jnp.float32),
        grid_spec=pltpu.PrefetchScalarGridSpec(
            num_scalar_prefetch=0,
            grid=(N, n_strips),
            in_specs=[strip_spec, strip_spec, strip_spec, usum_spec]
                     + [const_spec(p) for p in weights_b],
            out_specs=strip_spec),
        compiler_params=pltpu.CompilerParams(
            dimension_semantics=("parallel", "parallel"),
            vmem_limit_bytes=vmem_limit),
        cost_estimate=pl.CostEstimate(
            flops=int(2 * N * H * W * Cp * (Cp + 8)),
            transcendentals=int(N * n_strips * 2 * Cp),
            bytes_accessed=int(4 * N * H * W * Cp * 4
                               + sum(nbytes(a) for a in weights_b))),
    )(feat1, feat2, xp, usum, *weights_b)

    out = out[..., :C]
    return jnp.transpose(out, (0, 3, 1, 2))                  # back to NCHW


# ----------------------------------------------------------------------------
# synthetic parameters (BN folded, inference mode) + pure-JAX reference
# ----------------------------------------------------------------------------
def make_params(key, inplanes, planes, reduction=2):
    eps = 1e-5
    C = planes
    Cr = C // reduction
    keys = iter(jax.random.split(key, 40))

    def nrm(shape, scale=0.1):
        return scale * jax.random.normal(next(keys), shape, jnp.float32)

    def bn_fold(c):
        gamma = 1.0 + 0.1 * jax.random.normal(next(keys), (c,), jnp.float32)
        beta = 0.1 * jax.random.normal(next(keys), (c,), jnp.float32)
        mean = 0.1 * jax.random.normal(next(keys), (c,), jnp.float32)
        var = jnp.abs(jax.random.normal(next(keys), (c,), jnp.float32)) + 0.5
        s = gamma / jnp.sqrt(var + eps)
        return s, beta - mean * s

    P = {}
    # SKBlock.conv1: Conv2d(inplanes, planes, 1, bias=False) + BN
    w = nrm((C, inplanes))
    s, sh = bn_fold(C)
    P["w1"] = (w * s[:, None]).T
    P["b1"] = sh[None, :]

    # SKConv.conv1: Conv2d(C, C, 5, pad=2, bias=True) + BN
    w = nrm((C, C, 5, 5)); b = nrm((C,)); s, sh = bn_fold(C)
    wf = w * s[:, None, None, None]
    P["w5"] = jnp.transpose(wf, (2, 3, 1, 0)).reshape(25 * C, C)   # (kh,kw,in)->out
    P["b5"] = (b * s + sh)[None, :]

    # SKConv.conv2: Conv2d(C, C, 3, pad=1, bias=True) + BN
    w = nrm((C, C, 3, 3)); b = nrm((C,)); s, sh = bn_fold(C)
    wf = w * s[:, None, None, None]
    P["w3"] = jnp.transpose(wf, (2, 3, 1, 0)).reshape(9 * C, C)
    P["b3"] = (b * s + sh)[None, :]

    # SKConv.conv_se: Conv2d(C, C//r, 1, bias=True) + BN
    w = nrm((Cr, C)); b = nrm((Cr,)); s, sh = bn_fold(Cr)
    P["wse"] = (w * s[:, None]).T
    P["bse"] = (b * s + sh)[None, :]

    # SKConv.conv_ex1 / conv_ex2: Conv2d(C//r, C, 1, bias=True), no BN
    w = nrm((C, Cr)); b = nrm((C,))
    P["wex1"] = w.T; P["bex1"] = b[None, :]
    w = nrm((C, Cr)); b = nrm((C,))
    P["wex2"] = w.T; P["bex2"] = b[None, :]

    # BN after SKConv (tail of SKBlock.conv2)
    s, sh = bn_fold(C)
    P["ssk"] = s[None, :]; P["bsk"] = sh[None, :]

    # SKBlock.conv3: Conv2d(C, C, 1, bias=False) + BN
    w = nrm((C, C)); s, sh = bn_fold(C)
    P["w3b"] = (w * s[:, None]).T
    P["b3b"] = sh[None, :]
    return P


def ref_forward(x_nchw, P):
    """Pure-JAX f32 reference (lax.conv based) for validation."""
    x = jnp.transpose(x_nchw, (0, 2, 3, 1)).astype(jnp.float32)
    C = P["w1"].shape[1]
    dn = ("NHWC", "HWIO", "NHWC")
    h1 = jax.nn.relu(jnp.einsum("nhwc,cd->nhwd", x, P["w1"]) + P["b1"])
    w5 = P["w5"].reshape(5, 5, C, C)
    f1 = jax.nn.relu(lax.conv_general_dilated(h1, w5, (1, 1), "SAME",
                                              dimension_numbers=dn) + P["b5"])
    w3 = P["w3"].reshape(3, 3, C, C)
    f2 = jax.nn.relu(lax.conv_general_dilated(h1, w3, (1, 1), "SAME",
                                              dimension_numbers=dn) + P["b3"])
    U = f1 + f2
    S = jnp.mean(U, axis=(1, 2))
    Z = jax.nn.relu(S @ P["wse"] + P["bse"])
    a1 = Z @ P["wex1"] + P["bex1"]
    a2 = Z @ P["wex2"] + P["bex2"]
    att = jax.nn.softmax(jnp.stack([a1, a2], axis=1), axis=1)
    V = f1 * att[:, 0][:, None, None, :] + f2 * att[:, 1][:, None, None, :]
    sk = jax.nn.relu(V * P["ssk"] + P["bsk"])
    h3 = jnp.einsum("nhwc,cd->nhwd", sk, P["w3b"]) + P["b3b"]
    out = jax.nn.relu(h3 + x)
    return jnp.transpose(out, (0, 3, 1, 2))


if __name__ == "__main__":
    key = jax.random.PRNGKey(0)
    kx, kp = jax.random.split(key)
    # inplanes == planes so the residual add is valid (downsample=None)
    N, C, H, W = 2, 8, 16, 16
    x = jax.random.normal(kx, (N, C, H, W), jnp.float32)
    params = make_params(kp, inplanes=C, planes=C, reduction=2)

    out = jax.jit(skblock_pallas)(x, params)
    out = jax.block_until_ready(out)
    assert out.shape == (N, C, H, W)

    ref = ref_forward(x, params)
    err = float(jnp.max(jnp.abs(out - ref)))
    # bf16 MXU operands with f32 accumulation: loosened tolerance.  A real
    # bug (wrong tap alignment / mask / layout) would give errors O(0.3+).
    assert err < 1e-1, f"max abs err {err}"
    print("KERNEL_OK")
</pallas_src>

<mosaic_0001>
module attributes {stable_mosaic.version = 11 : i64} {
  func.func @_branch_kernel(%arg0: i32, %arg1: i32, %arg2: memref<1x20x16x128xf32, #tpu.memory_space<vmem>>, %arg3: memref<128x128xbf16, #tpu.memory_space<vmem>>, %arg4: memref<1x128xf32, #tpu.memory_space<vmem>>, %arg5: memref<3200x128xbf16, #tpu.memory_space<vmem>>, %arg6: memref<1x128xf32, #tpu.memory_space<vmem>>, %arg7: memref<1152x128xbf16, #tpu.memory_space<vmem>>, %arg8: memref<1x128xf32, #tpu.memory_space<vmem>>, %arg9: memref<1x16x16x128xf32, #tpu.memory_space<vmem>>, %arg10: memref<1x16x16x128xf32, #tpu.memory_space<vmem>>, %arg11: memref<1x1x128xf32, #tpu.memory_space<vmem>>) attributes {dimension_semantics = [#tpu.dimension_semantics<parallel>, #tpu.dimension_semantics<arbitrary>], iteration_bounds = array<i64: 2, 1>, scalar_prefetch = 0 : i64, scratch_operands = 0 : i64, tpu.core_type = #tpu.core_type<tc>, window_params = [{transform_indices = @transform_0, window_bounds = array<i64: 1, 20, 16, 128>}, {pipeline_mode = #tpu.pipeline_mode<synchronous>, transform_indices = @transform_1, window_bounds = array<i64: 128, 128>}, {pipeline_mode = #tpu.pipeline_mode<synchronous>, transform_indices = @transform_2, window_bounds = array<i64: 1, 128>}, {pipeline_mode = #tpu.pipeline_mode<synchronous>, transform_indices = @transform_3, window_bounds = array<i64: 3200, 128>}, {pipeline_mode = #tpu.pipeline_mode<synchronous>, transform_indices = @transform_4, window_bounds = array<i64: 1, 128>}, {pipeline_mode = #tpu.pipeline_mode<synchronous>, transform_indices = @transform_5, window_bounds = array<i64: 1152, 128>}, {pipeline_mode = #tpu.pipeline_mode<synchronous>, transform_indices = @transform_6, window_bounds = array<i64: 1, 128>}, {transform_indices = @transform_7, window_bounds = array<i64: 1, 16, 16, 128>}, {transform_indices = @transform_8, window_bounds = array<i64: 1, 16, 16, 128>}, {transform_indices = @transform_9, window_bounds = array<i64: 1, 1, 128>}]} {
    %c0 = arith.constant 0 : index
    %c0_0 = arith.constant 0 : index
    %c0_1 = arith.constant 0 : index
    %c0_2 = arith.constant 0 : index
    %0 = vector.load %arg2[%c0, %c0_0, %c0_1, %c0_2] : memref<1x20x16x128xf32, #tpu.memory_space<vmem>>, vector<1x20x16x128xf32>
    %1 = vector.shape_cast %0 : vector<1x20x16x128xf32> to vector<20x16x128xf32>
    %2 = vector.shape_cast %1 : vector<20x16x128xf32> to vector<320x128xf32>
    %3 = arith.truncf %2 : vector<320x128xf32> to vector<320x128xbf16>
    %c0_3 = arith.constant 0 : index
    %c0_4 = arith.constant 0 : index
    %4 = vector.load %arg3[%c0_3, %c0_4] : memref<128x128xbf16, #tpu.memory_space<vmem>>, vector<128x128xbf16>
    %cst = arith.constant dense<0.000000e+00> : vector<320x128xf32>
    %5 = tpu.matmul %3, %4, %cst {dimension_numbers = #tpu.dot_dimension_numbers<[1], [0], [0], [1], [0, 0, 1, 1], [], []>} : vector<320x128xbf16>, vector<128x128xbf16>, vector<320x128xf32> -> vector<320x128xf32>
    %c0_5 = arith.constant 0 : index
    %c0_6 = arith.constant 0 : index
    %6 = vector.load %arg4[%c0_5, %c0_6] : memref<1x128xf32, #tpu.memory_space<vmem>>, vector<1x128xf32>
    %7 = vector.broadcast %6 : vector<1x128xf32> to vector<320x128xf32>
    %8 = arith.addf %5, %7 : vector<320x128xf32>
    %cst_7 = arith.constant 0.000000e+00 : f32
    %9 = vector.broadcast %cst_7 : f32 to vector<320x128xf32>
    %10 = arith.maximumf %8, %9 : vector<320x128xf32>
    %11 = vector.shape_cast %10 : vector<320x128xf32> to vector<20x16x128xf32>
    %12 = tpu.iota {dimensions = array<i32: 0>} : vector<20x1x1xi32>
    %c16_i32 = arith.constant 16 : i32
    %13 = arith.muli %arg1, %c16_i32 : i32
    %14 = vector.broadcast %13 : i32 to vector<20x1x1xi32>
    %15 = arith.addi %12, %14 : vector<20x1x1xi32>
    %c2_i32 = arith.constant 2 : i32
    %16 = vector.broadcast %c2_i32 : i32 to vector<20x1x1xi32>
    %17 = arith.cmpi sge, %15, %16 : vector<20x1x1xi32>
    %c18_i32 = arith.constant 18 : i32
    %18 = vector.broadcast %c18_i32 : i32 to vector<20x1x1xi32>
    %19 = arith.cmpi slt, %15, %18 : vector<20x1x1xi32>
    %20 = arith.andi %17, %19 : vector<20x1x1xi1>
    %cst_8 = arith.constant 0.000000e+00 : f32
    %21 = vector.shape_cast %20 : vector<20x1x1xi1> to vector<20x1x1xi1>
    %22 = vector.broadcast %21 : vector<20x1x1xi1> to vector<20x16x128xi1>
    %23 = vector.broadcast %cst_8 : f32 to vector<20x16x128xf32>
    %24 = arith.select %22, %11, %23 : vector<20x16x128xi1>, vector<20x16x128xf32>
    %25 = arith.truncf %24 : vector<20x16x128xf32> to vector<20x16x128xbf16>
    %cst_9 = arith.constant 0.000000e+00 : bf16
    %26 = vector.broadcast %cst_9 : bf16 to vector<20x2x128xbf16>
    %27 = tpu.concatenate %26, %25, %26 in 1 : vector<20x2x128xbf16>, vector<20x16x128xbf16>, vector<20x2x128xbf16> -> vector<20x20x128xbf16>
    %cst_10 = arith.constant 0.000000e+00 : f32
    %28 = vector.broadcast %cst_10 : f32 to vector<256x128xf32>
    %cst_11 = arith.constant 0.000000e+00 : f32
    %29 = vector.broadcast %cst_11 : f32 to vector<256x128xf32>
    %30 = vector.extract_strided_slice %27 {offsets = [0, 0, 0], sizes = [16, 16, 128], strides = [1, 1, 1]} : vector<20x20x128xbf16> to vector<16x16x128xbf16>
    %31 = vector.shape_cast %30 : vector<16x16x128xbf16> to vector<256x128xbf16>
    %32 = vector.extract_strided_slice %27 {offsets = [0, 1, 0], sizes = [16, 16, 128], strides = [1, 1, 1]} : vector<20x20x128xbf16> to vector<16x16x128xbf16>
    %33 = vector.shape_cast %32 : vector<16x16x128xbf16> to vector<256x128xbf16>
    %34 = vector.extract_strided_slice %27 {offsets = [0, 2, 0], sizes = [16, 16, 128], strides = [1, 1, 1]} : vector<20x20x128xbf16> to vector<16x16x128xbf16>
    %35 = vector.shape_cast %34 : vector<16x16x128xbf16> to vector<256x128xbf16>
    %36 = vector.extract_strided_slice %27 {offsets = [0, 3, 0], sizes = [16, 16, 128], strides = [1, 1, 1]} : vector<20x20x128xbf16> to vector<16x16x128xbf16>
    %37 = vector.shape_cast %36 : vector<16x16x128xbf16> to vector<256x128xbf16>
    %38 = vector.extract_strided_slice %27 {offsets = [0, 4, 0], sizes = [16, 16, 128], strides = [1, 1, 1]} : vector<20x20x128xbf16> to vector<16x16x128xbf16>
    %39 = vector.shape_cast %38 : vector<16x16x128xbf16> to vector<256x128xbf16>
    %40 = tpu.concatenate %31, %33, %35, %37, %39 in 1 : vector<256x128xbf16>, vector<256x128xbf16>, vector<256x128xbf16>, vector<256x128xbf16>, vector<256x128xbf16> -> vector<256x640xbf16>
    %c0_12 = arith.constant 0 : index
    %c0_13 = arith.constant 0 : index
    %41 = vector.load %arg5[%c0_12, %c0_13] : memref<3200x128xbf16, #tpu.memory_space<vmem>>, vector<640x128xbf16>
    %cst_14 = arith.constant dense<0.000000e+00> : vector<256x128xf32>
    %42 = tpu.matmul %40, %41, %cst_14 {dimension_numbers = #tpu.dot_dimension_numbers<[1], [0], [0], [1], [0, 0, 1, 1], [], []>} : vector<256x640xbf16>, vector<640x128xbf16>, vector<256x128xf32> -> vector<256x128xf32>
    %43 = arith.addf %28, %42 : vector<256x128xf32>
    %44 = vector.extract_strided_slice %27 {offsets = [1, 0, 0], sizes = [16, 16, 128], strides = [1, 1, 1]} : vector<20x20x128xbf16> to vector<16x16x128xbf16>
    %45 = vector.shape_cast %44 : vector<16x16x128xbf16> to vector<256x128xbf16>
    %46 = vector.extract_strided_slice %27 {offsets = [1, 1, 0], sizes = [16, 16, 128], strides = [1, 1, 1]} : vector<20x20x128xbf16> to vector<16x16x128xbf16>
    %47 = vector.shape_cast %46 : vector<16x16x128xbf16> to vector<256x128xbf16>
    %48 = vector.extract_strided_slice %27 {offsets = [1, 2, 0], sizes = [16, 16, 128], strides = [1, 1, 1]} : vector<20x20x128xbf16> to vector<16x16x128xbf16>
    %49 = vector.shape_cast %48 : vector<16x16x128xbf16> to vector<256x128xbf16>
    %50 = vector.extract_strided_slice %27 {offsets = [1, 3, 0], sizes = [16, 16, 128], strides = [1, 1, 1]} : vector<20x20x128xbf16> to vector<16x16x128xbf16>
    %51 = vector.shape_cast %50 : vector<16x16x128xbf16> to vector<256x128xbf16>
    %52 = vector.extract_strided_slice %27 {offsets = [1, 4, 0], sizes = [16, 16, 128], strides = [1, 1, 1]} : vector<20x20x128xbf16> to vector<16x16x128xbf16>
    %53 = vector.shape_cast %52 : vector<16x16x128xbf16> to vector<256x128xbf16>
    %54 = tpu.concatenate %45, %47, %49, %51, %53 in 1 : vector<256x128xbf16>, vector<256x128xbf16>, vector<256x128xbf16>, vector<256x128xbf16>, vector<256x128xbf16> -> vector<256x640xbf16>
    %c640 = arith.constant 640 : index
    %c0_15 = arith.constant 0 : index
    %55 = vector.load %arg5[%c640, %c0_15] : memref<3200x128xbf16, #tpu.memory_space<vmem>>, vector<640x128xbf16>
    %cst_16 = arith.constant dense<0.000000e+00> : vector<256x128xf32>
    %56 = tpu.matmul %54, %55, %cst_16 {dimension_numbers = #tpu.dot_dimension_numbers<[1], [0], [0], [1], [0, 0, 1, 1], [], []>} : vector<256x640xbf16>, vector<640x128xbf16>, vector<256x128xf32> -> vector<256x128xf32>
    %57 = arith.addf %43, %56 : vector<256x128xf32>
    %58 = vector.extract_strided_slice %54 {offsets = [0, 128], sizes = [256, 384], strides = [1, 1]} : vector<256x640xbf16> to vector<256x384xbf16>
    %c0_17 = arith.constant 0 : index
    %c0_18 = arith.constant 0 : index
    %59 = vector.load %arg7[%c0_17, %c0_18] : memref<1152x128xbf16, #tpu.memory_space<vmem>>, vector<384x128xbf16>
    %cst_19 = arith.constant dense<0.000000e+00> : vector<256x128xf32>
    %60 = tpu.matmul %58, %59, %cst_19 {dimension_numbers = #tpu.dot_dimension_numbers<[1], [0], [0], [1], [0, 0, 1, 1], [], []>} : vector<256x384xbf16>, vector<384x128xbf16>, vector<256x128xf32> -> vector<256x128xf32>
    %61 = arith.addf %29, %60 : vector<256x128xf32>
    %62 = vector.extract_strided_slice %27 {offsets = [2, 0, 0], sizes = [16, 16, 128], strides = [1, 1, 1]} : vector<20x20x128xbf16> to vector<16x16x128xbf16>
    %63 = vector.shape_cast %62 : vector<16x16x128xbf16> to vector<256x128xbf16>
    %64 = vector.extract_strided_slice %27 {offsets = [2, 1, 0], sizes = [16, 16, 128], strides = [1, 1, 1]} : vector<20x20x128xbf16> to vector<16x16x128xbf16>
    %65 = vector.shape_cast %64 : vector<16x16x128xbf16> to vector<256x128xbf16>
    %66 = vector.extract_strided_slice %27 {offsets = [2, 2, 0], sizes = [16, 16, 128], strides = [1, 1, 1]} : vector<20x20x128xbf16> to vector<16x16x128xbf16>
    %67 = vector.shape_cast %66 : vector<16x16x128xbf16> to vector<256x128xbf16>
    %68 = vector.extract_strided_slice %27 {offsets = [2, 3, 0], sizes = [16, 16, 128], strides = [1, 1, 1]} : vector<20x20x128xbf16> to vector<16x16x128xbf16>
    %69 = vector.shape_cast %68 : vector<16x16x128xbf16> to vector<256x128xbf16>
    %70 = vector.extract_strided_slice %27 {offsets = [2, 4, 0], sizes = [16, 16, 128], strides = [1, 1, 1]} : vector<20x20x128xbf16> to vector<16x16x128xbf16>
    %71 = vector.shape_cast %70 : vector<16x16x128xbf16> to vector<256x128xbf16>
    %72 = tpu.concatenate %63, %65, %67, %69, %71 in 1 : vector<256x128xbf16>, vector<256x128xbf16>, vector<256x128xbf16>, vector<256x128xbf16>, vector<256x128xbf16> -> vector<256x640xbf16>
    %c1280 = arith.constant 1280 : index
    %c0_20 = arith.constant 0 : index
    %73 = vector.load %arg5[%c1280, %c0_20] : memref<3200x128xbf16, #tpu.memory_space<vmem>>, vector<640x128xbf16>
    %cst_21 = arith.constant dense<0.000000e+00> : vector<256x128xf32>
    %74 = tpu.matmul %72, %73, %cst_21 {dimension_numbers = #tpu.dot_dimension_numbers<[1], [0], [0], [1], [0, 0, 1, 1], [], []>} : vector<256x640xbf16>, vector<640x128xbf16>, vector<256x128xf32> -> vector<256x128xf32>
    %75 = arith.addf %57, %74 : vector<256x128xf32>
    %76 = vector.extract_strided_slice %72 {offsets = [0, 128], sizes = [256, 384], strides = [1, 1]} : vector<256x640xbf16> to vector<256x384xbf16>
    %c384 = arith.constant 384 : index
    %c0_22 = arith.constant 0 : index
    %77 = vector.load %arg7[%c384, %c0_22] : memref<1152x128xbf16, #tpu.memory_space<vmem>>, vector<384x128xbf16>
    %cst_23 = arith.constant dense<0.000000e+00> : vector<256x128xf32>
    %78 = tpu.matmul %76, %77, %cst_23 {dimension_numbers = #tpu.dot_dimension_numbers<[1], [0], [0], [1], [0, 0, 1, 1], [], []>} : vector<256x384xbf16>, vector<384x128xbf16>, vector<256x128xf32> -> vector<256x128xf32>
    %79 = arith.addf %61, %78 : vector<256x128xf32>
    %80 = vector.extract_strided_slice %27 {offsets = [3, 0, 0], sizes = [16, 16, 128], strides = [1, 1, 1]} : vector<20x20x128xbf16> to vector<16x16x128xbf16>
    %81 = vector.shape_cast %80 : vector<16x16x128xbf16> to vector<256x128xbf16>
    %82 = vector.extract_strided_slice %27 {offsets = [3, 1, 0], sizes = [16, 16, 128], strides = [1, 1, 1]} : vector<20x20x128xbf16> to vector<16x16x128xbf16>
    %83 = vector.shape_cast %82 : vector<16x16x128xbf16> to vector<256x128xbf16>
    %84 = vector.extract_strided_slice %27 {offsets = [3, 2, 0], sizes = [16, 16, 128], strides = [1, 1, 1]} : vector<20x20x128xbf16> to vector<16x16x128xbf16>
    %85 = vector.shape_cast %84 : vector<16x16x128xbf16> to vector<256x128xbf16>
    %86 = vector.extract_strided_slice %27 {offsets = [3, 3, 0], sizes = [16, 16, 128], strides = [1, 1, 1]} : vector<20x20x128xbf16> to vector<16x16x128xbf16>
    %87 = vector.shape_cast %86 : vector<16x16x128xbf16> to vector<256x128xbf16>
    %88 = vector.extract_strided_slice %27 {offsets = [3, 4, 0], sizes = [16, 16, 128], strides = [1, 1, 1]} : vector<20x20x128xbf16> to vector<16x16x128xbf16>
    %89 = vector.shape_cast %88 : vector<16x16x128xbf16> to vector<256x128xbf16>
    %90 = tpu.concatenate %81, %83, %85, %87, %89 in 1 : vector<256x128xbf16>, vector<256x128xbf16>, vector<256x128xbf16>, vector<256x128xbf16>, vector<256x128xbf16> -> vector<256x640xbf16>
    %c1920 = arith.constant 1920 : index
    %c0_24 = arith.constant 0 : index
    %91 = vector.load %arg5[%c1920, %c0_24] : memref<3200x128xbf16, #tpu.memory_space<vmem>>, vector<640x128xbf16>
    %cst_25 = arith.constant dense<0.000000e+00> : vector<256x128xf32>
    %92 = tpu.matmul %90, %91, %cst_25 {dimension_numbers = #tpu.dot_dimension_numbers<[1], [0], [0], [1], [0, 0, 1, 1], [], []>} : vector<256x640xbf16>, vector<640x128xbf16>, vector<256x128xf32> -> vector<256x128xf32>
    %93 = arith.addf %75, %92 : vector<256x128xf32>
    %94 = vector.extract_strided_slice %90 {offsets = [0, 128], sizes = [256, 384], strides = [1, 1]} : vector<256x640xbf16> to vector<256x384xbf16>
    %c768 = arith.constant 768 : index
    %c0_26 = arith.constant 0 : index
    %95 = vector.load %arg7[%c768, %c0_26] : memref<1152x128xbf16, #tpu.memory_space<vmem>>, vector<384x128xbf16>
    %cst_27 = arith.constant dense<0.000000e+00> : vector<256x128xf32>
    %96 = tpu.matmul %94, %95, %cst_27 {dimension_numbers = #tpu.dot_dimension_numbers<[1], [0], [0], [1], [0, 0, 1, 1], [], []>} : vector<256x384xbf16>, vector<384x128xbf16>, vector<256x128xf32> -> vector<256x128xf32>
    %97 = arith.addf %79, %96 : vector<256x128xf32>
    %98 = vector.extract_strided_slice %27 {offsets = [4, 0, 0], sizes = [16, 16, 128], strides = [1, 1, 1]} : vector<20x20x128xbf16> to vector<16x16x128xbf16>
    %99 = vector.shape_cast %98 : vector<16x16x128xbf16> to vector<256x128xbf16>
    %100 = vector.extract_strided_slice %27 {offsets = [4, 1, 0], sizes = [16, 16, 128], strides = [1, 1, 1]} : vector<20x20x128xbf16> to vector<16x16x128xbf16>
    %101 = vector.shape_cast %100 : vector<16x16x128xbf16> to vector<256x128xbf16>
    %102 = vector.extract_strided_slice %27 {offsets = [4, 2, 0], sizes = [16, 16, 128], strides = [1, 1, 1]} : vector<20x20x128xbf16> to vector<16x16x128xbf16>
    %103 = vector.shape_cast %102 : vector<16x16x128xbf16> to vector<256x128xbf16>
    %104 = vector.extract_strided_slice %27 {offsets = [4, 3, 0], sizes = [16, 16, 128], strides = [1, 1, 1]} : vector<20x20x128xbf16> to vector<16x16x128xbf16>
    %105 = vector.shape_cast %104 : vector<16x16x128xbf16> to vector<256x128xbf16>
    %106 = vector.extract_strided_slice %27 {offsets = [4, 4, 0], sizes = [16, 16, 128], strides = [1, 1, 1]} : vector<20x20x128xbf16> to vector<16x16x128xbf16>
    %107 = vector.shape_cast %106 : vector<16x16x128xbf16> to vector<256x128xbf16>
    %108 = tpu.concatenate %99, %101, %103, %105, %107 in 1 : vector<256x128xbf16>, vector<256x128xbf16>, vector<256x128xbf16>, vector<256x128xbf16>, vector<256x128xbf16> -> vector<256x640xbf16>
    %c2560 = arith.constant 2560 : index
    %c0_28 = arith.constant 0 : index
    %109 = vector.load %arg5[%c2560, %c0_28] : memref<3200x128xbf16, #tpu.memory_space<vmem>>, vector<640x128xbf16>
    %cst_29 = arith.constant dense<0.000000e+00> : vector<256x128xf32>
    %110 = tpu.matmul %108, %109, %cst_29 {dimension_numbers = #tpu.dot_dimension_numbers<[1], [0], [0], [1], [0, 0, 1, 1], [], []>} : vector<256x640xbf16>, vector<640x128xbf16>, vector<256x128xf32> -> vector<256x128xf32>
    %111 = arith.addf %93, %110 : vector<256x128xf32>
    %c0_30 = arith.constant 0 : index
    %c0_31 = arith.constant 0 : index
    %112 = vector.load %arg6[%c0_30, %c0_31] : memref<1x128xf32, #tpu.memory_space<vmem>>, vector<1x128xf32>
    %113 = vector.broadcast %112 : vector<1x128xf32> to vector<256x128xf32>
    %114 = arith.addf %111, %113 : vector<256x128xf32>
    %cst_32 = arith.constant 0.000000e+00 : f32
    %115 = vector.broadcast %cst_32 : f32 to vector<256x128xf32>
    %116 = arith.maximumf %114, %115 : vector<256x128xf32>
    %c0_33 = arith.constant 0 : index
    %c0_34 = arith.constant 0 : index
    %117 = vector.load %arg8[%c0_33, %c0_34] : memref<1x128xf32, #tpu.memory_space<vmem>>, vector<1x128xf32>
    %118 = vector.broadcast %117 : vector<1x128xf32> to vector<256x128xf32>
    %119 = arith.addf %97, %118 : vector<256x128xf32>
    %cst_35 = arith.constant 0.000000e+00 : f32
    %120 = vector.broadcast %cst_35 : f32 to vector<256x128xf32>
    %121 = arith.maximumf %119, %120 : vector<256x128xf32>
    %122 = vector.shape_cast %116 : vector<256x128xf32> to vector<1x16x16x128xf32>
    %c0_36 = arith.constant 0 : index
    %c0_37 = arith.constant 0 : index
    %c0_38 = arith.constant 0 : index
    %c0_39 = arith.constant 0 : index
    %123 = vector.load %arg9[%c0_36, %c0_37, %c0_38, %c0_39] : memref<1x16x16x128xf32, #tpu.memory_space<vmem>>, vector<1x16x16x128xf32>
    tpu.vector_store %arg9[%c0_36, %c0_37, %c0_38, %c0_39], %122 {strides = array<i32>} : memref<1x16x16x128xf32, #tpu.memory_space<vmem>>, vector<1x16x16x128xf32>,
    %124 = vector.shape_cast %121 : vector<256x128xf32> to vector<1x16x16x128xf32>
    %c0_40 = arith.constant 0 : index
    %c0_41 = arith.constant 0 : index
    %c0_42 = arith.constant 0 : index
    %c0_43 = arith.constant 0 : index
    %125 = vector.load %arg10[%c0_40, %c0_41, %c0_42, %c0_43] : memref<1x16x16x128xf32, #tpu.memory_space<vmem>>, vector<1x16x16x128xf32>
    tpu.vector_store %arg10[%c0_40, %c0_41, %c0_42, %c0_43], %124 {strides = array<i32>} : memref<1x16x16x128xf32, #tpu.memory_space<vmem>>, vector<1x16x16x128xf32>,
    %c0_i32 = arith.constant 0 : i32
    %126 = arith.cmpi eq, %arg1, %c0_i32 : i32
    %127 = arith.extui %126 : i1 to i32
    %c0_i32_44 = arith.constant 0 : i32
    %128 = arith.cmpi ne, %127, %c0_i32_44 : i32
    scf.if %128 {
      %cst_52 = arith.constant 0.000000e+00 : f32
      %136 = vector.broadcast %cst_52 : f32 to vector<1x1x128xf32>
      %c0_53 = arith.constant 0 : index
      %c0_54 = arith.constant 0 : index
      %c0_55 = arith.constant 0 : index
      %137 = vector.load %arg11[%c0_53, %c0_54, %c0_55] : memref<1x1x128xf32, #tpu.memory_space<vmem>>, vector<1x1x128xf32>
      tpu.vector_store %arg11[%c0_53, %c0_54, %c0_55], %136 {strides = array<i32>} : memref<1x1x128xf32, #tpu.memory_space<vmem>>, vector<1x1x128xf32>,
    } else {
    }
    %c0_45 = arith.constant 0 : index
    %c0_46 = arith.constant 0 : index
    %c0_47 = arith.constant 0 : index
    %129 = vector.load %arg11[%c0_45, %c0_46, %c0_47] : memref<1x1x128xf32, #tpu.memory_space<vmem>>, vector<1x1x128xf32>
    %130 = arith.addf %116, %121 : vector<256x128xf32>
    %cst_48 = arith.constant dense<0.000000e+00> : vector<128xf32>
    %131 = vector.multi_reduction <add>, %130, %cst_48 [0] : vector<256x128xf32> to vector<128xf32>
    %132 = vector.shape_cast %131 : vector<128xf32> to vector<1x128xf32>
    %133 = vector.shape_cast %132 : vector<1x128xf32> to vector<1x1x128xf32>
    %134 = arith.addf %129, %133 : vector<1x1x128xf32>
    %c0_49 = arith.constant 0 : index
    %c0_50 = arith.constant 0 : index
    %c0_51 = arith.constant 0 : index
    %135 = vector.load %arg11[%c0_49, %c0_50, %c0_51] : memref<1x1x128xf32, #tpu.memory_space<vmem>>, vector<1x1x128xf32>
    tpu.vector_store %arg11[%c0_49, %c0_50, %c0_51], %134 {strides = array<i32>} : memref<1x1x128xf32, #tpu.memory_space<vmem>>, vector<1x1x128xf32>,
    return
  }
  func.func @transform_0(%arg0: i32, %arg1: i32) -> (i32, i32, i32, i32) {
    %c1_i32 = arith.constant 1 : i32
    %0 = arith.muli %arg0, %c1_i32 : i32
    %1 = arith.addi %0, %arg1 : i32
    %c0_i32 = arith.constant 0 : i32
    %c0_i32_0 = arith.constant 0 : i32
    %c0_i32_1 = arith.constant 0 : i32
    %c0_i32_2 = arith.constant 0 : i32
    return %1, %c0_i32, %c0_i32_0, %c0_i32_1 : i32, i32, i32, i32
  }
  func.func @transform_1(%arg0: i32, %arg1: i32) -> (i32, i32) {
    %c0_i32 = arith.constant 0 : i32
    %c0_i32_0 = arith.constant 0 : i32
    %c0_i32_1 = arith.constant 0 : i32
    return %c0_i32, %c0_i32_0 : i32, i32
  }
  func.func @transform_2(%arg0: i32, %arg1: i32) -> (i32, i32) {
    %c0_i32 = arith.constant 0 : i32
    %c0_i32_0 = arith.constant 0 : i32
    %c0_i32_1 = arith.constant 0 : i32
    return %c0_i32, %c0_i32_0 : i32, i32
  }
  func.func @transform_3(%arg0: i32, %arg1: i32) -> (i32, i32) {
    %c0_i32 = arith.constant 0 : i32
    %c0_i32_0 = arith.constant 0 : i32
    %c0_i32_1 = arith.constant 0 : i32
    return %c0_i32, %c0_i32_0 : i32, i32
  }
  func.func @transform_4(%arg0: i32, %arg1: i32) -> (i32, i32) {
    %c0_i32 = arith.constant 0 : i32
    %c0_i32_0 = arith.constant 0 : i32
    %c0_i32_1 = arith.constant 0 : i32
    return %c0_i32, %c0_i32_0 : i32, i32
  }
  func.func @transform_5(%arg0: i32, %arg1: i32) -> (i32, i32) {
    %c0_i32 = arith.constant 0 : i32
    %c0_i32_0 = arith.constant 0 : i32
    %c0_i32_1 = arith.constant 0 : i32
    return %c0_i32, %c0_i32_0 : i32, i32
  }
  func.func @transform_6(%arg0: i32, %arg1: i32) -> (i32, i32) {
    %c0_i32 = arith.constant 0 : i32
    %c0_i32_0 = arith.constant 0 : i32
    %c0_i32_1 = arith.constant 0 : i32
    return %c0_i32, %c0_i32_0 : i32, i32
  }
  func.func @transform_7(%arg0: i32, %arg1: i32) -> (i32, i32, i32, i32) {
    %c0_i32 = arith.constant 0 : i32
    %c0_i32_0 = arith.constant 0 : i32
    %c0_i32_1 = arith.constant 0 : i32
    return %arg0, %arg1, %c0_i32, %c0_i32_0 : i32, i32, i32, i32
  }
  func.func @transform_8(%arg0: i32, %arg1: i32) -> (i32, i32, i32, i32) {
    %c0_i32 = arith.constant 0 : i32
    %c0_i32_0 = arith.constant 0 : i32
    %c0_i32_1 = arith.constant 0 : i32
    return %arg0, %arg1, %c0_i32, %c0_i32_0 : i32, i32, i32, i32
  }
  func.func @transform_9(%arg0: i32, %arg1: i32) -> (i32, i32, i32) {
    %c0_i32 = arith.constant 0 : i32
    %c0_i32_0 = arith.constant 0 : i32
    %c0_i32_1 = arith.constant 0 : i32
    return %arg0, %c0_i32, %c0_i32_0 : i32, i32, i32
  }
}

module attributes {stable_mosaic.version = 11 : i64} {
  func.func @_select_kernel(%arg0: i32, %arg1: i32, %arg2: memref<1x16x16x128xf32, #tpu.memory_space<vmem>>, %arg3: memref<1x16x16x128xf32, #tpu.memory_space<vmem>>, %arg4: memref<1x16x16x128xf32, #tpu.memory_space<vmem>>, %arg5: memref<1x1x128xf32, #tpu.memory_space<vmem>>, %arg6: memref<128x128xf32, #tpu.memory_space<vmem>>, %arg7: memref<1x128xf32, #tpu.memory_space<vmem>>, %arg8: memref<128x128xf32, #tpu.memory_space<vmem>>, %arg9: memref<1x128xf32, #tpu.memory_space<vmem>>, %arg10: memref<128x128xf32, #tpu.memory_space<vmem>>, %arg11: memref<1x128xf32, #tpu.memory_space<vmem>>, %arg12: memref<1x128xf32, #tpu.memory_space<vmem>>, %arg13: memref<1x128xf32, #tpu.memory_space<vmem>>, %arg14: memref<128x128xbf16, #tpu.memory_space<vmem>>, %arg15: memref<1x128xf32, #tpu.memory_space<vmem>>, %arg16: memref<1x16x16x128xf32, #tpu.memory_space<vmem>>) attributes {dimension_semantics = [#tpu.dimension_semantics<parallel>, #tpu.dimension_semantics<parallel>], iteration_bounds = array<i64: 2, 1>, scalar_prefetch = 0 : i64, scratch_operands = 0 : i64, tpu.core_type = #tpu.core_type<tc>, window_params = [{transform_indices = @transform_0, window_bounds = array<i64: 1, 16, 16, 128>}, {transform_indices = @transform_1, window_bounds = array<i64: 1, 16, 16, 128>}, {transform_indices = @transform_2, window_bounds = array<i64: 1, 16, 16, 128>}, {transform_indices = @transform_3, window_bounds = array<i64: 1, 1, 128>}, {pipeline_mode = #tpu.pipeline_mode<synchronous>, transform_indices = @transform_4, window_bounds = array<i64: 128, 128>}, {pipeline_mode = #tpu.pipeline_mode<synchronous>, transform_indices = @transform_5, window_bounds = array<i64: 1, 128>}, {pipeline_mode = #tpu.pipeline_mode<synchronous>, transform_indices = @transform_6, window_bounds = array<i64: 128, 128>}, {pipeline_mode = #tpu.pipeline_mode<synchronous>, transform_indices = @transform_7, window_bounds = array<i64: 1, 128>}, {pipeline_mode = #tpu.pipeline_mode<synchronous>, transform_indices = @transform_8, window_bounds = array<i64: 128, 128>}, {pipeline_mode = #tpu.pipeline_mode<synchronous>, transform_indices = @transform_9, window_bounds = array<i64: 1, 128>}, {pipeline_mode = #tpu.pipeline_mode<synchronous>, transform_indices = @transform_10, window_bounds = array<i64: 1, 128>}, {pipeline_mode = #tpu.pipeline_mode<synchronous>, transform_indices = @transform_11, window_bounds = array<i64: 1, 128>}, {pipeline_mode = #tpu.pipeline_mode<synchronous>, transform_indices = @transform_12, window_bounds = array<i64: 128, 128>}, {pipeline_mode = #tpu.pipeline_mode<synchronous>, transform_indices = @transform_13, window_bounds = array<i64: 1, 128>}, {transform_indices = @transform_14, window_bounds = array<i64: 1, 16, 16, 128>}]} {
    %c0 = arith.constant 0 : index
    %c0_0 = arith.constant 0 : index
    %c0_1 = arith.constant 0 : index
    %0 = vector.load %arg5[%c0, %c0_0, %c0_1] : memref<1x1x128xf32, #tpu.memory_space<vmem>>, vector<1x1x128xf32>
    %1 = vector.shape_cast %0 : vector<1x1x128xf32> to vector<1x128xf32>
    %cst = arith.constant 3.906250e-03 : f32
    %2 = vector.broadcast %cst : f32 to vector<1x128xf32>
    %3 = arith.mulf %1, %2 : vector<1x128xf32>
    %c0_2 = arith.constant 0 : index
    %c0_3 = arith.constant 0 : index
    %4 = vector.load %arg6[%c0_2, %c0_3] : memref<128x128xf32, #tpu.memory_space<vmem>>, vector<128x128xf32>
    %cst_4 = arith.constant dense<0.000000e+00> : vector<1x128xf32>
    %5 = tpu.matmul %3, %4, %cst_4 {dimension_numbers = #tpu.dot_dimension_numbers<[1], [0], [0], [1], [0, 0, 1, 1], [], []>} : vector<1x128xf32>, vector<128x128xf32>, vector<1x128xf32> -> vector<1x128xf32>
    %c0_5 = arith.constant 0 : index
    %c0_6 = arith.constant 0 : index
    %6 = vector.load %arg7[%c0_5, %c0_6] : memref<1x128xf32, #tpu.memory_space<vmem>>, vector<1x128xf32>
    %7 = arith.addf %5, %6 : vector<1x128xf32>
    %cst_7 = arith.constant 0.000000e+00 : f32
    %8 = vector.broadcast %cst_7 : f32 to vector<1x128xf32>
    %9 = arith.maximumf %7, %8 : vector<1x128xf32>
    %c0_8 = arith.constant 0 : index
    %c0_9 = arith.constant 0 : index
    %10 = vector.load %arg8[%c0_8, %c0_9] : memref<128x128xf32, #tpu.memory_space<vmem>>, vector<128x128xf32>
    %cst_10 = arith.constant dense<0.000000e+00> : vector<1x128xf32>
    %11 = tpu.matmul %9, %10, %cst_10 {dimension_numbers = #tpu.dot_dimension_numbers<[1], [0], [0], [1], [0, 0, 1, 1], [], []>} : vector<1x128xf32>, vector<128x128xf32>, vector<1x128xf32> -> vector<1x128xf32>
    %c0_11 = arith.constant 0 : index
    %c0_12 = arith.constant 0 : index
    %12 = vector.load %arg9[%c0_11, %c0_12] : memref<1x128xf32, #tpu.memory_space<vmem>>, vector<1x128xf32>
    %13 = arith.addf %11, %12 : vector<1x128xf32>
    %c0_13 = arith.constant 0 : index
    %c0_14 = arith.constant 0 : index
    %14 = vector.load %arg10[%c0_13, %c0_14] : memref<128x128xf32, #tpu.memory_space<vmem>>, vector<128x128xf32>
    %cst_15 = arith.constant dense<0.000000e+00> : vector<1x128xf32>
    %15 = tpu.matmul %9, %14, %cst_15 {dimension_numbers = #tpu.dot_dimension_numbers<[1], [0], [0], [1], [0, 0, 1, 1], [], []>} : vector<1x128xf32>, vector<128x128xf32>, vector<1x128xf32> -> vector<1x128xf32>
    %c0_16 = arith.constant 0 : index
    %c0_17 = arith.constant 0 : index
    %16 = vector.load %arg11[%c0_16, %c0_17] : memref<1x128xf32, #tpu.memory_space<vmem>>, vector<1x128xf32>
    %17 = arith.addf %15, %16 : vector<1x128xf32>
    %18 = arith.maximumf %13, %17 : vector<1x128xf32>
    %19 = arith.subf %13, %18 : vector<1x128xf32>
    %20 = math.exp %19 : vector<1x128xf32>
    %21 = arith.subf %17, %18 : vector<1x128xf32>
    %22 = math.exp %21 : vector<1x128xf32>
    %23 = arith.addf %20, %22 : vector<1x128xf32>
    %cst_18 = arith.constant 1.000000e+00 : f32
    %24 = vector.broadcast %cst_18 : f32 to vector<1x128xf32>
    %25 = arith.divf %24, %23 : vector<1x128xf32>
    %26 = arith.mulf %20, %25 : vector<1x128xf32>
    %27 = arith.mulf %22, %25 : vector<1x128xf32>
    %c0_19 = arith.constant 0 : index
    %c0_20 = arith.constant 0 : index
    %c0_21 = arith.constant 0 : index
    %c0_22 = arith.constant 0 : index
    %28 = vector.load %arg2[%c0_19, %c0_20, %c0_21, %c0_22] : memref<1x16x16x128xf32, #tpu.memory_space<vmem>>, vector<1x16x16x128xf32>
    %29 = vector.shape_cast %28 : vector<1x16x16x128xf32> to vector<16x16x128xf32>
    %30 = vector.shape_cast %29 : vector<16x16x128xf32> to vector<256x128xf32>
    %c0_23 = arith.constant 0 : index
    %c0_24 = arith.constant 0 : index
    %c0_25 = arith.constant 0 : index
    %c0_26 = arith.constant 0 : index
    %31 = vector.load %arg3[%c0_23, %c0_24, %c0_25, %c0_26] : memref<1x16x16x128xf32, #tpu.memory_space<vmem>>, vector<1x16x16x128xf32>
    %32 = vector.shape_cast %31 : vector<1x16x16x128xf32> to vector<16x16x128xf32>
    %33 = vector.shape_cast %32 : vector<16x16x128xf32> to vector<256x128xf32>
    %34 = vector.broadcast %26 : vector<1x128xf32> to vector<256x128xf32>
    %35 = arith.mulf %30, %34 : vector<256x128xf32>
    %36 = vector.broadcast %27 : vector<1x128xf32> to vector<256x128xf32>
    %37 = arith.mulf %33, %36 : vector<256x128xf32>
    %38 = arith.addf %35, %37 : vector<256x128xf32>
    %c0_27 = arith.constant 0 : index
    %c0_28 = arith.constant 0 : index
    %39 = vector.load %arg12[%c0_27, %c0_28] : memref<1x128xf32, #tpu.memory_space<vmem>>, vector<1x128xf32>
    %40 = vector.broadcast %39 : vector<1x128xf32> to vector<256x128xf32>
    %41 = arith.mulf %38, %40 : vector<256x128xf32>
    %c0_29 = arith.constant 0 : index
    %c0_30 = arith.constant 0 : index
    %42 = vector.load %arg13[%c0_29, %c0_30] : memref<1x128xf32, #tpu.memory_space<vmem>>, vector<1x128xf32>
    %43 = vector.broadcast %42 : vector<1x128xf32> to vector<256x128xf32>
    %44 = arith.addf %41, %43 : vector<256x128xf32>
    %cst_31 = arith.constant 0.000000e+00 : f32
    %45 = vector.broadcast %cst_31 : f32 to vector<256x128xf32>
    %46 = arith.maximumf %44, %45 : vector<256x128xf32>
    %47 = arith.truncf %46 : vector<256x128xf32> to vector<256x128xbf16>
    %c0_32 = arith.constant 0 : index
    %c0_33 = arith.constant 0 : index
    %48 = vector.load %arg14[%c0_32, %c0_33] : memref<128x128xbf16, #tpu.memory_space<vmem>>, vector<128x128xbf16>
    %cst_34 = arith.constant dense<0.000000e+00> : vector<256x128xf32>
    %49 = tpu.matmul %47, %48, %cst_34 {dimension_numbers = #tpu.dot_dimension_numbers<[1], [0], [0], [1], [0, 0, 1, 1], [], []>} : vector<256x128xbf16>, vector<128x128xbf16>, vector<256x128xf32> -> vector<256x128xf32>
    %c0_35 = arith.constant 0 : index
    %c0_36 = arith.constant 0 : index
    %50 = vector.load %arg15[%c0_35, %c0_36] : memref<1x128xf32, #tpu.memory_space<vmem>>, vector<1x128xf32>
    %51 = vector.broadcast %50 : vector<1x128xf32> to vector<256x128xf32>
    %52 = arith.addf %49, %51 : vector<256x128xf32>
    %c0_37 = arith.constant 0 : index
    %c0_38 = arith.constant 0 : index
    %c0_39 = arith.constant 0 : index
    %c0_40 = arith.constant 0 : index
    %53 = vector.load %arg4[%c0_37, %c0_38, %c0_39, %c0_40] : memref<1x16x16x128xf32, #tpu.memory_space<vmem>>, vector<1x16x16x128xf32>
    %54 = vector.shape_cast %53 : vector<1x16x16x128xf32> to vector<16x16x128xf32>
    %55 = vector.shape_cast %54 : vector<16x16x128xf32> to vector<256x128xf32>
    %56 = arith.addf %52, %55 : vector<256x128xf32>
    %cst_41 = arith.constant 0.000000e+00 : f32
    %57 = vector.broadcast %cst_41 : f32 to vector<256x128xf32>
    %58 = arith.maximumf %56, %57 : vector<256x128xf32>
    %59 = vector.shape_cast %58 : vector<256x128xf32> to vector<1x16x16x128xf32>
    %c0_42 = arith.constant 0 : index
    %c0_43 = arith.constant 0 : index
    %c0_44 = arith.constant 0 : index
    %c0_45 = arith.constant 0 : index
    %60 = vector.load %arg16[%c0_42, %c0_43, %c0_44, %c0_45] : memref<1x16x16x128xf32, #tpu.memory_space<vmem>>, vector<1x16x16x128xf32>
    tpu.vector_store %arg16[%c0_42, %c0_43, %c0_44, %c0_45], %59 {strides = array<i32>} : memref<1x16x16x128xf32, #tpu.memory_space<vmem>>, vector<1x16x16x128xf32>,
    return
  }
  func.func @transform_0(%arg0: i32, %arg1: i32) -> (i32, i32, i32, i32) {
    %c0_i32 = arith.constant 0 : i32
    %c0_i32_0 = arith.constant 0 : i32
    %c0_i32_1 = arith.constant 0 : i32
    return %arg0, %arg1, %c0_i32, %c0_i32_0 : i32, i32, i32, i32
  }
  func.func @transform_1(%arg0: i32, %arg1: i32) -> (i32, i32, i32, i32) {
    %c0_i32 = arith.constant 0 : i32
    %c0_i32_0 = arith.constant 0 : i32
    %c0_i32_1 = arith.constant 0 : i32
    return %arg0, %arg1, %c0_i32, %c0_i32_0 : i32, i32, i32, i32
  }
  func.func @transform_2(%arg0: i32, %arg1: i32) -> (i32, i32, i32, i32) {
    %c0_i32 = arith.constant 0 : i32
    %c0_i32_0 = arith.constant 0 : i32
    %c0_i32_1 = arith.constant 0 : i32
    return %arg0, %arg1, %c0_i32, %c0_i32_0 : i32, i32, i32, i32
  }
  func.func @transform_3(%arg0: i32, %arg1: i32) -> (i32, i32, i32) {
    %c0_i32 = arith.constant 0 : i32
    %c0_i32_0 = arith.constant 0 : i32
    %c0_i32_1 = arith.constant 0 : i32
    return %arg0, %c0_i32, %c0_i32_0 : i32, i32, i32
  }
  func.func @transform_4(%arg0: i32, %arg1: i32) -> (i32, i32) {
    %c0_i32 = arith.constant 0 : i32
    %c0_i32_0 = arith.constant 0 : i32
    %c0_i32_1 = arith.constant 0 : i32
    return %c0_i32, %c0_i32_0 : i32, i32
  }
  func.func @transform_5(%arg0: i32, %arg1: i32) -> (i32, i32) {
    %c0_i32 = arith.constant 0 : i32
    %c0_i32_0 = arith.constant 0 : i32
    %c0_i32_1 = arith.constant 0 : i32
    return %c0_i32, %c0_i32_0 : i32, i32
  }
  func.func @transform_6(%arg0: i32, %arg1: i32) -> (i32, i32) {
    %c0_i32 = arith.constant 0 : i32
    %c0_i32_0 = arith.constant 0 : i32
    %c0_i32_1 = arith.constant 0 : i32
    return %c0_i32, %c0_i32_0 : i32, i32
  }
  func.func @transform_7(%arg0: i32, %arg1: i32) -> (i32, i32) {
    %c0_i32 = arith.constant 0 : i32
    %c0_i32_0 = arith.constant 0 : i32
    %c0_i32_1 = arith.constant 0 : i32
    return %c0_i32, %c0_i32_0 : i32, i32
  }
  func.func @transform_8(%arg0: i32, %arg1: i32) -> (i32, i32) {
    %c0_i32 = arith.constant 0 : i32
    %c0_i32_0 = arith.constant 0 : i32
    %c0_i32_1 = arith.constant 0 : i32
    return %c0_i32, %c0_i32_0 : i32, i32
  }
  func.func @transform_9(%arg0: i32, %arg1: i32) -> (i32, i32) {
    %c0_i32 = arith.constant 0 : i32
    %c0_i32_0 = arith.constant 0 : i32
    %c0_i32_1 = arith.constant 0 : i32
    return %c0_i32, %c0_i32_0 : i32, i32
  }
  func.func @transform_10(%arg0: i32, %arg1: i32) -> (i32, i32) {
    %c0_i32 = arith.constant 0 : i32
    %c0_i32_0 = arith.constant 0 : i32
    %c0_i32_1 = arith.constant 0 : i32
    return %c0_i32, %c0_i32_0 : i32, i32
  }
  func.func @transform_11(%arg0: i32, %arg1: i32) -> (i32, i32) {
    %c0_i32 = arith.constant 0 : i32
    %c0_i32_0 = arith.constant 0 : i32
    %c0_i32_1 = arith.constant 0 : i32
    return %c0_i32, %c0_i32_0 : i32, i32
  }
  func.func @transform_12(%arg0: i32, %arg1: i32) -> (i32, i32) {
    %c0_i32 = arith.constant 0 : i32
    %c0_i32_0 = arith.constant 0 : i32
    %c0_i32_1 = arith.constant 0 : i32
    return %c0_i32, %c0_i32_0 : i32, i32
  }
  func.func @transform_13(%arg0: i32, %arg1: i32) -> (i32, i32) {
    %c0_i32 = arith.constant 0 : i32
    %c0_i32_0 = arith.constant 0 : i32
    %c0_i32_1 = arith.constant 0 : i32
    return %c0_i32, %c0_i32_0 : i32, i32
  }
  func.func @transform_14(%arg0: i32, %arg1: i32) -> (i32, i32, i32, i32) {
    %c0_i32 = arith.constant 0 : i32
    %c0_i32_0 = arith.constant 0 : i32
    %c0_i32_1 = arith.constant 0 : i32
    return %arg0, %arg1, %c0_i32, %c0_i32_0 : i32, i32, i32, i32
  }
}

</mosaic_0001>

<llo_original>
// kernel: skblock_pallas.3
$region0: #{skblock_pallas.3}
  #allocation0 [shape = 'u32[]', space=smem, size = 0x4, offset = 0x4, fixed_abs, tag = 'smem constant byte address 0x4 - core index']
  #allocation1 [shape = 'u32[144,128]{1,0:T(1,128)}', space=vmem, size = 0x12000, scoped, tag = 'internal scratch']
  %s0 = inlined_call_operand.vmem [shape: f32[2,16,16,128], index: 0, kind: input, shape index: {}]
  %s1 = inlined_call_operand.vmem [shape: f32[2,16,16,128], index: 1, kind: input, shape index: {}]
  %s2 = inlined_call_operand.vmem [shape: f32[2,16,16,128], index: 2, kind: input, shape index: {}]
  %s3 = inlined_call_operand.vmem [shape: f32[2,1,128], index: 3, kind: input, shape index: {}]
  %s4 = inlined_call_operand.vmem [shape: f32[128,128], index: 4, kind: input, shape index: {}]
  %s5 = inlined_call_operand.vmem [shape: f32[1,128], index: 5, kind: input, shape index: {}]
  %s6 = inlined_call_operand.vmem [shape: f32[128,128], index: 6, kind: input, shape index: {}]
  %s7 = inlined_call_operand.vmem [shape: f32[1,128], index: 7, kind: input, shape index: {}]
  %s8 = inlined_call_operand.vmem [shape: f32[128,128], index: 8, kind: input, shape index: {}]
  %s9 = inlined_call_operand.vmem [shape: f32[1,128], index: 9, kind: input, shape index: {}]
  %s10 = inlined_call_operand.vmem [shape: f32[1,128], index: 10, kind: input, shape index: {}]
  %s11 = inlined_call_operand.vmem [shape: f32[1,128], index: 11, kind: input, shape index: {}]
  %s12 = inlined_call_operand.vmem [shape: bf16[128,128], index: 12, kind: input, shape index: {}]
  %s13 = inlined_call_operand.vmem [shape: f32[1,128], index: 13, kind: input, shape index: {}]
  %s14 = inlined_call_operand.vmem [shape: f32[2,16,16,128], index: 14, kind: output, shape index: {}]
  %s15 = sld [smem:[#allocation0]]
  $region89: #{skblock_pallas.3} parent=0
    _
  %s17 = ssub.s32 1, %s15
  %s18 = scalar_select 0, %s17, %s15
  loop: start=0, step=1, limit=4
  $region2: #{skblock_pallas.3} parent=0 // loop_pre_header
    _
  $region3: #{skblock_pallas.3} parent=0 // loop_header
    %s20 = sphi 0, %s24
    %p21 = scmp.ge.s32.totalorder %s20, 4
    %s27 = sphi 0, %s39
    %s28 = sphi 0, %s35
    %s29 = sphi 0, %s27
    %s30 = sphi 0, %s28
    %s31 = sphi 0, %s29
    %s32 = sphi 0, %s30
    %s44 = sphi 0, %s46
    %s47 = sphi 0, %s44
    %s48 = sphi 0, %s47
    %s64 = sphi 0, %s48
    %s72 = sphi 0, %s74
    %s75 = sphi 0, %s72
    %s76 = sphi 0, %s75
    %s92 = sphi 0, %s76
    %s100 = sphi 0, %s102
    %s103 = sphi 0, %s100
    %s104 = sphi 0, %s103
    %s120 = sphi 0, %s104
    %s126 = sphi 0, %s128
    %s129 = sphi 0, %s126
    %s130 = sphi 0, %s129
    %s146 = sphi 0, %s130
    %s150 = sphi 0, %s150
    %s152 = sphi 0, %s150
    %s153 = sphi 0, %s152
    %s167 = sphi 0, %s153
    %s171 = sphi 0, %s171
    %s173 = sphi 0, %s171
    %s174 = sphi 0, %s173
    %s188 = sphi 0, %s174
    %s192 = sphi 0, %s192
    %s194 = sphi 0, %s192
    %s195 = sphi 0, %s194
    %s209 = sphi 0, %s195
    %s213 = sphi 0, %s213
    %s215 = sphi 0, %s213
    %s216 = sphi 0, %s215
    %s230 = sphi 0, %s216
    %s234 = sphi 0, %s234
    %s236 = sphi 0, %s234
    %s237 = sphi 0, %s236
    %s251 = sphi 0, %s237
    %s255 = sphi 0, %s255
    %s257 = sphi 0, %s255
    %s258 = sphi 0, %s257
    %s272 = sphi 0, %s258
    %s276 = sphi 0, %s276
    %s278 = sphi 0, %s276
    %s279 = sphi 0, %s278
    %s293 = sphi 0, %s279
    %s297 = sphi 0, %s297
    %s299 = sphi 0, %s297
    %s300 = sphi 0, %s299
    %s314 = sphi 0, %s300
    %s318 = sphi 0, %s318
    %s320 = sphi 0, %s318
    %s321 = sphi 0, %s320
    %s335 = sphi 0, %s321
    %s339 = sphi 0, %s339
    %s341 = sphi 0, %s339
    %s342 = sphi 0, %s341
    %s356 = sphi 0, %s342
    %s364 = sphi 0, %s366
    %s367 = sphi 0, %s364
    %s368 = sphi 0, %s367
    %s384 = sphi 0, %s368
  $region4: #{skblock_pallas.3} parent=0 // loop_header_branch
    %23 = sbr.rel (%p21) target = $region8
  $region5: #{skblock_pallas.3} parent=0 // loop_body
    %s25 = ssub.s32 %s20, 1
    %s26 = ssub.s32 %s20, 2
    %s33 = sadd.s32 1, %s28
    %p34 = scmp.ge.s32.totalorder %s33, 1
    %s35 = scalar_select %p34, 0, %s33
    %s36 = sadd.s32 1, %s27
    %s37 = scalar_select %p34, %s36, %s27
    %p38 = scmp.ge.s32.totalorder %s37, 2
    %s39 = scalar_select %p38, 0, %s37
    %s40 = ssub.s32 %s27, %s39
    %s41 = ssub.s32 %s28, %s35
    %s42 = sor.u32 %s40, %s41
    %p43 = scmp.eq.s32.totalorder %s42, 0
    %s45 = sadd.s32 %s44, 1
    %s46 = scalar_select %p43, %s44, %s45
    %p49 = pneg %p43
    %p50 = scmp.eq.s32.totalorder %s20, 1
    %p51 = por %p49, %p50
    %p52 = scmp.ne.s32.totalorder %s44, %s47
    %p53 = scmp.eq.s32.totalorder %s20, 0
    %p54 = por %p52, %p53
    %p55 = scmp.ne.s32.totalorder %s44, %s47
    %p56 = scmp.eq.s32.totalorder %s25, 1
    %p57 = por %p55, %p56
    %p58 = scmp.ne.s32.totalorder %s47, %s48
    %p59 = scmp.eq.s32.totalorder %s25, 0
    %p60 = por %p58, %p59
    %p61 = scmp.ne.s32.totalorder %s47, %s48
    %p62 = scmp.eq.s32.totalorder %s26, 1
    %p63 = por %p61, %p62
    %p65 = scmp.ne.s32.totalorder %s48, %s64
    %p66 = scmp.eq.s32.totalorder %s26, 0
    %p67 = por %p65, %p66
    %s68 = ssub.s32 %s27, %s39
    %s69 = ssub.s32 %s28, %s35
    %s70 = sor.u32 %s68, %s69
    %p71 = scmp.eq.s32.totalorder %s70, 0
    %s73 = sadd.s32 %s72, 1
    %s74 = scalar_select %p71, %s72, %s73
    %p77 = pneg %p71
    %p78 = scmp.eq.s32.totalorder %s20, 1
    %p79 = por %p77, %p78
    %p80 = scmp.ne.s32.totalorder %s72, %s75
    %p81 = scmp.eq.s32.totalorder %s20, 0
    %p82 = por %p80, %p81
    %p83 = scmp.ne.s32.totalorder %s72, %s75
    %p84 = scmp.eq.s32.totalorder %s25, 1
    %p85 = por %p83, %p84
    %p86 = scmp.ne.s32.totalorder %s75, %s76
    %p87 = scmp.eq.s32.totalorder %s25, 0
    %p88 = por %p86, %p87
    %p89 = scmp.ne.s32.totalorder %s75, %s76
    %p90 = scmp.eq.s32.totalorder %s26, 1
    %p91 = por %p89, %p90
    %p93 = scmp.ne.s32.totalorder %s76, %s92
    %p94 = scmp.eq.s32.totalorder %s26, 0
    %p95 = por %p93, %p94
    %s96 = ssub.s32 %s27, %s39
    %s97 = ssub.s32 %s28, %s35
    %s98 = sor.u32 %s96, %s97
    %p99 = scmp.eq.s32.totalorder %s98, 0
    %s101 = sadd.s32 %s100, 1
    %s102 = scalar_select %p99, %s100, %s101
    %p105 = pneg %p99
    %p106 = scmp.eq.s32.totalorder %s20, 1
    %p107 = por %p105, %p106
    %p108 = scmp.ne.s32.totalorder %s100, %s103
    %p109 = scmp.eq.s32.totalorder %s20, 0
    %p110 = por %p108, %p109
    %p111 = scmp.ne.s32.totalorder %s100, %s103
    %p112 = scmp.eq.s32.totalorder %s25, 1
    %p113 = por %p111, %p112
    %p114 = scmp.ne.s32.totalorder %s103, %s104
    %p115 = scmp.eq.s32.totalorder %s25, 0
    %p116 = por %p114, %p115
    %p117 = scmp.ne.s32.totalorder %s103, %s104
    %p118 = scmp.eq.s32.totalorder %s26, 1
    %p119 = por %p117, %p118
    %p121 = scmp.ne.s32.totalorder %s104, %s120
    %p122 = scmp.eq.s32.totalorder %s26, 0
    %p123 = por %p121, %p122
    %s124 = ssub.s32 %s27, %s39
    %p125 = scmp.eq.s32.totalorder %s124, 0
    %s127 = sadd.s32 %s126, 1
    %s128 = scalar_select %p125, %s126, %s127
    %p131 = pneg %p125
    %p132 = scmp.eq.s32.totalorder %s20, 1
    %p133 = por %p131, %p132
    %p134 = scmp.ne.s32.totalorder %s126, %s129
    %p135 = scmp.eq.s32.totalorder %s20, 0
    %p136 = por %p134, %p135
    %p137 = scmp.ne.s32.totalorder %s126, %s129
    %p138 = scmp.eq.s32.totalorder %s25, 1
    %p139 = por %p137, %p138
    %p140 = scmp.ne.s32.totalorder %s129, %s130
    %p141 = scmp.eq.s32.totalorder %s25, 0
    %p142 = por %p140, %p141
    %p143 = scmp.ne.s32.totalorder %s129, %s130
    %p144 = scmp.eq.s32.totalorder %s26, 1
    %p145 = por %p143, %p144
    %p147 = scmp.ne.s32.totalorder %s130, %s146
    %p148 = scmp.eq.s32.totalorder %s26, 0
    %p149 = por %p147, %p148
    %s151 = sadd.s32 %s150, 1
    %p154 = scmp.eq.s32.totalorder %s20, 1
    %p155 = scmp.ne.s32.totalorder %s150, %s152
    %p156 = scmp.eq.s32.totalorder %s20, 0
    %p157 = por %p155, %p156
    %p158 = scmp.ne.s32.totalorder %s150, %s152
    %p159 = scmp.eq.s32.totalorder %s25, 1
    %p160 = por %p158, %p159
    %p161 = scmp.ne.s32.totalorder %s152, %s153
    %p162 = scmp.eq.s32.totalorder %s25, 0
    %p163 = por %p161, %p162
    %p164 = scmp.ne.s32.totalorder %s152, %s153
    %p165 = scmp.eq.s32.totalorder %s26, 1
    %p166 = por %p164, %p165
    %p168 = scmp.ne.s32.totalorder %s153, %s167
    %p169 = scmp.eq.s32.totalorder %s26, 0
    %p170 = por %p168, %p169
    %s172 = sadd.s32 %s171, 1
    %p175 = scmp.eq.s32.totalorder %s20, 1
    %p176 = scmp.ne.s32.totalorder %s171, %s173
    %p177 = scmp.eq.s32.totalorder %s20, 0
    %p178 = por %p176, %p177
    %p179 = scmp.ne.s32.totalorder %s171, %s173
    %p180 = scmp.eq.s32.totalorder %s25, 1
    %p181 = por %p179, %p180
    %p182 = scmp.ne.s32.totalorder %s173, %s174
    %p183 = scmp.eq.s32.totalorder %s25, 0
    %p184 = por %p182, %p183
    %p185 = scmp.ne.s32.totalorder %s173, %s174
    %p186 = scmp.eq.s32.totalorder %s26, 1
    %p187 = por %p185, %p186
    %p189 = scmp.ne.s32.totalorder %s174, %s188
    %p190 = scmp.eq.s32.totalorder %s26, 0
    %p191 = por %p189, %p190
    %s193 = sadd.s32 %s192, 1
    %p196 = scmp.eq.s32.totalorder %s20, 1
    %p197 = scmp.ne.s32.totalorder %s192, %s194
    %p198 = scmp.eq.s32.totalorder %s20, 0
    %p199 = por %p197, %p198
    %p200 = scmp.ne.s32.totalorder %s192, %s194
    %p201 = scmp.eq.s32.totalorder %s25, 1
    %p202 = por %p200, %p201
    %p203 = scmp.ne.s32.totalorder %s194, %s195
    %p204 = scmp.eq.s32.totalorder %s25, 0
    %p205 = por %p203, %p204
    %p206 = scmp.ne.s32.totalorder %s194, %s195
    %p207 = scmp.eq.s32.totalorder %s26, 1
    %p208 = por %p206, %p207
    %p210 = scmp.ne.s32.totalorder %s195, %s209
    %p211 = scmp.eq.s32.totalorder %s26, 0
    %p212 = por %p210, %p211
    %s214 = sadd.s32 %s213, 1
    %p217 = scmp.eq.s32.totalorder %s20, 1
    %p218 = scmp.ne.s32.totalorder %s213, %s215
    %p219 = scmp.eq.s32.totalorder %s20, 0
    %p220 = por %p218, %p219
    %p221 = scmp.ne.s32.totalorder %s213, %s215
    %p222 = scmp.eq.s32.totalorder %s25, 1
    %p223 = por %p221, %p222
    %p224 = scmp.ne.s32.totalorder %s215, %s216
    %p225 = scmp.eq.s32.totalorder %s25, 0
    %p226 = por %p224, %p225
    %p227 = scmp.ne.s32.totalorder %s215, %s216
    %p228 = scmp.eq.s32.totalorder %s26, 1
    %p229 = por %p227, %p228
    %p231 = scmp.ne.s32.totalorder %s216, %s230
    %p232 = scmp.eq.s32.totalorder %s26, 0
    %p233 = por %p231, %p232
    %s235 = sadd.s32 %s234, 1
    %p238 = scmp.eq.s32.totalorder %s20, 1
    %p239 = scmp.ne.s32.totalorder %s234, %s236
    %p240 = scmp.eq.s32.totalorder %s20, 0
    %p241 = por %p239, %p240
    %p242 = scmp.ne.s32.totalorder %s234, %s236
    %p243 = scmp.eq.s32.totalorder %s25, 1
    %p244 = por %p242, %p243
    %p245 = scmp.ne.s32.totalorder %s236, %s237
    %p246 = scmp.eq.s32.totalorder %s25, 0
    %p247 = por %p245, %p246
    %p248 = scmp.ne.s32.totalorder %s236, %s237
    %p249 = scmp.eq.s32.totalorder %s26, 1
    %p250 = por %p248, %p249
    %p252 = scmp.ne.s32.totalorder %s237, %s251
    %p253 = scmp.eq.s32.totalorder %s26, 0
    %p254 = por %p252, %p253
    %s256 = sadd.s32 %s255, 1
    %p259 = scmp.eq.s32.totalorder %s20, 1
    %p260 = scmp.ne.s32.totalorder %s255, %s257
    %p261 = scmp.eq.s32.totalorder %s20, 0
    %p262 = por %p260, %p261
    %p263 = scmp.ne.s32.totalorder %s255, %s257
    %p264 = scmp.eq.s32.totalorder %s25, 1
    %p265 = por %p263, %p264
    %p266 = scmp.ne.s32.totalorder %s257, %s258
    %p267 = scmp.eq.s32.totalorder %s25, 0
    %p268 = por %p266, %p267
    %p269 = scmp.ne.s32.totalorder %s257, %s258
    %p270 = scmp.eq.s32.totalorder %s26, 1
    %p271 = por %p269, %p270
    %p273 = scmp.ne.s32.totalorder %s258, %s272
    %p274 = scmp.eq.s32.totalorder %s26, 0
    %p275 = por %p273, %p274
    %s277 = sadd.s32 %s276, 1
    %p280 = scmp.eq.s32.totalorder %s20, 1
    %p281 = scmp.ne.s32.totalorder %s276, %s278
    %p282 = scmp.eq.s32.totalorder %s20, 0
    %p283 = por %p281, %p282
    %p284 = scmp.ne.s32.totalorder %s276, %s278
    %p285 = scmp.eq.s32.totalorder %s25, 1
    %p286 = por %p284, %p285
    %p287 = scmp.ne.s32.totalorder %s278, %s279
    %p288 = scmp.eq.s32.totalorder %s25, 0
    %p289 = por %p287, %p288
    %p290 = scmp.ne.s32.totalorder %s278, %s279
    %p291 = scmp.eq.s32.totalorder %s26, 1
    %p292 = por %p290, %p291
    %p294 = scmp.ne.s32.totalorder %s279, %s293
    %p295 = scmp.eq.s32.totalorder %s26, 0
    %p296 = por %p294, %p295
    %s298 = sadd.s32 %s297, 1
    %p301 = scmp.eq.s32.totalorder %s20, 1
    %p302 = scmp.ne.s32.totalorder %s297, %s299
    %p303 = scmp.eq.s32.totalorder %s20, 0
    %p304 = por %p302, %p303
    %p305 = scmp.ne.s32.totalorder %s297, %s299
    %p306 = scmp.eq.s32.totalorder %s25, 1
    %p307 = por %p305, %p306
    %p308 = scmp.ne.s32.totalorder %s299, %s300
    %p309 = scmp.eq.s32.totalorder %s25, 0
    %p310 = por %p308, %p309
    %p311 = scmp.ne.s32.totalorder %s299, %s300
    %p312 = scmp.eq.s32.totalorder %s26, 1
    %p313 = por %p311, %p312
    %p315 = scmp.ne.s32.totalorder %s300, %s314
    %p316 = scmp.eq.s32.totalorder %s26, 0
    %p317 = por %p315, %p316
    %s319 = sadd.s32 %s318, 1
    %p322 = scmp.eq.s32.totalorder %s20, 1
    %p323 = scmp.ne.s32.totalorder %s318, %s320
    %p324 = scmp.eq.s32.totalorder %s20, 0
    %p325 = por %p323, %p324
    %p326 = scmp.ne.s32.totalorder %s318, %s320
    %p327 = scmp.eq.s32.totalorder %s25, 1
    %p328 = por %p326, %p327
    %p329 = scmp.ne.s32.totalorder %s320, %s321
    %p330 = scmp.eq.s32.totalorder %s25, 0
    %p331 = por %p329, %p330
    %p332 = scmp.ne.s32.totalorder %s320, %s321
    %p333 = scmp.eq.s32.totalorder %s26, 1
    %p334 = por %p332, %p333
    %p336 = scmp.ne.s32.totalorder %s321, %s335
    %p337 = scmp.eq.s32.totalorder %s26, 0
    %p338 = por %p336, %p337
    %s340 = sadd.s32 %s339, 1
    %p343 = scmp.eq.s32.totalorder %s20, 1
    %p344 = scmp.ne.s32.totalorder %s339, %s341
    %p345 = scmp.eq.s32.totalorder %s20, 0
    %p346 = por %p344, %p345
    %p347 = scmp.ne.s32.totalorder %s339, %s341
    %p348 = scmp.eq.s32.totalorder %s25, 1
    %p349 = por %p347, %p348
    %p350 = scmp.ne.s32.totalorder %s341, %s342
    %p351 = scmp.eq.s32.totalorder %s25, 0
    %p352 = por %p350, %p351
    %p353 = scmp.ne.s32.totalorder %s341, %s342
    %p354 = scmp.eq.s32.totalorder %s26, 1
    %p355 = por %p353, %p354
    %p357 = scmp.ne.s32.totalorder %s342, %s356
    %p358 = scmp.eq.s32.totalorder %s26, 0
    %p359 = por %p357, %p358
    %s360 = ssub.s32 %s27, %s39
    %s361 = ssub.s32 %s28, %s35
    %s362 = sor.u32 %s360, %s361
    %p363 = scmp.eq.s32.totalorder %s362, 0
    %s365 = sadd.s32 %s364, 1
    %s366 = scalar_select %p363, %s364, %s365
    %p369 = pneg %p363
    %p370 = scmp.eq.s32.totalorder %s20, 1
    %p371 = por %p369, %p370
    %p372 = scmp.ne.s32.totalorder %s364, %s367
    %p373 = scmp.eq.s32.totalorder %s20, 0
    %p374 = por %p372, %p373
    %p375 = scmp.ne.s32.totalorder %s364, %s367
    %p376 = scmp.eq.s32.totalorder %s25, 1
    %p377 = por %p375, %p376
    %p378 = scmp.ne.s32.totalorder %s367, %s368
    %p379 = scmp.eq.s32.totalorder %s25, 0
    %p380 = por %p378, %p379
    %p381 = scmp.ne.s32.totalorder %s367, %s368
    %p382 = scmp.eq.s32.totalorder %s26, 1
    %p383 = por %p381, %p382
    %p385 = scmp.ne.s32.totalorder %s368, %s384
    %p386 = scmp.eq.s32.totalorder %s26, 0
    %p387 = por %p385, %p386
    %p388 = scmp.le.s32.totalorder 1, %s20
    %p389 = scmp.lt.s32.totalorder %s20, 3
    %p390 = pnand %p388, %p389
    %p391 = pneg %p390
    // Predicated region
    $region9: #{skblock_pallas.3} parent=5 // pred_check
      _
    $region10: #{skblock_pallas.3} parent=5 // pred_check_branch
      %393 = sbr.rel (%p390) target = $region12
    $region11: #{skblock_pallas.3} parent=5 // pred_region
      %s394 = ssub.s32 %s20, 1
      // Predicated region
      $region13: #{skblock_pallas.3} parent=11 // pred_check
        %p395 = pneg %p163
      $region14: #{skblock_pallas.3} parent=11 // pred_check_branch
        %397 = sbr.rel (%p395) target = $region16
      $region15: #{skblock_pallas.3} parent=11 // pred_region
        _
      $region16: #{skblock_pallas.3} parent=11 // pred_fallthru
        _
      // Predicated region
      $region17: #{skblock_pallas.3} parent=11 // pred_check
        %p398 = pneg %p184
      $region18: #{skblock_pallas.3} parent=11 // pred_check_branch
        %400 = sbr.rel (%p398) target = $region20
      $region19: #{skblock_pallas.3} parent=11 // pred_region
        _
      $region20: #{skblock_pallas.3} parent=11 // pred_fallthru
        _
      // Predicated region
      $region21: #{skblock_pallas.3} parent=11 // pred_check
        %p401 = pneg %p205
      $region22: #{skblock_pallas.3} parent=11 // pred_check_branch
        %403 = sbr.rel (%p401) target = $region24
      $region23: #{skblock_pallas.3} parent=11 // pred_region
        _
      $region24: #{skblock_pallas.3} parent=11 // pred_fallthru
        _
      // Predicated region
      $region25: #{skblock_pallas.3} parent=11 // pred_check
        %p404 = pneg %p226
      $region26: #{skblock_pallas.3} parent=11 // pred_check_branch
        %406 = sbr.rel (%p404) target = $region28
      $region27: #{skblock_pallas.3} parent=11 // pred_region
        _
      $region28: #{skblock_pallas.3} parent=11 // pred_fallthru
        _
      // Predicated region
      $region29: #{skblock_pallas.3} parent=11 // pred_check
        %p407 = pneg %p247
      $region30: #{skblock_pallas.3} parent=11 // pred_check_branch
        %409 = sbr.rel (%p407) target = $region32
      $region31: #{skblock_pallas.3} parent=11 // pred_region
        _
      $region32: #{skblock_pallas.3} parent=11 // pred_fallthru
        _
      // Predicated region
      $region33: #{skblock_pallas.3} parent=11 // pred_check
        %p410 = pneg %p268
      $region34: #{skblock_pallas.3} parent=11 // pred_check_branch
        %412 = sbr.rel (%p410) target = $region36
      $region35: #{skblock_pallas.3} parent=11 // pred_region
        _
      $region36: #{skblock_pallas.3} parent=11 // pred_fallthru
        _
      // Predicated region
      $region37: #{skblock_pallas.3} parent=11 // pred_check
        %p413 = pneg %p289
      $region38: #{skblock_pallas.3} parent=11 // pred_check_branch
        %415 = sbr.rel (%p413) target = $region40
      $region39: #{skblock_pallas.3} parent=11 // pred_region
        _
      $region40: #{skblock_pallas.3} parent=11 // pred_fallthru
        _
      // Predicated region
      $region41: #{skblock_pallas.3} parent=11 // pred_check
        %p416 = pneg %p310
      $region42: #{skblock_pallas.3} parent=11 // pred_check_branch
        %418 = sbr.rel (%p416) target = $region44
      $region43: #{skblock_pallas.3} parent=11 // pred_region
        _
      $region44: #{skblock_pallas.3} parent=11 // pred_fallthru
        _
      // Predicated region
      $region45: #{skblock_pallas.3} parent=11 // pred_check
        %p419 = pneg %p331
      $region46: #{skblock_pallas.3} parent=11 // pred_check_branch
        %421 = sbr.rel (%p419) target = $region48
      $region47: #{skblock_pallas.3} parent=11 // pred_region
        _
      $region48: #{skblock_pallas.3} parent=11 // pred_fallthru
        _
      // Predicated region
      $region49: #{skblock_pallas.3} parent=11 // pred_check
        %p422 = pneg %p352
      $region50: #{skblock_pallas.3} parent=11 // pred_check_branch
        %424 = sbr.rel (%p422) target = $region52
      $region51: #{skblock_pallas.3} parent=11 // pred_region
        _
      $region52: #{skblock_pallas.3} parent=11 // pred_fallthru
        _
    $region12: #{skblock_pallas.3} parent=5 // pred_fallthru
      _
    %p425 = scmp.lt.s32.totalorder %s20, 2
    // Predicated region
    $region53: #{skblock_pallas.3} parent=5 // pred_check
      %p426 = pneg %p425
    $region54: #{skblock_pallas.3} parent=5 // pred_check_branch
      %428 = sbr.rel (%p426) target = $region56
    $region55: #{skblock_pallas.3} parent=5 // pred_region
      // Predicated region
      $region57: #{skblock_pallas.3} parent=55 // pred_check
        %p429 = pneg %p54
      $region58: #{skblock_pallas.3} parent=55 // pred_check_branch
        %431 = sbr.rel (%p429) target = $region60
      $region59: #{skblock_pallas.3} parent=55 // pred_region
        %s432 = smul.u32 16, %s28
        %p433 = scmp.lt.s32.totalorder %s27, 1
        %s434 = scalar_select %p433, %s27, 1
        %p435 = scmp.lt.s32.totalorder %s432, 15
        %s436 = scalar_select %p435, %s432, 15
        %s437 = smul.addr %s436, 2
        %s438 = smul.addr %s434, 32
        %s439 = sadd.s32 %s437, %s438
        %s440 = smul.addr %s439, 8
        %s441 = scalar_lea.vmem %s0, %s440
        %s442 = smul.u32 16, %s28
      $region60: #{skblock_pallas.3} parent=55 // pred_fallthru
        _
      // Predicated region
      $region61: #{skblock_pallas.3} parent=55 // pred_check
        %p443 = pneg %p82
      $region62: #{skblock_pallas.3} parent=55 // pred_check_branch
        %445 = sbr.rel (%p443) target = $region64
      $region63: #{skblock_pallas.3} parent=55 // pred_region
        %s446 = smul.u32 16, %s28
        %p447 = scmp.lt.s32.totalorder %s27, 1
        %s448 = scalar_select %p447, %s27, 1
        %p449 = scmp.lt.s32.totalorder %s446, 15
        %s450 = scalar_select %p449, %s446, 15
        %s451 = smul.addr %s450, 2
        %s452 = smul.addr %s448, 32
        %s453 = sadd.s32 %s451, %s452
        %s454 = smul.addr %s453, 8
        %s455 = scalar_lea.vmem %s1, %s454
        %s456 = smul.u32 16, %s28
      $region64: #{skblock_pallas.3} parent=55 // pred_fallthru
        _
      // Predicated region
      $region65: #{skblock_pallas.3} parent=55 // pred_check
        %p457 = pneg %p110
      $region66: #{skblock_pallas.3} parent=55 // pred_check_branch
        %459 = sbr.rel (%p457) target = $region68
      $region67: #{skblock_pallas.3} parent=55 // pred_region
        %s460 = smul.u32 16, %s28
        %p461 = scmp.lt.s32.totalorder %s27, 1
        %s462 = scalar_select %p461, %s27, 1
        %p463 = scmp.lt.s32.totalorder %s460, 15
        %s464 = scalar_select %p463, %s460, 15
        %s465 = smul.addr %s464, 2
        %s466 = smul.addr %s462, 32
        %s467 = sadd.s32 %s465, %s466
        %s468 = smul.addr %s467, 8
        %s469 = scalar_lea.vmem %s2, %s468
        %s470 = smul.u32 16, %s28
      $region68: #{skblock_pallas.3} parent=55 // pred_fallthru
        _
      // Predicated region
      $region69: #{skblock_pallas.3} parent=55 // pred_check
        %p471 = pneg %p136
      $region70: #{skblock_pallas.3} parent=55 // pred_check_branch
        %473 = sbr.rel (%p471) target = $region72
      $region71: #{skblock_pallas.3} parent=55 // pred_region
        %p474 = scmp.lt.s32.totalorder %s27, 1
        %s475 = scalar_select %p474, %s27, 1
        %s476 = scalar_lea.vmem %s3, %s475
      $region72: #{skblock_pallas.3} parent=55 // pred_fallthru
        _
    $region56: #{skblock_pallas.3} parent=5 // pred_fallthru
      _
    %p477 = scmp.le.s32.totalorder 1, %s20
    %p478 = scmp.lt.s32.totalorder %s20, 3
    %p479 = pnand %p477, %p478
    %p480 = pneg %p479
    // Predicated region
    $region73: #{skblock_pallas.3} parent=5 // pred_check
      _
    $region74: #{skblock_pallas.3} parent=5 // pred_check_branch
      %482 = sbr.rel (%p479) target = $region76
    $region75: #{skblock_pallas.3} parent=5 // pred_region
      %s483 = ssub.s32 %s20, 1
      %s484 = smul.u32 16, %s30
      %p485 = scmp.lt.s32.totalorder %s29, 1
      %s486 = scalar_select %p485, %s29, 1
      %p487 = scmp.lt.s32.totalorder %s484, 15
      %s488 = scalar_select %p487, %s484, 15
      %s489 = smul.addr %s488, 2
      %s490 = smul.addr %s486, 32
      %s491 = sadd.s32 %s489, %s490
      %s492 = smul.addr %s491, 8
      %s493 = scalar_lea.vmem %s0, %s492
      %p494 = pneg %p60
      %p495 = pneg %p57
      %s496 = smul.u32 16, %s30
      %p497 = scmp.lt.s32.totalorder %s29, 1
      %s498 = scalar_select %p497, %s29, 1
      %p499 = scmp.lt.s32.totalorder %s496, 15
      %s500 = scalar_select %p499, %s496, 15
      %s501 = smul.addr %s500, 2
      %s502 = smul.addr %s498, 32
      %s503 = sadd.s32 %s501, %s502
      %s504 = smul.addr %s503, 8
      %s505 = scalar_lea.vmem %s1, %s504
      %p506 = pneg %p88
      %p507 = pneg %p85
      %s508 = smul.u32 16, %s30
      %p509 = scmp.lt.s32.totalorder %s29, 1
      %s510 = scalar_select %p509, %s29, 1
      %p511 = scmp.lt.s32.totalorder %s508, 15
      %s512 = scalar_select %p511, %s508, 15
      %s513 = smul.addr %s512, 2
      %s514 = smul.addr %s510, 32
      %s515 = sadd.s32 %s513, %s514
      %s516 = smul.addr %s515, 8
      %s517 = scalar_lea.vmem %s2, %s516
      %p518 = pneg %p116
      %p519 = pneg %p113
      %p520 = scmp.lt.s32.totalorder %s29, 1
      %s521 = scalar_select %p520, %s29, 1
      %s522 = scalar_lea.vmem %s3, %s521
      %p523 = pneg %p142
      %p524 = pneg %p139
      %p525 = pneg %p163
      %p526 = pneg %p160
      %p527 = pneg %p184
      %p528 = pneg %p181
      %p529 = pneg %p205
      %p530 = pneg %p202
      %p531 = pneg %p226
      %p532 = pneg %p223
      %p533 = pneg %p247
      %p534 = pneg %p244
      %p535 = pneg %p268
      %p536 = pneg %p265
      %p537 = pneg %p289
      %p538 = pneg %p286
      %p539 = pneg %p310
      %p540 = pneg %p307
      %p541 = pneg %p331
      %p542 = pneg %p328
      %p543 = pneg %p352
      %p544 = pneg %p349
      %p545 = pneg %p380
      %p546 = pneg %p377
      %s547 = smul.u32 16, %s30
      %p548 = scmp.lt.s32.totalorder %s29, 1
      %s549 = scalar_select %p548, %s29, 1
      %p550 = scmp.lt.s32.totalorder %s547, 15
      %s551 = scalar_select %p550, %s547, 15
      %s552 = smul.addr %s551, 2
      %s553 = smul.addr %s549, 32
      %s554 = sadd.s32 %s552, %s553
      %s555 = smul.addr %s554, 8
      %s556 = scalar_lea.vmem %s14, %s555
      %s557 = smul.u32 16, %s30
      %p558 = scmp.lt.s32.totalorder %s29, 1
      %s559 = scalar_select %p558, %s29, 1
      %p560 = scmp.lt.s32.totalorder %s557, 15
      %s561 = scalar_select %p560, %s557, 15
      %s562 = smul.addr %s561, 2
      %s563 = smul.addr %s559, 32
      %s564 = sadd.s32 %s562, %s563
      %s565 = smul.addr %s564, 8
      %s566 = scalar_lea.vmem %s0, %s565
      %s567 = smul.u32 16, %s30
      %s568 = smul.u32 16, %s30
      %p569 = scmp.lt.s32.totalorder %s29, 1
      %s570 = scalar_select %p569, %s29, 1
      %p571 = scmp.lt.s32.totalorder %s568, 15
      %s572 = scalar_select %p571, %s568, 15
      %s573 = smul.addr %s572, 2
      %s574 = smul.addr %s570, 32
      %s575 = sadd.s32 %s573, %s574
      %s576 = smul.addr %s575, 8
      %s577 = scalar_lea.vmem %s1, %s576
      %s578 = smul.u32 16, %s30
      %s579 = smul.u32 16, %s30
      %p580 = scmp.lt.s32.totalorder %s29, 1
      %s581 = scalar_select %p580, %s29, 1
      %p582 = scmp.lt.s32.totalorder %s579, 15
      %s583 = scalar_select %p582, %s579, 15
      %s584 = smul.addr %s583, 2
      %s585 = smul.addr %s581, 32
      %s586 = sadd.s32 %s584, %s585
      %s587 = smul.addr %s586, 8
      %s588 = scalar_lea.vmem %s2, %s587
      %s589 = smul.u32 16, %s30
      %p590 = scmp.lt.s32.totalorder %s29, 1
      %s591 = scalar_select %p590, %s29, 1
      %s592 = scalar_lea.vmem %s3, %s591
      %s593 = smul.u32 16, %s30
      %p594 = scmp.lt.s32.totalorder %s29, 1
      %s595 = scalar_select %p594, %s29, 1
      %p596 = scmp.lt.s32.totalorder %s593, 15
      %s597 = scalar_select %p596, %s593, 15
      %s598 = smul.addr %s597, 2
      %s599 = smul.addr %s595, 32
      %s600 = sadd.s32 %s598, %s599
      %s601 = smul.addr %s600, 8
      %s602 = scalar_lea.vmem %s14, %s601
      %s603 = smul.u32 16, %s30
      %v605 = vld [vmem:[%s592] sm:$0x1]
      %v606 = vmul.f32 %v605, 0.00390625
      %v607 = vld [vmem:[%s4] sm:$0xff]
      %v608 = vld [vmem:[%s4 + $0x8] sm:$0xff]
      %v609 = vld [vmem:[%s4 + $0x10] sm:$0xff]
      %v610 = vld [vmem:[%s4 + $0x18] sm:$0xff]
      %v611 = vld [vmem:[%s4 + $0x20] sm:$0xff]
      %v612 = vld [vmem:[%s4 + $0x28] sm:$0xff]
      %v613 = vld [vmem:[%s4 + $0x30] sm:$0xff]
      %v614 = vld [vmem:[%s4 + $0x38] sm:$0xff]
      %v615 = vld [vmem:[%s4 + $0x40] sm:$0xff]
      %v616 = vld [vmem:[%s4 + $0x48] sm:$0xff]
      %v617 = vld [vmem:[%s4 + $0x50] sm:$0xff]
      %v618 = vld [vmem:[%s4 + $0x58] sm:$0xff]
      %v619 = vld [vmem:[%s4 + $0x60] sm:$0xff]
      %v620 = vld [vmem:[%s4 + $0x68] sm:$0xff]
      %v621 = vld [vmem:[%s4 + $0x70] sm:$0xff]
      %v622 = vld [vmem:[%s4 + $0x78] sm:$0xff]
      %v623 = vld [vmem:[%s5] sm:$0x1]
      %624 = vmatprep.subr.mxu0 0.0
      %625 = vmatpush1.msra.mxu0 %v622
      %626 = vmatprep.subr.mxu0 0.0
      %627 = vmatpush1.msra.mxu0 %v621
      %628 = vmatprep.subr.mxu0 0.0
      %629 = vmatpush1.msra.mxu0 %v620
      %630 = vmatprep.subr.mxu0 0.0
      %631 = vmatpush1.msra.mxu0 %v619
      %632 = vmatprep.subr.mxu0 0.0
      %633 = vmatpush1.msra.mxu0 %v618
      %634 = vmatprep.subr.mxu0 0.0
      %635 = vmatpush1.msra.mxu0 %v617
      %636 = vmatprep.subr.mxu0 0.0
      %637 = vmatpush1.msra.mxu0 %v616
      %638 = vmatprep.subr.mxu0 0.0
      %639 = vmatpush1.msra.mxu0 %v615
      %640 = vmatprep.subr.mxu0 0.0
      %641 = vmatpush1.msra.mxu0 %v614
      %642 = vmatprep.subr.mxu0 0.0
      %643 = vmatpush1.msra.mxu0 %v613
      %644 = vmatprep.subr.mxu0 0.0
      %645 = vmatpush1.msra.mxu0 %v612
      %646 = vmatprep.subr.mxu0 0.0
      %647 = vmatpush1.msra.mxu0 %v611
      %648 = vmatprep.subr.mxu0 0.0
      %649 = vmatpush1.msra.mxu0 %v610
      %650 = vmatprep.subr.mxu0 0.0
      %651 = vmatpush1.msra.mxu0 %v609
      %652 = vmatprep.subr.mxu0 0.0
      %653 = vmatpush1.msra.mxu0 %v608
      %654 = vmatprep.subr.mxu0 0.0
      %655 = vmatpush1.msra.mxu0 %v607
      %656 = vmatprep.subr.mxu0 0.0
      %657 = vmatpush2.msra.mxu0 0.0
      %658 = vmatprep.subr.mxu0 0.0
      %659 = vmatpush2.msra.mxu0 0.0
      %660 = vmatprep.subr.mxu0 0.0
      %661 = vmatpush2.msra.mxu0 0.0
      %662 = vmatprep.subr.mxu0 0.0
      %663 = vmatpush2.msra.mxu0 0.0
      %664 = vmatprep.subr.mxu0 0.0
      %665 = vmatpush2.msra.mxu0 0.0
      %666 = vmatprep.subr.mxu0 0.0
      %667 = vmatpush2.msra.mxu0 0.0
      %668 = vmatprep.subr.mxu0 0.0
      %669 = vmatpush2.msra.mxu0 0.0
      %670 = vmatprep.subr.mxu0 0.0
      %671 = vmatpush2.msra.mxu0 0.0
      %672 = vmatprep.subr.mxu0 0.0
      %673 = vmatpush2.msra.mxu0 0.0
      %674 = vmatprep.subr.mxu0 0.0
      %675 = vmatpush2.msra.mxu0 0.0
      %676 = vmatprep.subr.mxu0 0.0
      %677 = vmatpush2.msra.mxu0 0.0
      %678 = vmatprep.subr.mxu0 0.0
      %679 = vmatpush2.msra.mxu0 0.0
      %680 = vmatprep.subr.mxu0 0.0
      %681 = vmatpush2.msra.mxu0 0.0
      %682 = vmatprep.subr.mxu0 0.0
      %683 = vmatpush2.msra.mxu0 0.0
      %684 = vmatprep.subr.mxu0 0.0
      %685 = vmatpush2.msra.mxu0 0.0
      %686 = vmatprep.subr.mxu0 0.0
      %687 = vmatpush2.msra.mxu0 0.0
      %688 = vmatprep.mubr.f32.mxu0 0.0
      %689 = vmatmul.mubr.f32.gmra.mxu0 %v606
      %v690 = vpop.f32.mrf.mxu0
      %v691 = vadd.f32 %v623, %v690
      %v692 = vpop.f32.mrf.mxu0
      %693 = vdwg.mxu0
      %v694 = vmax.f32 %v691, 0.0
      %v695 = vld [vmem:[%s6] sm:$0xff]
      %v696 = vld [vmem:[%s6 + $0x8] sm:$0xff]
      %v697 = vld [vmem:[%s6 + $0x10] sm:$0xff]
      %v698 = vld [vmem:[%s6 + $0x18] sm:$0xff]
      %v699 = vld [vmem:[%s6 + $0x20] sm:$0xff]
      %v700 = vld [vmem:[%s6 + $0x28] sm:$0xff]
      %v701 = vld [vmem:[%s6 + $0x30] sm:$0xff]
      %v702 = vld [vmem:[%s6 + $0x38] sm:$0xff]
      %v703 = vld [vmem:[%s6 + $0x40] sm:$0xff]
      %v704 = vld [vmem:[%s6 + $0x48] sm:$0xff]
      %v705 = vld [vmem:[%s6 + $0x50] sm:$0xff]
      %v706 = vld [vmem:[%s6 + $0x58] sm:$0xff]
      %v707 = vld [vmem:[%s6 + $0x60] sm:$0xff]
      %v708 = vld [vmem:[%s6 + $0x68] sm:$0xff]
      %v709 = vld [vmem:[%s6 + $0x70] sm:$0xff]
      %v710 = vld [vmem:[%s6 + $0x78] sm:$0xff]
      %v711 = vld [vmem:[%s7] sm:$0x1]
      %712 = vmatprep.subr.mxu0 0.0
      %713 = vmatpush1.msra.mxu0 %v710
      %714 = vmatprep.subr.mxu0 0.0
      %715 = vmatpush1.msra.mxu0 %v709
      %716 = vmatprep.subr.mxu0 0.0
      %717 = vmatpush1.msra.mxu0 %v708
      %718 = vmatprep.subr.mxu0 0.0
      %719 = vmatpush1.msra.mxu0 %v707
      %720 = vmatprep.subr.mxu0 0.0
      %721 = vmatpush1.msra.mxu0 %v706
      %722 = vmatprep.subr.mxu0 0.0
      %723 = vmatpush1.msra.mxu0 %v705
      %724 = vmatprep.subr.mxu0 0.0
      %725 = vmatpush1.msra.mxu0 %v704
      %726 = vmatprep.subr.mxu0 0.0
      %727 = vmatpush1.msra.mxu0 %v703
      %728 = vmatprep.subr.mxu0 0.0
      %729 = vmatpush1.msra.mxu0 %v702
      %730 = vmatprep.subr.mxu0 0.0
      %731 = vmatpush1.msra.mxu0 %v701
      %732 = vmatprep.subr.mxu0 0.0
      %733 = vmatpush1.msra.mxu0 %v700
      %734 = vmatprep.subr.mxu0 0.0
      %735 = vmatpush1.msra.mxu0 %v699
      %736 = vmatprep.subr.mxu0 0.0
      %737 = vmatpush1.msra.mxu0 %v698
      %738 = vmatprep.subr.mxu0 0.0
      %739 = vmatpush1.msra.mxu0 %v697
      %740 = vmatprep.subr.mxu0 0.0
      %741 = vmatpush1.msra.mxu0 %v696
      %742 = vmatprep.subr.mxu0 0.0
      %743 = vmatpush1.msra.mxu0 %v695
      %744 = vmatprep.subr.mxu0 0.0
      %745 = vmatpush2.msra.mxu0 0.0
      %746 = vmatprep.subr.mxu0 0.0
      %747 = vmatpush2.msra.mxu0 0.0
      %748 = vmatprep.subr.mxu0 0.0
      %749 = vmatpush2.msra.mxu0 0.0
      %750 = vmatprep.subr.mxu0 0.0
      %751 = vmatpush2.msra.mxu0 0.0
      %752 = vmatprep.subr.mxu0 0.0
      %753 = vmatpush2.msra.mxu0 0.0
      %754 = vmatprep.subr.mxu0 0.0
      %755 = vmatpush2.msra.mxu0 0.0
      %756 = vmatprep.subr.mxu0 0.0
      %757 = vmatpush2.msra.mxu0 0.0
      %758 = vmatprep.subr.mxu0 0.0
      %759 = vmatpush2.msra.mxu0 0.0
      %760 = vmatprep.subr.mxu0 0.0
      %761 = vmatpush2.msra.mxu0 0.0
      %762 = vmatprep.subr.mxu0 0.0
      %763 = vmatpush2.msra.mxu0 0.0
      %764 = vmatprep.subr.mxu0 0.0
      %765 = vmatpush2.msra.mxu0 0.0
      %766 = vmatprep.subr.mxu0 0.0
      %767 = vmatpush2.msra.mxu0 0.0
      %768 = vmatprep.subr.mxu0 0.0
      %769 = vmatpush2.msra.mxu0 0.0
      %770 = vmatprep.subr.mxu0 0.0
      %771 = vmatpush2.msra.mxu0 0.0
      %772 = vmatprep.subr.mxu0 0.0
      %773 = vmatpush2.msra.mxu0 0.0
      %774 = vmatprep.subr.mxu0 0.0
      %775 = vmatpush2.msra.mxu0 0.0
      %776 = vmatprep.mubr.f32.mxu0 0.0
      %777 = vmatmul.mubr.f32.gmra.mxu0 %v694
      %v778 = vpop.f32.mrf.mxu0
      %v779 = vadd.f32 %v711, %v778
      %v780 = vpop.f32.mrf.mxu0
      %781 = vdwg.mxu0
      %v782 = vld [vmem:[%s8] sm:$0xff]
      %v783 = vld [vmem:[%s8 + $0x8] sm:$0xff]
      %v784 = vld [vmem:[%s8 + $0x10] sm:$0xff]
      %v785 = vld [vmem:[%s8 + $0x18] sm:$0xff]
      %v786 = vld [vmem:[%s8 + $0x20] sm:$0xff]
      %v787 = vld [vmem:[%s8 + $0x28] sm:$0xff]
      %v788 = vld [vmem:[%s8 + $0x30] sm:$0xff]
      %v789 = vld [vmem:[%s8 + $0x38] sm:$0xff]
      %v790 = vld [vmem:[%s8 + $0x40] sm:$0xff]
      %v791 = vld [vmem:[%s8 + $0x48] sm:$0xff]
      %v792 = vld [vmem:[%s8 + $0x50] sm:$0xff]
      %v793 = vld [vmem:[%s8 + $0x58] sm:$0xff]
      %v794 = vld [vmem:[%s8 + $0x60] sm:$0xff]
      %v795 = vld [vmem:[%s8 + $0x68] sm:$0xff]
      %v796 = vld [vmem:[%s8 + $0x70] sm:$0xff]
      %v797 = vld [vmem:[%s8 + $0x78] sm:$0xff]
      %v798 = vld [vmem:[%s9] sm:$0x1]
      %799 = vmatprep.subr.mxu0 0.0
      %800 = vmatpush1.msra.mxu0 %v797
      %801 = vmatprep.subr.mxu0 0.0
      %802 = vmatpush1.msra.mxu0 %v796
      %803 = vmatprep.subr.mxu0 0.0
      %804 = vmatpush1.msra.mxu0 %v795
      %805 = vmatprep.subr.mxu0 0.0
      %806 = vmatpush1.msra.mxu0 %v794
      %807 = vmatprep.subr.mxu0 0.0
      %808 = vmatpush1.msra.mxu0 %v793
      %809 = vmatprep.subr.mxu0 0.0
      %810 = vmatpush1.msra.mxu0 %v792
      %811 = vmatprep.subr.mxu0 0.0
      %812 = vmatpush1.msra.mxu0 %v791
      %813 = vmatprep.subr.mxu0 0.0
      %814 = vmatpush1.msra.mxu0 %v790
      %815 = vmatprep.subr.mxu0 0.0
      %816 = vmatpush1.msra.mxu0 %v789
      %817 = vmatprep.subr.mxu0 0.0
      %818 = vmatpush1.msra.mxu0 %v788
      %819 = vmatprep.subr.mxu0 0.0
      %820 = vmatpush1.msra.mxu0 %v787
      %821 = vmatprep.subr.mxu0 0.0
      %822 = vmatpush1.msra.mxu0 %v786
      %823 = vmatprep.subr.mxu0 0.0
      %824 = vmatpush1.msra.mxu0 %v785
      %825 = vmatprep.subr.mxu0 0.0
      %826 = vmatpush1.msra.mxu0 %v784
      %827 = vmatprep.subr.mxu0 0.0
      %828 = vmatpush1.msra.mxu0 %v783
      %829 = vmatprep.subr.mxu0 0.0
      %830 = vmatpush1.msra.mxu0 %v782
      %831 = vmatprep.subr.mxu0 0.0
      %832 = vmatpush2.msra.mxu0 0.0
      %833 = vmatprep.subr.mxu0 0.0
      %834 = vmatpush2.msra.mxu0 0.0
      %835 = vmatprep.subr.mxu0 0.0
      %836 = vmatpush2.msra.mxu0 0.0
      %837 = vmatprep.subr.mxu0 0.0
      %838 = vmatpush2.msra.mxu0 0.0
      %839 = vmatprep.subr.mxu0 0.0
      %840 = vmatpush2.msra.mxu0 0.0
      %841 = vmatprep.subr.mxu0 0.0
      %842 = vmatpush2.msra.mxu0 0.0
      %843 = vmatprep.subr.mxu0 0.0
      %844 = vmatpush2.msra.mxu0 0.0
      %845 = vmatprep.subr.mxu0 0.0
      %846 = vmatpush2.msra.mxu0 0.0
      %847 = vmatprep.subr.mxu0 0.0
      %848 = vmatpush2.msra.mxu0 0.0
      %849 = vmatprep.subr.mxu0 0.0
      %850 = vmatpush2.msra.mxu0 0.0
      %851 = vmatprep.subr.mxu0 0.0
      %852 = vmatpush2.msra.mxu0 0.0
      %853 = vmatprep.subr.mxu0 0.0
      %854 = vmatpush2.msra.mxu0 0.0
      %855 = vmatprep.subr.mxu0 0.0
      %856 = vmatpush2.msra.mxu0 0.0
      %857 = vmatprep.subr.mxu0 0.0
      %858 = vmatpush2.msra.mxu0 0.0
      %859 = vmatprep.subr.mxu0 0.0
      %860 = vmatpush2.msra.mxu0 0.0
      %861 = vmatprep.subr.mxu0 0.0
      %862 = vmatpush2.msra.mxu0 0.0
      %863 = vmatprep.mubr.f32.mxu0 0.0
      %864 = vmatmul.mubr.f32.gmra.mxu0 %v694
      %v865 = vpop.f32.mrf.mxu0
      %v866 = vadd.f32 %v798, %v865
      %v867 = vpop.f32.mrf.mxu0
      %868 = vdwg.mxu0
      %v869 = vmax.f32 %v779, %v866
      %v870 = vsub.f32 %v779, %v869
      %v871 = vmul.f32 %v870, 1.442695
      %v872 = vpow.pop %v871
      %v873 = vsub.f32 %v866, %v869
      %v874 = vmul.f32 %v873, 1.442695
      %v875 = vpow.pop %v874
      %v876 = vadd.f32 %v872, %v875
      %v877 = vrcp.pop %v876
      %v878 = vmul.f32 1.0, %v877
      %v879 = vmul.f32 %v872, %v878
      %v880 = vmul.f32 %v875, %v878
      %v881 = vld [vmem:[%s566] sm:$0xff]
      %v882 = vld [vmem:[%s566 + $0x8] sm:$0xff]
      %v883 = vld [vmem:[%s566 + $0x10] sm:$0xff]
      %v884 = vld [vmem:[%s566 + $0x18] sm:$0xff]
      %v885 = vld [vmem:[%s566 + $0x20] sm:$0xff]
      %v886 = vld [vmem:[%s566 + $0x28] sm:$0xff]
      %v887 = vld [vmem:[%s566 + $0x30] sm:$0xff]
      %v888 = vld [vmem:[%s566 + $0x38] sm:$0xff]
      %v889 = vld [vmem:[%s566 + $0x40] sm:$0xff]
      %v890 = vld [vmem:[%s566 + $0x48] sm:$0xff]
      %v891 = vld [vmem:[%s566 + $0x50] sm:$0xff]
      %v892 = vld [vmem:[%s566 + $0x58] sm:$0xff]
      %v893 = vld [vmem:[%s566 + $0x60] sm:$0xff]
      %v894 = vld [vmem:[%s566 + $0x68] sm:$0xff]
      %v895 = vld [vmem:[%s566 + $0x70] sm:$0xff]
      %v896 = vld [vmem:[%s566 + $0x78] sm:$0xff]
      %v897 = vld [vmem:[%s566 + $0x80] sm:$0xff]
      %v898 = vld [vmem:[%s566 + $0x88] sm:$0xff]
      %v899 = vld [vmem:[%s566 + $0x90] sm:$0xff]
      %v900 = vld [vmem:[%s566 + $0x98] sm:$0xff]
      %v901 = vld [vmem:[%s566 + $0xa0] sm:$0xff]
      %v902 = vld [vmem:[%s566 + $0xa8] sm:$0xff]
      %v903 = vld [vmem:[%s566 + $0xb0] sm:$0xff]
      %v904 = vld [vmem:[%s566 + $0xb8] sm:$0xff]
      %v905 = vld [vmem:[%s566 + $0xc0] sm:$0xff]
      %v906 = vld [vmem:[%s566 + $0xc8] sm:$0xff]
      %v907 = vld [vmem:[%s566 + $0xd0] sm:$0xff]
      %v908 = vld [vmem:[%s566 + $0xd8] sm:$0xff]
      %v909 = vld [vmem:[%s566 + $0xe0] sm:$0xff]
      %v910 = vld [vmem:[%s566 + $0xe8] sm:$0xff]
      %v911 = vld [vmem:[%s566 + $0xf0] sm:$0xff]
      %v912 = vld [vmem:[%s566 + $0xf8] sm:$0xff]
      %v913 = vld [vmem:[%s577] sm:$0xff]
      %v914 = vld [vmem:[%s577 + $0x8] sm:$0xff]
      %v915 = vld [vmem:[%s577 + $0x10] sm:$0xff]
      %v916 = vld [vmem:[%s577 + $0x18] sm:$0xff]
      %v917 = vld [vmem:[%s577 + $0x20] sm:$0xff]
      %v918 = vld [vmem:[%s577 + $0x28] sm:$0xff]
      %v919 = vld [vmem:[%s577 + $0x30] sm:$0xff]
      %v920 = vld [vmem:[%s577 + $0x38] sm:$0xff]
      %v921 = vld [vmem:[%s577 + $0x40] sm:$0xff]
      %v922 = vld [vmem:[%s577 + $0x48] sm:$0xff]
      %v923 = vld [vmem:[%s577 + $0x50] sm:$0xff]
      %v924 = vld [vmem:[%s577 + $0x58] sm:$0xff]
      %v925 = vld [vmem:[%s577 + $0x60] sm:$0xff]
      %v926 = vld [vmem:[%s577 + $0x68] sm:$0xff]
      %v927 = vld [vmem:[%s577 + $0x70] sm:$0xff]
      %v928 = vld [vmem:[%s577 + $0x78] sm:$0xff]
      %v929 = vld [vmem:[%s577 + $0x80] sm:$0xff]
      %v930 = vld [vmem:[%s577 + $0x88] sm:$0xff]
      %v931 = vld [vmem:[%s577 + $0x90] sm:$0xff]
      %v932 = vld [vmem:[%s577 + $0x98] sm:$0xff]
      %v933 = vld [vmem:[%s577 + $0xa0] sm:$0xff]
      %v934 = vld [vmem:[%s577 + $0xa8] sm:$0xff]
      %v935 = vld [vmem:[%s577 + $0xb0] sm:$0xff]
      %v936 = vld [vmem:[%s577 + $0xb8] sm:$0xff]
      %v937 = vld [vmem:[%s577 + $0xc0] sm:$0xff]
      %v938 = vld [vmem:[%s577 + $0xc8] sm:$0xff]
      %v939 = vld [vmem:[%s577 + $0xd0] sm:$0xff]
      %v940 = vld [vmem:[%s577 + $0xd8] sm:$0xff]
      %v941 = vld [vmem:[%s577 + $0xe0] sm:$0xff]
      %v942 = vld [vmem:[%s577 + $0xe8] sm:$0xff]
      %v943 = vld [vmem:[%s577 + $0xf0] sm:$0xff]
      %v944 = vld [vmem:[%s577 + $0xf8] sm:$0xff]
      %v945 = vlaneseq
      %v946 = vshrl.u32 %v945, 7
      %v947 = vsub.s32 0, %v946
      %v948 = vrot.slane %v879, %v947
      %v949 = vmul.f32 %v881, %v948
      %v950 = vmul.f32 %v882, %v948
      %v951 = vmul.f32 %v883, %v948
      %v952 = vmul.f32 %v884, %v948
      %v953 = vmul.f32 %v885, %v948
      %v954 = vmul.f32 %v886, %v948
      %v955 = vmul.f32 %v887, %v948
      %v956 = vmul.f32 %v888, %v948
      %v957 = vmul.f32 %v889, %v948
      %v958 = vmul.f32 %v890, %v948
      %v959 = vmul.f32 %v891, %v948
      %v960 = vmul.f32 %v892, %v948
      %v961 = vmul.f32 %v893, %v948
      %v962 = vmul.f32 %v894, %v948
      %v963 = vmul.f32 %v895, %v948
      %v964 = vmul.f32 %v896, %v948
      %v965 = vmul.f32 %v897, %v948
      %v966 = vmul.f32 %v898, %v948
      %v967 = vmul.f32 %v899, %v948
      %v968 = vmul.f32 %v900, %v948
      %v969 = vmul.f32 %v901, %v948
      %v970 = vmul.f32 %v902, %v948
      %v971 = vmul.f32 %v903, %v948
      %v972 = vmul.f32 %v904, %v948
      %v973 = vmul.f32 %v905, %v948
      %v974 = vmul.f32 %v906, %v948
      %v975 = vmul.f32 %v907, %v948
      %v976 = vmul.f32 %v908, %v948
      %v977 = vmul.f32 %v909, %v948
      %v978 = vmul.f32 %v910, %v948
      %v979 = vmul.f32 %v911, %v948
      %v980 = vmul.f32 %v912, %v948
      %v981 = vlaneseq
      %v982 = vshrl.u32 %v981, 7
      %v983 = vsub.s32 0, %v982
      %v984 = vrot.slane %v880, %v983
      %v985 = vmul.f32 %v913, %v984
      %v986 = vmul.f32 %v914, %v984
      %v987 = vmul.f32 %v915, %v984
      %v988 = vmul.f32 %v916, %v984
      %v989 = vmul.f32 %v917, %v984
      %v990 = vmul.f32 %v918, %v984
      %v991 = vmul.f32 %v919, %v984
      %v992 = vmul.f32 %v920, %v984
      %v993 = vmul.f32 %v921, %v984
      %v994 = vmul.f32 %v922, %v984
      %v995 = vmul.f32 %v923, %v984
      %v996 = vmul.f32 %v924, %v984
      %v997 = vmul.f32 %v925, %v984
      %v998 = vmul.f32 %v926, %v984
      %v999 = vmul.f32 %v927, %v984
      %v1000 = vmul.f32 %v928, %v984
      %v1001 = vmul.f32 %v929, %v984
      %v1002 = vmul.f32 %v930, %v984
      %v1003 = vmul.f32 %v931, %v984
      %v1004 = vmul.f32 %v932, %v984
      %v1005 = vmul.f32 %v933, %v984
      %v1006 = vmul.f32 %v934, %v984
      %v1007 = vmul.f32 %v935, %v984
      %v1008 = vmul.f32 %v936, %v984
      %v1009 = vmul.f32 %v937, %v984
      %v1010 = vmul.f32 %v938, %v984
      %v1011 = vmul.f32 %v939, %v984
      %v1012 = vmul.f32 %v940, %v984
      %v1013 = vmul.f32 %v941, %v984
      %v1014 = vmul.f32 %v942, %v984
      %v1015 = vmul.f32 %v943, %v984
      %v1016 = vmul.f32 %v944, %v984
      %v1017 = vadd.f32 %v949, %v985
      %v1018 = vadd.f32 %v950, %v986
      %v1019 = vadd.f32 %v951, %v987
      %v1020 = vadd.f32 %v952, %v988
      %v1021 = vadd.f32 %v953, %v989
      %v1022 = vadd.f32 %v954, %v990
      %v1023 = vadd.f32 %v955, %v991
      %v1024 = vadd.f32 %v956, %v992
      %v1025 = vadd.f32 %v957, %v993
      %v1026 = vadd.f32 %v958, %v994
      %v1027 = vadd.f32 %v959, %v995
      %v1028 = vadd.f32 %v960, %v996
      %v1029 = vadd.f32 %v961, %v997
      %v1030 = vadd.f32 %v962, %v998
      %v1031 = vadd.f32 %v963, %v999
      %v1032 = vadd.f32 %v964, %v1000
      %v1033 = vadd.f32 %v965, %v1001
      %v1034 = vadd.f32 %v966, %v1002
      %v1035 = vadd.f32 %v967, %v1003
      %v1036 = vadd.f32 %v968, %v1004
      %v1037 = vadd.f32 %v969, %v1005
      %v1038 = vadd.f32 %v970, %v1006
      %v1039 = vadd.f32 %v971, %v1007
      %v1040 = vadd.f32 %v972, %v1008
      %v1041 = vadd.f32 %v973, %v1009
      %v1042 = vadd.f32 %v974, %v1010
      %v1043 = vadd.f32 %v975, %v1011
      %v1044 = vadd.f32 %v976, %v1012
      %v1045 = vadd.f32 %v977, %v1013
      %v1046 = vadd.f32 %v978, %v1014
      %v1047 = vadd.f32 %v979, %v1015
      %v1048 = vadd.f32 %v980, %v1016
      %v1049 = vld [vmem:[%s10] sm:$0x1]
      %v1051 = vlaneseq
      %v1052 = vshrl.u32 %v1051, 7
      %v1053 = vsub.s32 0, %v1052
      %v1054 = vrot.slane %v1049, %v1053
      %v1056 = vmul.f32 %v1017, %v1054
      %v1057 = vmul.f32 %v1018, %v1054
      %v1058 = vmul.f32 %v1019, %v1054
      %v1059 = vmul.f32 %v1020, %v1054
      %v1060 = vmul.f32 %v1021, %v1054
      %v1061 = vmul.f32 %v1022, %v1054
      %v1062 = vmul.f32 %v1023, %v1054
      %v1063 = vmul.f32 %v1024, %v1054
      %v1064 = vmul.f32 %v1025, %v1054
      %v1065 = vmul.f32 %v1026, %v1054
      %v1066 = vmul.f32 %v1027, %v1054
      %v1067 = vmul.f32 %v1028, %v1054
      %v1068 = vmul.f32 %v1029, %v1054
      %v1069 = vmul.f32 %v1030, %v1054
      %v1070 = vmul.f32 %v1031, %v1054
      %v1071 = vmul.f32 %v1032, %v1054
      %v1072 = vmul.f32 %v1033, %v1054
      %v1073 = vmul.f32 %v1034, %v1054
      %v1074 = vmul.f32 %v1035, %v1054
      %v1075 = vmul.f32 %v1036, %v1054
      %v1076 = vmul.f32 %v1037, %v1054
      %v1077 = vmul.f32 %v1038, %v1054
      %v1078 = vmul.f32 %v1039, %v1054
      %v1079 = vmul.f32 %v1040, %v1054
      %v1080 = vmul.f32 %v1041, %v1054
      %v1081 = vmul.f32 %v1042, %v1054
      %v1082 = vmul.f32 %v1043, %v1054
      %v1083 = vmul.f32 %v1044, %v1054
      %v1084 = vmul.f32 %v1045, %v1054
      %v1085 = vmul.f32 %v1046, %v1054
      %v1086 = vmul.f32 %v1047, %v1054
      %v1087 = vmul.f32 %v1048, %v1054
      %v1088 = vld [vmem:[%s11] sm:$0x1]
      %v1090 = vlaneseq
      %v1091 = vshrl.u32 %v1090, 7
      %v1092 = vsub.s32 0, %v1091
      %v1093 = vrot.slane %v1088, %v1092
      %v1095 = vadd.f32 %v1056, %v1093
      %v1096 = vadd.f32 %v1057, %v1093
      %v1097 = vadd.f32 %v1058, %v1093
      %v1098 = vadd.f32 %v1059, %v1093
      %v1099 = vadd.f32 %v1060, %v1093
      %v1100 = vadd.f32 %v1061, %v1093
      %v1101 = vadd.f32 %v1062, %v1093
      %v1102 = vadd.f32 %v1063, %v1093
      %v1103 = vadd.f32 %v1064, %v1093
      %v1104 = vadd.f32 %v1065, %v1093
      %v1105 = vadd.f32 %v1066, %v1093
      %v1106 = vadd.f32 %v1067, %v1093
      %v1107 = vadd.f32 %v1068, %v1093
      %v1108 = vadd.f32 %v1069, %v1093
      %v1109 = vadd.f32 %v1070, %v1093
      %v1110 = vadd.f32 %v1071, %v1093
      %v1111 = vadd.f32 %v1072, %v1093
      %v1112 = vadd.f32 %v1073, %v1093
      %v1113 = vadd.f32 %v1074, %v1093
      %v1114 = vadd.f32 %v1075, %v1093
      %v1115 = vadd.f32 %v1076, %v1093
      %v1116 = vadd.f32 %v1077, %v1093
      %v1117 = vadd.f32 %v1078, %v1093
      %v1118 = vadd.f32 %v1079, %v1093
      %v1119 = vadd.f32 %v1080, %v1093
      %v1120 = vadd.f32 %v1081, %v1093
      %v1121 = vadd.f32 %v1082, %v1093
      %v1122 = vadd.f32 %v1083, %v1093
      %v1123 = vadd.f32 %v1084, %v1093
      %v1124 = vadd.f32 %v1085, %v1093
      %v1125 = vadd.f32 %v1086, %v1093
      %v1126 = vadd.f32 %v1087, %v1093
      %v1127 = vmax.f32 %v1095, 0.0
      %v1128 = vmax.f32 %v1096, 0.0
      %v1129 = vmax.f32 %v1097, 0.0
      %v1130 = vmax.f32 %v1098, 0.0
      %v1131 = vmax.f32 %v1099, 0.0
      %v1132 = vmax.f32 %v1100, 0.0
      %v1133 = vmax.f32 %v1101, 0.0
      %v1134 = vmax.f32 %v1102, 0.0
      %v1135 = vmax.f32 %v1103, 0.0
      %v1136 = vmax.f32 %v1104, 0.0
      %v1137 = vmax.f32 %v1105, 0.0
      %v1138 = vmax.f32 %v1106, 0.0
      %v1139 = vmax.f32 %v1107, 0.0
      %v1140 = vmax.f32 %v1108, 0.0
      %v1141 = vmax.f32 %v1109, 0.0
      %v1142 = vmax.f32 %v1110, 0.0
      %v1143 = vmax.f32 %v1111, 0.0
      %v1144 = vmax.f32 %v1112, 0.0
      %v1145 = vmax.f32 %v1113, 0.0
      %v1146 = vmax.f32 %v1114, 0.0
      %v1147 = vmax.f32 %v1115, 0.0
      %v1148 = vmax.f32 %v1116, 0.0
      %v1149 = vmax.f32 %v1117, 0.0
      %v1150 = vmax.f32 %v1118, 0.0
      %v1151 = vmax.f32 %v1119, 0.0
      %v1152 = vmax.f32 %v1120, 0.0
      %v1153 = vmax.f32 %v1121, 0.0
      %v1154 = vmax.f32 %v1122, 0.0
      %v1155 = vmax.f32 %v1123, 0.0
      %v1156 = vmax.f32 %v1124, 0.0
      %v1157 = vmax.f32 %v1125, 0.0
      %v1158 = vmax.f32 %v1126, 0.0
      %v1159 = vpack.c.bf16 %v1128, %v1127
      %v1160 = vpack.c.bf16 %v1130, %v1129
      %v1161 = vpack.c.bf16 %v1132, %v1131
      %v1162 = vpack.c.bf16 %v1134, %v1133
      %v1163 = vpack.c.bf16 %v1136, %v1135
      %v1164 = vpack.c.bf16 %v1138, %v1137
      %v1165 = vpack.c.bf16 %v1140, %v1139
      %v1166 = vpack.c.bf16 %v1142, %v1141
      %v1167 = vpack.c.bf16 %v1144, %v1143
      %v1168 = vpack.c.bf16 %v1146, %v1145
      %v1169 = vpack.c.bf16 %v1148, %v1147
      %v1170 = vpack.c.bf16 %v1150, %v1149
      %v1171 = vpack.c.bf16 %v1152, %v1151
      %v1172 = vpack.c.bf16 %v1154, %v1153
      %v1173 = vpack.c.bf16 %v1156, %v1155
      %v1174 = vpack.c.bf16 %v1158, %v1157
      %v1175 = vld [vmem:[%s12] sm:$0xf]
      %v1176 = vld [vmem:[%s12 + $0x4] sm:$0xf]
      %v1177 = vld [vmem:[%s12 + $0x8] sm:$0xf]
      %v1178 = vld [vmem:[%s12 + $0xc] sm:$0xf]
      %v1179 = vld [vmem:[%s12 + $0x10] sm:$0xf]
      %v1180 = vld [vmem:[%s12 + $0x14] sm:$0xf]
      %v1181 = vld [vmem:[%s12 + $0x18] sm:$0xf]
      %v1182 = vld [vmem:[%s12 + $0x1c] sm:$0xf]
      %v1183 = vld [vmem:[%s12 + $0x20] sm:$0xf]
      %v1184 = vld [vmem:[%s12 + $0x24] sm:$0xf]
      %v1185 = vld [vmem:[%s12 + $0x28] sm:$0xf]
      %v1186 = vld [vmem:[%s12 + $0x2c] sm:$0xf]
      %v1187 = vld [vmem:[%s12 + $0x30] sm:$0xf]
      %v1188 = vld [vmem:[%s12 + $0x34] sm:$0xf]
      %v1189 = vld [vmem:[%s12 + $0x38] sm:$0xf]
      %v1190 = vld [vmem:[%s12 + $0x3c] sm:$0xf]
      %v1191 = vld [vmem:[%s13] sm:$0x1]
      %v1193 = vlaneseq
      %v1194 = vshrl.u32 %v1193, 7
      %v1195 = vsub.s32 0, %v1194
      %v1196 = vrot.slane %v1191, %v1195
      %v1214 = vunpack.c.l.b16 %v1175
      %v1215 = vunpack.c.l.b16 %v1176
      %v1216 = vunpack.c.l.b16 %v1177
      %v1217 = vunpack.c.l.b16 %v1178
      %v1218 = vunpack.c.l.b16 %v1179
      %v1219 = vunpack.c.l.b16 %v1180
      %v1220 = vunpack.c.l.b16 %v1181
      %v1221 = vunpack.c.l.b16 %v1182
      %v1222 = vunpack.c.l.b16 %v1183
      %v1223 = vunpack.c.l.b16 %v1184
      %v1224 = vunpack.c.l.b16 %v1185
      %v1225 = vunpack.c.l.b16 %v1186
      %v1226 = vunpack.c.l.b16 %v1187
      %v1227 = vunpack.c.l.b16 %v1188
      %v1228 = vunpack.c.l.b16 %v1189
      %v1229 = vunpack.c.l.b16 %v1190
      %v1230 = vpack.c.b16 %v1215, %v1214
      %v1231 = vpack.c.b16 %v1217, %v1216
      %v1232 = vpack.c.b16 %v1219, %v1218
      %v1233 = vpack.c.b16 %v1221, %v1220
      %v1234 = vpack.c.b16 %v1223, %v1222
      %v1235 = vpack.c.b16 %v1225, %v1224
      %v1236 = vpack.c.b16 %v1227, %v1226
      %v1237 = vpack.c.b16 %v1229, %v1228
      %1246 = vmatprep.subr.bf16.mxu0 0
      %1247 = vmatpush1.bf16.msra.mxu0 %v1237
      %1248 = vmatprep.subr.bf16.mxu0 0
      %1249 = vmatpush1.bf16.msra.mxu0 %v1236
      %1250 = vmatprep.subr.bf16.mxu0 0
      %1251 = vmatpush1.bf16.msra.mxu0 %v1235
      %1252 = vmatprep.subr.bf16.mxu0 0
      %1253 = vmatpush1.bf16.msra.mxu0 %v1234
      %1254 = vmatprep.subr.bf16.mxu0 0
      %1255 = vmatpush1.bf16.msra.mxu0 %v1233
      %1256 = vmatprep.subr.bf16.mxu0 0
      %1257 = vmatpush1.bf16.msra.mxu0 %v1232
      %1258 = vmatprep.subr.bf16.mxu0 0
      %1259 = vmatpush1.bf16.msra.mxu0 %v1231
      %1260 = vmatprep.subr.bf16.mxu0 0
      %1261 = vmatpush1.bf16.msra.mxu0 %v1230
      %1262 = vmatprep.subr.bf16.mxu0 0
      %1263 = vmatpush2.bf16.msra.mxu0 0
      %1264 = vmatprep.subr.bf16.mxu0 0
      %1265 = vmatpush2.bf16.msra.mxu0 0
      %1266 = vmatprep.subr.bf16.mxu0 0
      %1267 = vmatpush2.bf16.msra.mxu0 0
      %1268 = vmatprep.subr.bf16.mxu0 0
      %1269 = vmatpush2.bf16.msra.mxu0 0
      %1270 = vmatprep.subr.bf16.mxu0 0
      %1271 = vmatpush2.bf16.msra.mxu0 0
      %1272 = vmatprep.subr.bf16.mxu0 0
      %1273 = vmatpush2.bf16.msra.mxu0 0
      %1274 = vmatprep.subr.bf16.mxu0 0
      %1275 = vmatpush2.bf16.msra.mxu0 0
      %1276 = vmatprep.subr.bf16.mxu0 0
      %1277 = vmatpush2.bf16.msra.mxu0 0
      %1278 = vmatprep.mubr.bf16.mxu0 0
      %1279 = vmatmul.mubr.bf16.gmra.mxu0 %v1159
      %v1280 = vpop.f32.mrf.mxu0
      %v1281 = vadd.f32 %v1196, %v1280
      %v1282 = vpop.f32.mrf.mxu0
      %v1283 = vpop.f32.mrf.mxu0
      %v1284 = vadd.f32 %v1196, %v1283
      %v1285 = vpop.f32.mrf.mxu0
      %1286 = vmatprep.mubr.bf16.mxu0 0
      %1287 = vmatmul.mubr.bf16.gmra.mxu0 %v1160
      %v1288 = vpop.f32.mrf.mxu0
      %v1289 = vadd.f32 %v1196, %v1288
      %v1290 = vpop.f32.mrf.mxu0
      %v1291 = vpop.f32.mrf.mxu0
      %v1292 = vadd.f32 %v1196, %v1291
      %v1293 = vpop.f32.mrf.mxu0
      %1294 = vmatprep.mubr.bf16.mxu0 0
      %1295 = vmatmul.mubr.bf16.gmra.mxu0 %v1161
      %v1296 = vpop.f32.mrf.mxu0
      %v1297 = vadd.f32 %v1196, %v1296
      %v1298 = vpop.f32.mrf.mxu0
      %v1299 = vpop.f32.mrf.mxu0
      %v1300 = vadd.f32 %v1196, %v1299
      %v1301 = vpop.f32.mrf.mxu0
      %1302 = vmatprep.mubr.bf16.mxu0 0
      %1303 = vmatmul.mubr.bf16.gmra.mxu0 %v1162
      %v1304 = vpop.f32.mrf.mxu0
      %v1305 = vadd.f32 %v1196, %v1304
      %v1306 = vpop.f32.mrf.mxu0
      %v1307 = vpop.f32.mrf.mxu0
      %v1308 = vadd.f32 %v1196, %v1307
      %v1309 = vpop.f32.mrf.mxu0
      %1310 = vmatprep.mubr.bf16.mxu0 0
      %1311 = vmatmul.mubr.bf16.gmra.mxu0 %v1163
      %v1312 = vpop.f32.mrf.mxu0
      %v1313 = vadd.f32 %v1196, %v1312
      %v1314 = vpop.f32.mrf.mxu0
      %v1315 = vpop.f32.mrf.mxu0
      %v1316 = vadd.f32 %v1196, %v1315
      %v1317 = vpop.f32.mrf.mxu0
      %1318 = vmatprep.mubr.bf16.mxu0 0
      %1319 = vmatmul.mubr.bf16.gmra.mxu0 %v1164
      %v1320 = vpop.f32.mrf.mxu0
      %v1321 = vadd.f32 %v1196, %v1320
      %v1322 = vpop.f32.mrf.mxu0
      %v1323 = vpop.f32.mrf.mxu0
      %v1324 = vadd.f32 %v1196, %v1323
      %v1325 = vpop.f32.mrf.mxu0
      %1326 = vmatprep.mubr.bf16.mxu0 0
      %1327 = vmatmul.mubr.bf16.gmra.mxu0 %v1165
      %v1328 = vpop.f32.mrf.mxu0
      %v1329 = vadd.f32 %v1196, %v1328
      %v1330 = vpop.f32.mrf.mxu0
      %v1331 = vpop.f32.mrf.mxu0
      %v1332 = vadd.f32 %v1196, %v1331
      %v1333 = vpop.f32.mrf.mxu0
      %1334 = vmatprep.mubr.bf16.mxu0 0
      %1335 = vmatmul.mubr.bf16.gmra.mxu0 %v1166
      %v1336 = vpop.f32.mrf.mxu0
      %v1337 = vadd.f32 %v1196, %v1336
      %v1338 = vpop.f32.mrf.mxu0
      %v1339 = vpop.f32.mrf.mxu0
      %v1340 = vadd.f32 %v1196, %v1339
      %v1341 = vpop.f32.mrf.mxu0
      %1342 = vmatprep.mubr.bf16.mxu0 0
      %1343 = vmatmul.mubr.bf16.gmra.mxu0 %v1167
      %v1344 = vpop.f32.mrf.mxu0
      %v1345 = vadd.f32 %v1196, %v1344
      %v1346 = vpop.f32.mrf.mxu0
      %v1347 = vpop.f32.mrf.mxu0
      %v1348 = vadd.f32 %v1196, %v1347
      %v1349 = vpop.f32.mrf.mxu0
      %1350 = vmatprep.mubr.bf16.mxu0 0
      %1351 = vmatmul.mubr.bf16.gmra.mxu0 %v1168
      %v1352 = vpop.f32.mrf.mxu0
      %v1353 = vadd.f32 %v1196, %v1352
      %v1354 = vpop.f32.mrf.mxu0
      %v1355 = vpop.f32.mrf.mxu0
      %v1356 = vadd.f32 %v1196, %v1355
      %v1357 = vpop.f32.mrf.mxu0
      %1358 = vmatprep.mubr.bf16.mxu0 0
      %1359 = vmatmul.mubr.bf16.gmra.mxu0 %v1169
      %v1360 = vpop.f32.mrf.mxu0
      %v1361 = vadd.f32 %v1196, %v1360
      %v1362 = vpop.f32.mrf.mxu0
      %v1363 = vpop.f32.mrf.mxu0
      %v1364 = vadd.f32 %v1196, %v1363
      %v1365 = vpop.f32.mrf.mxu0
      %1366 = vmatprep.mubr.bf16.mxu0 0
      %1367 = vmatmul.mubr.bf16.gmra.mxu0 %v1170
      %v1368 = vpop.f32.mrf.mxu0
      %v1369 = vadd.f32 %v1196, %v1368
      %v1370 = vpop.f32.mrf.mxu0
      %v1371 = vpop.f32.mrf.mxu0
      %v1372 = vadd.f32 %v1196, %v1371
      %v1373 = vpop.f32.mrf.mxu0
      %1374 = vmatprep.mubr.bf16.mxu0 0
      %1375 = vmatmul.mubr.bf16.gmra.mxu0 %v1171
      %v1376 = vpop.f32.mrf.mxu0
      %v1377 = vadd.f32 %v1196, %v1376
      %v1378 = vpop.f32.mrf.mxu0
      %v1379 = vpop.f32.mrf.mxu0
      %v1380 = vadd.f32 %v1196, %v1379
      %v1381 = vpop.f32.mrf.mxu0
      %1382 = vmatprep.mubr.bf16.mxu0 0
      %1383 = vmatmul.mubr.bf16.gmra.mxu0 %v1172
      %v1384 = vpop.f32.mrf.mxu0
      %v1385 = vadd.f32 %v1196, %v1384
      %v1386 = vpop.f32.mrf.mxu0
      %v1387 = vpop.f32.mrf.mxu0
      %v1388 = vadd.f32 %v1196, %v1387
      %v1389 = vpop.f32.mrf.mxu0
      %1390 = vmatprep.mubr.bf16.mxu0 0
      %1391 = vmatmul.mubr.bf16.gmra.mxu0 %v1173
      %v1392 = vpop.f32.mrf.mxu0
      %v1393 = vadd.f32 %v1196, %v1392
      %v1394 = vpop.f32.mrf.mxu0
      %v1395 = vpop.f32.mrf.mxu0
      %v1396 = vadd.f32 %v1196, %v1395
      %v1397 = vpop.f32.mrf.mxu0
      %1398 = vmatprep.mubr.bf16.mxu0 0
      %1399 = vmatmul.mubr.bf16.gmra.mxu0 %v1174
      %v1400 = vpop.f32.mrf.mxu0
      %v1401 = vadd.f32 %v1196, %v1400
      %v1402 = vpop.f32.mrf.mxu0
      %v1403 = vpop.f32.mrf.mxu0
      %v1404 = vadd.f32 %v1196, %v1403
      %v1405 = vpop.f32.mrf.mxu0
      %1406 = vdwg.mxu0
      %v1407 = vld [vmem:[%s588] sm:$0xff]
      %v1408 = vld [vmem:[%s588 + $0x8] sm:$0xff]
      %v1409 = vld [vmem:[%s588 + $0x10] sm:$0xff]
      %v1410 = vld [vmem:[%s588 + $0x18] sm:$0xff]
      %v1411 = vld [vmem:[%s588 + $0x20] sm:$0xff]
      %v1412 = vld [vmem:[%s588 + $0x28] sm:$0xff]
      %v1413 = vld [vmem:[%s588 + $0x30] sm:$0xff]
      %v1414 = vld [vmem:[%s588 + $0x38] sm:$0xff]
      %v1415 = vld [vmem:[%s588 + $0x40] sm:$0xff]
      %v1416 = vld [vmem:[%s588 + $0x48] sm:$0xff]
      %v1417 = vld [vmem:[%s588 + $0x50] sm:$0xff]
      %v1418 = vld [vmem:[%s588 + $0x58] sm:$0xff]
      %v1419 = vld [vmem:[%s588 + $0x60] sm:$0xff]
      %v1420 = vld [vmem:[%s588 + $0x68] sm:$0xff]
      %v1421 = vld [vmem:[%s588 + $0x70] sm:$0xff]
      %v1422 = vld [vmem:[%s588 + $0x78] sm:$0xff]
      %v1423 = vld [vmem:[%s588 + $0x80] sm:$0xff]
      %v1424 = vld [vmem:[%s588 + $0x88] sm:$0xff]
      %v1425 = vld [vmem:[%s588 + $0x90] sm:$0xff]
      %v1426 = vld [vmem:[%s588 + $0x98] sm:$0xff]
      %v1427 = vld [vmem:[%s588 + $0xa0] sm:$0xff]
      %v1428 = vld [vmem:[%s588 + $0xa8] sm:$0xff]
      %v1429 = vld [vmem:[%s588 + $0xb0] sm:$0xff]
      %v1430 = vld [vmem:[%s588 + $0xb8] sm:$0xff]
      %v1431 = vld [vmem:[%s588 + $0xc0] sm:$0xff]
      %v1432 = vld [vmem:[%s588 + $0xc8] sm:$0xff]
      %v1433 = vld [vmem:[%s588 + $0xd0] sm:$0xff]
      %v1434 = vld [vmem:[%s588 + $0xd8] sm:$0xff]
      %v1435 = vld [vmem:[%s588 + $0xe0] sm:$0xff]
      %v1436 = vld [vmem:[%s588 + $0xe8] sm:$0xff]
      %v1437 = vld [vmem:[%s588 + $0xf0] sm:$0xff]
      %v1438 = vld [vmem:[%s588 + $0xf8] sm:$0xff]
      %v1439 = vadd.f32 %v1281, %v1407
      %v1440 = vadd.f32 %v1284, %v1408
      %v1441 = vadd.f32 %v1289, %v1409
      %v1442 = vadd.f32 %v1292, %v1410
      %v1443 = vadd.f32 %v1297, %v1411
      %v1444 = vadd.f32 %v1300, %v1412
      %v1445 = vadd.f32 %v1305, %v1413
      %v1446 = vadd.f32 %v1308, %v1414
      %v1447 = vadd.f32 %v1313, %v1415
      %v1448 = vadd.f32 %v1316, %v1416
      %v1449 = vadd.f32 %v1321, %v1417
      %v1450 = vadd.f32 %v1324, %v1418
      %v1451 = vadd.f32 %v1329, %v1419
      %v1452 = vadd.f32 %v1332, %v1420
      %v1453 = vadd.f32 %v1337, %v1421
      %v1454 = vadd.f32 %v1340, %v1422
      %v1455 = vadd.f32 %v1345, %v1423
      %v1456 = vadd.f32 %v1348, %v1424
      %v1457 = vadd.f32 %v1353, %v1425
      %v1458 = vadd.f32 %v1356, %v1426
      %v1459 = vadd.f32 %v1361, %v1427
      %v1460 = vadd.f32 %v1364, %v1428
      %v1461 = vadd.f32 %v1369, %v1429
      %v1462 = vadd.f32 %v1372, %v1430
      %v1463 = vadd.f32 %v1377, %v1431
      %v1464 = vadd.f32 %v1380, %v1432
      %v1465 = vadd.f32 %v1385, %v1433
      %v1466 = vadd.f32 %v1388, %v1434
      %v1467 = vadd.f32 %v1393, %v1435
      %v1468 = vadd.f32 %v1396, %v1436
      %v1469 = vadd.f32 %v1401, %v1437
      %v1470 = vadd.f32 %v1404, %v1438
      %v1471 = vmax.f32 %v1439, 0.0
      %v1472 = vmax.f32 %v1440, 0.0
      %v1473 = vmax.f32 %v1441, 0.0
      %v1474 = vmax.f32 %v1442, 0.0
      %v1475 = vmax.f32 %v1443, 0.0
      %v1476 = vmax.f32 %v1444, 0.0
      %v1477 = vmax.f32 %v1445, 0.0
      %v1478 = vmax.f32 %v1446, 0.0
      %v1479 = vmax.f32 %v1447, 0.0
      %v1480 = vmax.f32 %v1448, 0.0
      %v1481 = vmax.f32 %v1449, 0.0
      %v1482 = vmax.f32 %v1450, 0.0
      %v1483 = vmax.f32 %v1451, 0.0
      %v1484 = vmax.f32 %v1452, 0.0
      %v1485 = vmax.f32 %v1453, 0.0
      %v1486 = vmax.f32 %v1454, 0.0
      %v1487 = vmax.f32 %v1455, 0.0
      %v1488 = vmax.f32 %v1456, 0.0
      %v1489 = vmax.f32 %v1457, 0.0
      %v1490 = vmax.f32 %v1458, 0.0
      %v1491 = vmax.f32 %v1459, 0.0
      %v1492 = vmax.f32 %v1460, 0.0
      %v1493 = vmax.f32 %v1461, 0.0
      %v1494 = vmax.f32 %v1462, 0.0
      %v1495 = vmax.f32 %v1463, 0.0
      %v1496 = vmax.f32 %v1464, 0.0
      %v1497 = vmax.f32 %v1465, 0.0
      %v1498 = vmax.f32 %v1466, 0.0
      %v1499 = vmax.f32 %v1467, 0.0
      %v1500 = vmax.f32 %v1468, 0.0
      %v1501 = vmax.f32 %v1469, 0.0
      %v1502 = vmax.f32 %v1470, 0.0
      %1503 = vst [vmem:[%s602] sm:$0xff] %v1471
      %1504 = vst [vmem:[%s602 + $0x8] sm:$0xff] %v1472
      %1505 = vst [vmem:[%s602 + $0x10] sm:$0xff] %v1473
      %1506 = vst [vmem:[%s602 + $0x18] sm:$0xff] %v1474
      %1507 = vst [vmem:[%s602 + $0x20] sm:$0xff] %v1475
      %1508 = vst [vmem:[%s602 + $0x28] sm:$0xff] %v1476
      %1509 = vst [vmem:[%s602 + $0x30] sm:$0xff] %v1477
      %1510 = vst [vmem:[%s602 + $0x38] sm:$0xff] %v1478
      %1511 = vst [vmem:[%s602 + $0x40] sm:$0xff] %v1479
      %1512 = vst [vmem:[%s602 + $0x48] sm:$0xff] %v1480
      %1513 = vst [vmem:[%s602 + $0x50] sm:$0xff] %v1481
      %1514 = vst [vmem:[%s602 + $0x58] sm:$0xff] %v1482
      %1515 = vst [vmem:[%s602 + $0x60] sm:$0xff] %v1483
      %1516 = vst [vmem:[%s602 + $0x68] sm:$0xff] %v1484
      %1517 = vst [vmem:[%s602 + $0x70] sm:$0xff] %v1485
      %1518 = vst [vmem:[%s602 + $0x78] sm:$0xff] %v1486
      %1519 = vst [vmem:[%s602 + $0x80] sm:$0xff] %v1487
      %1520 = vst [vmem:[%s602 + $0x88] sm:$0xff] %v1488
      %1521 = vst [vmem:[%s602 + $0x90] sm:$0xff] %v1489
      %1522 = vst [vmem:[%s602 + $0x98] sm:$0xff] %v1490
      %1523 = vst [vmem:[%s602 + $0xa0] sm:$0xff] %v1491
      %1524 = vst [vmem:[%s602 + $0xa8] sm:$0xff] %v1492
      %1525 = vst [vmem:[%s602 + $0xb0] sm:$0xff] %v1493
      %1526 = vst [vmem:[%s602 + $0xb8] sm:$0xff] %v1494
      %1527 = vst [vmem:[%s602 + $0xc0] sm:$0xff] %v1495
      %1528 = vst [vmem:[%s602 + $0xc8] sm:$0xff] %v1496
      %1529 = vst [vmem:[%s602 + $0xd0] sm:$0xff] %v1497
      %1530 = vst [vmem:[%s602 + $0xd8] sm:$0xff] %v1498
      %1531 = vst [vmem:[%s602 + $0xe0] sm:$0xff] %v1499
      %1532 = vst [vmem:[%s602 + $0xe8] sm:$0xff] %v1500
      %1533 = vst [vmem:[%s602 + $0xf0] sm:$0xff] %v1501
      %1534 = vst [vmem:[%s602 + $0xf8] sm:$0xff] %v1502
      %s1535 = smul.u32 16, %s30
      %p1536 = scmp.lt.s32.totalorder %s29, 1
      %s1537 = scalar_select %p1536, %s29, 1
      %p1538 = scmp.lt.s32.totalorder %s1535, 15
      %s1539 = scalar_select %p1538, %s1535, 15
      %s1540 = smul.addr %s1539, 2
      %s1541 = smul.addr %s1537, 32
      %s1542 = sadd.s32 %s1540, %s1541
      %s1543 = smul.addr %s1542, 8
      %s1544 = scalar_lea.vmem %s14, %s1543
      // Predicated region
      $region77: #{skblock_pallas.3} parent=75 // pred_check
        %p1545 = pneg %p377
      $region78: #{skblock_pallas.3} parent=75 // pred_check_branch
        %1547 = sbr.rel (%p1545) target = $region80
      $region79: #{skblock_pallas.3} parent=75 // pred_region
        %s1548 = smul.u32 16, %s30
      $region80: #{skblock_pallas.3} parent=75 // pred_fallthru
        _
    $region76: #{skblock_pallas.3} parent=5 // pred_fallthru
      _
    %p1549 = scmp.le.s32.totalorder 2, %s20
    // Predicated region
    $region81: #{skblock_pallas.3} parent=5 // pred_check
      %p1550 = pneg %p1549
    $region82: #{skblock_pallas.3} parent=5 // pred_check_branch
      %1552 = sbr.rel (%p1550) target = $region84
    $region83: #{skblock_pallas.3} parent=5 // pred_region
      %s1553 = ssub.s32 %s20, 2
      // Predicated region
      $region85: #{skblock_pallas.3} parent=83 // pred_check
        %p1554 = pneg %p383
      $region86: #{skblock_pallas.3} parent=83 // pred_check_branch
        %1556 = sbr.rel (%p1554) target = $region88
      $region87: #{skblock_pallas.3} parent=83 // pred_region
        %s1557 = smul.u32 16, %s32
        %p1558 = scmp.lt.s32.totalorder %s31, 1
        %s1559 = scalar_select %p1558, %s31, 1
        %p1560 = scmp.lt.s32.totalorder %s1557, 15
        %s1561 = scalar_select %p1560, %s1557, 15
        %s1562 = smul.addr %s1561, 2
        %s1563 = smul.addr %s1559, 32
        %s1564 = sadd.s32 %s1562, %s1563
        %s1565 = smul.addr %s1564, 8
        %s1566 = scalar_lea.vmem %s14, %s1565
      $region88: #{skblock_pallas.3} parent=83 // pred_fallthru
        _
    $region84: #{skblock_pallas.3} parent=5 // pred_fallthru
      _
  $region6: #{skblock_pallas.3} parent=0 // loop_footer
    %s24 = sadd.s32 1, %s20
  $region7: #{skblock_pallas.3} parent=0 // loop_footer_branch
    %19 = sbr.rel target = $region3
  $region8: #{skblock_pallas.3} parent=0 // loop_exit
    _

// kernel: skblock_pallas.2
$region0: #{skblock_pallas.2}
  #allocation0 [shape = 'u32[]', space=smem, size = 0x4, offset = 0x4, fixed_abs, tag = 'smem constant byte address 0x4 - core index']
  #allocation1 [shape = 'u32[144,128]{1,0:T(1,128)}', space=vmem, size = 0x12000, scoped, tag = 'internal scratch']
  %s0 = inlined_call_operand.vmem [shape: f32[2,20,16,128], index: 0, kind: input, shape index: {}]
  %s1 = inlined_call_operand.vmem [shape: bf16[128,128], index: 1, kind: input, shape index: {}]
  %s2 = inlined_call_operand.vmem [shape: f32[1,128], index: 2, kind: input, shape index: {}]
  %s3 = inlined_call_operand.vmem [shape: bf16[3200,128], index: 3, kind: input, shape index: {}]
  %s4 = inlined_call_operand.vmem [shape: f32[1,128], index: 4, kind: input, shape index: {}]
  %s5 = inlined_call_operand.vmem [shape: bf16[1152,128], index: 5, kind: input, shape index: {}]
  %s6 = inlined_call_operand.vmem [shape: f32[1,128], index: 6, kind: input, shape index: {}]
  %s7 = inlined_call_operand.vmem [shape: f32[2,16,16,128], index: 7, kind: output, shape index: {0}]
  %s8 = inlined_call_operand.vmem [shape: f32[2,16,16,128], index: 8, kind: output, shape index: {1}]
  %s9 = inlined_call_operand.vmem [shape: f32[2,1,128], index: 9, kind: output, shape index: {2}]
  %10 = xla_tuple %s7, %s8, %s9
  %s11 = sld [smem:[#allocation0]]
  $region81: #{skblock_pallas.2} parent=0
    _
  %s13 = ssub.s32 1, %s11
  %s14 = scalar_select 0, %s13, %s11
  loop: start=0, step=1, limit=4
  $region2: #{skblock_pallas.2} parent=0 // loop_pre_header
    _
  $region3: #{skblock_pallas.2} parent=0 // loop_header
    %s16 = sphi 0, %s20
    %p17 = scmp.ge.s32.totalorder %s16, 4
    %s23 = sphi 0, %s35
    %s24 = sphi 0, %s31
    %s25 = sphi 0, %s23
    %s26 = sphi 0, %s24
    %s27 = sphi 0, %s25
    %s28 = sphi 0, %s26
    %s40 = sphi 0, %s42
    %s43 = sphi 0, %s40
    %s44 = sphi 0, %s43
    %s60 = sphi 0, %s44
    %s64 = sphi 0, %s64
    %s66 = sphi 0, %s64
    %s67 = sphi 0, %s66
    %s81 = sphi 0, %s67
    %s85 = sphi 0, %s85
    %s87 = sphi 0, %s85
    %s88 = sphi 0, %s87
    %s102 = sphi 0, %s88
    %s106 = sphi 0, %s106
    %s108 = sphi 0, %s106
    %s109 = sphi 0, %s108
    %s123 = sphi 0, %s109
    %s127 = sphi 0, %s127
    %s129 = sphi 0, %s127
    %s130 = sphi 0, %s129
    %s144 = sphi 0, %s130
    %s148 = sphi 0, %s148
    %s150 = sphi 0, %s148
    %s151 = sphi 0, %s150
    %s165 = sphi 0, %s151
    %s169 = sphi 0, %s169
    %s171 = sphi 0, %s169
    %s172 = sphi 0, %s171
    %s186 = sphi 0, %s172
    %s194 = sphi 0, %s196
    %s197 = sphi 0, %s194
    %s198 = sphi 0, %s197
    %s214 = sphi 0, %s198
    %s222 = sphi 0, %s224
    %s225 = sphi 0, %s222
    %s226 = sphi 0, %s225
    %s242 = sphi 0, %s226
    %s248 = sphi 0, %s250
    %s251 = sphi 0, %s248
    %s252 = sphi 0, %s251
    %s268 = sphi 0, %s252
  $region4: #{skblock_pallas.2} parent=0 // loop_header_branch
    %19 = sbr.rel (%p17) target = $region8
  $region5: #{skblock_pallas.2} parent=0 // loop_body
    %s21 = ssub.s32 %s16, 1
    %s22 = ssub.s32 %s16, 2
    %s29 = sadd.s32 1, %s24
    %p30 = scmp.ge.s32.totalorder %s29, 1
    %s31 = scalar_select %p30, 0, %s29
    %s32 = sadd.s32 1, %s23
    %s33 = scalar_select %p30, %s32, %s23
    %p34 = scmp.ge.s32.totalorder %s33, 2
    %s35 = scalar_select %p34, 0, %s33
    %s36 = sadd.s32 %s23, %s24
    %s37 = sadd.s32 %s35, %s31
    %s38 = ssub.s32 %s36, %s37
    %p39 = scmp.eq.s32.totalorder %s38, 0
    %s41 = sadd.s32 %s40, 1
    %s42 = scalar_select %p39, %s40, %s41
    %p45 = pneg %p39
    %p46 = scmp.eq.s32.totalorder %s16, 1
    %p47 = por %p45, %p46
    %p48 = scmp.ne.s32.totalorder %s40, %s43
    %p49 = scmp.eq.s32.totalorder %s16, 0
    %p50 = por %p48, %p49
    %p51 = scmp.ne.s32.totalorder %s40, %s43
    %p52 = scmp.eq.s32.totalorder %s21, 1
    %p53 = por %p51, %p52
    %p54 = scmp.ne.s32.totalorder %s43, %s44
    %p55 = scmp.eq.s32.totalorder %s21, 0
    %p56 = por %p54, %p55
    %p57 = scmp.ne.s32.totalorder %s43, %s44
    %p58 = scmp.eq.s32.totalorder %s22, 1
    %p59 = por %p57, %p58
    %p61 = scmp.ne.s32.totalorder %s44, %s60
    %p62 = scmp.eq.s32.totalorder %s22, 0
    %p63 = por %p61, %p62
    %s65 = sadd.s32 %s64, 1
    %p68 = scmp.eq.s32.totalorder %s16, 1
    %p69 = scmp.ne.s32.totalorder %s64, %s66
    %p70 = scmp.eq.s32.totalorder %s16, 0
    %p71 = por %p69, %p70
    %p72 = scmp.ne.s32.totalorder %s64, %s66
    %p73 = scmp.eq.s32.totalorder %s21, 1
    %p74 = por %p72, %p73
    %p75 = scmp.ne.s32.totalorder %s66, %s67
    %p76 = scmp.eq.s32.totalorder %s21, 0
    %p77 = por %p75, %p76
    %p78 = scmp.ne.s32.totalorder %s66, %s67
    %p79 = scmp.eq.s32.totalorder %s22, 1
    %p80 = por %p78, %p79
    %p82 = scmp.ne.s32.totalorder %s67, %s81
    %p83 = scmp.eq.s32.totalorder %s22, 0
    %p84 = por %p82, %p83
    %s86 = sadd.s32 %s85, 1
    %p89 = scmp.eq.s32.totalorder %s16, 1
    %p90 = scmp.ne.s32.totalorder %s85, %s87
    %p91 = scmp.eq.s32.totalorder %s16, 0
    %p92 = por %p90, %p91
    %p93 = scmp.ne.s32.totalorder %s85, %s87
    %p94 = scmp.eq.s32.totalorder %s21, 1
    %p95 = por %p93, %p94
    %p96 = scmp.ne.s32.totalorder %s87, %s88
    %p97 = scmp.eq.s32.totalorder %s21, 0
    %p98 = por %p96, %p97
    %p99 = scmp.ne.s32.totalorder %s87, %s88
    %p100 = scmp.eq.s32.totalorder %s22, 1
    %p101 = por %p99, %p100
    %p103 = scmp.ne.s32.totalorder %s88, %s102
    %p104 = scmp.eq.s32.totalorder %s22, 0
    %p105 = por %p103, %p104
    %s107 = sadd.s32 %s106, 1
    %p110 = scmp.eq.s32.totalorder %s16, 1
    %p111 = scmp.ne.s32.totalorder %s106, %s108
    %p112 = scmp.eq.s32.totalorder %s16, 0
    %p113 = por %p111, %p112
    %p114 = scmp.ne.s32.totalorder %s106, %s108
    %p115 = scmp.eq.s32.totalorder %s21, 1
    %p116 = por %p114, %p115
    %p117 = scmp.ne.s32.totalorder %s108, %s109
    %p118 = scmp.eq.s32.totalorder %s21, 0
    %p119 = por %p117, %p118
    %p120 = scmp.ne.s32.totalorder %s108, %s109
    %p121 = scmp.eq.s32.totalorder %s22, 1
    %p122 = por %p120, %p121
    %p124 = scmp.ne.s32.totalorder %s109, %s123
    %p125 = scmp.eq.s32.totalorder %s22, 0
    %p126 = por %p124, %p125
    %s128 = sadd.s32 %s127, 1
    %p131 = scmp.eq.s32.totalorder %s16, 1
    %p132 = scmp.ne.s32.totalorder %s127, %s129
    %p133 = scmp.eq.s32.totalorder %s16, 0
    %p134 = por %p132, %p133
    %p135 = scmp.ne.s32.totalorder %s127, %s129
    %p136 = scmp.eq.s32.totalorder %s21, 1
    %p137 = por %p135, %p136
    %p138 = scmp.ne.s32.totalorder %s129, %s130
    %p139 = scmp.eq.s32.totalorder %s21, 0
    %p140 = por %p138, %p139
    %p141 = scmp.ne.s32.totalorder %s129, %s130
    %p142 = scmp.eq.s32.totalorder %s22, 1
    %p143 = por %p141, %p142
    %p145 = scmp.ne.s32.totalorder %s130, %s144
    %p146 = scmp.eq.s32.totalorder %s22, 0
    %p147 = por %p145, %p146
    %s149 = sadd.s32 %s148, 1
    %p152 = scmp.eq.s32.totalorder %s16, 1
    %p153 = scmp.ne.s32.totalorder %s148, %s150
    %p154 = scmp.eq.s32.totalorder %s16, 0
    %p155 = por %p153, %p154
    %p156 = scmp.ne.s32.totalorder %s148, %s150
    %p157 = scmp.eq.s32.totalorder %s21, 1
    %p158 = por %p156, %p157
    %p159 = scmp.ne.s32.totalorder %s150, %s151
    %p160 = scmp.eq.s32.totalorder %s21, 0
    %p161 = por %p159, %p160
    %p162 = scmp.ne.s32.totalorder %s150, %s151
    %p163 = scmp.eq.s32.totalorder %s22, 1
    %p164 = por %p162, %p163
    %p166 = scmp.ne.s32.totalorder %s151, %s165
    %p167 = scmp.eq.s32.totalorder %s22, 0
    %p168 = por %p166, %p167
    %s170 = sadd.s32 %s169, 1
    %p173 = scmp.eq.s32.totalorder %s16, 1
    %p174 = scmp.ne.s32.totalorder %s169, %s171
    %p175 = scmp.eq.s32.totalorder %s16, 0
    %p176 = por %p174, %p175
    %p177 = scmp.ne.s32.totalorder %s169, %s171
    %p178 = scmp.eq.s32.totalorder %s21, 1
    %p179 = por %p177, %p178
    %p180 = scmp.ne.s32.totalorder %s171, %s172
    %p181 = scmp.eq.s32.totalorder %s21, 0
    %p182 = por %p180, %p181
    %p183 = scmp.ne.s32.totalorder %s171, %s172
    %p184 = scmp.eq.s32.totalorder %s22, 1
    %p185 = por %p183, %p184
    %p187 = scmp.ne.s32.totalorder %s172, %s186
    %p188 = scmp.eq.s32.totalorder %s22, 0
    %p189 = por %p187, %p188
    %s190 = ssub.s32 %s23, %s35
    %s191 = ssub.s32 %s24, %s31
    %s192 = sor.u32 %s190, %s191
    %p193 = scmp.eq.s32.totalorder %s192, 0
    %s195 = sadd.s32 %s194, 1
    %s196 = scalar_select %p193, %s194, %s195
    %p199 = pneg %p193
    %p200 = scmp.eq.s32.totalorder %s16, 1
    %p201 = por %p199, %p200
    %p202 = scmp.ne.s32.totalorder %s194, %s197
    %p203 = scmp.eq.s32.totalorder %s16, 0
    %p204 = por %p202, %p203
    %p205 = scmp.ne.s32.totalorder %s194, %s197
    %p206 = scmp.eq.s32.totalorder %s21, 1
    %p207 = por %p205, %p206
    %p208 = scmp.ne.s32.totalorder %s197, %s198
    %p209 = scmp.eq.s32.totalorder %s21, 0
    %p210 = por %p208, %p209
    %p211 = scmp.ne.s32.totalorder %s197, %s198
    %p212 = scmp.eq.s32.totalorder %s22, 1
    %p213 = por %p211, %p212
    %p215 = scmp.ne.s32.totalorder %s198, %s214
    %p216 = scmp.eq.s32.totalorder %s22, 0
    %p217 = por %p215, %p216
    %s218 = ssub.s32 %s23, %s35
    %s219 = ssub.s32 %s24, %s31
    %s220 = sor.u32 %s218, %s219
    %p221 = scmp.eq.s32.totalorder %s220, 0
    %s223 = sadd.s32 %s222, 1
    %s224 = scalar_select %p221, %s222, %s223
    %p227 = pneg %p221
    %p228 = scmp.eq.s32.totalorder %s16, 1
    %p229 = por %p227, %p228
    %p230 = scmp.ne.s32.totalorder %s222, %s225
    %p231 = scmp.eq.s32.totalorder %s16, 0
    %p232 = por %p230, %p231
    %p233 = scmp.ne.s32.totalorder %s222, %s225
    %p234 = scmp.eq.s32.totalorder %s21, 1
    %p235 = por %p233, %p234
    %p236 = scmp.ne.s32.totalorder %s225, %s226
    %p237 = scmp.eq.s32.totalorder %s21, 0
    %p238 = por %p236, %p237
    %p239 = scmp.ne.s32.totalorder %s225, %s226
    %p240 = scmp.eq.s32.totalorder %s22, 1
    %p241 = por %p239, %p240
    %p243 = scmp.ne.s32.totalorder %s226, %s242
    %p244 = scmp.eq.s32.totalorder %s22, 0
    %p245 = por %p243, %p244
    %s246 = ssub.s32 %s23, %s35
    %p247 = scmp.eq.s32.totalorder %s246, 0
    %s249 = sadd.s32 %s248, 1
    %s250 = scalar_select %p247, %s248, %s249
    %p253 = pneg %p247
    %p254 = scmp.eq.s32.totalorder %s16, 1
    %p255 = por %p253, %p254
    %p256 = scmp.ne.s32.totalorder %s248, %s251
    %p257 = scmp.eq.s32.totalorder %s16, 0
    %p258 = por %p256, %p257
    %p259 = scmp.ne.s32.totalorder %s248, %s251
    %p260 = scmp.eq.s32.totalorder %s21, 1
    %p261 = por %p259, %p260
    %p262 = scmp.ne.s32.totalorder %s251, %s252
    %p263 = scmp.eq.s32.totalorder %s21, 0
    %p264 = por %p262, %p263
    %p265 = scmp.ne.s32.totalorder %s251, %s252
    %p266 = scmp.eq.s32.totalorder %s22, 1
    %p267 = por %p265, %p266
    %p269 = scmp.ne.s32.totalorder %s252, %s268
    %p270 = scmp.eq.s32.totalorder %s22, 0
    %p271 = por %p269, %p270
    %p272 = scmp.le.s32.totalorder 1, %s16
    %p273 = scmp.lt.s32.totalorder %s16, 3
    %p274 = pnand %p272, %p273
    %p275 = pneg %p274
    // Predicated region
    $region9: #{skblock_pallas.2} parent=5 // pred_check
      _
    $region10: #{skblock_pallas.2} parent=5 // pred_check_branch
      %277 = sbr.rel (%p274) target = $region12
    $region11: #{skblock_pallas.2} parent=5 // pred_region
      %s278 = ssub.s32 %s16, 1
      // Predicated region
      $region13: #{skblock_pallas.2} parent=11 // pred_check
        %p279 = pneg %p77
      $region14: #{skblock_pallas.2} parent=11 // pred_check_branch
        %281 = sbr.rel (%p279) target = $region16
      $region15: #{skblock_pallas.2} parent=11 // pred_region
        _
      $region16: #{skblock_pallas.2} parent=11 // pred_fallthru
        _
      // Predicated region
      $region17: #{skblock_pallas.2} parent=11 // pred_check
        %p282 = pneg %p98
      $region18: #{skblock_pallas.2} parent=11 // pred_check_branch
        %284 = sbr.rel (%p282) target = $region20
      $region19: #{skblock_pallas.2} parent=11 // pred_region
        _
      $region20: #{skblock_pallas.2} parent=11 // pred_fallthru
        _
      // Predicated region
      $region21: #{skblock_pallas.2} parent=11 // pred_check
        %p285 = pneg %p119
      $region22: #{skblock_pallas.2} parent=11 // pred_check_branch
        %287 = sbr.rel (%p285) target = $region24
      $region23: #{skblock_pallas.2} parent=11 // pred_region
        _
      $region24: #{skblock_pallas.2} parent=11 // pred_fallthru
        _
      // Predicated region
      $region25: #{skblock_pallas.2} parent=11 // pred_check
        %p288 = pneg %p140
      $region26: #{skblock_pallas.2} parent=11 // pred_check_branch
        %290 = sbr.rel (%p288) target = $region28
      $region27: #{skblock_pallas.2} parent=11 // pred_region
        _
      $region28: #{skblock_pallas.2} parent=11 // pred_fallthru
        _
      // Predicated region
      $region29: #{skblock_pallas.2} parent=11 // pred_check
        %p291 = pneg %p161
      $region30: #{skblock_pallas.2} parent=11 // pred_check_branch
        %293 = sbr.rel (%p291) target = $region32
      $region31: #{skblock_pallas.2} parent=11 // pred_region
        _
      $region32: #{skblock_pallas.2} parent=11 // pred_fallthru
        _
      // Predicated region
      $region33: #{skblock_pallas.2} parent=11 // pred_check
        %p294 = pneg %p182
      $region34: #{skblock_pallas.2} parent=11 // pred_check_branch
        %296 = sbr.rel (%p294) target = $region36
      $region35: #{skblock_pallas.2} parent=11 // pred_region
        _
      $region36: #{skblock_pallas.2} parent=11 // pred_fallthru
        _
    $region12: #{skblock_pallas.2} parent=5 // pred_fallthru
      _
    %p297 = scmp.lt.s32.totalorder %s16, 2
    // Predicated region
    $region37: #{skblock_pallas.2} parent=5 // pred_check
      %p298 = pneg %p297
    $region38: #{skblock_pallas.2} parent=5 // pred_check_branch
      %300 = sbr.rel (%p298) target = $region40
    $region39: #{skblock_pallas.2} parent=5 // pred_region
      // Predicated region
      $region41: #{skblock_pallas.2} parent=39 // pred_check
        %p301 = pneg %p50
      $region42: #{skblock_pallas.2} parent=39 // pred_check_branch
        %303 = sbr.rel (%p301) target = $region44
      $region43: #{skblock_pallas.2} parent=39 // pred_region
        %s304 = sadd.s32 %s23, %s24
        %p305 = scmp.lt.s32.totalorder %s304, 1
        %s306 = scalar_select %p305, %s304, 1
        %s307 = smul.addr %s306, 40
        %s308 = smul.addr %s307, 8
        %s309 = scalar_lea.vmem %s0, %s308
        %s310 = sadd.s32 %s23, %s24
      $region44: #{skblock_pallas.2} parent=39 // pred_fallthru
        _
    $region40: #{skblock_pallas.2} parent=5 // pred_fallthru
      _
    %p311 = scmp.le.s32.totalorder 1, %s16
    %p312 = scmp.lt.s32.totalorder %s16, 3
    %p313 = pnand %p311, %p312
    %p314 = pneg %p313
    // Predicated region
    $region45: #{skblock_pallas.2} parent=5 // pred_check
      _
    $region46: #{skblock_pallas.2} parent=5 // pred_check_branch
      %316 = sbr.rel (%p313) target = $region48
    $region47: #{skblock_pallas.2} parent=5 // pred_region
      %s317 = ssub.s32 %s16, 1
      %s318 = sadd.s32 %s25, %s26
      %p319 = scmp.lt.s32.totalorder %s318, 1
      %s320 = scalar_select %p319, %s318, 1
      %s321 = smul.addr %s320, 40
      %s322 = smul.addr %s321, 8
      %s323 = scalar_lea.vmem %s0, %s322
      %p324 = pneg %p56
      %p325 = pneg %p53
      %p326 = pneg %p77
      %p327 = pneg %p74
      %p328 = pneg %p98
      %p329 = pneg %p95
      %p330 = pneg %p119
      %p331 = pneg %p116
      %p332 = pneg %p140
      %p333 = pneg %p137
      %p334 = pneg %p161
      %p335 = pneg %p158
      %p336 = pneg %p182
      %p337 = pneg %p179
      %p338 = pneg %p210
      %p339 = pneg %p207
      %s340 = smul.u32 16, %s26
      %p341 = scmp.lt.s32.totalorder %s25, 1
      %s342 = scalar_select %p341, %s25, 1
      %p343 = scmp.lt.s32.totalorder %s340, 15
      %s344 = scalar_select %p343, %s340, 15
      %s345 = smul.addr %s344, 2
      %s346 = smul.addr %s342, 32
      %s347 = sadd.s32 %s345, %s346
      %s348 = smul.addr %s347, 8
      %s349 = scalar_lea.vmem %s7, %s348
      %p350 = pneg %p238
      %p351 = pneg %p235
      %s352 = smul.u32 16, %s26
      %p353 = scmp.lt.s32.totalorder %s25, 1
      %s354 = scalar_select %p353, %s25, 1
      %p355 = scmp.lt.s32.totalorder %s352, 15
      %s356 = scalar_select %p355, %s352, 15
      %s357 = smul.addr %s356, 2
      %s358 = smul.addr %s354, 32
      %s359 = sadd.s32 %s357, %s358
      %s360 = smul.addr %s359, 8
      %s361 = scalar_lea.vmem %s8, %s360
      %p362 = pneg %p264
      %p363 = pneg %p261
      %p364 = scmp.lt.s32.totalorder %s25, 1
      %s365 = scalar_select %p364, %s25, 1
      %s366 = scalar_lea.vmem %s9, %s365
      %s367 = sadd.s32 %s25, %s26
      %p368 = scmp.lt.s32.totalorder %s367, 1
      %s369 = scalar_select %p368, %s367, 1
      %s370 = smul.addr %s369, 40
      %s371 = smul.addr %s370, 8
      %s372 = scalar_lea.vmem %s0, %s371
      %s373 = sadd.s32 %s25, %s26
      %s374 = smul.u32 16, %s26
      %p375 = scmp.lt.s32.totalorder %s25, 1
      %s376 = scalar_select %p375, %s25, 1
      %p377 = scmp.lt.s32.totalorder %s374, 15
      %s378 = scalar_select %p377, %s374, 15
      %s379 = smul.addr %s378, 2
      %s380 = smul.addr %s376, 32
      %s381 = sadd.s32 %s379, %s380
      %s382 = smul.addr %s381, 8
      %s383 = scalar_lea.vmem %s7, %s382
      %s384 = smul.u32 16, %s26
      %s385 = smul.u32 16, %s26
      %p386 = scmp.lt.s32.totalorder %s25, 1
      %s387 = scalar_select %p386, %s25, 1
      %p388 = scmp.lt.s32.totalorder %s385, 15
      %s389 = scalar_select %p388, %s385, 15
      %s390 = smul.addr %s389, 2
      %s391 = smul.addr %s387, 32
      %s392 = sadd.s32 %s390, %s391
      %s393 = smul.addr %s392, 8
      %s394 = scalar_lea.vmem %s8, %s393
      %s395 = smul.u32 16, %s26
      %p396 = scmp.lt.s32.totalorder %s25, 1
      %s397 = scalar_select %p396, %s25, 1
      %s398 = scalar_lea.vmem %s9, %s397
      %v400 = vld [vmem:[%s372] sm:$0xff]
      %v401 = vld [vmem:[%s372 + $0x8] sm:$0xff]
      %v402 = vld [vmem:[%s372 + $0x10] sm:$0xff]
      %v403 = vld [vmem:[%s372 + $0x18] sm:$0xff]
      %v404 = vld [vmem:[%s372 + $0x20] sm:$0xff]
      %v405 = vld [vmem:[%s372 + $0x28] sm:$0xff]
      %v406 = vld [vmem:[%s372 + $0x30] sm:$0xff]
      %v407 = vld [vmem:[%s372 + $0x38] sm:$0xff]
      %v408 = vld [vmem:[%s372 + $0x40] sm:$0xff]
      %v409 = vld [vmem:[%s372 + $0x48] sm:$0xff]
      %v410 = vld [vmem:[%s372 + $0x50] sm:$0xff]
      %v411 = vld [vmem:[%s372 + $0x58] sm:$0xff]
      %v412 = vld [vmem:[%s372 + $0x60] sm:$0xff]
      %v413 = vld [vmem:[%s372 + $0x68] sm:$0xff]
      %v414 = vld [vmem:[%s372 + $0x70] sm:$0xff]
      %v415 = vld [vmem:[%s372 + $0x78] sm:$0xff]
      %v416 = vld [vmem:[%s372 + $0x80] sm:$0xff]
      %v417 = vld [vmem:[%s372 + $0x88] sm:$0xff]
      %v418 = vld [vmem:[%s372 + $0x90] sm:$0xff]
      %v419 = vld [vmem:[%s372 + $0x98] sm:$0xff]
      %v420 = vld [vmem:[%s372 + $0xa0] sm:$0xff]
      %v421 = vld [vmem:[%s372 + $0xa8] sm:$0xff]
      %v422 = vld [vmem:[%s372 + $0xb0] sm:$0xff]
      %v423 = vld [vmem:[%s372 + $0xb8] sm:$0xff]
      %v424 = vld [vmem:[%s372 + $0xc0] sm:$0xff]
      %v425 = vld [vmem:[%s372 + $0xc8] sm:$0xff]
      %v426 = vld [vmem:[%s372 + $0xd0] sm:$0xff]
      %v427 = vld [vmem:[%s372 + $0xd8] sm:$0xff]
      %v428 = vld [vmem:[%s372 + $0xe0] sm:$0xff]
      %v429 = vld [vmem:[%s372 + $0xe8] sm:$0xff]
      %v430 = vld [vmem:[%s372 + $0xf0] sm:$0xff]
      %v431 = vld [vmem:[%s372 + $0xf8] sm:$0xff]
      %v432 = vld [vmem:[%s372 + $0x100] sm:$0xff]
      %v433 = vld [vmem:[%s372 + $0x108] sm:$0xff]
      %v434 = vld [vmem:[%s372 + $0x110] sm:$0xff]
      %v435 = vld [vmem:[%s372 + $0x118] sm:$0xff]
      %v436 = vld [vmem:[%s372 + $0x120] sm:$0xff]
      %v437 = vld [vmem:[%s372 + $0x128] sm:$0xff]
      %v438 = vld [vmem:[%s372 + $0x130] sm:$0xff]
      %v439 = vld [vmem:[%s372 + $0x138] sm:$0xff]
      %v440 = vpack.c.bf16 %v401, %v400
      %v441 = vpack.c.bf16 %v403, %v402
      %v442 = vpack.c.bf16 %v405, %v404
      %v443 = vpack.c.bf16 %v407, %v406
      %v444 = vpack.c.bf16 %v409, %v408
      %v445 = vpack.c.bf16 %v411, %v410
      %v446 = vpack.c.bf16 %v413, %v412
      %v447 = vpack.c.bf16 %v415, %v414
      %v448 = vpack.c.bf16 %v417, %v416
      %v449 = vpack.c.bf16 %v419, %v418
      %v450 = vpack.c.bf16 %v421, %v420
      %v451 = vpack.c.bf16 %v423, %v422
      %v452 = vpack.c.bf16 %v425, %v424
      %v453 = vpack.c.bf16 %v427, %v426
      %v454 = vpack.c.bf16 %v429, %v428
      %v455 = vpack.c.bf16 %v431, %v430
      %v456 = vpack.c.bf16 %v433, %v432
      %v457 = vpack.c.bf16 %v435, %v434
      %v458 = vpack.c.bf16 %v437, %v436
      %v459 = vpack.c.bf16 %v439, %v438
      %v460 = vld [vmem:[%s1] sm:$0xf]
      %v461 = vld [vmem:[%s1 + $0x4] sm:$0xf]
      %v462 = vld [vmem:[%s1 + $0x8] sm:$0xf]
      %v463 = vld [vmem:[%s1 + $0xc] sm:$0xf]
      %v464 = vld [vmem:[%s1 + $0x10] sm:$0xf]
      %v465 = vld [vmem:[%s1 + $0x14] sm:$0xf]
      %v466 = vld [vmem:[%s1 + $0x18] sm:$0xf]
      %v467 = vld [vmem:[%s1 + $0x1c] sm:$0xf]
      %v468 = vld [vmem:[%s1 + $0x20] sm:$0xf]
      %v469 = vld [vmem:[%s1 + $0x24] sm:$0xf]
      %v470 = vld [vmem:[%s1 + $0x28] sm:$0xf]
      %v471 = vld [vmem:[%s1 + $0x2c] sm:$0xf]
      %v472 = vld [vmem:[%s1 + $0x30] sm:$0xf]
      %v473 = vld [vmem:[%s1 + $0x34] sm:$0xf]
      %v474 = vld [vmem:[%s1 + $0x38] sm:$0xf]
      %v475 = vld [vmem:[%s1 + $0x3c] sm:$0xf]
      %v476 = vld [vmem:[%s2] sm:$0x1]
      %v478 = vlaneseq
      %v479 = vshrl.u32 %v478, 7
      %v480 = vsub.s32 0, %v479
      %v481 = vrot.slane %v476, %v480
      %v499 = vunpack.c.l.b16 %v460
      %v500 = vunpack.c.l.b16 %v461
      %v501 = vunpack.c.l.b16 %v462
      %v502 = vunpack.c.l.b16 %v463
      %v503 = vunpack.c.l.b16 %v464
      %v504 = vunpack.c.l.b16 %v465
      %v505 = vunpack.c.l.b16 %v466
      %v506 = vunpack.c.l.b16 %v467
      %v507 = vunpack.c.l.b16 %v468
      %v508 = vunpack.c.l.b16 %v469
      %v509 = vunpack.c.l.b16 %v470
      %v510 = vunpack.c.l.b16 %v471
      %v511 = vunpack.c.l.b16 %v472
      %v512 = vunpack.c.l.b16 %v473
      %v513 = vunpack.c.l.b16 %v474
      %v514 = vunpack.c.l.b16 %v475
      %v515 = vpack.c.b16 %v500, %v499
      %v516 = vpack.c.b16 %v502, %v501
      %v517 = vpack.c.b16 %v504, %v503
      %v518 = vpack.c.b16 %v506, %v505
      %v519 = vpack.c.b16 %v508, %v507
      %v520 = vpack.c.b16 %v510, %v509
      %v521 = vpack.c.b16 %v512, %v511
      %v522 = vpack.c.b16 %v514, %v513
      %531 = vmatprep.subr.bf16.mxu0 0
      %532 = vmatpush1.bf16.msra.mxu0 %v522
      %533 = vmatprep.subr.bf16.mxu0 0
      %534 = vmatpush1.bf16.msra.mxu0 %v521
      %535 = vmatprep.subr.bf16.mxu0 0
      %536 = vmatpush1.bf16.msra.mxu0 %v520
      %537 = vmatprep.subr.bf16.mxu0 0
      %538 = vmatpush1.bf16.msra.mxu0 %v519
      %539 = vmatprep.subr.bf16.mxu0 0
      %540 = vmatpush1.bf16.msra.mxu0 %v518
      %541 = vmatprep.subr.bf16.mxu0 0
      %542 = vmatpush1.bf16.msra.mxu0 %v517
      %543 = vmatprep.subr.bf16.mxu0 0
      %544 = vmatpush1.bf16.msra.mxu0 %v516
      %545 = vmatprep.subr.bf16.mxu0 0
      %546 = vmatpush1.bf16.msra.mxu0 %v515
      %547 = vmatprep.subr.bf16.mxu0 0
      %548 = vmatpush2.bf16.msra.mxu0 0
      %549 = vmatprep.subr.bf16.mxu0 0
      %550 = vmatpush2.bf16.msra.mxu0 0
      %551 = vmatprep.subr.bf16.mxu0 0
      %552 = vmatpush2.bf16.msra.mxu0 0
      %553 = vmatprep.subr.bf16.mxu0 0
      %554 = vmatpush2.bf16.msra.mxu0 0
      %555 = vmatprep.subr.bf16.mxu0 0
      %556 = vmatpush2.bf16.msra.mxu0 0
      %557 = vmatprep.subr.bf16.mxu0 0
      %558 = vmatpush2.bf16.msra.mxu0 0
      %559 = vmatprep.subr.bf16.mxu0 0
      %560 = vmatpush2.bf16.msra.mxu0 0
      %561 = vmatprep.subr.bf16.mxu0 0
      %562 = vmatpush2.bf16.msra.mxu0 0
      %563 = vmatprep.mubr.bf16.mxu0 0
      %564 = vmatmul.mubr.bf16.gmra.mxu0 %v440
      %v565 = vpop.f32.mrf.mxu0
      %v566 = vadd.f32 %v481, %v565
      %v567 = vpop.f32.mrf.mxu0
      %v568 = vpop.f32.mrf.mxu0
      %v569 = vadd.f32 %v481, %v568
      %v570 = vpop.f32.mrf.mxu0
      %571 = vmatprep.mubr.bf16.mxu0 0
      %572 = vmatmul.mubr.bf16.gmra.mxu0 %v441
      %v573 = vpop.f32.mrf.mxu0
      %v574 = vadd.f32 %v481, %v573
      %v575 = vpop.f32.mrf.mxu0
      %v576 = vpop.f32.mrf.mxu0
      %v577 = vadd.f32 %v481, %v576
      %v578 = vpop.f32.mrf.mxu0
      %579 = vmatprep.mubr.bf16.mxu0 0
      %580 = vmatmul.mubr.bf16.gmra.mxu0 %v442
      %v581 = vpop.f32.mrf.mxu0
      %v582 = vadd.f32 %v481, %v581
      %v583 = vpop.f32.mrf.mxu0
      %v584 = vpop.f32.mrf.mxu0
      %v585 = vadd.f32 %v481, %v584
      %v586 = vpop.f32.mrf.mxu0
      %587 = vmatprep.mubr.bf16.mxu0 0
      %588 = vmatmul.mubr.bf16.gmra.mxu0 %v443
      %v589 = vpop.f32.mrf.mxu0
      %v590 = vadd.f32 %v481, %v589
      %v591 = vpop.f32.mrf.mxu0
      %v592 = vpop.f32.mrf.mxu0
      %v593 = vadd.f32 %v481, %v592
      %v594 = vpop.f32.mrf.mxu0
      %595 = vmatprep.mubr.bf16.mxu0 0
      %596 = vmatmul.mubr.bf16.gmra.mxu0 %v444
      %v597 = vpop.f32.mrf.mxu0
      %v598 = vadd.f32 %v481, %v597
      %v599 = vpop.f32.mrf.mxu0
      %v600 = vpop.f32.mrf.mxu0
      %v601 = vadd.f32 %v481, %v600
      %v602 = vpop.f32.mrf.mxu0
      %603 = vmatprep.mubr.bf16.mxu0 0
      %604 = vmatmul.mubr.bf16.gmra.mxu0 %v445
      %v605 = vpop.f32.mrf.mxu0
      %v606 = vadd.f32 %v481, %v605
      %v607 = vpop.f32.mrf.mxu0
      %v608 = vpop.f32.mrf.mxu0
      %v609 = vadd.f32 %v481, %v608
      %v610 = vpop.f32.mrf.mxu0
      %611 = vmatprep.mubr.bf16.mxu0 0
      %612 = vmatmul.mubr.bf16.gmra.mxu0 %v446
      %v613 = vpop.f32.mrf.mxu0
      %v614 = vadd.f32 %v481, %v613
      %v615 = vpop.f32.mrf.mxu0
      %v616 = vpop.f32.mrf.mxu0
      %v617 = vadd.f32 %v481, %v616
      %v618 = vpop.f32.mrf.mxu0
      %619 = vmatprep.mubr.bf16.mxu0 0
      %620 = vmatmul.mubr.bf16.gmra.mxu0 %v447
      %v621 = vpop.f32.mrf.mxu0
      %v622 = vadd.f32 %v481, %v621
      %v623 = vpop.f32.mrf.mxu0
      %v624 = vpop.f32.mrf.mxu0
      %v625 = vadd.f32 %v481, %v624
      %v626 = vpop.f32.mrf.mxu0
      %627 = vmatprep.mubr.bf16.mxu0 0
      %628 = vmatmul.mubr.bf16.gmra.mxu0 %v448
      %v629 = vpop.f32.mrf.mxu0
      %v630 = vadd.f32 %v481, %v629
      %v631 = vpop.f32.mrf.mxu0
      %v632 = vpop.f32.mrf.mxu0
      %v633 = vadd.f32 %v481, %v632
      %v634 = vpop.f32.mrf.mxu0
      %635 = vmatprep.mubr.bf16.mxu0 0
      %636 = vmatmul.mubr.bf16.gmra.mxu0 %v449
      %v637 = vpop.f32.mrf.mxu0
      %v638 = vadd.f32 %v481, %v637
      %v639 = vpop.f32.mrf.mxu0
      %v640 = vpop.f32.mrf.mxu0
      %v641 = vadd.f32 %v481, %v640
      %v642 = vpop.f32.mrf.mxu0
      %643 = vmatprep.mubr.bf16.mxu0 0
      %644 = vmatmul.mubr.bf16.gmra.mxu0 %v450
      %v645 = vpop.f32.mrf.mxu0
      %v646 = vadd.f32 %v481, %v645
      %v647 = vpop.f32.mrf.mxu0
      %v648 = vpop.f32.mrf.mxu0
      %v649 = vadd.f32 %v481, %v648
      %v650 = vpop.f32.mrf.mxu0
      %651 = vmatprep.mubr.bf16.mxu0 0
      %652 = vmatmul.mubr.bf16.gmra.mxu0 %v451
      %v653 = vpop.f32.mrf.mxu0
      %v654 = vadd.f32 %v481, %v653
      %v655 = vpop.f32.mrf.mxu0
      %v656 = vpop.f32.mrf.mxu0
      %v657 = vadd.f32 %v481, %v656
      %v658 = vpop.f32.mrf.mxu0
      %659 = vmatprep.mubr.bf16.mxu0 0
      %660 = vmatmul.mubr.bf16.gmra.mxu0 %v452
      %v661 = vpop.f32.mrf.mxu0
      %v662 = vadd.f32 %v481, %v661
      %v663 = vpop.f32.mrf.mxu0
      %v664 = vpop.f32.mrf.mxu0
      %v665 = vadd.f32 %v481, %v664
      %v666 = vpop.f32.mrf.mxu0
      %667 = vmatprep.mubr.bf16.mxu0 0
      %668 = vmatmul.mubr.bf16.gmra.mxu0 %v453
      %v669 = vpop.f32.mrf.mxu0
      %v670 = vadd.f32 %v481, %v669
      %v671 = vpop.f32.mrf.mxu0
      %v672 = vpop.f32.mrf.mxu0
      %v673 = vadd.f32 %v481, %v672
      %v674 = vpop.f32.mrf.mxu0
      %675 = vmatprep.mubr.bf16.mxu0 0
      %676 = vmatmul.mubr.bf16.gmra.mxu0 %v454
      %v677 = vpop.f32.mrf.mxu0
      %v678 = vadd.f32 %v481, %v677
      %v679 = vpop.f32.mrf.mxu0
      %v680 = vpop.f32.mrf.mxu0
      %v681 = vadd.f32 %v481, %v680
      %v682 = vpop.f32.mrf.mxu0
      %683 = vmatprep.mubr.bf16.mxu0 0
      %684 = vmatmul.mubr.bf16.gmra.mxu0 %v455
      %v685 = vpop.f32.mrf.mxu0
      %v686 = vadd.f32 %v481, %v685
      %v687 = vpop.f32.mrf.mxu0
      %v688 = vpop.f32.mrf.mxu0
      %v689 = vadd.f32 %v481, %v688
      %v690 = vpop.f32.mrf.mxu0
      %691 = vmatprep.mubr.bf16.mxu0 0
      %692 = vmatmul.mubr.bf16.gmra.mxu0 %v456
      %v693 = vpop.f32.mrf.mxu0
      %v694 = vadd.f32 %v481, %v693
      %v695 = vpop.f32.mrf.mxu0
      %v696 = vpop.f32.mrf.mxu0
      %v697 = vadd.f32 %v481, %v696
      %v698 = vpop.f32.mrf.mxu0
      %699 = vmatprep.mubr.bf16.mxu0 0
      %700 = vmatmul.mubr.bf16.gmra.mxu0 %v457
      %v701 = vpop.f32.mrf.mxu0
      %v702 = vadd.f32 %v481, %v701
      %v703 = vpop.f32.mrf.mxu0
      %v704 = vpop.f32.mrf.mxu0
      %v705 = vadd.f32 %v481, %v704
      %v706 = vpop.f32.mrf.mxu0
      %707 = vmatprep.mubr.bf16.mxu0 0
      %708 = vmatmul.mubr.bf16.gmra.mxu0 %v458
      %v709 = vpop.f32.mrf.mxu0
      %v710 = vadd.f32 %v481, %v709
      %v711 = vpop.f32.mrf.mxu0
      %v712 = vpop.f32.mrf.mxu0
      %v713 = vadd.f32 %v481, %v712
      %v714 = vpop.f32.mrf.mxu0
      %715 = vmatprep.mubr.bf16.mxu0 0
      %716 = vmatmul.mubr.bf16.gmra.mxu0 %v459
      %v717 = vpop.f32.mrf.mxu0
      %v718 = vadd.f32 %v481, %v717
      %v719 = vpop.f32.mrf.mxu0
      %v720 = vpop.f32.mrf.mxu0
      %v721 = vadd.f32 %v481, %v720
      %v722 = vpop.f32.mrf.mxu0
      %723 = vdwg.mxu0
      %v724 = vmax.f32 %v566, 0.0
      %v725 = vmax.f32 %v569, 0.0
      %v726 = vmax.f32 %v574, 0.0
      %v727 = vmax.f32 %v577, 0.0
      %v728 = vmax.f32 %v582, 0.0
      %v729 = vmax.f32 %v585, 0.0
      %v730 = vmax.f32 %v590, 0.0
      %v731 = vmax.f32 %v593, 0.0
      %v732 = vmax.f32 %v598, 0.0
      %v733 = vmax.f32 %v601, 0.0
      %v734 = vmax.f32 %v606, 0.0
      %v735 = vmax.f32 %v609, 0.0
      %v736 = vmax.f32 %v614, 0.0
      %v737 = vmax.f32 %v617, 0.0
      %v738 = vmax.f32 %v622, 0.0
      %v739 = vmax.f32 %v625, 0.0
      %v740 = vmax.f32 %v630, 0.0
      %v741 = vmax.f32 %v633, 0.0
      %v742 = vmax.f32 %v638, 0.0
      %v743 = vmax.f32 %v641, 0.0
      %v744 = vmax.f32 %v646, 0.0
      %v745 = vmax.f32 %v649, 0.0
      %v746 = vmax.f32 %v654, 0.0
      %v747 = vmax.f32 %v657, 0.0
      %v748 = vmax.f32 %v662, 0.0
      %v749 = vmax.f32 %v665, 0.0
      %v750 = vmax.f32 %v670, 0.0
      %v751 = vmax.f32 %v673, 0.0
      %v752 = vmax.f32 %v678, 0.0
      %v753 = vmax.f32 %v681, 0.0
      %v754 = vmax.f32 %v686, 0.0
      %v755 = vmax.f32 %v689, 0.0
      %v756 = vmax.f32 %v694, 0.0
      %v757 = vmax.f32 %v697, 0.0
      %v758 = vmax.f32 %v702, 0.0
      %v759 = vmax.f32 %v705, 0.0
      %v760 = vmax.f32 %v710, 0.0
      %v761 = vmax.f32 %v713, 0.0
      %v762 = vmax.f32 %v718, 0.0
      %v763 = vmax.f32 %v721, 0.0
      %s764 = smul.u32 %s26, 16
      %v765 = vstv %s764
      %v766 = vadd.s32 %v765, 1
      %v767 = vadd.s32 %v765, 2
      %v768 = vadd.s32 %v765, 3
      %v769 = vadd.s32 %v765, 4
      %v770 = vadd.s32 %v765, 5
      %v771 = vadd.s32 %v765, 6
      %v772 = vadd.s32 %v765, 7
      %v773 = vadd.s32 %v765, 8
      %v774 = vadd.s32 %v765, 9
      %v775 = vadd.s32 %v765, 10
      %v776 = vadd.s32 %v765, 11
      %v777 = vadd.s32 %v765, 12
      %v778 = vadd.s32 %v765, 13
      %v779 = vadd.s32 %v765, 14
      %v780 = vadd.s32 %v765, 15
      %v781 = vadd.s32 %v765, 16
      %v782 = vadd.s32 %v765, 17
      %v783 = vadd.s32 %v765, 18
      %v784 = vadd.s32 %v765, 19
      %vm785 = vcmp.ge.s32.totalorder %v765, 2
      %vm786 = vcmp.ge.s32.totalorder %v766, 2
      %vm787 = vcmp.ge.s32.totalorder %v767, 2
      %vm788 = vcmp.ge.s32.totalorder %v768, 2
      %vm789 = vcmp.ge.s32.totalorder %v769, 2
      %vm790 = vcmp.ge.s32.totalorder %v770, 2
      %vm791 = vcmp.ge.s32.totalorder %v771, 2
      %vm792 = vcmp.ge.s32.totalorder %v772, 2
      %vm793 = vcmp.ge.s32.totalorder %v773, 2
      %vm794 = vcmp.ge.s32.totalorder %v774, 2
      %vm795 = vcmp.ge.s32.totalorder %v775, 2
      %vm796 = vcmp.ge.s32.totalorder %v776, 2
      %vm797 = vcmp.ge.s32.totalorder %v777, 2
      %vm798 = vcmp.ge.s32.totalorder %v778, 2
      %vm799 = vcmp.ge.s32.totalorder %v779, 2
      %vm800 = vcmp.ge.s32.totalorder %v780, 2
      %vm801 = vcmp.ge.s32.totalorder %v781, 2
      %vm802 = vcmp.ge.s32.totalorder %v782, 2
      %vm803 = vcmp.ge.s32.totalorder %v783, 2
      %vm804 = vcmp.ge.s32.totalorder %v784, 2
      %vm805 = vcmp.lt.s32.totalorder %v765, 18
      %vm806 = vcmp.lt.s32.totalorder %v766, 18
      %vm807 = vcmp.lt.s32.totalorder %v767, 18
      %vm808 = vcmp.lt.s32.totalorder %v768, 18
      %vm809 = vcmp.lt.s32.totalorder %v769, 18
      %vm810 = vcmp.lt.s32.totalorder %v770, 18
      %vm811 = vcmp.lt.s32.totalorder %v771, 18
      %vm812 = vcmp.lt.s32.totalorder %v772, 18
      %vm813 = vcmp.lt.s32.totalorder %v773, 18
      %vm814 = vcmp.lt.s32.totalorder %v774, 18
      %vm815 = vcmp.lt.s32.totalorder %v775, 18
      %vm816 = vcmp.lt.s32.totalorder %v776, 18
      %vm817 = vcmp.lt.s32.totalorder %v777, 18
      %vm818 = vcmp.lt.s32.totalorder %v778, 18
      %vm819 = vcmp.lt.s32.totalorder %v779, 18
      %vm820 = vcmp.lt.s32.totalorder %v780, 18
      %vm821 = vcmp.lt.s32.totalorder %v781, 18
      %vm822 = vcmp.lt.s32.totalorder %v782, 18
      %vm823 = vcmp.lt.s32.totalorder %v783, 18
      %vm824 = vcmp.lt.s32.totalorder %v784, 18
      %vm825 = vmand %vm785, %vm805
      %vm826 = vmand %vm786, %vm806
      %vm827 = vmand %vm787, %vm807
      %vm828 = vmand %vm788, %vm808
      %vm829 = vmand %vm789, %vm809
      %vm830 = vmand %vm790, %vm810
      %vm831 = vmand %vm791, %vm811
      %vm832 = vmand %vm792, %vm812
      %vm833 = vmand %vm793, %vm813
      %vm834 = vmand %vm794, %vm814
      %vm835 = vmand %vm795, %vm815
      %vm836 = vmand %vm796, %vm816
      %vm837 = vmand %vm797, %vm817
      %vm838 = vmand %vm798, %vm818
      %vm839 = vmand %vm799, %vm819
      %vm840 = vmand %vm800, %vm820
      %vm841 = vmand %vm801, %vm821
      %vm842 = vmand %vm802, %vm822
      %vm843 = vmand %vm803, %vm823
      %vm844 = vmand %vm804, %vm824
      %v845 = vsel %vm825, 1, 0
      %v846 = vsel %vm826, 1, 0
      %v847 = vsel %vm827, 1, 0
      %v848 = vsel %vm828, 1, 0
      %v849 = vsel %vm829, 1, 0
      %v850 = vsel %vm830, 1, 0
      %v851 = vsel %vm831, 1, 0
      %v852 = vsel %vm832, 1, 0
      %v853 = vsel %vm833, 1, 0
      %v854 = vsel %vm834, 1, 0
      %v855 = vsel %vm835, 1, 0
      %v856 = vsel %vm836, 1, 0
      %v857 = vsel %vm837, 1, 0
      %v858 = vsel %vm838, 1, 0
      %v859 = vsel %vm839, 1, 0
      %v860 = vsel %vm840, 1, 0
      %v861 = vsel %vm841, 1, 0
      %v862 = vsel %vm842, 1, 0
      %v863 = vsel %vm843, 1, 0
      %v864 = vsel %vm844, 1, 0
      %vm865 = vcmp.eq.s32.totalorder %v845, 1
      %vm866 = vcmp.eq.s32.totalorder %v846, 1
      %vm867 = vcmp.eq.s32.totalorder %v847, 1
      %vm868 = vcmp.eq.s32.totalorder %v848, 1
      %vm869 = vcmp.eq.s32.totalorder %v849, 1
      %vm870 = vcmp.eq.s32.totalorder %v850, 1
      %vm871 = vcmp.eq.s32.totalorder %v851, 1
      %vm872 = vcmp.eq.s32.totalorder %v852, 1
      %vm873 = vcmp.eq.s32.totalorder %v853, 1
      %vm874 = vcmp.eq.s32.totalorder %v854, 1
      %vm875 = vcmp.eq.s32.totalorder %v855, 1
      %vm876 = vcmp.eq.s32.totalorder %v856, 1
      %vm877 = vcmp.eq.s32.totalorder %v857, 1
      %vm878 = vcmp.eq.s32.totalorder %v858, 1
      %vm879 = vcmp.eq.s32.totalorder %v859, 1
      %vm880 = vcmp.eq.s32.totalorder %v860, 1
      %vm881 = vcmp.eq.s32.totalorder %v861, 1
      %vm882 = vcmp.eq.s32.totalorder %v862, 1
      %vm883 = vcmp.eq.s32.totalorder %v863, 1
      %vm884 = vcmp.eq.s32.totalorder %v864, 1
      %v885 = vsel %vm865, %v724, 0.0
      %v886 = vsel %vm865, %v725, 0.0
      %v887 = vsel %vm866, %v726, 0.0
      %v888 = vsel %vm866, %v727, 0.0
      %v889 = vsel %vm867, %v728, 0.0
      %v890 = vsel %vm867, %v729, 0.0
      %v891 = vsel %vm868, %v730, 0.0
      %v892 = vsel %vm868, %v731, 0.0
      %v893 = vsel %vm869, %v732, 0.0
      %v894 = vsel %vm869, %v733, 0.0
      %v895 = vsel %vm870, %v734, 0.0
      %v896 = vsel %vm870, %v735, 0.0
      %v897 = vsel %vm871, %v736, 0.0
      %v898 = vsel %vm871, %v737, 0.0
      %v899 = vsel %vm872, %v738, 0.0
      %v900 = vsel %vm872, %v739, 0.0
      %v901 = vsel %vm873, %v740, 0.0
      %v902 = vsel %vm873, %v741, 0.0
      %v903 = vsel %vm874, %v742, 0.0
      %v904 = vsel %vm874, %v743, 0.0
      %v905 = vsel %vm875, %v744, 0.0
      %v906 = vsel %vm875, %v745, 0.0
      %v907 = vsel %vm876, %v746, 0.0
      %v908 = vsel %vm876, %v747, 0.0
      %v909 = vsel %vm877, %v748, 0.0
      %v910 = vsel %vm877, %v749, 0.0
      %v911 = vsel %vm878, %v750, 0.0
      %v912 = vsel %vm878, %v751, 0.0
      %v913 = vsel %vm879, %v752, 0.0
      %v914 = vsel %vm879, %v753, 0.0
      %v915 = vsel %vm880, %v754, 0.0
      %v916 = vsel %vm880, %v755, 0.0
      %v917 = vsel %vm881, %v756, 0.0
      %v918 = vsel %vm881, %v757, 0.0
      %v919 = vsel %vm882, %v758, 0.0
      %v920 = vsel %vm882, %v759, 0.0
      %v921 = vsel %vm883, %v760, 0.0
      %v922 = vsel %vm883, %v761, 0.0
      %v923 = vsel %vm884, %v762, 0.0
      %v924 = vsel %vm884, %v763, 0.0
      %v925 = vpack.c.bf16 %v886, %v885
      %v926 = vpack.c.bf16 %v888, %v887
      %v927 = vpack.c.bf16 %v890, %v889
      %v928 = vpack.c.bf16 %v892, %v891
      %v929 = vpack.c.bf16 %v894, %v893
      %v930 = vpack.c.bf16 %v896, %v895
      %v931 = vpack.c.bf16 %v898, %v897
      %v932 = vpack.c.bf16 %v900, %v899
      %v933 = vpack.c.bf16 %v902, %v901
      %v934 = vpack.c.bf16 %v904, %v903
      %v935 = vpack.c.bf16 %v906, %v905
      %v936 = vpack.c.bf16 %v908, %v907
      %v937 = vpack.c.bf16 %v910, %v909
      %v938 = vpack.c.bf16 %v912, %v911
      %v939 = vpack.c.bf16 %v914, %v913
      %v940 = vpack.c.bf16 %v916, %v915
      %v941 = vpack.c.bf16 %v918, %v917
      %v942 = vpack.c.bf16 %v920, %v919
      %v943 = vpack.c.bf16 %v922, %v921
      %v944 = vpack.c.bf16 %v924, %v923
      %v965 = vrot.slane %v925, 7
      %v966 = vrot.slane %v926, 7
      %v967 = vrot.slane %v927, 7
      %v968 = vrot.slane %v928, 7
      %v969 = vrot.slane %v929, 7
      %v970 = vrot.slane %v930, 7
      %v971 = vrot.slane %v931, 7
      %v972 = vrot.slane %v932, 7
      %v973 = vrot.slane %v933, 7
      %v974 = vrot.slane %v934, 7
      %v975 = vrot.slane %v935, 7
      %v976 = vrot.slane %v936, 7
      %v977 = vrot.slane %v937, 7
      %v978 = vrot.slane %v938, 7
      %v979 = vrot.slane %v939, 7
      %v980 = vrot.slane %v940, 7
      %v981 = vrot.slane %v941, 7
      %v982 = vrot.slane %v942, 7
      %v983 = vrot.slane %v943, 7
      %v984 = vrot.slane %v944, 7
      %vm985 = vcmask 1040384
      %v988 = vsel %vm985, 0, %v965
      %v991 = vsel %vm985, 0, %v966
      %v994 = vsel %vm985, 0, %v967
      %v997 = vsel %vm985, 0, %v968
      %v1000 = vsel %vm985, 0, %v969
      %v1003 = vsel %vm985, 0, %v970
      %v1006 = vsel %vm985, 0, %v971
      %v1009 = vsel %vm985, 0, %v972
      %v1012 = vsel %vm985, 0, %v973
      %v1015 = vsel %vm985, 0, %v974
      %v1018 = vsel %vm985, 0, %v975
      %v1021 = vsel %vm985, 0, %v976
      %v1024 = vsel %vm985, 0, %v977
      %v1027 = vsel %vm985, 0, %v978
      %v1030 = vsel %vm985, 0, %v979
      %v1033 = vsel %vm985, 0, %v980
      %v1036 = vsel %vm985, 0, %v981
      %v1039 = vsel %vm985, 0, %v982
      %v1042 = vsel %vm985, 0, %v983
      %v1045 = vsel %vm985, 0, %v984
      %v1047 = vsel %vm985, %v965, 0
      %v1048 = vsel %vm985, %v966, 0
      %v1049 = vsel %vm985, %v967, 0
      %v1050 = vsel %vm985, %v968, 0
      %v1051 = vsel %vm985, %v969, 0
      %v1052 = vsel %vm985, %v970, 0
      %v1053 = vsel %vm985, %v971, 0
      %v1054 = vsel %vm985, %v972, 0
      %v1055 = vsel %vm985, %v973, 0
      %v1056 = vsel %vm985, %v974, 0
      %v1057 = vsel %vm985, %v975, 0
      %v1058 = vsel %vm985, %v976, 0
      %v1059 = vsel %vm985, %v977, 0
      %v1060 = vsel %vm985, %v978, 0
      %v1061 = vsel %vm985, %v979, 0
      %v1062 = vsel %vm985, %v980, 0
      %v1063 = vsel %vm985, %v981, 0
      %v1064 = vsel %vm985, %v982, 0
      %v1065 = vsel %vm985, %v983, 0
      %v1066 = vsel %vm985, %v984, 0
      %vm1067 = vsmask.f32 7424
      %v1068 = vshrl.u32 %v988, 16
      %v1070 = vshll.u32 %v988, 16
      %v1072 = vrot.slane %v1070, 1
      %v1073 = vor.u32 %v1068, %v1072
      %v1074 = vshll.u32 %v1047, 16
      %v1076 = vrot.slane %v1074, 1
      %v1077 = vsel %vm1067, %v1073, %v1076
      %v1078 = vshrl.u32 %v991, 16
      %v1080 = vshll.u32 %v991, 16
      %v1082 = vrot.slane %v1080, 1
      %v1083 = vor.u32 %v1078, %v1082
      %v1084 = vshll.u32 %v1048, 16
      %v1086 = vrot.slane %v1084, 1
      %v1087 = vsel %vm1067, %v1083, %v1086
      %v1088 = vshrl.u32 %v994, 16
      %v1090 = vshll.u32 %v994, 16
      %v1092 = vrot.slane %v1090, 1
      %v1093 = vor.u32 %v1088, %v1092
      %v1094 = vshll.u32 %v1049, 16
      %v1096 = vrot.slane %v1094, 1
      %v1097 = vsel %vm1067, %v1093, %v1096
      %v1098 = vshrl.u32 %v997, 16
      %v1100 = vshll.u32 %v997, 16
      %v1102 = vrot.slane %v1100, 1
      %v1103 = vor.u32 %v1098, %v1102
      %v1104 = vshll.u32 %v1050, 16
      %v1106 = vrot.slane %v1104, 1
      %v1107 = vsel %vm1067, %v1103, %v1106
      %v1108 = vshrl.u32 %v1000, 16
      %v1110 = vshll.u32 %v1000, 16
      %v1112 = vrot.slane %v1110, 1
      %v1113 = vor.u32 %v1108, %v1112
      %v1114 = vshll.u32 %v1051, 16
      %v1116 = vrot.slane %v1114, 1
      %v1117 = vsel %vm1067, %v1113, %v1116
      %v1118 = vshrl.u32 %v1003, 16
      %v1120 = vshll.u32 %v1003, 16
      %v1122 = vrot.slane %v1120, 1
      %v1123 = vor.u32 %v1118, %v1122
      %v1124 = vshll.u32 %v1052, 16
      %v1126 = vrot.slane %v1124, 1
      %v1127 = vsel %vm1067, %v1123, %v1126
      %v1128 = vshrl.u32 %v1006, 16
      %v1130 = vshll.u32 %v1006, 16
      %v1132 = vrot.slane %v1130, 1
      %v1133 = vor.u32 %v1128, %v1132
      %v1134 = vshll.u32 %v1053, 16
      %v1136 = vrot.slane %v1134, 1
      %v1137 = vsel %vm1067, %v1133, %v1136
      %v1138 = vshrl.u32 %v1009, 16
      %v1140 = vshll.u32 %v1009, 16
      %v1142 = vrot.slane %v1140, 1
      %v1143 = vor.u32 %v1138, %v1142
      %v1144 = vshll.u32 %v1054, 16
      %v1146 = vrot.slane %v1144, 1
      %v1147 = vsel %vm1067, %v1143, %v1146
      %v1148 = vshrl.u32 %v1012, 16
      %v1150 = vshll.u32 %v1012, 16
      %v1152 = vrot.slane %v1150, 1
      %v1153 = vor.u32 %v1148, %v1152
      %v1154 = vshll.u32 %v1055, 16
      %v1156 = vrot.slane %v1154, 1
      %v1157 = vsel %vm1067, %v1153, %v1156
      %v1158 = vshrl.u32 %v1015, 16
      %v1160 = vshll.u32 %v1015, 16
      %v1162 = vrot.slane %v1160, 1
      %v1163 = vor.u32 %v1158, %v1162
      %v1164 = vshll.u32 %v1056, 16
      %v1166 = vrot.slane %v1164, 1
      %v1167 = vsel %vm1067, %v1163, %v1166
      %v1168 = vshrl.u32 %v1018, 16
      %v1170 = vshll.u32 %v1018, 16
      %v1172 = vrot.slane %v1170, 1
      %v1173 = vor.u32 %v1168, %v1172
      %v1174 = vshll.u32 %v1057, 16
      %v1176 = vrot.slane %v1174, 1
      %v1177 = vsel %vm1067, %v1173, %v1176
      %v1178 = vshrl.u32 %v1021, 16
      %v1180 = vshll.u32 %v1021, 16
      %v1182 = vrot.slane %v1180, 1
      %v1183 = vor.u32 %v1178, %v1182
      %v1184 = vshll.u32 %v1058, 16
      %v1186 = vrot.slane %v1184, 1
      %v1187 = vsel %vm1067, %v1183, %v1186
      %v1188 = vshrl.u32 %v1024, 16
      %v1190 = vshll.u32 %v1024, 16
      %v1192 = vrot.slane %v1190, 1
      %v1193 = vor.u32 %v1188, %v1192
      %v1194 = vshll.u32 %v1059, 16
      %v1196 = vrot.slane %v1194, 1
      %v1197 = vsel %vm1067, %v1193, %v1196
      %v1198 = vshrl.u32 %v1027, 16
      %v1200 = vshll.u32 %v1027, 16
      %v1202 = vrot.slane %v1200, 1
      %v1203 = vor.u32 %v1198, %v1202
      %v1204 = vshll.u32 %v1060, 16
      %v1206 = vrot.slane %v1204, 1
      %v1207 = vsel %vm1067, %v1203, %v1206
      %v1208 = vshrl.u32 %v1030, 16
      %v1210 = vshll.u32 %v1030, 16
      %v1212 = vrot.slane %v1210, 1
      %v1213 = vor.u32 %v1208, %v1212
      %v1214 = vshll.u32 %v1061, 16
      %v1216 = vrot.slane %v1214, 1
      %v1217 = vsel %vm1067, %v1213, %v1216
      %v1218 = vshrl.u32 %v1033, 16
      %v1220 = vshll.u32 %v1033, 16
      %v1222 = vrot.slane %v1220, 1
      %v1223 = vor.u32 %v1218, %v1222
      %v1224 = vshll.u32 %v1062, 16
      %v1226 = vrot.slane %v1224, 1
      %v1227 = vsel %vm1067, %v1223, %v1226
      %vm1276 = vcmask 1046528
      %v1277 = vrot.slane %v988, 1
      %v1278 = vrot.slane %v1047, 1
      %v1279 = vsel %vm1276, %v1277, %v1278
      %v1280 = vrot.slane %v991, 1
      %v1281 = vrot.slane %v1048, 1
      %v1282 = vsel %vm1276, %v1280, %v1281
      %v1283 = vrot.slane %v994, 1
      %v1284 = vrot.slane %v1049, 1
      %v1285 = vsel %vm1276, %v1283, %v1284
      %v1286 = vrot.slane %v997, 1
      %v1287 = vrot.slane %v1050, 1
      %v1288 = vsel %vm1276, %v1286, %v1287
      %v1289 = vrot.slane %v1000, 1
      %v1290 = vrot.slane %v1051, 1
      %v1291 = vsel %vm1276, %v1289, %v1290
      %v1292 = vrot.slane %v1003, 1
      %v1293 = vrot.slane %v1052, 1
      %v1294 = vsel %vm1276, %v1292, %v1293
      %v1295 = vrot.slane %v1006, 1
      %v1296 = vrot.slane %v1053, 1
      %v1297 = vsel %vm1276, %v1295, %v1296
      %v1298 = vrot.slane %v1009, 1
      %v1299 = vrot.slane %v1054, 1
      %v1300 = vsel %vm1276, %v1298, %v1299
      %v1301 = vrot.slane %v1012, 1
      %v1302 = vrot.slane %v1055, 1
      %v1303 = vsel %vm1276, %v1301, %v1302
      %v1304 = vrot.slane %v1015, 1
      %v1305 = vrot.slane %v1056, 1
      %v1306 = vsel %vm1276, %v1304, %v1305
      %v1307 = vrot.slane %v1018, 1
      %v1308 = vrot.slane %v1057, 1
      %v1309 = vsel %vm1276, %v1307, %v1308
      %v1310 = vrot.slane %v1021, 1
      %v1311 = vrot.slane %v1058, 1
      %v1312 = vsel %vm1276, %v1310, %v1311
      %v1313 = vrot.slane %v1024, 1
      %v1314 = vrot.slane %v1059, 1
      %v1315 = vsel %vm1276, %v1313, %v1314
      %v1316 = vrot.slane %v1027, 1
      %v1317 = vrot.slane %v1060, 1
      %v1318 = vsel %vm1276, %v1316, %v1317
      %v1319 = vrot.slane %v1030, 1
      %v1320 = vrot.slane %v1061, 1
      %v1321 = vsel %vm1276, %v1319, %v1320
      %v1322 = vrot.slane %v1033, 1
      %v1323 = vrot.slane %v1062, 1
      %v1324 = vsel %vm1276, %v1322, %v1323
      %vm1341 = vsmask.f32 6400
      %v1342 = vrot.slane %v1068, 1
      %v1343 = vrot.slane %v1070, 2
      %v1344 = vor.u32 %v1342, %v1343
      %v1345 = vshrl.u32 %v1047, 16
      %v1347 = vrot.slane %v1345, 1
      %v1348 = vrot.slane %v1074, 2
      %v1349 = vor.u32 %v1347, %v1348
      %v1350 = vsel %vm1341, %v1344, %v1349
      %v1351 = vrot.slane %v1078, 1
      %v1352 = vrot.slane %v1080, 2
      %v1353 = vor.u32 %v1351, %v1352
      %v1354 = vshrl.u32 %v1048, 16
      %v1356 = vrot.slane %v1354, 1
      %v1357 = vrot.slane %v1084, 2
      %v1358 = vor.u32 %v1356, %v1357
      %v1359 = vsel %vm1341, %v1353, %v1358
      %v1360 = vrot.slane %v1088, 1
      %v1361 = vrot.slane %v1090, 2
      %v1362 = vor.u32 %v1360, %v1361
      %v1363 = vshrl.u32 %v1049, 16
      %v1365 = vrot.slane %v1363, 1
      %v1366 = vrot.slane %v1094, 2
      %v1367 = vor.u32 %v1365, %v1366
      %v1368 = vsel %vm1341, %v1362, %v1367
      %v1369 = vrot.slane %v1098, 1
      %v1370 = vrot.slane %v1100, 2
      %v1371 = vor.u32 %v1369, %v1370
      %v1372 = vshrl.u32 %v1050, 16
      %v1374 = vrot.slane %v1372, 1
      %v1375 = vrot.slane %v1104, 2
      %v1376 = vor.u32 %v1374, %v1375
      %v1377 = vsel %vm1341, %v1371, %v1376
      %v1378 = vrot.slane %v1108, 1
      %v1379 = vrot.slane %v1110, 2
      %v1380 = vor.u32 %v1378, %v1379
      %v1381 = vshrl.u32 %v1051, 16
      %v1383 = vrot.slane %v1381, 1
      %v1384 = vrot.slane %v1114, 2
      %v1385 = vor.u32 %v1383, %v1384
      %v1386 = vsel %vm1341, %v1380, %v1385
      %v1387 = vrot.slane %v1118, 1
      %v1388 = vrot.slane %v1120, 2
      %v1389 = vor.u32 %v1387, %v1388
      %v1390 = vshrl.u32 %v1052, 16
      %v1392 = vrot.slane %v1390, 1
      %v1393 = vrot.slane %v1124, 2
      %v1394 = vor.u32 %v1392, %v1393
      %v1395 = vsel %vm1341, %v1389, %v1394
      %v1396 = vrot.slane %v1128, 1
      %v1397 = vrot.slane %v1130, 2
      %v1398 = vor.u32 %v1396, %v1397
      %v1399 = vshrl.u32 %v1053, 16
      %v1401 = vrot.slane %v1399, 1
      %v1402 = vrot.slane %v1134, 2
      %v1403 = vor.u32 %v1401, %v1402
      %v1404 = vsel %vm1341, %v1398, %v1403
      %v1405 = vrot.slane %v1138, 1
      %v1406 = vrot.slane %v1140, 2
      %v1407 = vor.u32 %v1405, %v1406
      %v1408 = vshrl.u32 %v1054, 16
      %v1410 = vrot.slane %v1408, 1
      %v1411 = vrot.slane %v1144, 2
      %v1412 = vor.u32 %v1410, %v1411
      %v1413 = vsel %vm1341, %v1407, %v1412
      %v1414 = vrot.slane %v1148, 1
      %v1415 = vrot.slane %v1150, 2
      %v1416 = vor.u32 %v1414, %v1415
      %v1417 = vshrl.u32 %v1055, 16
      %v1419 = vrot.slane %v1417, 1
      %v1420 = vrot.slane %v1154, 2
      %v1421 = vor.u32 %v1419, %v1420
      %v1422 = vsel %vm1341, %v1416, %v1421
      %v1423 = vrot.slane %v1158, 1
      %v1424 = vrot.slane %v1160, 2
      %v1425 = vor.u32 %v1423, %v1424
      %v1426 = vshrl.u32 %v1056, 16
      %v1428 = vrot.slane %v1426, 1
      %v1429 = vrot.slane %v1164, 2
      %v1430 = vor.u32 %v1428, %v1429
      %v1431 = vsel %vm1341, %v1425, %v1430
      %v1432 = vrot.slane %v1168, 1
      %v1433 = vrot.slane %v1170, 2
      %v1434 = vor.u32 %v1432, %v1433
      %v1435 = vshrl.u32 %v1057, 16
      %v1437 = vrot.slane %v1435, 1
      %v1438 = vrot.slane %v1174, 2
      %v1439 = vor.u32 %v1437, %v1438
      %v1440 = vsel %vm1341, %v1434, %v1439
      %v1441 = vrot.slane %v1178, 1
      %v1442 = vrot.slane %v1180, 2
      %v1443 = vor.u32 %v1441, %v1442
      %v1444 = vshrl.u32 %v1058, 16
      %v1446 = vrot.slane %v1444, 1
      %v1447 = vrot.slane %v1184, 2
      %v1448 = vor.u32 %v1446, %v1447
      %v1449 = vsel %vm1341, %v1443, %v1448
      %v1450 = vrot.slane %v1188, 1
      %v1451 = vrot.slane %v1190, 2
      %v1452 = vor.u32 %v1450, %v1451
      %v1453 = vshrl.u32 %v1059, 16
      %v1455 = vrot.slane %v1453, 1
      %v1456 = vrot.slane %v1194, 2
      %v1457 = vor.u32 %v1455, %v1456
      %v1458 = vsel %vm1341, %v1452, %v1457
      %v1459 = vrot.slane %v1198, 1
      %v1460 = vrot.slane %v1200, 2
      %v1461 = vor.u32 %v1459, %v1460
      %v1462 = vshrl.u32 %v1060, 16
      %v1464 = vrot.slane %v1462, 1
      %v1465 = vrot.slane %v1204, 2
      %v1466 = vor.u32 %v1464, %v1465
      %v1467 = vsel %vm1341, %v1461, %v1466
      %v1468 = vrot.slane %v1208, 1
      %v1469 = vrot.slane %v1210, 2
      %v1470 = vor.u32 %v1468, %v1469
      %v1471 = vshrl.u32 %v1061, 16
      %v1473 = vrot.slane %v1471, 1
      %v1474 = vrot.slane %v1214, 2
      %v1475 = vor.u32 %v1473, %v1474
      %v1476 = vsel %vm1341, %v1470, %v1475
      %v1477 = vrot.slane %v1218, 1
      %v1478 = vrot.slane %v1220, 2
      %v1479 = vor.u32 %v1477, %v1478
      %v1480 = vshrl.u32 %v1062, 16
      %v1482 = vrot.slane %v1480, 1
      %v1483 = vrot.slane %v1224, 2
      %v1484 = vor.u32 %v1482, %v1483
      %v1485 = vsel %vm1341, %v1479, %v1484
      %vm1502 = vcmask 1045504
      %v1503 = vrot.slane %v988, 2
      %v1504 = vrot.slane %v1047, 2
      %v1505 = vsel %vm1502, %v1503, %v1504
      %v1506 = vrot.slane %v991, 2
      %v1507 = vrot.slane %v1048, 2
      %v1508 = vsel %vm1502, %v1506, %v1507
      %v1509 = vrot.slane %v994, 2
      %v1510 = vrot.slane %v1049, 2
      %v1511 = vsel %vm1502, %v1509, %v1510
      %v1512 = vrot.slane %v997, 2
      %v1513 = vrot.slane %v1050, 2
      %v1514 = vsel %vm1502, %v1512, %v1513
      %v1515 = vrot.slane %v1000, 2
      %v1516 = vrot.slane %v1051, 2
      %v1517 = vsel %vm1502, %v1515, %v1516
      %v1518 = vrot.slane %v1003, 2
      %v1519 = vrot.slane %v1052, 2
      %v1520 = vsel %vm1502, %v1518, %v1519
      %v1521 = vrot.slane %v1006, 2
      %v1522 = vrot.slane %v1053, 2
      %v1523 = vsel %vm1502, %v1521, %v1522
      %v1524 = vrot.slane %v1009, 2
      %v1525 = vrot.slane %v1054, 2
      %v1526 = vsel %vm1502, %v1524, %v1525
      %v1527 = vrot.slane %v1012, 2
      %v1528 = vrot.slane %v1055, 2
      %v1529 = vsel %vm1502, %v1527, %v1528
      %v1530 = vrot.slane %v1015, 2
      %v1531 = vrot.slane %v1056, 2
      %v1532 = vsel %vm1502, %v1530, %v1531
      %v1533 = vrot.slane %v1018, 2
      %v1534 = vrot.slane %v1057, 2
      %v1535 = vsel %vm1502, %v1533, %v1534
      %v1536 = vrot.slane %v1021, 2
      %v1537 = vrot.slane %v1058, 2
      %v1538 = vsel %vm1502, %v1536, %v1537
      %v1539 = vrot.slane %v1024, 2
      %v1540 = vrot.slane %v1059, 2
      %v1541 = vsel %vm1502, %v1539, %v1540
      %v1542 = vrot.slane %v1027, 2
      %v1543 = vrot.slane %v1060, 2
      %v1544 = vsel %vm1502, %v1542, %v1543
      %v1545 = vrot.slane %v1030, 2
      %v1546 = vrot.slane %v1061, 2
      %v1547 = vsel %vm1502, %v1545, %v1546
      %v1548 = vrot.slane %v1033, 2
      %v1549 = vrot.slane %v1062, 2
      %v1550 = vsel %vm1502, %v1548, %v1549
      %v1567 = vld [vmem:[%s3] sm:$0xf]
      %v1568 = vld [vmem:[%s3 + $0x4] sm:$0xf]
      %v1569 = vld [vmem:[%s3 + $0x8] sm:$0xf]
      %v1570 = vld [vmem:[%s3 + $0xc] sm:$0xf]
      %v1571 = vld [vmem:[%s3 + $0x10] sm:$0xf]
      %v1572 = vld [vmem:[%s3 + $0x14] sm:$0xf]
      %v1573 = vld [vmem:[%s3 + $0x18] sm:$0xf]
      %v1574 = vld [vmem:[%s3 + $0x1c] sm:$0xf]
      %v1575 = vld [vmem:[%s3 + $0x20] sm:$0xf]
      %v1576 = vld [vmem:[%s3 + $0x24] sm:$0xf]
      %v1577 = vld [vmem:[%s3 + $0x28] sm:$0xf]
      %v1578 = vld [vmem:[%s3 + $0x2c] sm:$0xf]
      %v1579 = vld [vmem:[%s3 + $0x30] sm:$0xf]
      %v1580 = vld [vmem:[%s3 + $0x34] sm:$0xf]
      %v1581 = vld [vmem:[%s3 + $0x38] sm:$0xf]
      %v1582 = vld [vmem:[%s3 + $0x3c] sm:$0xf]
      %v1583 = vld [vmem:[%s3 + $0x40] sm:$0xf]
      %v1584 = vld [vmem:[%s3 + $0x44] sm:$0xf]
      %v1585 = vld [vmem:[%s3 + $0x48] sm:$0xf]
      %v1586 = vld [vmem:[%s3 + $0x4c] sm:$0xf]
      %v1587 = vld [vmem:[%s3 + $0x50] sm:$0xf]
      %v1588 = vld [vmem:[%s3 + $0x54] sm:$0xf]
      %v1589 = vld [vmem:[%s3 + $0x58] sm:$0xf]
      %v1590 = vld [vmem:[%s3 + $0x5c] sm:$0xf]
      %v1591 = vld [vmem:[%s3 + $0x60] sm:$0xf]
      %v1592 = vld [vmem:[%s3 + $0x64] sm:$0xf]
      %v1593 = vld [vmem:[%s3 + $0x68] sm:$0xf]
      %v1594 = vld [vmem:[%s3 + $0x6c] sm:$0xf]
      %v1595 = vld [vmem:[%s3 + $0x70] sm:$0xf]
      %v1596 = vld [vmem:[%s3 + $0x74] sm:$0xf]
      %v1597 = vld [vmem:[%s3 + $0x78] sm:$0xf]
      %v1598 = vld [vmem:[%s3 + $0x7c] sm:$0xf]
      %v1599 = vld [vmem:[%s3 + $0x80] sm:$0xf]
      %v1600 = vld [vmem:[%s3 + $0x84] sm:$0xf]
      %v1601 = vld [vmem:[%s3 + $0x88] sm:$0xf]
      %v1602 = vld [vmem:[%s3 + $0x8c] sm:$0xf]
      %v1603 = vld [vmem:[%s3 + $0x90] sm:$0xf]
      %v1604 = vld [vmem:[%s3 + $0x94] sm:$0xf]
      %v1605 = vld [vmem:[%s3 + $0x98] sm:$0xf]
      %v1606 = vld [vmem:[%s3 + $0x9c] sm:$0xf]
      %v1607 = vld [vmem:[%s3 + $0xa0] sm:$0xf]
      %v1608 = vld [vmem:[%s3 + $0xa4] sm:$0xf]
      %v1609 = vld [vmem:[%s3 + $0xa8] sm:$0xf]
      %v1610 = vld [vmem:[%s3 + $0xac] sm:$0xf]
      %v1611 = vld [vmem:[%s3 + $0xb0] sm:$0xf]
      %v1612 = vld [vmem:[%s3 + $0xb4] sm:$0xf]
      %v1613 = vld [vmem:[%s3 + $0xb8] sm:$0xf]
      %v1614 = vld [vmem:[%s3 + $0xbc] sm:$0xf]
      %v1615 = vld [vmem:[%s3 + $0xc0] sm:$0xf]
      %v1616 = vld [vmem:[%s3 + $0xc4] sm:$0xf]
      %v1617 = vld [vmem:[%s3 + $0xc8] sm:$0xf]
      %v1618 = vld [vmem:[%s3 + $0xcc] sm:$0xf]
      %v1619 = vld [vmem:[%s3 + $0xd0] sm:$0xf]
      %v1620 = vld [vmem:[%s3 + $0xd4] sm:$0xf]
      %v1621 = vld [vmem:[%s3 + $0xd8] sm:$0xf]
      %v1622 = vld [vmem:[%s3 + $0xdc] sm:$0xf]
      %v1623 = vld [vmem:[%s3 + $0xe0] sm:$0xf]
      %v1624 = vld [vmem:[%s3 + $0xe4] sm:$0xf]
      %v1625 = vld [vmem:[%s3 + $0xe8] sm:$0xf]
      %v1626 = vld [vmem:[%s3 + $0xec] sm:$0xf]
      %v1627 = vld [vmem:[%s3 + $0xf0] sm:$0xf]
      %v1628 = vld [vmem:[%s3 + $0xf4] sm:$0xf]
      %v1629 = vld [vmem:[%s3 + $0xf8] sm:$0xf]
      %v1630 = vld [vmem:[%s3 + $0xfc] sm:$0xf]
      %v1631 = vld [vmem:[%s3 + $0x100] sm:$0xf]
      %v1632 = vld [vmem:[%s3 + $0x104] sm:$0xf]
      %v1633 = vld [vmem:[%s3 + $0x108] sm:$0xf]
      %v1634 = vld [vmem:[%s3 + $0x10c] sm:$0xf]
      %v1635 = vld [vmem:[%s3 + $0x110] sm:$0xf]
      %v1636 = vld [vmem:[%s3 + $0x114] sm:$0xf]
      %v1637 = vld [vmem:[%s3 + $0x118] sm:$0xf]
      %v1638 = vld [vmem:[%s3 + $0x11c] sm:$0xf]
      %v1639 = vld [vmem:[%s3 + $0x120] sm:$0xf]
      %v1640 = vld [vmem:[%s3 + $0x124] sm:$0xf]
      %v1641 = vld [vmem:[%s3 + $0x128] sm:$0xf]
      %v1642 = vld [vmem:[%s3 + $0x12c] sm:$0xf]
      %v1643 = vld [vmem:[%s3 + $0x130] sm:$0xf]
      %v1644 = vld [vmem:[%s3 + $0x134] sm:$0xf]
      %v1645 = vld [vmem:[%s3 + $0x138] sm:$0xf]
      %v1646 = vld [vmem:[%s3 + $0x13c] sm:$0xf]
      %v1647 = vshrl.u32 %v1036, 16
      %v1649 = vshll.u32 %v1036, 16
      %v1651 = vrot.slane %v1649, 1
      %v1652 = vor.u32 %v1647, %v1651
      %v1653 = vshll.u32 %v1063, 16
      %v1655 = vrot.slane %v1653, 1
      %v1656 = vsel %vm1067, %v1652, %v1655
      %v1660 = vrot.slane %v1036, 1
      %v1661 = vrot.slane %v1063, 1
      %v1662 = vsel %vm1276, %v1660, %v1661
      %v1664 = vrot.slane %v1647, 1
      %v1665 = vrot.slane %v1649, 2
      %v1666 = vor.u32 %v1664, %v1665
      %v1667 = vshrl.u32 %v1063, 16
      %v1669 = vrot.slane %v1667, 1
      %v1670 = vrot.slane %v1653, 2
      %v1671 = vor.u32 %v1669, %v1670
      %v1672 = vsel %vm1341, %v1666, %v1671
      %v1674 = vrot.slane %v1036, 2
      %v1675 = vrot.slane %v1063, 2
      %v1676 = vsel %vm1502, %v1674, %v1675
      %v1678 = vld [vmem:[%s3 + $0x140] sm:$0xf]
      %v1679 = vld [vmem:[%s3 + $0x144] sm:$0xf]
      %v1680 = vld [vmem:[%s3 + $0x148] sm:$0xf]
      %v1681 = vld [vmem:[%s3 + $0x14c] sm:$0xf]
      %v1682 = vld [vmem:[%s3 + $0x150] sm:$0xf]
      %v1683 = vld [vmem:[%s3 + $0x154] sm:$0xf]
      %v1684 = vld [vmem:[%s3 + $0x158] sm:$0xf]
      %v1685 = vld [vmem:[%s3 + $0x15c] sm:$0xf]
      %v1686 = vld [vmem:[%s3 + $0x160] sm:$0xf]
      %v1687 = vld [vmem:[%s3 + $0x164] sm:$0xf]
      %v1688 = vld [vmem:[%s3 + $0x168] sm:$0xf]
      %v1689 = vld [vmem:[%s3 + $0x16c] sm:$0xf]
      %v1690 = vld [vmem:[%s3 + $0x170] sm:$0xf]
      %v1691 = vld [vmem:[%s3 + $0x174] sm:$0xf]
      %v1692 = vld [vmem:[%s3 + $0x178] sm:$0xf]
      %v1693 = vld [vmem:[%s3 + $0x17c] sm:$0xf]
      %v1694 = vld [vmem:[%s3 + $0x180] sm:$0xf]
      %v1695 = vld [vmem:[%s3 + $0x184] sm:$0xf]
      %v1696 = vld [vmem:[%s3 + $0x188] sm:$0xf]
      %v1697 = vld [vmem:[%s3 + $0x18c] sm:$0xf]
      %v1698 = vld [vmem:[%s3 + $0x190] sm:$0xf]
      %v1699 = vld [vmem:[%s3 + $0x194] sm:$0xf]
      %v1700 = vld [vmem:[%s3 + $0x198] sm:$0xf]
      %v1701 = vld [vmem:[%s3 + $0x19c] sm:$0xf]
      %v1702 = vld [vmem:[%s3 + $0x1a0] sm:$0xf]
      %v1703 = vld [vmem:[%s3 + $0x1a4] sm:$0xf]
      %v1704 = vld [vmem:[%s3 + $0x1a8] sm:$0xf]
      %v1705 = vld [vmem:[%s3 + $0x1ac] sm:$0xf]
      %v1706 = vld [vmem:[%s3 + $0x1b0] sm:$0xf]
      %v1707 = vld [vmem:[%s3 + $0x1b4] sm:$0xf]
      %v1708 = vld [vmem:[%s3 + $0x1b8] sm:$0xf]
      %v1709 = vld [vmem:[%s3 + $0x1bc] sm:$0xf]
      %v1710 = vld [vmem:[%s3 + $0x1c0] sm:$0xf]
      %v1711 = vld [vmem:[%s3 + $0x1c4] sm:$0xf]
      %v1712 = vld [vmem:[%s3 + $0x1c8] sm:$0xf]
      %v1713 = vld [vmem:[%s3 + $0x1cc] sm:$0xf]
      %v1714 = vld [vmem:[%s3 + $0x1d0] sm:$0xf]
      %v1715 = vld [vmem:[%s3 + $0x1d4] sm:$0xf]
      %v1716 = vld [vmem:[%s3 + $0x1d8] sm:$0xf]
      %v1717 = vld [vmem:[%s3 + $0x1dc] sm:$0xf]
      %v1718 = vld [vmem:[%s3 + $0x1e0] sm:$0xf]
      %v1719 = vld [vmem:[%s3 + $0x1e4] sm:$0xf]
      %v1720 = vld [vmem:[%s3 + $0x1e8] sm:$0xf]
      %v1721 = vld [vmem:[%s3 + $0x1ec] sm:$0xf]
      %v1722 = vld [vmem:[%s3 + $0x1f0] sm:$0xf]
      %v1723 = vld [vmem:[%s3 + $0x1f4] sm:$0xf]
      %v1724 = vld [vmem:[%s3 + $0x1f8] sm:$0xf]
      %v1725 = vld [vmem:[%s3 + $0x1fc] sm:$0xf]
      %v1726 = vld [vmem:[%s3 + $0x200] sm:$0xf]
      %v1727 = vld [vmem:[%s3 + $0x204] sm:$0xf]
      %v1728 = vld [vmem:[%s3 + $0x208] sm:$0xf]
      %v1729 = vld [vmem:[%s3 + $0x20c] sm:$0xf]
      %v1730 = vld [vmem:[%s3 + $0x210] sm:$0xf]
      %v1731 = vld [vmem:[%s3 + $0x214] sm:$0xf]
      %v1732 = vld [vmem:[%s3 + $0x218] sm:$0xf]
      %v1733 = vld [vmem:[%s3 + $0x21c] sm:$0xf]
      %v1734 = vld [vmem:[%s3 + $0x220] sm:$0xf]
      %v1735 = vld [vmem:[%s3 + $0x224] sm:$0xf]
      %v1736 = vld [vmem:[%s3 + $0x228] sm:$0xf]
      %v1737 = vld [vmem:[%s3 + $0x22c] sm:$0xf]
      %v1738 = vld [vmem:[%s3 + $0x230] sm:$0xf]
      %v1739 = vld [vmem:[%s3 + $0x234] sm:$0xf]
      %v1740 = vld [vmem:[%s3 + $0x238] sm:$0xf]
      %v1741 = vld [vmem:[%s3 + $0x23c] sm:$0xf]
      %v1742 = vld [vmem:[%s3 + $0x240] sm:$0xf]
      %v1743 = vld [vmem:[%s3 + $0x244] sm:$0xf]
      %v1744 = vld [vmem:[%s3 + $0x248] sm:$0xf]
      %v1745 = vld [vmem:[%s3 + $0x24c] sm:$0xf]
      %v1746 = vld [vmem:[%s3 + $0x250] sm:$0xf]
      %v1747 = vld [vmem:[%s3 + $0x254] sm:$0xf]
      %v1748 = vld [vmem:[%s3 + $0x258] sm:$0xf]
      %v1749 = vld [vmem:[%s3 + $0x25c] sm:$0xf]
      %v1750 = vld [vmem:[%s3 + $0x260] sm:$0xf]
      %v1751 = vld [vmem:[%s3 + $0x264] sm:$0xf]
      %v1752 = vld [vmem:[%s3 + $0x268] sm:$0xf]
      %v1753 = vld [vmem:[%s3 + $0x26c] sm:$0xf]
      %v1754 = vld [vmem:[%s3 + $0x270] sm:$0xf]
      %v1755 = vld [vmem:[%s3 + $0x274] sm:$0xf]
      %v1756 = vld [vmem:[%s3 + $0x278] sm:$0xf]
      %v1757 = vld [vmem:[%s3 + $0x27c] sm:$0xf]
      %v1838 = vunpack.c.l.b16 %v1678
      %v1839 = vunpack.c.l.b16 %v1679
      %v1840 = vunpack.c.l.b16 %v1680
      %v1841 = vunpack.c.l.b16 %v1681
      %v1842 = vunpack.c.l.b16 %v1682
      %v1843 = vunpack.c.l.b16 %v1683
      %v1844 = vunpack.c.l.b16 %v1684
      %v1845 = vunpack.c.l.b16 %v1685
      %v1846 = vunpack.c.l.b16 %v1686
      %v1847 = vunpack.c.l.b16 %v1687
      %v1848 = vunpack.c.l.b16 %v1688
      %v1849 = vunpack.c.l.b16 %v1689
      %v1850 = vunpack.c.l.b16 %v1690
      %v1851 = vunpack.c.l.b16 %v1691
      %v1852 = vunpack.c.l.b16 %v1692
      %v1853 = vunpack.c.l.b16 %v1693
      %v1854 = vunpack.c.l.b16 %v1694
      %v1855 = vunpack.c.l.b16 %v1695
      %v1856 = vunpack.c.l.b16 %v1696
      %v1857 = vunpack.c.l.b16 %v1697
      %v1858 = vunpack.c.l.b16 %v1698
      %v1859 = vunpack.c.l.b16 %v1699
      %v1860 = vunpack.c.l.b16 %v1700
      %v1861 = vunpack.c.l.b16 %v1701
      %v1862 = vunpack.c.l.b16 %v1702
      %v1863 = vunpack.c.l.b16 %v1703
      %v1864 = vunpack.c.l.b16 %v1704
      %v1865 = vunpack.c.l.b16 %v1705
      %v1866 = vunpack.c.l.b16 %v1706
      %v1867 = vunpack.c.l.b16 %v1707
      %v1868 = vunpack.c.l.b16 %v1708
      %v1869 = vunpack.c.l.b16 %v1709
      %v1870 = vunpack.c.l.b16 %v1710
      %v1871 = vunpack.c.l.b16 %v1711
      %v1872 = vunpack.c.l.b16 %v1712
      %v1873 = vunpack.c.l.b16 %v1713
      %v1874 = vunpack.c.l.b16 %v1714
      %v1875 = vunpack.c.l.b16 %v1715
      %v1876 = vunpack.c.l.b16 %v1716
      %v1877 = vunpack.c.l.b16 %v1717
      %v1878 = vunpack.c.l.b16 %v1718
      %v1879 = vunpack.c.l.b16 %v1719
      %v1880 = vunpack.c.l.b16 %v1720
      %v1881 = vunpack.c.l.b16 %v1721
      %v1882 = vunpack.c.l.b16 %v1722
      %v1883 = vunpack.c.l.b16 %v1723
      %v1884 = vunpack.c.l.b16 %v1724
      %v1885 = vunpack.c.l.b16 %v1725
      %v1886 = vunpack.c.l.b16 %v1726
      %v1887 = vunpack.c.l.b16 %v1727
      %v1888 = vunpack.c.l.b16 %v1728
      %v1889 = vunpack.c.l.b16 %v1729
      %v1890 = vunpack.c.l.b16 %v1730
      %v1891 = vunpack.c.l.b16 %v1731
      %v1892 = vunpack.c.l.b16 %v1732
      %v1893 = vunpack.c.l.b16 %v1733
      %v1894 = vunpack.c.l.b16 %v1734
      %v1895 = vunpack.c.l.b16 %v1735
      %v1896 = vunpack.c.l.b16 %v1736
      %v1897 = vunpack.c.l.b16 %v1737
      %v1898 = vunpack.c.l.b16 %v1738
      %v1899 = vunpack.c.l.b16 %v1739
      %v1900 = vunpack.c.l.b16 %v1740
      %v1901 = vunpack.c.l.b16 %v1741
      %v1902 = vunpack.c.l.b16 %v1742
      %v1903 = vunpack.c.l.b16 %v1743
      %v1904 = vunpack.c.l.b16 %v1744
      %v1905 = vunpack.c.l.b16 %v1745
      %v1906 = vunpack.c.l.b16 %v1746
      %v1907 = vunpack.c.l.b16 %v1747
      %v1908 = vunpack.c.l.b16 %v1748
      %v1909 = vunpack.c.l.b16 %v1749
      %v1910 = vunpack.c.l.b16 %v1750
      %v1911 = vunpack.c.l.b16 %v1751
      %v1912 = vunpack.c.l.b16 %v1752
      %v1913 = vunpack.c.l.b16 %v1753
      %v1914 = vunpack.c.l.b16 %v1754
      %v1915 = vunpack.c.l.b16 %v1755
      %v1916 = vunpack.c.l.b16 %v1756
      %v1917 = vunpack.c.l.b16 %v1757
      %v1918 = vpack.c.b16 %v1839, %v1838
      %v1919 = vpack.c.b16 %v1841, %v1840
      %v1920 = vpack.c.b16 %v1843, %v1842
      %v1921 = vpack.c.b16 %v1845, %v1844
      %v1922 = vpack.c.b16 %v1847, %v1846
      %v1923 = vpack.c.b16 %v1849, %v1848
      %v1924 = vpack.c.b16 %v1851, %v1850
      %v1925 = vpack.c.b16 %v1853, %v1852
      %v1926 = vpack.c.b16 %v1855, %v1854
      %v1927 = vpack.c.b16 %v1857, %v1856
      %v1928 = vpack.c.b16 %v1859, %v1858
      %v1929 = vpack.c.b16 %v1861, %v1860
      %v1930 = vpack.c.b16 %v1863, %v1862
      %v1931 = vpack.c.b16 %v1865, %v1864
      %v1932 = vpack.c.b16 %v1867, %v1866
      %v1933 = vpack.c.b16 %v1869, %v1868
      %v1934 = vpack.c.b16 %v1871, %v1870
      %v1935 = vpack.c.b16 %v1873, %v1872
      %v1936 = vpack.c.b16 %v1875, %v1874
      %v1937 = vpack.c.b16 %v1877, %v1876
      %v1938 = vpack.c.b16 %v1879, %v1878
      %v1939 = vpack.c.b16 %v1881, %v1880
      %v1940 = vpack.c.b16 %v1883, %v1882
      %v1941 = vpack.c.b16 %v1885, %v1884
      %v1942 = vpack.c.b16 %v1887, %v1886
      %v1943 = vpack.c.b16 %v1889, %v1888
      %v1944 = vpack.c.b16 %v1891, %v1890
      %v1945 = vpack.c.b16 %v1893, %v1892
      %v1946 = vpack.c.b16 %v1895, %v1894
      %v1947 = vpack.c.b16 %v1897, %v1896
      %v1948 = vpack.c.b16 %v1899, %v1898
      %v1949 = vpack.c.b16 %v1901, %v1900
      %v1950 = vpack.c.b16 %v1903, %v1902
      %v1951 = vpack.c.b16 %v1905, %v1904
      %v1952 = vpack.c.b16 %v1907, %v1906
      %v1953 = vpack.c.b16 %v1909, %v1908
      %v1954 = vpack.c.b16 %v1911, %v1910
      %v1955 = vpack.c.b16 %v1913, %v1912
      %v1956 = vpack.c.b16 %v1915, %v1914
      %v1957 = vpack.c.b16 %v1917, %v1916
      %1998 = vmatprep.subr.bf16.mxu0 0
      %1999 = vmatpush1.bf16.msra.mxu0 %v1925
      %2000 = vmatprep.subr.bf16.mxu0 0
      %2001 = vmatpush1.bf16.msra.mxu0 %v1924
      %2002 = vmatprep.subr.bf16.mxu0 0
      %2003 = vmatpush1.bf16.msra.mxu0 %v1923
      %2004 = vmatprep.subr.bf16.mxu0 0
      %2005 = vmatpush1.bf16.msra.mxu0 %v1922
      %2006 = vmatprep.subr.bf16.mxu0 0
      %2007 = vmatpush1.bf16.msra.mxu0 %v1921
      %2008 = vmatprep.subr.bf16.mxu0 0
      %2009 = vmatpush1.bf16.msra.mxu0 %v1920
      %2010 = vmatprep.subr.bf16.mxu0 0
      %2011 = vmatpush1.bf16.msra.mxu0 %v1919
      %2012 = vmatprep.subr.bf16.mxu0 0
      %2013 = vmatpush1.bf16.msra.mxu0 %v1918
      %2014 = vmatprep.subr.bf16.mxu0 0
      %2015 = vmatpush2.bf16.msra.mxu0 %v1933
      %2016 = vmatprep.subr.bf16.mxu0 0
      %2017 = vmatpush2.bf16.msra.mxu0 %v1932
      %2018 = vmatprep.subr.bf16.mxu0 0
      %2019 = vmatpush2.bf16.msra.mxu0 %v1931
      %2020 = vmatprep.subr.bf16.mxu0 0
      %2021 = vmatpush2.bf16.msra.mxu0 %v1930
      %2022 = vmatprep.subr.bf16.mxu0 0
      %2023 = vmatpush2.bf16.msra.mxu0 %v1929
      %2024 = vmatprep.subr.bf16.mxu0 0
      %2025 = vmatpush2.bf16.msra.mxu0 %v1928
      %2026 = vmatprep.subr.bf16.mxu0 0
      %2027 = vmatpush2.bf16.msra.mxu0 %v1927
      %2028 = vmatprep.subr.bf16.mxu0 0
      %2029 = vmatpush2.bf16.msra.mxu0 %v1926
      %2030 = vmatprep.mubr.bf16.mxu0 %v1087
      %2031 = vmatmul.mubr.bf16.gmra.mxu0 %v991
      %v2032 = vpop.f32.mrf.mxu0
      %v2033 = vadd.f32 0.0, %v2032
      %v2034 = vpop.f32.mrf.mxu0
      %v2035 = vpop.f32.mrf.mxu0
      %v2036 = vadd.f32 0.0, %v2035
      %v2037 = vpop.f32.mrf.mxu0
      %2038 = vmatprep.mubr.bf16.mxu0 %v1097
      %2039 = vmatmul.mubr.bf16.gmra.mxu0 %v994
      %v2040 = vpop.f32.mrf.mxu0
      %v2041 = vadd.f32 0.0, %v2040
      %v2042 = vpop.f32.mrf.mxu0
      %v2043 = vpop.f32.mrf.mxu0
      %v2044 = vadd.f32 0.0, %v2043
      %v2045 = vpop.f32.mrf.mxu0
      %2046 = vmatprep.mubr.bf16.mxu0 %v1107
      %2047 = vmatmul.mubr.bf16.gmra.mxu0 %v997
      %v2048 = vpop.f32.mrf.mxu0
      %v2049 = vadd.f32 0.0, %v2048
      %v2050 = vpop.f32.mrf.mxu0
      %v2051 = vpop.f32.mrf.mxu0
      %v2052 = vadd.f32 0.0, %v2051
      %v2053 = vpop.f32.mrf.mxu0
      %2054 = vmatprep.mubr.bf16.mxu0 %v1117
      %2055 = vmatmul.mubr.bf16.gmra.mxu0 %v1000
      %v2056 = vpop.f32.mrf.mxu0
      %v2057 = vadd.f32 0.0, %v2056
      %v2058 = vpop.f32.mrf.mxu0
      %v2059 = vpop.f32.mrf.mxu0
      %v2060 = vadd.f32 0.0, %v2059
      %v2061 = vpop.f32.mrf.mxu0
      %2062 = vmatprep.mubr.bf16.mxu0 %v1127
      %2063 = vmatmul.mubr.bf16.gmra.mxu0 %v1003
      %v2064 = vpop.f32.mrf.mxu0
      %v2065 = vadd.f32 0.0, %v2064
      %v2066 = vpop.f32.mrf.mxu0
      %v2067 = vpop.f32.mrf.mxu0
      %v2068 = vadd.f32 0.0, %v2067
      %v2069 = vpop.f32.mrf.mxu0
      %2070 = vmatprep.mubr.bf16.mxu0 %v1137
      %2071 = vmatmul.mubr.bf16.gmra.mxu0 %v1006
      %v2072 = vpop.f32.mrf.mxu0
      %v2073 = vadd.f32 0.0, %v2072
      %v2074 = vpop.f32.mrf.mxu0
      %v2075 = vpop.f32.mrf.mxu0
      %v2076 = vadd.f32 0.0, %v2075
      %v2077 = vpop.f32.mrf.mxu0
      %2078 = vmatprep.mubr.bf16.mxu0 %v1147
      %2079 = vmatmul.mubr.bf16.gmra.mxu0 %v1009
      %v2080 = vpop.f32.mrf.mxu0
      %v2081 = vadd.f32 0.0, %v2080
      %v2082 = vpop.f32.mrf.mxu0
      %v2083 = vpop.f32.mrf.mxu0
      %v2084 = vadd.f32 0.0, %v2083
      %v2085 = vpop.f32.mrf.mxu0
      %2086 = vmatprep.mubr.bf16.mxu0 %v1157
      %2087 = vmatmul.mubr.bf16.gmra.mxu0 %v1012
      %v2088 = vpop.f32.mrf.mxu0
      %v2089 = vadd.f32 0.0, %v2088
      %v2090 = vpop.f32.mrf.mxu0
      %v2091 = vpop.f32.mrf.mxu0
      %v2092 = vadd.f32 0.0, %v2091
      %v2093 = vpop.f32.mrf.mxu0
      %2094 = vmatprep.mubr.bf16.mxu0 %v1167
      %2095 = vmatmul.mubr.bf16.gmra.mxu0 %v1015
      %v2096 = vpop.f32.mrf.mxu0
      %v2097 = vadd.f32 0.0, %v2096
      %v2098 = vpop.f32.mrf.mxu0
      %v2099 = vpop.f32.mrf.mxu0
      %v2100 = vadd.f32 0.0, %v2099
      %v2101 = vpop.f32.mrf.mxu0
      %2102 = vmatprep.mubr.bf16.mxu0 %v1177
      %2103 = vmatmul.mubr.bf16.gmra.mxu0 %v1018
      %v2104 = vpop.f32.mrf.mxu0
      %v2105 = vadd.f32 0.0, %v2104
      %v2106 = vpop.f32.mrf.mxu0
      %v2107 = vpop.f32.mrf.mxu0
      %v2108 = vadd.f32 0.0, %v2107
      %v2109 = vpop.f32.mrf.mxu0
      %2110 = vmatprep.mubr.bf16.mxu0 %v1187
      %2111 = vmatmul.mubr.bf16.gmra.mxu0 %v1021
      %v2112 = vpop.f32.mrf.mxu0
      %v2113 = vadd.f32 0.0, %v2112
      %v2114 = vpop.f32.mrf.mxu0
      %v2115 = vpop.f32.mrf.mxu0
      %v2116 = vadd.f32 0.0, %v2115
      %v2117 = vpop.f32.mrf.mxu0
      %2118 = vmatprep.mubr.bf16.mxu0 %v1197
      %2119 = vmatmul.mubr.bf16.gmra.mxu0 %v1024
      %v2120 = vpop.f32.mrf.mxu0
      %v2121 = vadd.f32 0.0, %v2120
      %v2122 = vpop.f32.mrf.mxu0
      %v2123 = vpop.f32.mrf.mxu0
      %v2124 = vadd.f32 0.0, %v2123
      %v2125 = vpop.f32.mrf.mxu0
      %2126 = vmatprep.mubr.bf16.mxu0 %v1207
      %2127 = vmatmul.mubr.bf16.gmra.mxu0 %v1027
      %v2128 = vpop.f32.mrf.mxu0
      %v2129 = vadd.f32 0.0, %v2128
      %v2130 = vpop.f32.mrf.mxu0
      %v2131 = vpop.f32.mrf.mxu0
      %v2132 = vadd.f32 0.0, %v2131
      %v2133 = vpop.f32.mrf.mxu0
      %2134 = vmatprep.mubr.bf16.mxu0 %v1217
      %2135 = vmatmul.mubr.bf16.gmra.mxu0 %v1030
      %v2136 = vpop.f32.mrf.mxu0
      %v2137 = vadd.f32 0.0, %v2136
      %v2138 = vpop.f32.mrf.mxu0
      %v2139 = vpop.f32.mrf.mxu0
      %v2140 = vadd.f32 0.0, %v2139
      %v2141 = vpop.f32.mrf.mxu0
      %2142 = vmatprep.mubr.bf16.mxu0 %v1227
      %2143 = vmatmul.mubr.bf16.gmra.mxu0 %v1033
      %v2144 = vpop.f32.mrf.mxu0
      %v2145 = vadd.f32 0.0, %v2144
      %v2146 = vpop.f32.mrf.mxu0
      %v2147 = vpop.f32.mrf.mxu0
      %v2148 = vadd.f32 0.0, %v2147
      %v2149 = vpop.f32.mrf.mxu0
      %2150 = vmatprep.mubr.bf16.mxu0 %v1656
      %2151 = vmatmul.mubr.bf16.gmra.mxu0 %v1036
      %v2152 = vpop.f32.mrf.mxu0
      %v2153 = vadd.f32 0.0, %v2152
      %v2154 = vpop.f32.mrf.mxu0
      %v2155 = vpop.f32.mrf.mxu0
      %v2156 = vadd.f32 0.0, %v2155
      %v2157 = vpop.f32.mrf.mxu0
      %2158 = vdwg.mxu0
      %2159 = vmatprep.subr.bf16.mxu0 0
      %2160 = vmatpush1.bf16.msra.mxu0 %v1941
      %2161 = vmatprep.subr.bf16.mxu0 0
      %2162 = vmatpush1.bf16.msra.mxu0 %v1940
      %2163 = vmatprep.subr.bf16.mxu0 0
      %2164 = vmatpush1.bf16.msra.mxu0 %v1939
      %2165 = vmatprep.subr.bf16.mxu0 0
      %2166 = vmatpush1.bf16.msra.mxu0 %v1938
      %2167 = vmatprep.subr.bf16.mxu0 0
      %2168 = vmatpush1.bf16.msra.mxu0 %v1937
      %2169 = vmatprep.subr.bf16.mxu0 0
      %2170 = vmatpush1.bf16.msra.mxu0 %v1936
      %2171 = vmatprep.subr.bf16.mxu0 0
      %2172 = vmatpush1.bf16.msra.mxu0 %v1935
      %2173 = vmatprep.subr.bf16.mxu0 0
      %2174 = vmatpush1.bf16.msra.mxu0 %v1934
      %2175 = vmatprep.subr.bf16.mxu0 0
      %2176 = vmatpush2.bf16.msra.mxu0 %v1949
      %2177 = vmatprep.subr.bf16.mxu0 0
      %2178 = vmatpush2.bf16.msra.mxu0 %v1948
      %2179 = vmatprep.subr.bf16.mxu0 0
      %2180 = vmatpush2.bf16.msra.mxu0 %v1947
      %2181 = vmatprep.subr.bf16.mxu0 0
      %2182 = vmatpush2.bf16.msra.mxu0 %v1946
      %2183 = vmatprep.subr.bf16.mxu0 0
      %2184 = vmatpush2.bf16.msra.mxu0 %v1945
      %2185 = vmatprep.subr.bf16.mxu0 0
      %2186 = vmatpush2.bf16.msra.mxu0 %v1944
      %2187 = vmatprep.subr.bf16.mxu0 0
      %2188 = vmatpush2.bf16.msra.mxu0 %v1943
      %2189 = vmatprep.subr.bf16.mxu0 0
      %2190 = vmatpush2.bf16.msra.mxu0 %v1942
      %2191 = vmatprep.mubr.bf16.mxu0 %v1359
      %2192 = vmatmul.mubr.bf16.gmra.mxu0 %v1282
      %v2193 = vpop.f32.mrf.mxu0
      %v2194 = vadd.f32 %v2033, %v2193
      %v2195 = vpop.f32.mrf.mxu0
      %v2196 = vpop.f32.mrf.mxu0
      %v2197 = vadd.f32 %v2036, %v2196
      %v2198 = vpop.f32.mrf.mxu0
      %2199 = vmatprep.mubr.bf16.mxu0 %v1368
      %2200 = vmatmul.mubr.bf16.gmra.mxu0 %v1285
      %v2201 = vpop.f32.mrf.mxu0
      %v2202 = vadd.f32 %v2041, %v2201
      %v2203 = vpop.f32.mrf.mxu0
      %v2204 = vpop.f32.mrf.mxu0
      %v2205 = vadd.f32 %v2044, %v2204
      %v2206 = vpop.f32.mrf.mxu0
      %2207 = vmatprep.mubr.bf16.mxu0 %v1377
      %2208 = vmatmul.mubr.bf16.gmra.mxu0 %v1288
      %v2209 = vpop.f32.mrf.mxu0
      %v2210 = vadd.f32 %v2049, %v2209
      %v2211 = vpop.f32.mrf.mxu0
      %v2212 = vpop.f32.mrf.mxu0
      %v2213 = vadd.f32 %v2052, %v2212
      %v2214 = vpop.f32.mrf.mxu0
      %2215 = vmatprep.mubr.bf16.mxu0 %v1386
      %2216 = vmatmul.mubr.bf16.gmra.mxu0 %v1291
      %v2217 = vpop.f32.mrf.mxu0
      %v2218 = vadd.f32 %v2057, %v2217
      %v2219 = vpop.f32.mrf.mxu0
      %v2220 = vpop.f32.mrf.mxu0
      %v2221 = vadd.f32 %v2060, %v2220
      %v2222 = vpop.f32.mrf.mxu0
      %2223 = vmatprep.mubr.bf16.mxu0 %v1395
      %2224 = vmatmul.mubr.bf16.gmra.mxu0 %v1294
      %v2225 = vpop.f32.mrf.mxu0
      %v2226 = vadd.f32 %v2065, %v2225
      %v2227 = vpop.f32.mrf.mxu0
      %v2228 = vpop.f32.mrf.mxu0
      %v2229 = vadd.f32 %v2068, %v2228
      %v2230 = vpop.f32.mrf.mxu0
      %2231 = vmatprep.mubr.bf16.mxu0 %v1404
      %2232 = vmatmul.mubr.bf16.gmra.mxu0 %v1297
      %v2233 = vpop.f32.mrf.mxu0
      %v2234 = vadd.f32 %v2073, %v2233
      %v2235 = vpop.f32.mrf.mxu0
      %v2236 = vpop.f32.mrf.mxu0
      %v2237 = vadd.f32 %v2076, %v2236
      %v2238 = vpop.f32.mrf.mxu0
      %2239 = vmatprep.mubr.bf16.mxu0 %v1413
      %2240 = vmatmul.mubr.bf16.gmra.mxu0 %v1300
      %v2241 = vpop.f32.mrf.mxu0
      %v2242 = vadd.f32 %v2081, %v2241
      %v2243 = vpop.f32.mrf.mxu0
      %v2244 = vpop.f32.mrf.mxu0
      %v2245 = vadd.f32 %v2084, %v2244
      %v2246 = vpop.f32.mrf.mxu0
      %2247 = vmatprep.mubr.bf16.mxu0 %v1422
      %2248 = vmatmul.mubr.bf16.gmra.mxu0 %v1303
      %v2249 = vpop.f32.mrf.mxu0
      %v2250 = vadd.f32 %v2089, %v2249
      %v2251 = vpop.f32.mrf.mxu0
      %v2252 = vpop.f32.mrf.mxu0
      %v2253 = vadd.f32 %v2092, %v2252
      %v2254 = vpop.f32.mrf.mxu0
      %2255 = vmatprep.mubr.bf16.mxu0 %v1431
      %2256 = vmatmul.mubr.bf16.gmra.mxu0 %v1306
      %v2257 = vpop.f32.mrf.mxu0
      %v2258 = vadd.f32 %v2097, %v2257
      %v2259 = vpop.f32.mrf.mxu0
      %v2260 = vpop.f32.mrf.mxu0
      %v2261 = vadd.f32 %v2100, %v2260
      %v2262 = vpop.f32.mrf.mxu0
      %2263 = vmatprep.mubr.bf16.mxu0 %v1440
      %2264 = vmatmul.mubr.bf16.gmra.mxu0 %v1309
      %v2265 = vpop.f32.mrf.mxu0
      %v2266 = vadd.f32 %v2105, %v2265
      %v2267 = vpop.f32.mrf.mxu0
      %v2268 = vpop.f32.mrf.mxu0
      %v2269 = vadd.f32 %v2108, %v2268
      %v2270 = vpop.f32.mrf.mxu0
      %2271 = vmatprep.mubr.bf16.mxu0 %v1449
      %2272 = vmatmul.mubr.bf16.gmra.mxu0 %v1312
      %v2273 = vpop.f32.mrf.mxu0
      %v2274 = vadd.f32 %v2113, %v2273
      %v2275 = vpop.f32.mrf.mxu0
      %v2276 = vpop.f32.mrf.mxu0
      %v2277 = vadd.f32 %v2116, %v2276
      %v2278 = vpop.f32.mrf.mxu0
      %2279 = vmatprep.mubr.bf16.mxu0 %v1458
      %2280 = vmatmul.mubr.bf16.gmra.mxu0 %v1315
      %v2281 = vpop.f32.mrf.mxu0
      %v2282 = vadd.f32 %v2121, %v2281
      %v2283 = vpop.f32.mrf.mxu0
      %v2284 = vpop.f32.mrf.mxu0
      %v2285 = vadd.f32 %v2124, %v2284
      %v2286 = vpop.f32.mrf.mxu0
      %2287 = vmatprep.mubr.bf16.mxu0 %v1467
      %2288 = vmatmul.mubr.bf16.gmra.mxu0 %v1318
      %v2289 = vpop.f32.mrf.mxu0
      %v2290 = vadd.f32 %v2129, %v2289
      %v2291 = vpop.f32.mrf.mxu0
      %v2292 = vpop.f32.mrf.mxu0
      %v2293 = vadd.f32 %v2132, %v2292
      %v2294 = vpop.f32.mrf.mxu0
      %2295 = vmatprep.mubr.bf16.mxu0 %v1476
      %2296 = vmatmul.mubr.bf16.gmra.mxu0 %v1321
      %v2297 = vpop.f32.mrf.mxu0
      %v2298 = vadd.f32 %v2137, %v2297
      %v2299 = vpop.f32.mrf.mxu0
      %v2300 = vpop.f32.mrf.mxu0
      %v2301 = vadd.f32 %v2140, %v2300
      %v2302 = vpop.f32.mrf.mxu0
      %2303 = vmatprep.mubr.bf16.mxu0 %v1485
      %2304 = vmatmul.mubr.bf16.gmra.mxu0 %v1324
      %v2305 = vpop.f32.mrf.mxu0
      %v2306 = vadd.f32 %v2145, %v2305
      %v2307 = vpop.f32.mrf.mxu0
      %v2308 = vpop.f32.mrf.mxu0
      %v2309 = vadd.f32 %v2148, %v2308
      %v2310 = vpop.f32.mrf.mxu0
      %2311 = vmatprep.mubr.bf16.mxu0 %v1672
      %2312 = vmatmul.mubr.bf16.gmra.mxu0 %v1662
      %v2313 = vpop.f32.mrf.mxu0
      %v2314 = vadd.f32 %v2153, %v2313
      %v2315 = vpop.f32.mrf.mxu0
      %v2316 = vpop.f32.mrf.mxu0
      %v2317 = vadd.f32 %v2156, %v2316
      %v2318 = vpop.f32.mrf.mxu0
      %2319 = vdwg.mxu0
      %2320 = vmatprep.subr.bf16.mxu0 0
      %2321 = vmatpush1.bf16.msra.mxu0 %v1957
      %2322 = vmatprep.subr.bf16.mxu0 0
      %2323 = vmatpush1.bf16.msra.mxu0 %v1956
      %2324 = vmatprep.subr.bf16.mxu0 0
      %2325 = vmatpush1.bf16.msra.mxu0 %v1955
      %2326 = vmatprep.subr.bf16.mxu0 0
      %2327 = vmatpush1.bf16.msra.mxu0 %v1954
      %2328 = vmatprep.subr.bf16.mxu0 0
      %2329 = vmatpush1.bf16.msra.mxu0 %v1953
      %2330 = vmatprep.subr.bf16.mxu0 0
      %2331 = vmatpush1.bf16.msra.mxu0 %v1952
      %2332 = vmatprep.subr.bf16.mxu0 0
      %2333 = vmatpush1.bf16.msra.mxu0 %v1951
      %2334 = vmatprep.subr.bf16.mxu0 0
      %2335 = vmatpush1.bf16.msra.mxu0 %v1950
      %2336 = vmatprep.subr.bf16.mxu0 0
      %2337 = vmatpush2.bf16.msra.mxu0 0
      %2338 = vmatprep.subr.bf16.mxu0 0
      %2339 = vmatpush2.bf16.msra.mxu0 0
      %2340 = vmatprep.subr.bf16.mxu0 0
      %2341 = vmatpush2.bf16.msra.mxu0 0
      %2342 = vmatprep.subr.bf16.mxu0 0
      %2343 = vmatpush2.bf16.msra.mxu0 0
      %2344 = vmatprep.subr.bf16.mxu0 0
      %2345 = vmatpush2.bf16.msra.mxu0 0
      %2346 = vmatprep.subr.bf16.mxu0 0
      %2347 = vmatpush2.bf16.msra.mxu0 0
      %2348 = vmatprep.subr.bf16.mxu0 0
      %2349 = vmatpush2.bf16.msra.mxu0 0
      %2350 = vmatprep.subr.bf16.mxu0 0
      %2351 = vmatpush2.bf16.msra.mxu0 0
      %2352 = vmatprep.mubr.bf16.mxu0 0
      %2353 = vmatmul.mubr.bf16.gmra.mxu0 %v1508
      %v2354 = vpop.f32.mrf.mxu0
      %v2355 = vadd.f32 %v2194, %v2354
      %v2356 = vpop.f32.mrf.mxu0
      %v2357 = vpop.f32.mrf.mxu0
      %v2358 = vadd.f32 %v2197, %v2357
      %v2359 = vpop.f32.mrf.mxu0
      %2360 = vmatprep.mubr.bf16.mxu0 0
      %2361 = vmatmul.mubr.bf16.gmra.mxu0 %v1511
      %v2362 = vpop.f32.mrf.mxu0
      %v2363 = vadd.f32 %v2202, %v2362
      %v2364 = vpop.f32.mrf.mxu0
      %v2365 = vpop.f32.mrf.mxu0
      %v2366 = vadd.f32 %v2205, %v2365
      %v2367 = vpop.f32.mrf.mxu0
      %2368 = vmatprep.mubr.bf16.mxu0 0
      %2369 = vmatmul.mubr.bf16.gmra.mxu0 %v1514
      %v2370 = vpop.f32.mrf.mxu0
      %v2371 = vadd.f32 %v2210, %v2370
      %v2372 = vpop.f32.mrf.mxu0
      %v2373 = vpop.f32.mrf.mxu0
      %v2374 = vadd.f32 %v2213, %v2373
      %v2375 = vpop.f32.mrf.mxu0
      %2376 = vmatprep.mubr.bf16.mxu0 0
      %2377 = vmatmul.mubr.bf16.gmra.mxu0 %v1517
      %v2378 = vpop.f32.mrf.mxu0
      %v2379 = vadd.f32 %v2218, %v2378
      %v2380 = vpop.f32.mrf.mxu0
      %v2381 = vpop.f32.mrf.mxu0
      %v2382 = vadd.f32 %v2221, %v2381
      %v2383 = vpop.f32.mrf.mxu0
      %2384 = vmatprep.mubr.bf16.mxu0 0
      %2385 = vmatmul.mubr.bf16.gmra.mxu0 %v1520
      %v2386 = vpop.f32.mrf.mxu0
      %v2387 = vadd.f32 %v2226, %v2386
      %v2388 = vpop.f32.mrf.mxu0
      %v2389 = vpop.f32.mrf.mxu0
      %v2390 = vadd.f32 %v2229, %v2389
      %v2391 = vpop.f32.mrf.mxu0
      %2392 = vmatprep.mubr.bf16.mxu0 0
      %2393 = vmatmul.mubr.bf16.gmra.mxu0 %v1523
      %v2394 = vpop.f32.mrf.mxu0
      %v2395 = vadd.f32 %v2234, %v2394
      %v2396 = vpop.f32.mrf.mxu0
      %v2397 = vpop.f32.mrf.mxu0
      %v2398 = vadd.f32 %v2237, %v2397
      %v2399 = vpop.f32.mrf.mxu0
      %2400 = vmatprep.mubr.bf16.mxu0 0
      %2401 = vmatmul.mubr.bf16.gmra.mxu0 %v1526
      %v2402 = vpop.f32.mrf.mxu0
      %v2403 = vadd.f32 %v2242, %v2402
      %v2404 = vpop.f32.mrf.mxu0
      %v2405 = vpop.f32.mrf.mxu0
      %v2406 = vadd.f32 %v2245, %v2405
      %v2407 = vpop.f32.mrf.mxu0
      %2408 = vmatprep.mubr.bf16.mxu0 0
      %2409 = vmatmul.mubr.bf16.gmra.mxu0 %v1529
      %v2410 = vpop.f32.mrf.mxu0
      %v2411 = vadd.f32 %v2250, %v2410
      %v2412 = vpop.f32.mrf.mxu0
      %v2413 = vpop.f32.mrf.mxu0
      %v2414 = vadd.f32 %v2253, %v2413
      %v2415 = vpop.f32.mrf.mxu0
      %2416 = vmatprep.mubr.bf16.mxu0 0
      %2417 = vmatmul.mubr.bf16.gmra.mxu0 %v1532
      %v2418 = vpop.f32.mrf.mxu0
      %v2419 = vadd.f32 %v2258, %v2418
      %v2420 = vpop.f32.mrf.mxu0
      %v2421 = vpop.f32.mrf.mxu0
      %v2422 = vadd.f32 %v2261, %v2421
      %v2423 = vpop.f32.mrf.mxu0
      %2424 = vmatprep.mubr.bf16.mxu0 0
      %2425 = vmatmul.mubr.bf16.gmra.mxu0 %v1535
      %v2426 = vpop.f32.mrf.mxu0
      %v2427 = vadd.f32 %v2266, %v2426
      %v2428 = vpop.f32.mrf.mxu0
      %v2429 = vpop.f32.mrf.mxu0
      %v2430 = vadd.f32 %v2269, %v2429
      %v2431 = vpop.f32.mrf.mxu0
      %2432 = vmatprep.mubr.bf16.mxu0 0
      %2433 = vmatmul.mubr.bf16.gmra.mxu0 %v1538
      %v2434 = vpop.f32.mrf.mxu0
      %v2435 = vadd.f32 %v2274, %v2434
      %v2436 = vpop.f32.mrf.mxu0
      %v2437 = vpop.f32.mrf.mxu0
      %v2438 = vadd.f32 %v2277, %v2437
      %v2439 = vpop.f32.mrf.mxu0
      %2440 = vmatprep.mubr.bf16.mxu0 0
      %2441 = vmatmul.mubr.bf16.gmra.mxu0 %v1541
      %v2442 = vpop.f32.mrf.mxu0
      %v2443 = vadd.f32 %v2282, %v2442
      %v2444 = vpop.f32.mrf.mxu0
      %v2445 = vpop.f32.mrf.mxu0
      %v2446 = vadd.f32 %v2285, %v2445
      %v2447 = vpop.f32.mrf.mxu0
      %2448 = vmatprep.mubr.bf16.mxu0 0
      %2449 = vmatmul.mubr.bf16.gmra.mxu0 %v1544
      %v2450 = vpop.f32.mrf.mxu0
      %v2451 = vadd.f32 %v2290, %v2450
      %v2452 = vpop.f32.mrf.mxu0
      %v2453 = vpop.f32.mrf.mxu0
      %v2454 = vadd.f32 %v2293, %v2453
      %v2455 = vpop.f32.mrf.mxu0
      %2456 = vmatprep.mubr.bf16.mxu0 0
      %2457 = vmatmul.mubr.bf16.gmra.mxu0 %v1547
      %v2458 = vpop.f32.mrf.mxu0
      %v2459 = vadd.f32 %v2298, %v2458
      %v2460 = vpop.f32.mrf.mxu0
      %v2461 = vpop.f32.mrf.mxu0
      %v2462 = vadd.f32 %v2301, %v2461
      %v2463 = vpop.f32.mrf.mxu0
      %2464 = vmatprep.mubr.bf16.mxu0 0
      %2465 = vmatmul.mubr.bf16.gmra.mxu0 %v1550
      %v2466 = vpop.f32.mrf.mxu0
      %v2467 = vadd.f32 %v2306, %v2466
      %v2468 = vpop.f32.mrf.mxu0
      %v2469 = vpop.f32.mrf.mxu0
      %v2470 = vadd.f32 %v2309, %v2469
      %v2471 = vpop.f32.mrf.mxu0
      %2472 = vmatprep.mubr.bf16.mxu0 0
      %2473 = vmatmul.mubr.bf16.gmra.mxu0 %v1676
      %v2474 = vpop.f32.mrf.mxu0
      %v2475 = vadd.f32 %v2314, %v2474
      %v2476 = vpop.f32.mrf.mxu0
      %v2477 = vpop.f32.mrf.mxu0
      %v2478 = vadd.f32 %v2317, %v2477
      %v2479 = vpop.f32.mrf.mxu0
      %2480 = vdwg.mxu0
      %v2561 = vunpack.c.l.b16 %v1567
      %v2562 = vunpack.c.l.b16 %v1568
      %v2563 = vunpack.c.l.b16 %v1569
      %v2564 = vunpack.c.l.b16 %v1570
      %v2565 = vunpack.c.l.b16 %v1571
      %v2566 = vunpack.c.l.b16 %v1572
      %v2567 = vunpack.c.l.b16 %v1573
      %v2568 = vunpack.c.l.b16 %v1574
      %v2569 = vunpack.c.l.b16 %v1575
      %v2570 = vunpack.c.l.b16 %v1576
      %v2571 = vunpack.c.l.b16 %v1577
      %v2572 = vunpack.c.l.b16 %v1578
      %v2573 = vunpack.c.l.b16 %v1579
      %v2574 = vunpack.c.l.b16 %v1580
      %v2575 = vunpack.c.l.b16 %v1581
      %v2576 = vunpack.c.l.b16 %v1582
      %v2577 = vunpack.c.l.b16 %v1583
      %v2578 = vunpack.c.l.b16 %v1584
      %v2579 = vunpack.c.l.b16 %v1585
      %v2580 = vunpack.c.l.b16 %v1586
      %v2581 = vunpack.c.l.b16 %v1587
      %v2582 = vunpack.c.l.b16 %v1588
      %v2583 = vunpack.c.l.b16 %v1589
      %v2584 = vunpack.c.l.b16 %v1590
      %v2585 = vunpack.c.l.b16 %v1591
      %v2586 = vunpack.c.l.b16 %v1592
      %v2587 = vunpack.c.l.b16 %v1593
      %v2588 = vunpack.c.l.b16 %v1594
      %v2589 = vunpack.c.l.b16 %v1595
      %v2590 = vunpack.c.l.b16 %v1596
      %v2591 = vunpack.c.l.b16 %v1597
      %v2592 = vunpack.c.l.b16 %v1598
      %v2593 = vunpack.c.l.b16 %v1599
      %v2594 = vunpack.c.l.b16 %v1600
      %v2595 = vunpack.c.l.b16 %v1601
      %v2596 = vunpack.c.l.b16 %v1602
      %v2597 = vunpack.c.l.b16 %v1603
      %v2598 = vunpack.c.l.b16 %v1604
      %v2599 = vunpack.c.l.b16 %v1605
      %v2600 = vunpack.c.l.b16 %v1606
      %v2601 = vunpack.c.l.b16 %v1607
      %v2602 = vunpack.c.l.b16 %v1608
      %v2603 = vunpack.c.l.b16 %v1609
      %v2604 = vunpack.c.l.b16 %v1610
      %v2605 = vunpack.c.l.b16 %v1611
      %v2606 = vunpack.c.l.b16 %v1612
      %v2607 = vunpack.c.l.b16 %v1613
      %v2608 = vunpack.c.l.b16 %v1614
      %v2609 = vunpack.c.l.b16 %v1615
      %v2610 = vunpack.c.l.b16 %v1616
      %v2611 = vunpack.c.l.b16 %v1617
      %v2612 = vunpack.c.l.b16 %v1618
      %v2613 = vunpack.c.l.b16 %v1619
      %v2614 = vunpack.c.l.b16 %v1620
      %v2615 = vunpack.c.l.b16 %v1621
      %v2616 = vunpack.c.l.b16 %v1622
      %v2617 = vunpack.c.l.b16 %v1623
      %v2618 = vunpack.c.l.b16 %v1624
      %v2619 = vunpack.c.l.b16 %v1625
      %v2620 = vunpack.c.l.b16 %v1626
      %v2621 = vunpack.c.l.b16 %v1627
      %v2622 = vunpack.c.l.b16 %v1628
      %v2623 = vunpack.c.l.b16 %v1629
      %v2624 = vunpack.c.l.b16 %v1630
      %v2625 = vunpack.c.l.b16 %v1631
      %v2626 = vunpack.c.l.b16 %v1632
      %v2627 = vunpack.c.l.b16 %v1633
      %v2628 = vunpack.c.l.b16 %v1634
      %v2629 = vunpack.c.l.b16 %v1635
      %v2630 = vunpack.c.l.b16 %v1636
      %v2631 = vunpack.c.l.b16 %v1637
      %v2632 = vunpack.c.l.b16 %v1638
      %v2633 = vunpack.c.l.b16 %v1639
      %v2634 = vunpack.c.l.b16 %v1640
      %v2635 = vunpack.c.l.b16 %v1641
      %v2636 = vunpack.c.l.b16 %v1642
      %v2637 = vunpack.c.l.b16 %v1643
      %v2638 = vunpack.c.l.b16 %v1644
      %v2639 = vunpack.c.l.b16 %v1645
      %v2640 = vunpack.c.l.b16 %v1646
      %v2641 = vpack.c.b16 %v2562, %v2561
      %v2642 = vpack.c.b16 %v2564, %v2563
      %v2643 = vpack.c.b16 %v2566, %v2565
      %v2644 = vpack.c.b16 %v2568, %v2567
      %v2645 = vpack.c.b16 %v2570, %v2569
      %v2646 = vpack.c.b16 %v2572, %v2571
      %v2647 = vpack.c.b16 %v2574, %v2573
      %v2648 = vpack.c.b16 %v2576, %v2575
      %v2649 = vpack.c.b16 %v2578, %v2577
      %v2650 = vpack.c.b16 %v2580, %v2579
      %v2651 = vpack.c.b16 %v2582, %v2581
      %v2652 = vpack.c.b16 %v2584, %v2583
      %v2653 = vpack.c.b16 %v2586, %v2585
      %v2654 = vpack.c.b16 %v2588, %v2587
      %v2655 = vpack.c.b16 %v2590, %v2589
      %v2656 = vpack.c.b16 %v2592, %v2591
      %v2657 = vpack.c.b16 %v2594, %v2593
      %v2658 = vpack.c.b16 %v2596, %v2595
      %v2659 = vpack.c.b16 %v2598, %v2597
      %v2660 = vpack.c.b16 %v2600, %v2599
      %v2661 = vpack.c.b16 %v2602, %v2601
      %v2662 = vpack.c.b16 %v2604, %v2603
      %v2663 = vpack.c.b16 %v2606, %v2605
      %v2664 = vpack.c.b16 %v2608, %v2607
      %v2665 = vpack.c.b16 %v2610, %v2609
      %v2666 = vpack.c.b16 %v2612, %v2611
      %v2667 = vpack.c.b16 %v2614, %v2613
      %v2668 = vpack.c.b16 %v2616, %v2615
      %v2669 = vpack.c.b16 %v2618, %v2617
      %v2670 = vpack.c.b16 %v2620, %v2619
      %v2671 = vpack.c.b16 %v2622, %v2621
      %v2672 = vpack.c.b16 %v2624, %v2623
      %v2673 = vpack.c.b16 %v2626, %v2625
      %v2674 = vpack.c.b16 %v2628, %v2627
      %v2675 = vpack.c.b16 %v2630, %v2629
      %v2676 = vpack.c.b16 %v2632, %v2631
      %v2677 = vpack.c.b16 %v2634, %v2633
      %v2678 = vpack.c.b16 %v2636, %v2635
      %v2679 = vpack.c.b16 %v2638, %v2637
      %v2680 = vpack.c.b16 %v2640, %v2639
      %2721 = vmatprep.subr.bf16.mxu0 0
      %2722 = vmatpush1.bf16.msra.mxu0 %v2648
      %2723 = vmatprep.subr.bf16.mxu0 0
      %2724 = vmatpush1.bf16.msra.mxu0 %v2647
      %2725 = vmatprep.subr.bf16.mxu0 0
      %2726 = vmatpush1.bf16.msra.mxu0 %v2646
      %2727 = vmatprep.subr.bf16.mxu0 0
      %2728 = vmatpush1.bf16.msra.mxu0 %v2645
      %2729 = vmatprep.subr.bf16.mxu0 0
      %2730 = vmatpush1.bf16.msra.mxu0 %v2644
      %2731 = vmatprep.subr.bf16.mxu0 0
      %2732 = vmatpush1.bf16.msra.mxu0 %v2643
      %2733 = vmatprep.subr.bf16.mxu0 0
      %2734 = vmatpush1.bf16.msra.mxu0 %v2642
      %2735 = vmatprep.subr.bf16.mxu0 0
      %2736 = vmatpush1.bf16.msra.mxu0 %v2641
      %2737 = vmatprep.subr.bf16.mxu0 0
      %2738 = vmatpush2.bf16.msra.mxu0 %v2656
      %2739 = vmatprep.subr.bf16.mxu0 0
      %2740 = vmatpush2.bf16.msra.mxu0 %v2655
      %2741 = vmatprep.subr.bf16.mxu0 0
      %2742 = vmatpush2.bf16.msra.mxu0 %v2654
      %2743 = vmatprep.subr.bf16.mxu0 0
      %2744 = vmatpush2.bf16.msra.mxu0 %v2653
      %2745 = vmatprep.subr.bf16.mxu0 0
      %2746 = vmatpush2.bf16.msra.mxu0 %v2652
      %2747 = vmatprep.subr.bf16.mxu0 0
      %2748 = vmatpush2.bf16.msra.mxu0 %v2651
      %2749 = vmatprep.subr.bf16.mxu0 0
      %2750 = vmatpush2.bf16.msra.mxu0 %v2650
      %2751 = vmatprep.subr.bf16.mxu0 0
      %2752 = vmatpush2.bf16.msra.mxu0 %v2649
      %2753 = vmatprep.mubr.bf16.mxu0 %v1077
      %2754 = vmatmul.mubr.bf16.gmra.mxu0 %v988
      %v2755 = vpop.f32.mrf.mxu0
      %v2756 = vadd.f32 %v2355, %v2755
      %v2757 = vpop.f32.mrf.mxu0
      %v2758 = vpop.f32.mrf.mxu0
      %v2759 = vadd.f32 %v2358, %v2758
      %v2760 = vpop.f32.mrf.mxu0
      %2761 = vmatprep.mubr.bf16.mxu0 %v1087
      %2762 = vmatmul.mubr.bf16.gmra.mxu0 %v991
      %v2763 = vpop.f32.mrf.mxu0
      %v2764 = vadd.f32 %v2363, %v2763
      %v2765 = vpop.f32.mrf.mxu0
      %v2766 = vpop.f32.mrf.mxu0
      %v2767 = vadd.f32 %v2366, %v2766
      %v2768 = vpop.f32.mrf.mxu0
      %2769 = vmatprep.mubr.bf16.mxu0 %v1097
      %2770 = vmatmul.mubr.bf16.gmra.mxu0 %v994
      %v2771 = vpop.f32.mrf.mxu0
      %v2772 = vadd.f32 %v2371, %v2771
      %v2773 = vpop.f32.mrf.mxu0
      %v2774 = vpop.f32.mrf.mxu0
      %v2775 = vadd.f32 %v2374, %v2774
      %v2776 = vpop.f32.mrf.mxu0
      %2777 = vmatprep.mubr.bf16.mxu0 %v1107
      %2778 = vmatmul.mubr.bf16.gmra.mxu0 %v997
      %v2779 = vpop.f32.mrf.mxu0
      %v2780 = vadd.f32 %v2379, %v2779
      %v2781 = vpop.f32.mrf.mxu0
      %v2782 = vpop.f32.mrf.mxu0
      %v2783 = vadd.f32 %v2382, %v2782
      %v2784 = vpop.f32.mrf.mxu0
      %2785 = vmatprep.mubr.bf16.mxu0 %v1117
      %2786 = vmatmul.mubr.bf16.gmra.mxu0 %v1000
      %v2787 = vpop.f32.mrf.mxu0
      %v2788 = vadd.f32 %v2387, %v2787
      %v2789 = vpop.f32.mrf.mxu0
      %v2790 = vpop.f32.mrf.mxu0
      %v2791 = vadd.f32 %v2390, %v2790
      %v2792 = vpop.f32.mrf.mxu0
      %2793 = vmatprep.mubr.bf16.mxu0 %v1127
      %2794 = vmatmul.mubr.bf16.gmra.mxu0 %v1003
      %v2795 = vpop.f32.mrf.mxu0
      %v2796 = vadd.f32 %v2395, %v2795
      %v2797 = vpop.f32.mrf.mxu0
      %v2798 = vpop.f32.mrf.mxu0
      %v2799 = vadd.f32 %v2398, %v2798
      %v2800 = vpop.f32.mrf.mxu0
      %2801 = vmatprep.mubr.bf16.mxu0 %v1137
      %2802 = vmatmul.mubr.bf16.gmra.mxu0 %v1006
      %v2803 = vpop.f32.mrf.mxu0
      %v2804 = vadd.f32 %v2403, %v2803
      %v2805 = vpop.f32.mrf.mxu0
      %v2806 = vpop.f32.mrf.mxu0
      %v2807 = vadd.f32 %v2406, %v2806
      %v2808 = vpop.f32.mrf.mxu0
      %2809 = vmatprep.mubr.bf16.mxu0 %v1147
      %2810 = vmatmul.mubr.bf16.gmra.mxu0 %v1009
      %v2811 = vpop.f32.mrf.mxu0
      %v2812 = vadd.f32 %v2411, %v2811
      %v2813 = vpop.f32.mrf.mxu0
      %v2814 = vpop.f32.mrf.mxu0
      %v2815 = vadd.f32 %v2414, %v2814
      %v2816 = vpop.f32.mrf.mxu0
      %2817 = vmatprep.mubr.bf16.mxu0 %v1157
      %2818 = vmatmul.mubr.bf16.gmra.mxu0 %v1012
      %v2819 = vpop.f32.mrf.mxu0
      %v2820 = vadd.f32 %v2419, %v2819
      %v2821 = vpop.f32.mrf.mxu0
      %v2822 = vpop.f32.mrf.mxu0
      %v2823 = vadd.f32 %v2422, %v2822
      %v2824 = vpop.f32.mrf.mxu0
      %2825 = vmatprep.mubr.bf16.mxu0 %v1167
      %2826 = vmatmul.mubr.bf16.gmra.mxu0 %v1015
      %v2827 = vpop.f32.mrf.mxu0
      %v2828 = vadd.f32 %v2427, %v2827
      %v2829 = vpop.f32.mrf.mxu0
      %v2830 = vpop.f32.mrf.mxu0
      %v2831 = vadd.f32 %v2430, %v2830
      %v2832 = vpop.f32.mrf.mxu0
      %2833 = vmatprep.mubr.bf16.mxu0 %v1177
      %2834 = vmatmul.mubr.bf16.gmra.mxu0 %v1018
      %v2835 = vpop.f32.mrf.mxu0
      %v2836 = vadd.f32 %v2435, %v2835
      %v2837 = vpop.f32.mrf.mxu0
      %v2838 = vpop.f32.mrf.mxu0
      %v2839 = vadd.f32 %v2438, %v2838
      %v2840 = vpop.f32.mrf.mxu0
      %2841 = vmatprep.mubr.bf16.mxu0 %v1187
      %2842 = vmatmul.mubr.bf16.gmra.mxu0 %v1021
      %v2843 = vpop.f32.mrf.mxu0
      %v2844 = vadd.f32 %v2443, %v2843
      %v2845 = vpop.f32.mrf.mxu0
      %v2846 = vpop.f32.mrf.mxu0
      %v2847 = vadd.f32 %v2446, %v2846
      %v2848 = vpop.f32.mrf.mxu0
      %2849 = vmatprep.mubr.bf16.mxu0 %v1197
      %2850 = vmatmul.mubr.bf16.gmra.mxu0 %v1024
      %v2851 = vpop.f32.mrf.mxu0
      %v2852 = vadd.f32 %v2451, %v2851
      %v2853 = vpop.f32.mrf.mxu0
      %v2854 = vpop.f32.mrf.mxu0
      %v2855 = vadd.f32 %v2454, %v2854
      %v2856 = vpop.f32.mrf.mxu0
      %2857 = vmatprep.mubr.bf16.mxu0 %v1207
      %2858 = vmatmul.mubr.bf16.gmra.mxu0 %v1027
      %v2859 = vpop.f32.mrf.mxu0
      %v2860 = vadd.f32 %v2459, %v2859
      %v2861 = vpop.f32.mrf.mxu0
      %v2862 = vpop.f32.mrf.mxu0
      %v2863 = vadd.f32 %v2462, %v2862
      %v2864 = vpop.f32.mrf.mxu0
      %2865 = vmatprep.mubr.bf16.mxu0 %v1217
      %2866 = vmatmul.mubr.bf16.gmra.mxu0 %v1030
      %v2867 = vpop.f32.mrf.mxu0
      %v2868 = vadd.f32 %v2467, %v2867
      %v2869 = vpop.f32.mrf.mxu0
      %v2870 = vpop.f32.mrf.mxu0
      %v2871 = vadd.f32 %v2470, %v2870
      %v2872 = vpop.f32.mrf.mxu0
      %2873 = vmatprep.mubr.bf16.mxu0 %v1227
      %2874 = vmatmul.mubr.bf16.gmra.mxu0 %v1033
      %v2875 = vpop.f32.mrf.mxu0
      %v2876 = vadd.f32 %v2475, %v2875
      %v2877 = vpop.f32.mrf.mxu0
      %v2878 = vpop.f32.mrf.mxu0
      %v2879 = vadd.f32 %v2478, %v2878
      %v2880 = vpop.f32.mrf.mxu0
      %2881 = vdwg.mxu0
      %2882 = vmatprep.subr.bf16.mxu0 0
      %2883 = vmatpush1.bf16.msra.mxu0 %v2664
      %2884 = vmatprep.subr.bf16.mxu0 0
      %2885 = vmatpush1.bf16.msra.mxu0 %v2663
      %2886 = vmatprep.subr.bf16.mxu0 0
      %2887 = vmatpush1.bf16.msra.mxu0 %v2662
      %2888 = vmatprep.subr.bf16.mxu0 0
      %2889 = vmatpush1.bf16.msra.mxu0 %v2661
      %2890 = vmatprep.subr.bf16.mxu0 0
      %2891 = vmatpush1.bf16.msra.mxu0 %v2660
      %2892 = vmatprep.subr.bf16.mxu0 0
      %2893 = vmatpush1.bf16.msra.mxu0 %v2659
      %2894 = vmatprep.subr.bf16.mxu0 0
      %2895 = vmatpush1.bf16.msra.mxu0 %v2658
      %2896 = vmatprep.subr.bf16.mxu0 0
      %2897 = vmatpush1.bf16.msra.mxu0 %v2657
      %2898 = vmatprep.subr.bf16.mxu0 0
      %2899 = vmatpush2.bf16.msra.mxu0 %v2672
      %2900 = vmatprep.subr.bf16.mxu0 0
      %2901 = vmatpush2.bf16.msra.mxu0 %v2671
      %2902 = vmatprep.subr.bf16.mxu0 0
      %2903 = vmatpush2.bf16.msra.mxu0 %v2670
      %2904 = vmatprep.subr.bf16.mxu0 0
      %2905 = vmatpush2.bf16.msra.mxu0 %v2669
      %2906 = vmatprep.subr.bf16.mxu0 0
      %2907 = vmatpush2.bf16.msra.mxu0 %v2668
      %2908 = vmatprep.subr.bf16.mxu0 0
      %2909 = vmatpush2.bf16.msra.mxu0 %v2667
      %2910 = vmatprep.subr.bf16.mxu0 0
      %2911 = vmatpush2.bf16.msra.mxu0 %v2666
      %2912 = vmatprep.subr.bf16.mxu0 0
      %2913 = vmatpush2.bf16.msra.mxu0 %v2665
      %2914 = vmatprep.mubr.bf16.mxu0 %v1350
      %2915 = vmatmul.mubr.bf16.gmra.mxu0 %v1279
      %v2916 = vpop.f32.mrf.mxu0
      %v2917 = vadd.f32 %v2756, %v2916
      %v2918 = vpop.f32.mrf.mxu0
      %v2919 = vpop.f32.mrf.mxu0
      %v2920 = vadd.f32 %v2759, %v2919
      %v2921 = vpop.f32.mrf.mxu0
      %2922 = vmatprep.mubr.bf16.mxu0 %v1359
      %2923 = vmatmul.mubr.bf16.gmra.mxu0 %v1282
      %v2924 = vpop.f32.mrf.mxu0
      %v2925 = vadd.f32 %v2764, %v2924
      %v2926 = vpop.f32.mrf.mxu0
      %v2927 = vpop.f32.mrf.mxu0
      %v2928 = vadd.f32 %v2767, %v2927
      %v2929 = vpop.f32.mrf.mxu0
      %2930 = vmatprep.mubr.bf16.mxu0 %v1368
      %2931 = vmatmul.mubr.bf16.gmra.mxu0 %v1285
      %v2932 = vpop.f32.mrf.mxu0
      %v2933 = vadd.f32 %v2772, %v2932
      %v2934 = vpop.f32.mrf.mxu0
      %v2935 = vpop.f32.mrf.mxu0
      %v2936 = vadd.f32 %v2775, %v2935
      %v2937 = vpop.f32.mrf.mxu0
      %2938 = vmatprep.mubr.bf16.mxu0 %v1377
      %2939 = vmatmul.mubr.bf16.gmra.mxu0 %v1288
      %v2940 = vpop.f32.mrf.mxu0
      %v2941 = vadd.f32 %v2780, %v2940
      %v2942 = vpop.f32.mrf.mxu0
      %v2943 = vpop.f32.mrf.mxu0
      %v2944 = vadd.f32 %v2783, %v2943
      %v2945 = vpop.f32.mrf.mxu0
      %2946 = vmatprep.mubr.bf16.mxu0 %v1386
      %2947 = vmatmul.mubr.bf16.gmra.mxu0 %v1291
      %v2948 = vpop.f32.mrf.mxu0
      %v2949 = vadd.f32 %v2788, %v2948
      %v2950 = vpop.f32.mrf.mxu0
      %v2951 = vpop.f32.mrf.mxu0
      %v2952 = vadd.f32 %v2791, %v2951
      %v2953 = vpop.f32.mrf.mxu0
      %2954 = vmatprep.mubr.bf16.mxu0 %v1395
      %2955 = vmatmul.mubr.bf16.gmra.mxu0 %v1294
      %v2956 = vpop.f32.mrf.mxu0
      %v2957 = vadd.f32 %v2796, %v2956
      %v2958 = vpop.f32.mrf.mxu0
      %v2959 = vpop.f32.mrf.mxu0
      %v2960 = vadd.f32 %v2799, %v2959
      %v2961 = vpop.f32.mrf.mxu0
      %2962 = vmatprep.mubr.bf16.mxu0 %v1404
      %2963 = vmatmul.mubr.bf16.gmra.mxu0 %v1297
      %v2964 = vpop.f32.mrf.mxu0
      %v2965 = vadd.f32 %v2804, %v2964
      %v2966 = vpop.f32.mrf.mxu0
      %v2967 = vpop.f32.mrf.mxu0
      %v2968 = vadd.f32 %v2807, %v2967
      %v2969 = vpop.f32.mrf.mxu0
      %2970 = vmatprep.mubr.bf16.mxu0 %v1413
      %2971 = vmatmul.mubr.bf16.gmra.mxu0 %v1300
      %v2972 = vpop.f32.mrf.mxu0
      %v2973 = vadd.f32 %v2812, %v2972
      %v2974 = vpop.f32.mrf.mxu0
      %v2975 = vpop.f32.mrf.mxu0
      %v2976 = vadd.f32 %v2815, %v2975
      %v2977 = vpop.f32.mrf.mxu0
      %2978 = vmatprep.mubr.bf16.mxu0 %v1422
      %2979 = vmatmul.mubr.bf16.gmra.mxu0 %v1303
      %v2980 = vpop.f32.mrf.mxu0
      %v2981 = vadd.f32 %v2820, %v2980
      %v2982 = vpop.f32.mrf.mxu0
      %v2983 = vpop.f32.mrf.mxu0
      %v2984 = vadd.f32 %v2823, %v2983
      %v2985 = vpop.f32.mrf.mxu0
      %2986 = vmatprep.mubr.bf16.mxu0 %v1431
      %2987 = vmatmul.mubr.bf16.gmra.mxu0 %v1306
      %v2988 = vpop.f32.mrf.mxu0
      %v2989 = vadd.f32 %v2828, %v2988
      %v2990 = vpop.f32.mrf.mxu0
      %v2991 = vpop.f32.mrf.mxu0
      %v2992 = vadd.f32 %v2831, %v2991
      %v2993 = vpop.f32.mrf.mxu0
      %2994 = vmatprep.mubr.bf16.mxu0 %v1440
      %2995 = vmatmul.mubr.bf16.gmra.mxu0 %v1309
      %v2996 = vpop.f32.mrf.mxu0
      %v2997 = vadd.f32 %v2836, %v2996
      %v2998 = vpop.f32.mrf.mxu0
      %v2999 = vpop.f32.mrf.mxu0
      %v3000 = vadd.f32 %v2839, %v2999
      %v3001 = vpop.f32.mrf.mxu0
      %3002 = vmatprep.mubr.bf16.mxu0 %v1449
      %3003 = vmatmul.mubr.bf16.gmra.mxu0 %v1312
      %v3004 = vpop.f32.mrf.mxu0
      %v3005 = vadd.f32 %v2844, %v3004
      %v3006 = vpop.f32.mrf.mxu0
      %v3007 = vpop.f32.mrf.mxu0
      %v3008 = vadd.f32 %v2847, %v3007
      %v3009 = vpop.f32.mrf.mxu0
      %3010 = vmatprep.mubr.bf16.mxu0 %v1458
      %3011 = vmatmul.mubr.bf16.gmra.mxu0 %v1315
      %v3012 = vpop.f32.mrf.mxu0
      %v3013 = vadd.f32 %v2852, %v3012
      %v3014 = vpop.f32.mrf.mxu0
      %v3015 = vpop.f32.mrf.mxu0
      %v3016 = vadd.f32 %v2855, %v3015
      %v3017 = vpop.f32.mrf.mxu0
      %3018 = vmatprep.mubr.bf16.mxu0 %v1467
      %3019 = vmatmul.mubr.bf16.gmra.mxu0 %v1318
      %v3020 = vpop.f32.mrf.mxu0
      %v3021 = vadd.f32 %v2860, %v3020
      %v3022 = vpop.f32.mrf.mxu0
      %v3023 = vpop.f32.mrf.mxu0
      %v3024 = vadd.f32 %v2863, %v3023
      %v3025 = vpop.f32.mrf.mxu0
      %3026 = vmatprep.mubr.bf16.mxu0 %v1476
      %3027 = vmatmul.mubr.bf16.gmra.mxu0 %v1321
      %v3028 = vpop.f32.mrf.mxu0
      %v3029 = vadd.f32 %v2868, %v3028
      %v3030 = vpop.f32.mrf.mxu0
      %v3031 = vpop.f32.mrf.mxu0
      %v3032 = vadd.f32 %v2871, %v3031
      %v3033 = vpop.f32.mrf.mxu0
      %3034 = vmatprep.mubr.bf16.mxu0 %v1485
      %3035 = vmatmul.mubr.bf16.gmra.mxu0 %v1324
      %v3036 = vpop.f32.mrf.mxu0
      %v3037 = vadd.f32 %v2876, %v3036
      %v3038 = vpop.f32.mrf.mxu0
      %v3039 = vpop.f32.mrf.mxu0
      %v3040 = vadd.f32 %v2879, %v3039
      %v3041 = vpop.f32.mrf.mxu0
      %3042 = vdwg.mxu0
      %3043 = vmatprep.subr.bf16.mxu0 0
      %3044 = vmatpush1.bf16.msra.mxu0 %v2680
      %3045 = vmatprep.subr.bf16.mxu0 0
      %3046 = vmatpush1.bf16.msra.mxu0 %v2679
      %3047 = vmatprep.subr.bf16.mxu0 0
      %3048 = vmatpush1.bf16.msra.mxu0 %v2678
      %3049 = vmatprep.subr.bf16.mxu0 0
      %3050 = vmatpush1.bf16.msra.mxu0 %v2677
      %3051 = vmatprep.subr.bf16.mxu0 0
      %3052 = vmatpush1.bf16.msra.mxu0 %v2676
      %3053 = vmatprep.subr.bf16.mxu0 0
      %3054 = vmatpush1.bf16.msra.mxu0 %v2675
      %3055 = vmatprep.subr.bf16.mxu0 0
      %3056 = vmatpush1.bf16.msra.mxu0 %v2674
      %3057 = vmatprep.subr.bf16.mxu0 0
      %3058 = vmatpush1.bf16.msra.mxu0 %v2673
      %3059 = vmatprep.subr.bf16.mxu0 0
      %3060 = vmatpush2.bf16.msra.mxu0 0
      %3061 = vmatprep.subr.bf16.mxu0 0
      %3062 = vmatpush2.bf16.msra.mxu0 0
      %3063 = vmatprep.subr.bf16.mxu0 0
      %3064 = vmatpush2.bf16.msra.mxu0 0
      %3065 = vmatprep.subr.bf16.mxu0 0
      %3066 = vmatpush2.bf16.msra.mxu0 0
      %3067 = vmatprep.subr.bf16.mxu0 0
      %3068 = vmatpush2.bf16.msra.mxu0 0
      %3069 = vmatprep.subr.bf16.mxu0 0
      %3070 = vmatpush2.bf16.msra.mxu0 0
      %3071 = vmatprep.subr.bf16.mxu0 0
      %3072 = vmatpush2.bf16.msra.mxu0 0
      %3073 = vmatprep.subr.bf16.mxu0 0
      %3074 = vmatpush2.bf16.msra.mxu0 0
      %3075 = vmatprep.mubr.bf16.mxu0 0
      %3076 = vmatmul.mubr.bf16.gmra.mxu0 %v1505
      %v3077 = vpop.f32.mrf.mxu0
      %v3078 = vadd.f32 %v2917, %v3077
      %v3079 = vpop.f32.mrf.mxu0
      %v3080 = vpop.f32.mrf.mxu0
      %v3081 = vadd.f32 %v2920, %v3080
      %v3082 = vpop.f32.mrf.mxu0
      %3083 = vmatprep.mubr.bf16.mxu0 0
      %3084 = vmatmul.mubr.bf16.gmra.mxu0 %v1508
      %v3085 = vpop.f32.mrf.mxu0
      %v3086 = vadd.f32 %v2925, %v3085
      %v3087 = vpop.f32.mrf.mxu0
      %v3088 = vpop.f32.mrf.mxu0
      %v3089 = vadd.f32 %v2928, %v3088
      %v3090 = vpop.f32.mrf.mxu0
      %3091 = vmatprep.mubr.bf16.mxu0 0
      %3092 = vmatmul.mubr.bf16.gmra.mxu0 %v1511
      %v3093 = vpop.f32.mrf.mxu0
      %v3094 = vadd.f32 %v2933, %v3093
      %v3095 = vpop.f32.mrf.mxu0
      %v3096 = vpop.f32.mrf.mxu0
      %v3097 = vadd.f32 %v2936, %v3096
      %v3098 = vpop.f32.mrf.mxu0
      %3099 = vmatprep.mubr.bf16.mxu0 0
      %3100 = vmatmul.mubr.bf16.gmra.mxu0 %v1514
      %v3101 = vpop.f32.mrf.mxu0
      %v3102 = vadd.f32 %v2941, %v3101
      %v3103 = vpop.f32.mrf.mxu0
      %v3104 = vpop.f32.mrf.mxu0
      %v3105 = vadd.f32 %v2944, %v3104
      %v3106 = vpop.f32.mrf.mxu0
      %3107 = vmatprep.mubr.bf16.mxu0 0
      %3108 = vmatmul.mubr.bf16.gmra.mxu0 %v1517
      %v3109 = vpop.f32.mrf.mxu0
      %v3110 = vadd.f32 %v2949, %v3109
      %v3111 = vpop.f32.mrf.mxu0
      %v3112 = vpop.f32.mrf.mxu0
      %v3113 = vadd.f32 %v2952, %v3112
      %v3114 = vpop.f32.mrf.mxu0
      %3115 = vmatprep.mubr.bf16.mxu0 0
      %3116 = vmatmul.mubr.bf16.gmra.mxu0 %v1520
      %v3117 = vpop.f32.mrf.mxu0
      %v3118 = vadd.f32 %v2957, %v3117
      %v3119 = vpop.f32.mrf.mxu0
      %v3120 = vpop.f32.mrf.mxu0
      %v3121 = vadd.f32 %v2960, %v3120
      %v3122 = vpop.f32.mrf.mxu0
      %3123 = vmatprep.mubr.bf16.mxu0 0
      %3124 = vmatmul.mubr.bf16.gmra.mxu0 %v1523
      %v3125 = vpop.f32.mrf.mxu0
      %v3126 = vadd.f32 %v2965, %v3125
      %v3127 = vpop.f32.mrf.mxu0
      %v3128 = vpop.f32.mrf.mxu0
      %v3129 = vadd.f32 %v2968, %v3128
      %v3130 = vpop.f32.mrf.mxu0
      %3131 = vmatprep.mubr.bf16.mxu0 0
      %3132 = vmatmul.mubr.bf16.gmra.mxu0 %v1526
      %v3133 = vpop.f32.mrf.mxu0
      %v3134 = vadd.f32 %v2973, %v3133
      %v3135 = vpop.f32.mrf.mxu0
      %v3136 = vpop.f32.mrf.mxu0
      %v3137 = vadd.f32 %v2976, %v3136
      %v3138 = vpop.f32.mrf.mxu0
      %3139 = vmatprep.mubr.bf16.mxu0 0
      %3140 = vmatmul.mubr.bf16.gmra.mxu0 %v1529
      %v3141 = vpop.f32.mrf.mxu0
      %v3142 = vadd.f32 %v2981, %v3141
      %v3143 = vpop.f32.mrf.mxu0
      %v3144 = vpop.f32.mrf.mxu0
      %v3145 = vadd.f32 %v2984, %v3144
      %v3146 = vpop.f32.mrf.mxu0
      %3147 = vmatprep.mubr.bf16.mxu0 0
      %3148 = vmatmul.mubr.bf16.gmra.mxu0 %v1532
      %v3149 = vpop.f32.mrf.mxu0
      %v3150 = vadd.f32 %v2989, %v3149
      %v3151 = vpop.f32.mrf.mxu0
      %v3152 = vpop.f32.mrf.mxu0
      %v3153 = vadd.f32 %v2992, %v3152
      %v3154 = vpop.f32.mrf.mxu0
      %3155 = vmatprep.mubr.bf16.mxu0 0
      %3156 = vmatmul.mubr.bf16.gmra.mxu0 %v1535
      %v3157 = vpop.f32.mrf.mxu0
      %v3158 = vadd.f32 %v2997, %v3157
      %v3159 = vpop.f32.mrf.mxu0
      %v3160 = vpop.f32.mrf.mxu0
      %v3161 = vadd.f32 %v3000, %v3160
      %v3162 = vpop.f32.mrf.mxu0
      %3163 = vmatprep.mubr.bf16.mxu0 0
      %3164 = vmatmul.mubr.bf16.gmra.mxu0 %v1538
      %v3165 = vpop.f32.mrf.mxu0
      %v3166 = vadd.f32 %v3005, %v3165
      %v3167 = vpop.f32.mrf.mxu0
      %v3168 = vpop.f32.mrf.mxu0
      %v3169 = vadd.f32 %v3008, %v3168
      %v3170 = vpop.f32.mrf.mxu0
      %3171 = vmatprep.mubr.bf16.mxu0 0
      %3172 = vmatmul.mubr.bf16.gmra.mxu0 %v1541
      %v3173 = vpop.f32.mrf.mxu0
      %v3174 = vadd.f32 %v3013, %v3173
      %v3175 = vpop.f32.mrf.mxu0
      %v3176 = vpop.f32.mrf.mxu0
      %v3177 = vadd.f32 %v3016, %v3176
      %v3178 = vpop.f32.mrf.mxu0
      %3179 = vmatprep.mubr.bf16.mxu0 0
      %3180 = vmatmul.mubr.bf16.gmra.mxu0 %v1544
      %v3181 = vpop.f32.mrf.mxu0
      %v3182 = vadd.f32 %v3021, %v3181
      %v3183 = vpop.f32.mrf.mxu0
      %v3184 = vpop.f32.mrf.mxu0
      %v3185 = vadd.f32 %v3024, %v3184
      %v3186 = vpop.f32.mrf.mxu0
      %3187 = vmatprep.mubr.bf16.mxu0 0
      %3188 = vmatmul.mubr.bf16.gmra.mxu0 %v1547
      %v3189 = vpop.f32.mrf.mxu0
      %v3190 = vadd.f32 %v3029, %v3189
      %v3191 = vpop.f32.mrf.mxu0
      %v3192 = vpop.f32.mrf.mxu0
      %v3193 = vadd.f32 %v3032, %v3192
      %v3194 = vpop.f32.mrf.mxu0
      %3195 = vmatprep.mubr.bf16.mxu0 0
      %3196 = vmatmul.mubr.bf16.gmra.mxu0 %v1550
      %v3197 = vpop.f32.mrf.mxu0
      %v3198 = vadd.f32 %v3037, %v3197
      %v3199 = vpop.f32.mrf.mxu0
      %v3200 = vpop.f32.mrf.mxu0
      %v3201 = vadd.f32 %v3040, %v3200
      %v3202 = vpop.f32.mrf.mxu0
      %3203 = vdwg.mxu0
      %v3204 = vld [vmem:[%s5] sm:$0xf]
      %v3205 = vld [vmem:[%s5 + $0x4] sm:$0xf]
      %v3206 = vld [vmem:[%s5 + $0x8] sm:$0xf]
      %v3207 = vld [vmem:[%s5 + $0xc] sm:$0xf]
      %v3208 = vld [vmem:[%s5 + $0x10] sm:$0xf]
      %v3209 = vld [vmem:[%s5 + $0x14] sm:$0xf]
      %v3210 = vld [vmem:[%s5 + $0x18] sm:$0xf]
      %v3211 = vld [vmem:[%s5 + $0x1c] sm:$0xf]
      %v3212 = vld [vmem:[%s5 + $0x20] sm:$0xf]
      %v3213 = vld [vmem:[%s5 + $0x24] sm:$0xf]
      %v3214 = vld [vmem:[%s5 + $0x28] sm:$0xf]
      %v3215 = vld [vmem:[%s5 + $0x2c] sm:$0xf]
      %v3216 = vld [vmem:[%s5 + $0x30] sm:$0xf]
      %v3217 = vld [vmem:[%s5 + $0x34] sm:$0xf]
      %v3218 = vld [vmem:[%s5 + $0x38] sm:$0xf]
      %v3219 = vld [vmem:[%s5 + $0x3c] sm:$0xf]
      %v3220 = vld [vmem:[%s5 + $0x40] sm:$0xf]
      %v3221 = vld [vmem:[%s5 + $0x44] sm:$0xf]
      %v3222 = vld [vmem:[%s5 + $0x48] sm:$0xf]
      %v3223 = vld [vmem:[%s5 + $0x4c] sm:$0xf]
      %v3224 = vld [vmem:[%s5 + $0x50] sm:$0xf]
      %v3225 = vld [vmem:[%s5 + $0x54] sm:$0xf]
      %v3226 = vld [vmem:[%s5 + $0x58] sm:$0xf]
      %v3227 = vld [vmem:[%s5 + $0x5c] sm:$0xf]
      %v3228 = vld [vmem:[%s5 + $0x60] sm:$0xf]
      %v3229 = vld [vmem:[%s5 + $0x64] sm:$0xf]
      %v3230 = vld [vmem:[%s5 + $0x68] sm:$0xf]
      %v3231 = vld [vmem:[%s5 + $0x6c] sm:$0xf]
      %v3232 = vld [vmem:[%s5 + $0x70] sm:$0xf]
      %v3233 = vld [vmem:[%s5 + $0x74] sm:$0xf]
      %v3234 = vld [vmem:[%s5 + $0x78] sm:$0xf]
      %v3235 = vld [vmem:[%s5 + $0x7c] sm:$0xf]
      %v3236 = vld [vmem:[%s5 + $0x80] sm:$0xf]
      %v3237 = vld [vmem:[%s5 + $0x84] sm:$0xf]
      %v3238 = vld [vmem:[%s5 + $0x88] sm:$0xf]
      %v3239 = vld [vmem:[%s5 + $0x8c] sm:$0xf]
      %v3240 = vld [vmem:[%s5 + $0x90] sm:$0xf]
      %v3241 = vld [vmem:[%s5 + $0x94] sm:$0xf]
      %v3242 = vld [vmem:[%s5 + $0x98] sm:$0xf]
      %v3243 = vld [vmem:[%s5 + $0x9c] sm:$0xf]
      %v3244 = vld [vmem:[%s5 + $0xa0] sm:$0xf]
      %v3245 = vld [vmem:[%s5 + $0xa4] sm:$0xf]
      %v3246 = vld [vmem:[%s5 + $0xa8] sm:$0xf]
      %v3247 = vld [vmem:[%s5 + $0xac] sm:$0xf]
      %v3248 = vld [vmem:[%s5 + $0xb0] sm:$0xf]
      %v3249 = vld [vmem:[%s5 + $0xb4] sm:$0xf]
      %v3250 = vld [vmem:[%s5 + $0xb8] sm:$0xf]
      %v3251 = vld [vmem:[%s5 + $0xbc] sm:$0xf]
      %v3252 = vshrl.u32 %v1039, 16
      %v3254 = vshll.u32 %v1039, 16
      %v3256 = vrot.slane %v3254, 1
      %v3257 = vor.u32 %v3252, %v3256
      %v3258 = vshll.u32 %v1064, 16
      %v3260 = vrot.slane %v3258, 1
      %v3261 = vsel %vm1067, %v3257, %v3260
      %v3265 = vrot.slane %v1039, 1
      %v3266 = vrot.slane %v1064, 1
      %v3267 = vsel %vm1276, %v3265, %v3266
      %v3269 = vrot.slane %v3252, 1
      %v3270 = vrot.slane %v3254, 2
      %v3271 = vor.u32 %v3269, %v3270
      %v3272 = vshrl.u32 %v1064, 16
      %v3274 = vrot.slane %v3272, 1
      %v3275 = vrot.slane %v3258, 2
      %v3276 = vor.u32 %v3274, %v3275
      %v3277 = vsel %vm1341, %v3271, %v3276
      %v3279 = vrot.slane %v1039, 2
      %v3280 = vrot.slane %v1064, 2
      %v3281 = vsel %vm1502, %v3279, %v3280
      %v3283 = vld [vmem:[%s3 + $0x280] sm:$0xf]
      %v3284 = vld [vmem:[%s3 + $0x284] sm:$0xf]
      %v3285 = vld [vmem:[%s3 + $0x288] sm:$0xf]
      %v3286 = vld [vmem:[%s3 + $0x28c] sm:$0xf]
      %v3287 = vld [vmem:[%s3 + $0x290] sm:$0xf]
      %v3288 = vld [vmem:[%s3 + $0x294] sm:$0xf]
      %v3289 = vld [vmem:[%s3 + $0x298] sm:$0xf]
      %v3290 = vld [vmem:[%s3 + $0x29c] sm:$0xf]
      %v3291 = vld [vmem:[%s3 + $0x2a0] sm:$0xf]
      %v3292 = vld [vmem:[%s3 + $0x2a4] sm:$0xf]
      %v3293 = vld [vmem:[%s3 + $0x2a8] sm:$0xf]
      %v3294 = vld [vmem:[%s3 + $0x2ac] sm:$0xf]
      %v3295 = vld [vmem:[%s3 + $0x2b0] sm:$0xf]
      %v3296 = vld [vmem:[%s3 + $0x2b4] sm:$0xf]
      %v3297 = vld [vmem:[%s3 + $0x2b8] sm:$0xf]
      %v3298 = vld [vmem:[%s3 + $0x2bc] sm:$0xf]
      %v3299 = vld [vmem:[%s3 + $0x2c0] sm:$0xf]
      %v3300 = vld [vmem:[%s3 + $0x2c4] sm:$0xf]
      %v3301 = vld [vmem:[%s3 + $0x2c8] sm:$0xf]
      %v3302 = vld [vmem:[%s3 + $0x2cc] sm:$0xf]
      %v3303 = vld [vmem:[%s3 + $0x2d0] sm:$0xf]
      %v3304 = vld [vmem:[%s3 + $0x2d4] sm:$0xf]
      %v3305 = vld [vmem:[%s3 + $0x2d8] sm:$0xf]
      %v3306 = vld [vmem:[%s3 + $0x2dc] sm:$0xf]
      %v3307 = vld [vmem:[%s3 + $0x2e0] sm:$0xf]
      %v3308 = vld [vmem:[%s3 + $0x2e4] sm:$0xf]
      %v3309 = vld [vmem:[%s3 + $0x2e8] sm:$0xf]
      %v3310 = vld [vmem:[%s3 + $0x2ec] sm:$0xf]
      %v3311 = vld [vmem:[%s3 + $0x2f0] sm:$0xf]
      %v3312 = vld [vmem:[%s3 + $0x2f4] sm:$0xf]
      %v3313 = vld [vmem:[%s3 + $0x2f8] sm:$0xf]
      %v3314 = vld [vmem:[%s3 + $0x2fc] sm:$0xf]
      %v3315 = vld [vmem:[%s3 + $0x300] sm:$0xf]
      %v3316 = vld [vmem:[%s3 + $0x304] sm:$0xf]
      %v3317 = vld [vmem:[%s3 + $0x308] sm:$0xf]
      %v3318 = vld [vmem:[%s3 + $0x30c] sm:$0xf]
      %v3319 = vld [vmem:[%s3 + $0x310] sm:$0xf]
      %v3320 = vld [vmem:[%s3 + $0x314] sm:$0xf]
      %v3321 = vld [vmem:[%s3 + $0x318] sm:$0xf]
      %v3322 = vld [vmem:[%s3 + $0x31c] sm:$0xf]
      %v3323 = vld [vmem:[%s3 + $0x320] sm:$0xf]
      %v3324 = vld [vmem:[%s3 + $0x324] sm:$0xf]
      %v3325 = vld [vmem:[%s3 + $0x328] sm:$0xf]
      %v3326 = vld [vmem:[%s3 + $0x32c] sm:$0xf]
      %v3327 = vld [vmem:[%s3 + $0x330] sm:$0xf]
      %v3328 = vld [vmem:[%s3 + $0x334] sm:$0xf]
      %v3329 = vld [vmem:[%s3 + $0x338] sm:$0xf]
      %v3330 = vld [vmem:[%s3 + $0x33c] sm:$0xf]
      %v3331 = vld [vmem:[%s3 + $0x340] sm:$0xf]
      %v3332 = vld [vmem:[%s3 + $0x344] sm:$0xf]
      %v3333 = vld [vmem:[%s3 + $0x348] sm:$0xf]
      %v3334 = vld [vmem:[%s3 + $0x34c] sm:$0xf]
      %v3335 = vld [vmem:[%s3 + $0x350] sm:$0xf]
      %v3336 = vld [vmem:[%s3 + $0x354] sm:$0xf]
      %v3337 = vld [vmem:[%s3 + $0x358] sm:$0xf]
      %v3338 = vld [vmem:[%s3 + $0x35c] sm:$0xf]
      %v3339 = vld [vmem:[%s3 + $0x360] sm:$0xf]
      %v3340 = vld [vmem:[%s3 + $0x364] sm:$0xf]
      %v3341 = vld [vmem:[%s3 + $0x368] sm:$0xf]
      %v3342 = vld [vmem:[%s3 + $0x36c] sm:$0xf]
      %v3343 = vld [vmem:[%s3 + $0x370] sm:$0xf]
      %v3344 = vld [vmem:[%s3 + $0x374] sm:$0xf]
      %v3345 = vld [vmem:[%s3 + $0x378] sm:$0xf]
      %v3346 = vld [vmem:[%s3 + $0x37c] sm:$0xf]
      %v3347 = vld [vmem:[%s3 + $0x380] sm:$0xf]
      %v3348 = vld [vmem:[%s3 + $0x384] sm:$0xf]
      %v3349 = vld [vmem:[%s3 + $0x388] sm:$0xf]
      %v3350 = vld [vmem:[%s3 + $0x38c] sm:$0xf]
      %v3351 = vld [vmem:[%s3 + $0x390] sm:$0xf]
      %v3352 = vld [vmem:[%s3 + $0x394] sm:$0xf]
      %v3353 = vld [vmem:[%s3 + $0x398] sm:$0xf]
      %v3354 = vld [vmem:[%s3 + $0x39c] sm:$0xf]
      %v3355 = vld [vmem:[%s3 + $0x3a0] sm:$0xf]
      %v3356 = vld [vmem:[%s3 + $0x3a4] sm:$0xf]
      %v3357 = vld [vmem:[%s3 + $0x3a8] sm:$0xf]
      %v3358 = vld [vmem:[%s3 + $0x3ac] sm:$0xf]
      %v3359 = vld [vmem:[%s3 + $0x3b0] sm:$0xf]
      %v3360 = vld [vmem:[%s3 + $0x3b4] sm:$0xf]
      %v3361 = vld [vmem:[%s3 + $0x3b8] sm:$0xf]
      %v3362 = vld [vmem:[%s3 + $0x3bc] sm:$0xf]
      %v3443 = vunpack.c.l.b16 %v3283
      %v3444 = vunpack.c.l.b16 %v3284
      %v3445 = vunpack.c.l.b16 %v3285
      %v3446 = vunpack.c.l.b16 %v3286
      %v3447 = vunpack.c.l.b16 %v3287
      %v3448 = vunpack.c.l.b16 %v3288
      %v3449 = vunpack.c.l.b16 %v3289
      %v3450 = vunpack.c.l.b16 %v3290
      %v3451 = vunpack.c.l.b16 %v3291
      %v3452 = vunpack.c.l.b16 %v3292
      %v3453 = vunpack.c.l.b16 %v3293
      %v3454 = vunpack.c.l.b16 %v3294
      %v3455 = vunpack.c.l.b16 %v3295
      %v3456 = vunpack.c.l.b16 %v3296
      %v3457 = vunpack.c.l.b16 %v3297
      %v3458 = vunpack.c.l.b16 %v3298
      %v3459 = vunpack.c.l.b16 %v3299
      %v3460 = vunpack.c.l.b16 %v3300
      %v3461 = vunpack.c.l.b16 %v3301
      %v3462 = vunpack.c.l.b16 %v3302
      %v3463 = vunpack.c.l.b16 %v3303
      %v3464 = vunpack.c.l.b16 %v3304
      %v3465 = vunpack.c.l.b16 %v3305
      %v3466 = vunpack.c.l.b16 %v3306
      %v3467 = vunpack.c.l.b16 %v3307
      %v3468 = vunpack.c.l.b16 %v3308
      %v3469 = vunpack.c.l.b16 %v3309
      %v3470 = vunpack.c.l.b16 %v3310
      %v3471 = vunpack.c.l.b16 %v3311
      %v3472 = vunpack.c.l.b16 %v3312
      %v3473 = vunpack.c.l.b16 %v3313
      %v3474 = vunpack.c.l.b16 %v3314
      %v3475 = vunpack.c.l.b16 %v3315
      %v3476 = vunpack.c.l.b16 %v3316
      %v3477 = vunpack.c.l.b16 %v3317
      %v3478 = vunpack.c.l.b16 %v3318
      %v3479 = vunpack.c.l.b16 %v3319
      %v3480 = vunpack.c.l.b16 %v3320
      %v3481 = vunpack.c.l.b16 %v3321
      %v3482 = vunpack.c.l.b16 %v3322
      %v3483 = vunpack.c.l.b16 %v3323
      %v3484 = vunpack.c.l.b16 %v3324
      %v3485 = vunpack.c.l.b16 %v3325
      %v3486 = vunpack.c.l.b16 %v3326
      %v3487 = vunpack.c.l.b16 %v3327
      %v3488 = vunpack.c.l.b16 %v3328
      %v3489 = vunpack.c.l.b16 %v3329
      %v3490 = vunpack.c.l.b16 %v3330
      %v3491 = vunpack.c.l.b16 %v3331
      %v3492 = vunpack.c.l.b16 %v3332
      %v3493 = vunpack.c.l.b16 %v3333
      %v3494 = vunpack.c.l.b16 %v3334
      %v3495 = vunpack.c.l.b16 %v3335
      %v3496 = vunpack.c.l.b16 %v3336
      %v3497 = vunpack.c.l.b16 %v3337
      %v3498 = vunpack.c.l.b16 %v3338
      %v3499 = vunpack.c.l.b16 %v3339
      %v3500 = vunpack.c.l.b16 %v3340
      %v3501 = vunpack.c.l.b16 %v3341
      %v3502 = vunpack.c.l.b16 %v3342
      %v3503 = vunpack.c.l.b16 %v3343
      %v3504 = vunpack.c.l.b16 %v3344
      %v3505 = vunpack.c.l.b16 %v3345
      %v3506 = vunpack.c.l.b16 %v3346
      %v3507 = vunpack.c.l.b16 %v3347
      %v3508 = vunpack.c.l.b16 %v3348
      %v3509 = vunpack.c.l.b16 %v3349
      %v3510 = vunpack.c.l.b16 %v3350
      %v3511 = vunpack.c.l.b16 %v3351
      %v3512 = vunpack.c.l.b16 %v3352
      %v3513 = vunpack.c.l.b16 %v3353
      %v3514 = vunpack.c.l.b16 %v3354
      %v3515 = vunpack.c.l.b16 %v3355
      %v3516 = vunpack.c.l.b16 %v3356
      %v3517 = vunpack.c.l.b16 %v3357
      %v3518 = vunpack.c.l.b16 %v3358
      %v3519 = vunpack.c.l.b16 %v3359
      %v3520 = vunpack.c.l.b16 %v3360
      %v3521 = vunpack.c.l.b16 %v3361
      %v3522 = vunpack.c.l.b16 %v3362
      %v3523 = vpack.c.b16 %v3444, %v3443
      %v3524 = vpack.c.b16 %v3446, %v3445
      %v3525 = vpack.c.b16 %v3448, %v3447
      %v3526 = vpack.c.b16 %v3450, %v3449
      %v3527 = vpack.c.b16 %v3452, %v3451
      %v3528 = vpack.c.b16 %v3454, %v3453
      %v3529 = vpack.c.b16 %v3456, %v3455
      %v3530 = vpack.c.b16 %v3458, %v3457
      %v3531 = vpack.c.b16 %v3460, %v3459
      %v3532 = vpack.c.b16 %v3462, %v3461
      %v3533 = vpack.c.b16 %v3464, %v3463
      %v3534 = vpack.c.b16 %v3466, %v3465
      %v3535 = vpack.c.b16 %v3468, %v3467
      %v3536 = vpack.c.b16 %v3470, %v3469
      %v3537 = vpack.c.b16 %v3472, %v3471
      %v3538 = vpack.c.b16 %v3474, %v3473
      %v3539 = vpack.c.b16 %v3476, %v3475
      %v3540 = vpack.c.b16 %v3478, %v3477
      %v3541 = vpack.c.b16 %v3480, %v3479
      %v3542 = vpack.c.b16 %v3482, %v3481
      %v3543 = vpack.c.b16 %v3484, %v3483
      %v3544 = vpack.c.b16 %v3486, %v3485
      %v3545 = vpack.c.b16 %v3488, %v3487
      %v3546 = vpack.c.b16 %v3490, %v3489
      %v3547 = vpack.c.b16 %v3492, %v3491
      %v3548 = vpack.c.b16 %v3494, %v3493
      %v3549 = vpack.c.b16 %v3496, %v3495
      %v3550 = vpack.c.b16 %v3498, %v3497
      %v3551 = vpack.c.b16 %v3500, %v3499
      %v3552 = vpack.c.b16 %v3502, %v3501
      %v3553 = vpack.c.b16 %v3504, %v3503
      %v3554 = vpack.c.b16 %v3506, %v3505
      %v3555 = vpack.c.b16 %v3508, %v3507
      %v3556 = vpack.c.b16 %v3510, %v3509
      %v3557 = vpack.c.b16 %v3512, %v3511
      %v3558 = vpack.c.b16 %v3514, %v3513
      %v3559 = vpack.c.b16 %v3516, %v3515
      %v3560 = vpack.c.b16 %v3518, %v3517
      %v3561 = vpack.c.b16 %v3520, %v3519
      %v3562 = vpack.c.b16 %v3522, %v3521
      %3603 = vmatprep.subr.bf16.mxu0 0
      %3604 = vmatpush1.bf16.msra.mxu0 %v3530
      %3605 = vmatprep.subr.bf16.mxu0 0
      %3606 = vmatpush1.bf16.msra.mxu0 %v3529
      %3607 = vmatprep.subr.bf16.mxu0 0
      %3608 = vmatpush1.bf16.msra.mxu0 %v3528
      %3609 = vmatprep.subr.bf16.mxu0 0
      %3610 = vmatpush1.bf16.msra.mxu0 %v3527
      %3611 = vmatprep.subr.bf16.mxu0 0
      %3612 = vmatpush1.bf16.msra.mxu0 %v3526
      %3613 = vmatprep.subr.bf16.mxu0 0
      %3614 = vmatpush1.bf16.msra.mxu0 %v3525
      %3615 = vmatprep.subr.bf16.mxu0 0
      %3616 = vmatpush1.bf16.msra.mxu0 %v3524
      %3617 = vmatprep.subr.bf16.mxu0 0
      %3618 = vmatpush1.bf16.msra.mxu0 %v3523
      %3619 = vmatprep.subr.bf16.mxu0 0
      %3620 = vmatpush2.bf16.msra.mxu0 %v3538
      %3621 = vmatprep.subr.bf16.mxu0 0
      %3622 = vmatpush2.bf16.msra.mxu0 %v3537
      %3623 = vmatprep.subr.bf16.mxu0 0
      %3624 = vmatpush2.bf16.msra.mxu0 %v3536
      %3625 = vmatprep.subr.bf16.mxu0 0
      %3626 = vmatpush2.bf16.msra.mxu0 %v3535
      %3627 = vmatprep.subr.bf16.mxu0 0
      %3628 = vmatpush2.bf16.msra.mxu0 %v3534
      %3629 = vmatprep.subr.bf16.mxu0 0
      %3630 = vmatpush2.bf16.msra.mxu0 %v3533
      %3631 = vmatprep.subr.bf16.mxu0 0
      %3632 = vmatpush2.bf16.msra.mxu0 %v3532
      %3633 = vmatprep.subr.bf16.mxu0 0
      %3634 = vmatpush2.bf16.msra.mxu0 %v3531
      %3635 = vmatprep.mubr.bf16.mxu0 %v1097
      %3636 = vmatmul.mubr.bf16.gmra.mxu0 %v994
      %v3637 = vpop.f32.mrf.mxu0
      %v3638 = vadd.f32 0.0, %v3637
      %v3639 = vpop.f32.mrf.mxu0
      %v3640 = vpop.f32.mrf.mxu0
      %v3641 = vadd.f32 0.0, %v3640
      %v3642 = vpop.f32.mrf.mxu0
      %3643 = vmatprep.mubr.bf16.mxu0 %v1107
      %3644 = vmatmul.mubr.bf16.gmra.mxu0 %v997
      %v3645 = vpop.f32.mrf.mxu0
      %v3646 = vadd.f32 0.0, %v3645
      %v3647 = vpop.f32.mrf.mxu0
      %v3648 = vpop.f32.mrf.mxu0
      %v3649 = vadd.f32 0.0, %v3648
      %v3650 = vpop.f32.mrf.mxu0
      %3651 = vmatprep.mubr.bf16.mxu0 %v1117
      %3652 = vmatmul.mubr.bf16.gmra.mxu0 %v1000
      %v3653 = vpop.f32.mrf.mxu0
      %v3654 = vadd.f32 0.0, %v3653
      %v3655 = vpop.f32.mrf.mxu0
      %v3656 = vpop.f32.mrf.mxu0
      %v3657 = vadd.f32 0.0, %v3656
      %v3658 = vpop.f32.mrf.mxu0
      %3659 = vmatprep.mubr.bf16.mxu0 %v1127
      %3660 = vmatmul.mubr.bf16.gmra.mxu0 %v1003
      %v3661 = vpop.f32.mrf.mxu0
      %v3662 = vadd.f32 0.0, %v3661
      %v3663 = vpop.f32.mrf.mxu0
      %v3664 = vpop.f32.mrf.mxu0
      %v3665 = vadd.f32 0.0, %v3664
      %v3666 = vpop.f32.mrf.mxu0
      %3667 = vmatprep.mubr.bf16.mxu0 %v1137
      %3668 = vmatmul.mubr.bf16.gmra.mxu0 %v1006
      %v3669 = vpop.f32.mrf.mxu0
      %v3670 = vadd.f32 0.0, %v3669
      %v3671 = vpop.f32.mrf.mxu0
      %v3672 = vpop.f32.mrf.mxu0
      %v3673 = vadd.f32 0.0, %v3672
      %v3674 = vpop.f32.mrf.mxu0
      %3675 = vmatprep.mubr.bf16.mxu0 %v1147
      %3676 = vmatmul.mubr.bf16.gmra.mxu0 %v1009
      %v3677 = vpop.f32.mrf.mxu0
      %v3678 = vadd.f32 0.0, %v3677
      %v3679 = vpop.f32.mrf.mxu0
      %v3680 = vpop.f32.mrf.mxu0
      %v3681 = vadd.f32 0.0, %v3680
      %v3682 = vpop.f32.mrf.mxu0
      %3683 = vmatprep.mubr.bf16.mxu0 %v1157
      %3684 = vmatmul.mubr.bf16.gmra.mxu0 %v1012
      %v3685 = vpop.f32.mrf.mxu0
      %v3686 = vadd.f32 0.0, %v3685
      %v3687 = vpop.f32.mrf.mxu0
      %v3688 = vpop.f32.mrf.mxu0
      %v3689 = vadd.f32 0.0, %v3688
      %v3690 = vpop.f32.mrf.mxu0
      %3691 = vmatprep.mubr.bf16.mxu0 %v1167
      %3692 = vmatmul.mubr.bf16.gmra.mxu0 %v1015
      %v3693 = vpop.f32.mrf.mxu0
      %v3694 = vadd.f32 0.0, %v3693
      %v3695 = vpop.f32.mrf.mxu0
      %v3696 = vpop.f32.mrf.mxu0
      %v3697 = vadd.f32 0.0, %v3696
      %v3698 = vpop.f32.mrf.mxu0
      %3699 = vmatprep.mubr.bf16.mxu0 %v1177
      %3700 = vmatmul.mubr.bf16.gmra.mxu0 %v1018
      %v3701 = vpop.f32.mrf.mxu0
      %v3702 = vadd.f32 0.0, %v3701
      %v3703 = vpop.f32.mrf.mxu0
      %v3704 = vpop.f32.mrf.mxu0
      %v3705 = vadd.f32 0.0, %v3704
      %v3706 = vpop.f32.mrf.mxu0
      %3707 = vmatprep.mubr.bf16.mxu0 %v1187
      %3708 = vmatmul.mubr.bf16.gmra.mxu0 %v1021
      %v3709 = vpop.f32.mrf.mxu0
      %v3710 = vadd.f32 0.0, %v3709
      %v3711 = vpop.f32.mrf.mxu0
      %v3712 = vpop.f32.mrf.mxu0
      %v3713 = vadd.f32 0.0, %v3712
      %v3714 = vpop.f32.mrf.mxu0
      %3715 = vmatprep.mubr.bf16.mxu0 %v1197
      %3716 = vmatmul.mubr.bf16.gmra.mxu0 %v1024
      %v3717 = vpop.f32.mrf.mxu0
      %v3718 = vadd.f32 0.0, %v3717
      %v3719 = vpop.f32.mrf.mxu0
      %v3720 = vpop.f32.mrf.mxu0
      %v3721 = vadd.f32 0.0, %v3720
      %v3722 = vpop.f32.mrf.mxu0
      %3723 = vmatprep.mubr.bf16.mxu0 %v1207
      %3724 = vmatmul.mubr.bf16.gmra.mxu0 %v1027
      %v3725 = vpop.f32.mrf.mxu0
      %v3726 = vadd.f32 0.0, %v3725
      %v3727 = vpop.f32.mrf.mxu0
      %v3728 = vpop.f32.mrf.mxu0
      %v3729 = vadd.f32 0.0, %v3728
      %v3730 = vpop.f32.mrf.mxu0
      %3731 = vmatprep.mubr.bf16.mxu0 %v1217
      %3732 = vmatmul.mubr.bf16.gmra.mxu0 %v1030
      %v3733 = vpop.f32.mrf.mxu0
      %v3734 = vadd.f32 0.0, %v3733
      %v3735 = vpop.f32.mrf.mxu0
      %v3736 = vpop.f32.mrf.mxu0
      %v3737 = vadd.f32 0.0, %v3736
      %v3738 = vpop.f32.mrf.mxu0
      %3739 = vmatprep.mubr.bf16.mxu0 %v1227
      %3740 = vmatmul.mubr.bf16.gmra.mxu0 %v1033
      %v3741 = vpop.f32.mrf.mxu0
      %v3742 = vadd.f32 0.0, %v3741
      %v3743 = vpop.f32.mrf.mxu0
      %v3744 = vpop.f32.mrf.mxu0
      %v3745 = vadd.f32 0.0, %v3744
      %v3746 = vpop.f32.mrf.mxu0
      %3747 = vmatprep.mubr.bf16.mxu0 %v1656
      %3748 = vmatmul.mubr.bf16.gmra.mxu0 %v1036
      %v3749 = vpop.f32.mrf.mxu0
      %v3750 = vadd.f32 0.0, %v3749
      %v3751 = vpop.f32.mrf.mxu0
      %v3752 = vpop.f32.mrf.mxu0
      %v3753 = vadd.f32 0.0, %v3752
      %v3754 = vpop.f32.mrf.mxu0
      %3755 = vmatprep.mubr.bf16.mxu0 %v3261
      %3756 = vmatmul.mubr.bf16.gmra.mxu0 %v1039
      %v3757 = vpop.f32.mrf.mxu0
      %v3758 = vadd.f32 0.0, %v3757
      %v3759 = vpop.f32.mrf.mxu0
      %v3760 = vpop.f32.mrf.mxu0
      %v3761 = vadd.f32 0.0, %v3760
      %v3762 = vpop.f32.mrf.mxu0
      %3763 = vdwg.mxu0
      %3764 = vmatprep.subr.bf16.mxu0 0
      %3765 = vmatpush1.bf16.msra.mxu0 %v3546
      %3766 = vmatprep.subr.bf16.mxu0 0
      %3767 = vmatpush1.bf16.msra.mxu0 %v3545
      %3768 = vmatprep.subr.bf16.mxu0 0
      %3769 = vmatpush1.bf16.msra.mxu0 %v3544
      %3770 = vmatprep.subr.bf16.mxu0 0
      %3771 = vmatpush1.bf16.msra.mxu0 %v3543
      %3772 = vmatprep.subr.bf16.mxu0 0
      %3773 = vmatpush1.bf16.msra.mxu0 %v3542
      %3774 = vmatprep.subr.bf16.mxu0 0
      %3775 = vmatpush1.bf16.msra.mxu0 %v3541
      %3776 = vmatprep.subr.bf16.mxu0 0
      %3777 = vmatpush1.bf16.msra.mxu0 %v3540
      %3778 = vmatprep.subr.bf16.mxu0 0
      %3779 = vmatpush1.bf16.msra.mxu0 %v3539
      %3780 = vmatprep.subr.bf16.mxu0 0
      %3781 = vmatpush2.bf16.msra.mxu0 %v3554
      %3782 = vmatprep.subr.bf16.mxu0 0
      %3783 = vmatpush2.bf16.msra.mxu0 %v3553
      %3784 = vmatprep.subr.bf16.mxu0 0
      %3785 = vmatpush2.bf16.msra.mxu0 %v3552
      %3786 = vmatprep.subr.bf16.mxu0 0
      %3787 = vmatpush2.bf16.msra.mxu0 %v3551
      %3788 = vmatprep.subr.bf16.mxu0 0
      %3789 = vmatpush2.bf16.msra.mxu0 %v3550
      %3790 = vmatprep.subr.bf16.mxu0 0
      %3791 = vmatpush2.bf16.msra.mxu0 %v3549
      %3792 = vmatprep.subr.bf16.mxu0 0
      %3793 = vmatpush2.bf16.msra.mxu0 %v3548
      %3794 = vmatprep.subr.bf16.mxu0 0
      %3795 = vmatpush2.bf16.msra.mxu0 %v3547
      %3796 = vmatprep.mubr.bf16.mxu0 %v1368
      %3797 = vmatmul.mubr.bf16.gmra.mxu0 %v1285
      %v3798 = vpop.f32.mrf.mxu0
      %v3799 = vadd.f32 %v3638, %v3798
      %v3800 = vpop.f32.mrf.mxu0
      %v3801 = vpop.f32.mrf.mxu0
      %v3802 = vadd.f32 %v3641, %v3801
      %v3803 = vpop.f32.mrf.mxu0
      %3804 = vmatprep.mubr.bf16.mxu0 %v1377
      %3805 = vmatmul.mubr.bf16.gmra.mxu0 %v1288
      %v3806 = vpop.f32.mrf.mxu0
      %v3807 = vadd.f32 %v3646, %v3806
      %v3808 = vpop.f32.mrf.mxu0
      %v3809 = vpop.f32.mrf.mxu0
      %v3810 = vadd.f32 %v3649, %v3809
      %v3811 = vpop.f32.mrf.mxu0
      %3812 = vmatprep.mubr.bf16.mxu0 %v1386
      %3813 = vmatmul.mubr.bf16.gmra.mxu0 %v1291
      %v3814 = vpop.f32.mrf.mxu0
      %v3815 = vadd.f32 %v3654, %v3814
      %v3816 = vpop.f32.mrf.mxu0
      %v3817 = vpop.f32.mrf.mxu0
      %v3818 = vadd.f32 %v3657, %v3817
      %v3819 = vpop.f32.mrf.mxu0
      %3820 = vmatprep.mubr.bf16.mxu0 %v1395
      %3821 = vmatmul.mubr.bf16.gmra.mxu0 %v1294
      %v3822 = vpop.f32.mrf.mxu0
      %v3823 = vadd.f32 %v3662, %v3822
      %v3824 = vpop.f32.mrf.mxu0
      %v3825 = vpop.f32.mrf.mxu0
      %v3826 = vadd.f32 %v3665, %v3825
      %v3827 = vpop.f32.mrf.mxu0
      %3828 = vmatprep.mubr.bf16.mxu0 %v1404
      %3829 = vmatmul.mubr.bf16.gmra.mxu0 %v1297
      %v3830 = vpop.f32.mrf.mxu0
      %v3831 = vadd.f32 %v3670, %v3830
      %v3832 = vpop.f32.mrf.mxu0
      %v3833 = vpop.f32.mrf.mxu0
      %v3834 = vadd.f32 %v3673, %v3833
      %v3835 = vpop.f32.mrf.mxu0
      %3836 = vmatprep.mubr.bf16.mxu0 %v1413
      %3837 = vmatmul.mubr.bf16.gmra.mxu0 %v1300
      %v3838 = vpop.f32.mrf.mxu0
      %v3839 = vadd.f32 %v3678, %v3838
      %v3840 = vpop.f32.mrf.mxu0
      %v3841 = vpop.f32.mrf.mxu0
      %v3842 = vadd.f32 %v3681, %v3841
      %v3843 = vpop.f32.mrf.mxu0
      %3844 = vmatprep.mubr.bf16.mxu0 %v1422
      %3845 = vmatmul.mubr.bf16.gmra.mxu0 %v1303
      %v3846 = vpop.f32.mrf.mxu0
      %v3847 = vadd.f32 %v3686, %v3846
      %v3848 = vpop.f32.mrf.mxu0
      %v3849 = vpop.f32.mrf.mxu0
      %v3850 = vadd.f32 %v3689, %v3849
      %v3851 = vpop.f32.mrf.mxu0
      %3852 = vmatprep.mubr.bf16.mxu0 %v1431
      %3853 = vmatmul.mubr.bf16.gmra.mxu0 %v1306
      %v3854 = vpop.f32.mrf.mxu0
      %v3855 = vadd.f32 %v3694, %v3854
      %v3856 = vpop.f32.mrf.mxu0
      %v3857 = vpop.f32.mrf.mxu0
      %v3858 = vadd.f32 %v3697, %v3857
      %v3859 = vpop.f32.mrf.mxu0
      %3860 = vmatprep.mubr.bf16.mxu0 %v1440
      %3861 = vmatmul.mubr.bf16.gmra.mxu0 %v1309
      %v3862 = vpop.f32.mrf.mxu0
      %v3863 = vadd.f32 %v3702, %v3862
      %v3864 = vpop.f32.mrf.mxu0
      %v3865 = vpop.f32.mrf.mxu0
      %v3866 = vadd.f32 %v3705, %v3865
      %v3867 = vpop.f32.mrf.mxu0
      %3868 = vmatprep.mubr.bf16.mxu0 %v1449
      %3869 = vmatmul.mubr.bf16.gmra.mxu0 %v1312
      %v3870 = vpop.f32.mrf.mxu0
      %v3871 = vadd.f32 %v3710, %v3870
      %v3872 = vpop.f32.mrf.mxu0
      %v3873 = vpop.f32.mrf.mxu0
      %v3874 = vadd.f32 %v3713, %v3873
      %v3875 = vpop.f32.mrf.mxu0
      %3876 = vmatprep.mubr.bf16.mxu0 %v1458
      %3877 = vmatmul.mubr.bf16.gmra.mxu0 %v1315
      %v3878 = vpop.f32.mrf.mxu0
      %v3879 = vadd.f32 %v3718, %v3878
      %v3880 = vpop.f32.mrf.mxu0
      %v3881 = vpop.f32.mrf.mxu0
      %v3882 = vadd.f32 %v3721, %v3881
      %v3883 = vpop.f32.mrf.mxu0
      %3884 = vmatprep.mubr.bf16.mxu0 %v1467
      %3885 = vmatmul.mubr.bf16.gmra.mxu0 %v1318
      %v3886 = vpop.f32.mrf.mxu0
      %v3887 = vadd.f32 %v3726, %v3886
      %v3888 = vpop.f32.mrf.mxu0
      %v3889 = vpop.f32.mrf.mxu0
      %v3890 = vadd.f32 %v3729, %v3889
      %v3891 = vpop.f32.mrf.mxu0
      %3892 = vmatprep.mubr.bf16.mxu0 %v1476
      %3893 = vmatmul.mubr.bf16.gmra.mxu0 %v1321
      %v3894 = vpop.f32.mrf.mxu0
      %v3895 = vadd.f32 %v3734, %v3894
      %v3896 = vpop.f32.mrf.mxu0
      %v3897 = vpop.f32.mrf.mxu0
      %v3898 = vadd.f32 %v3737, %v3897
      %v3899 = vpop.f32.mrf.mxu0
      %3900 = vmatprep.mubr.bf16.mxu0 %v1485
      %3901 = vmatmul.mubr.bf16.gmra.mxu0 %v1324
      %v3902 = vpop.f32.mrf.mxu0
      %v3903 = vadd.f32 %v3742, %v3902
      %v3904 = vpop.f32.mrf.mxu0
      %v3905 = vpop.f32.mrf.mxu0
      %v3906 = vadd.f32 %v3745, %v3905
      %v3907 = vpop.f32.mrf.mxu0
      %3908 = vmatprep.mubr.bf16.mxu0 %v1672
      %3909 = vmatmul.mubr.bf16.gmra.mxu0 %v1662
      %v3910 = vpop.f32.mrf.mxu0
      %v3911 = vadd.f32 %v3750, %v3910
      %v3912 = vpop.f32.mrf.mxu0
      %v3913 = vpop.f32.mrf.mxu0
      %v3914 = vadd.f32 %v3753, %v3913
      %v3915 = vpop.f32.mrf.mxu0
      %3916 = vmatprep.mubr.bf16.mxu0 %v3277
      %3917 = vmatmul.mubr.bf16.gmra.mxu0 %v3267
      %v3918 = vpop.f32.mrf.mxu0
      %v3919 = vadd.f32 %v3758, %v3918
      %v3920 = vpop.f32.mrf.mxu0
      %v3921 = vpop.f32.mrf.mxu0
      %v3922 = vadd.f32 %v3761, %v3921
      %v3923 = vpop.f32.mrf.mxu0
      %3924 = vdwg.mxu0
      %3925 = vmatprep.subr.bf16.mxu0 0
      %3926 = vmatpush1.bf16.msra.mxu0 %v3562
      %3927 = vmatprep.subr.bf16.mxu0 0
      %3928 = vmatpush1.bf16.msra.mxu0 %v3561
      %3929 = vmatprep.subr.bf16.mxu0 0
      %3930 = vmatpush1.bf16.msra.mxu0 %v3560
      %3931 = vmatprep.subr.bf16.mxu0 0
      %3932 = vmatpush1.bf16.msra.mxu0 %v3559
      %3933 = vmatprep.subr.bf16.mxu0 0
      %3934 = vmatpush1.bf16.msra.mxu0 %v3558
      %3935 = vmatprep.subr.bf16.mxu0 0
      %3936 = vmatpush1.bf16.msra.mxu0 %v3557
      %3937 = vmatprep.subr.bf16.mxu0 0
      %3938 = vmatpush1.bf16.msra.mxu0 %v3556
      %3939 = vmatprep.subr.bf16.mxu0 0
      %3940 = vmatpush1.bf16.msra.mxu0 %v3555
      %3941 = vmatprep.subr.bf16.mxu0 0
      %3942 = vmatpush2.bf16.msra.mxu0 0
      %3943 = vmatprep.subr.bf16.mxu0 0
      %3944 = vmatpush2.bf16.msra.mxu0 0
      %3945 = vmatprep.subr.bf16.mxu0 0
      %3946 = vmatpush2.bf16.msra.mxu0 0
      %3947 = vmatprep.subr.bf16.mxu0 0
      %3948 = vmatpush2.bf16.msra.mxu0 0
      %3949 = vmatprep.subr.bf16.mxu0 0
      %3950 = vmatpush2.bf16.msra.mxu0 0
      %3951 = vmatprep.subr.bf16.mxu0 0
      %3952 = vmatpush2.bf16.msra.mxu0 0
      %3953 = vmatprep.subr.bf16.mxu0 0
      %3954 = vmatpush2.bf16.msra.mxu0 0
      %3955 = vmatprep.subr.bf16.mxu0 0
      %3956 = vmatpush2.bf16.msra.mxu0 0
      %3957 = vmatprep.mubr.bf16.mxu0 0
      %3958 = vmatmul.mubr.bf16.gmra.mxu0 %v1511
      %v3959 = vpop.f32.mrf.mxu0
      %v3960 = vadd.f32 %v3799, %v3959
      %v3961 = vpop.f32.mrf.mxu0
      %v3962 = vpop.f32.mrf.mxu0
      %v3963 = vadd.f32 %v3802, %v3962
      %v3964 = vpop.f32.mrf.mxu0
      %3965 = vmatprep.mubr.bf16.mxu0 0
      %3966 = vmatmul.mubr.bf16.gmra.mxu0 %v1514
      %v3967 = vpop.f32.mrf.mxu0
      %v3968 = vadd.f32 %v3807, %v3967
      %v3969 = vpop.f32.mrf.mxu0
      %v3970 = vpop.f32.mrf.mxu0
      %v3971 = vadd.f32 %v3810, %v3970
      %v3972 = vpop.f32.mrf.mxu0
      %3973 = vmatprep.mubr.bf16.mxu0 0
      %3974 = vmatmul.mubr.bf16.gmra.mxu0 %v1517
      %v3975 = vpop.f32.mrf.mxu0
      %v3976 = vadd.f32 %v3815, %v3975
      %v3977 = vpop.f32.mrf.mxu0
      %v3978 = vpop.f32.mrf.mxu0
      %v3979 = vadd.f32 %v3818, %v3978
      %v3980 = vpop.f32.mrf.mxu0
      %3981 = vmatprep.mubr.bf16.mxu0 0
      %3982 = vmatmul.mubr.bf16.gmra.mxu0 %v1520
      %v3983 = vpop.f32.mrf.mxu0
      %v3984 = vadd.f32 %v3823, %v3983
      %v3985 = vpop.f32.mrf.mxu0
      %v3986 = vpop.f32.mrf.mxu0
      %v3987 = vadd.f32 %v3826, %v3986
      %v3988 = vpop.f32.mrf.mxu0
      %3989 = vmatprep.mubr.bf16.mxu0 0
      %3990 = vmatmul.mubr.bf16.gmra.mxu0 %v1523
      %v3991 = vpop.f32.mrf.mxu0
      %v3992 = vadd.f32 %v3831, %v3991
      %v3993 = vpop.f32.mrf.mxu0
      %v3994 = vpop.f32.mrf.mxu0
      %v3995 = vadd.f32 %v3834, %v3994
      %v3996 = vpop.f32.mrf.mxu0
      %3997 = vmatprep.mubr.bf16.mxu0 0
      %3998 = vmatmul.mubr.bf16.gmra.mxu0 %v1526
      %v3999 = vpop.f32.mrf.mxu0
      %v4000 = vadd.f32 %v3839, %v3999
      %v4001 = vpop.f32.mrf.mxu0
      %v4002 = vpop.f32.mrf.mxu0
      %v4003 = vadd.f32 %v3842, %v4002
      %v4004 = vpop.f32.mrf.mxu0
      %4005 = vmatprep.mubr.bf16.mxu0 0
      %4006 = vmatmul.mubr.bf16.gmra.mxu0 %v1529
      %v4007 = vpop.f32.mrf.mxu0
      %v4008 = vadd.f32 %v3847, %v4007
      %v4009 = vpop.f32.mrf.mxu0
      %v4010 = vpop.f32.mrf.mxu0
      %v4011 = vadd.f32 %v3850, %v4010
      %v4012 = vpop.f32.mrf.mxu0
      %4013 = vmatprep.mubr.bf16.mxu0 0
      %4014 = vmatmul.mubr.bf16.gmra.mxu0 %v1532
      %v4015 = vpop.f32.mrf.mxu0
      %v4016 = vadd.f32 %v3855, %v4015
      %v4017 = vpop.f32.mrf.mxu0
      %v4018 = vpop.f32.mrf.mxu0
      %v4019 = vadd.f32 %v3858, %v4018
      %v4020 = vpop.f32.mrf.mxu0
      %4021 = vmatprep.mubr.bf16.mxu0 0
      %4022 = vmatmul.mubr.bf16.gmra.mxu0 %v1535
      %v4023 = vpop.f32.mrf.mxu0
      %v4024 = vadd.f32 %v3863, %v4023
      %v4025 = vpop.f32.mrf.mxu0
      %v4026 = vpop.f32.mrf.mxu0
      %v4027 = vadd.f32 %v3866, %v4026
      %v4028 = vpop.f32.mrf.mxu0
      %4029 = vmatprep.mubr.bf16.mxu0 0
      %4030 = vmatmul.mubr.bf16.gmra.mxu0 %v1538
      %v4031 = vpop.f32.mrf.mxu0
      %v4032 = vadd.f32 %v3871, %v4031
      %v4033 = vpop.f32.mrf.mxu0
      %v4034 = vpop.f32.mrf.mxu0
      %v4035 = vadd.f32 %v3874, %v4034
      %v4036 = vpop.f32.mrf.mxu0
      %4037 = vmatprep.mubr.bf16.mxu0 0
      %4038 = vmatmul.mubr.bf16.gmra.mxu0 %v1541
      %v4039 = vpop.f32.mrf.mxu0
      %v4040 = vadd.f32 %v3879, %v4039
      %v4041 = vpop.f32.mrf.mxu0
      %v4042 = vpop.f32.mrf.mxu0
      %v4043 = vadd.f32 %v3882, %v4042
      %v4044 = vpop.f32.mrf.mxu0
      %4045 = vmatprep.mubr.bf16.mxu0 0
      %4046 = vmatmul.mubr.bf16.gmra.mxu0 %v1544
      %v4047 = vpop.f32.mrf.mxu0
      %v4048 = vadd.f32 %v3887, %v4047
      %v4049 = vpop.f32.mrf.mxu0
      %v4050 = vpop.f32.mrf.mxu0
      %v4051 = vadd.f32 %v3890, %v4050
      %v4052 = vpop.f32.mrf.mxu0
      %4053 = vmatprep.mubr.bf16.mxu0 0
      %4054 = vmatmul.mubr.bf16.gmra.mxu0 %v1547
      %v4055 = vpop.f32.mrf.mxu0
      %v4056 = vadd.f32 %v3895, %v4055
      %v4057 = vpop.f32.mrf.mxu0
      %v4058 = vpop.f32.mrf.mxu0
      %v4059 = vadd.f32 %v3898, %v4058
      %v4060 = vpop.f32.mrf.mxu0
      %4061 = vmatprep.mubr.bf16.mxu0 0
      %4062 = vmatmul.mubr.bf16.gmra.mxu0 %v1550
      %v4063 = vpop.f32.mrf.mxu0
      %v4064 = vadd.f32 %v3903, %v4063
      %v4065 = vpop.f32.mrf.mxu0
      %v4066 = vpop.f32.mrf.mxu0
      %v4067 = vadd.f32 %v3906, %v4066
      %v4068 = vpop.f32.mrf.mxu0
      %4069 = vmatprep.mubr.bf16.mxu0 0
      %4070 = vmatmul.mubr.bf16.gmra.mxu0 %v1676
      %v4071 = vpop.f32.mrf.mxu0
      %v4072 = vadd.f32 %v3911, %v4071
      %v4073 = vpop.f32.mrf.mxu0
      %v4074 = vpop.f32.mrf.mxu0
      %v4075 = vadd.f32 %v3914, %v4074
      %v4076 = vpop.f32.mrf.mxu0
      %4077 = vmatprep.mubr.bf16.mxu0 0
      %4078 = vmatmul.mubr.bf16.gmra.mxu0 %v3281
      %v4079 = vpop.f32.mrf.mxu0
      %v4080 = vadd.f32 %v3919, %v4079
      %v4081 = vpop.f32.mrf.mxu0
      %v4082 = vpop.f32.mrf.mxu0
      %v4083 = vadd.f32 %v3922, %v4082
      %v4084 = vpop.f32.mrf.mxu0
      %4085 = vdwg.mxu0
      %v4086 = vadd.f32 %v3078, %v3960
      %v4087 = vadd.f32 %v3081, %v3963
      %v4088 = vadd.f32 %v3086, %v3968
      %v4089 = vadd.f32 %v3089, %v3971
      %v4090 = vadd.f32 %v3094, %v3976
      %v4091 = vadd.f32 %v3097, %v3979
      %v4092 = vadd.f32 %v3102, %v3984
      %v4093 = vadd.f32 %v3105, %v3987
      %v4094 = vadd.f32 %v3110, %v3992
      %v4095 = vadd.f32 %v3113, %v3995
      %v4096 = vadd.f32 %v3118, %v4000
      %v4097 = vadd.f32 %v3121, %v4003
      %v4098 = vadd.f32 %v3126, %v4008
      %v4099 = vadd.f32 %v3129, %v4011
      %v4100 = vadd.f32 %v3134, %v4016
      %v4101 = vadd.f32 %v3137, %v4019
      %v4102 = vadd.f32 %v3142, %v4024
      %v4103 = vadd.f32 %v3145, %v4027
      %v4104 = vadd.f32 %v3150, %v4032
      %v4105 = vadd.f32 %v3153, %v4035
      %v4106 = vadd.f32 %v3158, %v4040
      %v4107 = vadd.f32 %v3161, %v4043
      %v4108 = vadd.f32 %v3166, %v4048
      %v4109 = vadd.f32 %v3169, %v4051
      %v4110 = vadd.f32 %v3174, %v4056
      %v4111 = vadd.f32 %v3177, %v4059
      %v4112 = vadd.f32 %v3182, %v4064
      %v4113 = vadd.f32 %v3185, %v4067
      %v4114 = vadd.f32 %v3190, %v4072
      %v4115 = vadd.f32 %v3193, %v4075
      %v4116 = vadd.f32 %v3198, %v4080
      %v4117 = vadd.f32 %v3201, %v4083
      %v4118 = vld [vmem:[%s5 + $0xc0] sm:$0xf]
      %v4119 = vld [vmem:[%s5 + $0xc4] sm:$0xf]
      %v4120 = vld [vmem:[%s5 + $0xc8] sm:$0xf]
      %v4121 = vld [vmem:[%s5 + $0xcc] sm:$0xf]
      %v4122 = vld [vmem:[%s5 + $0xd0] sm:$0xf]
      %v4123 = vld [vmem:[%s5 + $0xd4] sm:$0xf]
      %v4124 = vld [vmem:[%s5 + $0xd8] sm:$0xf]
      %v4125 = vld [vmem:[%s5 + $0xdc] sm:$0xf]
      %v4126 = vld [vmem:[%s5 + $0xe0] sm:$0xf]
      %v4127 = vld [vmem:[%s5 + $0xe4] sm:$0xf]
      %v4128 = vld [vmem:[%s5 + $0xe8] sm:$0xf]
      %v4129 = vld [vmem:[%s5 + $0xec] sm:$0xf]
      %v4130 = vld [vmem:[%s5 + $0xf0] sm:$0xf]
      %v4131 = vld [vmem:[%s5 + $0xf4] sm:$0xf]
      %v4132 = vld [vmem:[%s5 + $0xf8] sm:$0xf]
      %v4133 = vld [vmem:[%s5 + $0xfc] sm:$0xf]
      %v4134 = vld [vmem:[%s5 + $0x100] sm:$0xf]
      %v4135 = vld [vmem:[%s5 + $0x104] sm:$0xf]
      %v4136 = vld [vmem:[%s5 + $0x108] sm:$0xf]
      %v4137 = vld [vmem:[%s5 + $0x10c] sm:$0xf]
      %v4138 = vld [vmem:[%s5 + $0x110] sm:$0xf]
      %v4139 = vld [vmem:[%s5 + $0x114] sm:$0xf]
      %v4140 = vld [vmem:[%s5 + $0x118] sm:$0xf]
      %v4141 = vld [vmem:[%s5 + $0x11c] sm:$0xf]
      %v4142 = vld [vmem:[%s5 + $0x120] sm:$0xf]
      %v4143 = vld [vmem:[%s5 + $0x124] sm:$0xf]
      %v4144 = vld [vmem:[%s5 + $0x128] sm:$0xf]
      %v4145 = vld [vmem:[%s5 + $0x12c] sm:$0xf]
      %v4146 = vld [vmem:[%s5 + $0x130] sm:$0xf]
      %v4147 = vld [vmem:[%s5 + $0x134] sm:$0xf]
      %v4148 = vld [vmem:[%s5 + $0x138] sm:$0xf]
      %v4149 = vld [vmem:[%s5 + $0x13c] sm:$0xf]
      %v4150 = vld [vmem:[%s5 + $0x140] sm:$0xf]
      %v4151 = vld [vmem:[%s5 + $0x144] sm:$0xf]
      %v4152 = vld [vmem:[%s5 + $0x148] sm:$0xf]
      %v4153 = vld [vmem:[%s5 + $0x14c] sm:$0xf]
      %v4154 = vld [vmem:[%s5 + $0x150] sm:$0xf]
      %v4155 = vld [vmem:[%s5 + $0x154] sm:$0xf]
      %v4156 = vld [vmem:[%s5 + $0x158] sm:$0xf]
      %v4157 = vld [vmem:[%s5 + $0x15c] sm:$0xf]
      %v4158 = vld [vmem:[%s5 + $0x160] sm:$0xf]
      %v4159 = vld [vmem:[%s5 + $0x164] sm:$0xf]
      %v4160 = vld [vmem:[%s5 + $0x168] sm:$0xf]
      %v4161 = vld [vmem:[%s5 + $0x16c] sm:$0xf]
      %v4162 = vld [vmem:[%s5 + $0x170] sm:$0xf]
      %v4163 = vld [vmem:[%s5 + $0x174] sm:$0xf]
      %v4164 = vld [vmem:[%s5 + $0x178] sm:$0xf]
      %v4165 = vld [vmem:[%s5 + $0x17c] sm:$0xf]
      %v4214 = vunpack.c.l.b16 %v4118
      %v4215 = vunpack.c.l.b16 %v4119
      %v4216 = vunpack.c.l.b16 %v4120
      %v4217 = vunpack.c.l.b16 %v4121
      %v4218 = vunpack.c.l.b16 %v4122
      %v4219 = vunpack.c.l.b16 %v4123
      %v4220 = vunpack.c.l.b16 %v4124
      %v4221 = vunpack.c.l.b16 %v4125
      %v4222 = vunpack.c.l.b16 %v4126
      %v4223 = vunpack.c.l.b16 %v4127
      %v4224 = vunpack.c.l.b16 %v4128
      %v4225 = vunpack.c.l.b16 %v4129
      %v4226 = vunpack.c.l.b16 %v4130
      %v4227 = vunpack.c.l.b16 %v4131
      %v4228 = vunpack.c.l.b16 %v4132
      %v4229 = vunpack.c.l.b16 %v4133
      %v4230 = vunpack.c.l.b16 %v4134
      %v4231 = vunpack.c.l.b16 %v4135
      %v4232 = vunpack.c.l.b16 %v4136
      %v4233 = vunpack.c.l.b16 %v4137
      %v4234 = vunpack.c.l.b16 %v4138
      %v4235 = vunpack.c.l.b16 %v4139
      %v4236 = vunpack.c.l.b16 %v4140
      %v4237 = vunpack.c.l.b16 %v4141
      %v4238 = vunpack.c.l.b16 %v4142
      %v4239 = vunpack.c.l.b16 %v4143
      %v4240 = vunpack.c.l.b16 %v4144
      %v4241 = vunpack.c.l.b16 %v4145
      %v4242 = vunpack.c.l.b16 %v4146
      %v4243 = vunpack.c.l.b16 %v4147
      %v4244 = vunpack.c.l.b16 %v4148
      %v4245 = vunpack.c.l.b16 %v4149
      %v4246 = vunpack.c.l.b16 %v4150
      %v4247 = vunpack.c.l.b16 %v4151
      %v4248 = vunpack.c.l.b16 %v4152
      %v4249 = vunpack.c.l.b16 %v4153
      %v4250 = vunpack.c.l.b16 %v4154
      %v4251 = vunpack.c.l.b16 %v4155
      %v4252 = vunpack.c.l.b16 %v4156
      %v4253 = vunpack.c.l.b16 %v4157
      %v4254 = vunpack.c.l.b16 %v4158
      %v4255 = vunpack.c.l.b16 %v4159
      %v4256 = vunpack.c.l.b16 %v4160
      %v4257 = vunpack.c.l.b16 %v4161
      %v4258 = vunpack.c.l.b16 %v4162
      %v4259 = vunpack.c.l.b16 %v4163
      %v4260 = vunpack.c.l.b16 %v4164
      %v4261 = vunpack.c.l.b16 %v4165
      %v4262 = vpack.c.b16 %v4215, %v4214
      %v4263 = vpack.c.b16 %v4217, %v4216
      %v4264 = vpack.c.b16 %v4219, %v4218
      %v4265 = vpack.c.b16 %v4221, %v4220
      %v4266 = vpack.c.b16 %v4223, %v4222
      %v4267 = vpack.c.b16 %v4225, %v4224
      %v4268 = vpack.c.b16 %v4227, %v4226
      %v4269 = vpack.c.b16 %v4229, %v4228
      %v4270 = vpack.c.b16 %v4231, %v4230
      %v4271 = vpack.c.b16 %v4233, %v4232
      %v4272 = vpack.c.b16 %v4235, %v4234
      %v4273 = vpack.c.b16 %v4237, %v4236
      %v4274 = vpack.c.b16 %v4239, %v4238
      %v4275 = vpack.c.b16 %v4241, %v4240
      %v4276 = vpack.c.b16 %v4243, %v4242
      %v4277 = vpack.c.b16 %v4245, %v4244
      %v4278 = vpack.c.b16 %v4247, %v4246
      %v4279 = vpack.c.b16 %v4249, %v4248
      %v4280 = vpack.c.b16 %v4251, %v4250
      %v4281 = vpack.c.b16 %v4253, %v4252
      %v4282 = vpack.c.b16 %v4255, %v4254
      %v4283 = vpack.c.b16 %v4257, %v4256
      %v4284 = vpack.c.b16 %v4259, %v4258
      %v4285 = vpack.c.b16 %v4261, %v4260
      %4310 = vmatprep.subr.bf16.mxu0 0
      %4311 = vmatpush1.bf16.msra.mxu0 %v4269
      %4312 = vmatprep.subr.bf16.mxu0 0
      %4313 = vmatpush1.bf16.msra.mxu0 %v4268
      %4314 = vmatprep.subr.bf16.mxu0 0
      %4315 = vmatpush1.bf16.msra.mxu0 %v4267
      %4316 = vmatprep.subr.bf16.mxu0 0
      %4317 = vmatpush1.bf16.msra.mxu0 %v4266
      %4318 = vmatprep.subr.bf16.mxu0 0
      %4319 = vmatpush1.bf16.msra.mxu0 %v4265
      %4320 = vmatprep.subr.bf16.mxu0 0
      %4321 = vmatpush1.bf16.msra.mxu0 %v4264
      %4322 = vmatprep.subr.bf16.mxu0 0
      %4323 = vmatpush1.bf16.msra.mxu0 %v4263
      %4324 = vmatprep.subr.bf16.mxu0 0
      %4325 = vmatpush1.bf16.msra.mxu0 %v4262
      %4326 = vmatprep.subr.bf16.mxu0 0
      %4327 = vmatpush2.bf16.msra.mxu0 %v4277
      %4328 = vmatprep.subr.bf16.mxu0 0
      %4329 = vmatpush2.bf16.msra.mxu0 %v4276
      %4330 = vmatprep.subr.bf16.mxu0 0
      %4331 = vmatpush2.bf16.msra.mxu0 %v4275
      %4332 = vmatprep.subr.bf16.mxu0 0
      %4333 = vmatpush2.bf16.msra.mxu0 %v4274
      %4334 = vmatprep.subr.bf16.mxu0 0
      %4335 = vmatpush2.bf16.msra.mxu0 %v4273
      %4336 = vmatprep.subr.bf16.mxu0 0
      %4337 = vmatpush2.bf16.msra.mxu0 %v4272
      %4338 = vmatprep.subr.bf16.mxu0 0
      %4339 = vmatpush2.bf16.msra.mxu0 %v4271
      %4340 = vmatprep.subr.bf16.mxu0 0
      %4341 = vmatpush2.bf16.msra.mxu0 %v4270
      %4342 = vmatprep.mubr.bf16.mxu0 %v1285
      %4343 = vmatmul.mubr.bf16.gmra.mxu0 %v1097
      %v4344 = vpop.f32.mrf.mxu0
      %v4345 = vadd.f32 0.0, %v4344
      %v4346 = vpop.f32.mrf.mxu0
      %v4347 = vpop.f32.mrf.mxu0
      %v4348 = vadd.f32 0.0, %v4347
      %v4349 = vpop.f32.mrf.mxu0
      %4350 = vmatprep.mubr.bf16.mxu0 %v1288
      %4351 = vmatmul.mubr.bf16.gmra.mxu0 %v1107
      %v4352 = vpop.f32.mrf.mxu0
      %v4353 = vadd.f32 0.0, %v4352
      %v4354 = vpop.f32.mrf.mxu0
      %v4355 = vpop.f32.mrf.mxu0
      %v4356 = vadd.f32 0.0, %v4355
      %v4357 = vpop.f32.mrf.mxu0
      %4358 = vmatprep.mubr.bf16.mxu0 %v1291
      %4359 = vmatmul.mubr.bf16.gmra.mxu0 %v1117
      %v4360 = vpop.f32.mrf.mxu0
      %v4361 = vadd.f32 0.0, %v4360
      %v4362 = vpop.f32.mrf.mxu0
      %v4363 = vpop.f32.mrf.mxu0
      %v4364 = vadd.f32 0.0, %v4363
      %v4365 = vpop.f32.mrf.mxu0
      %4366 = vmatprep.mubr.bf16.mxu0 %v1294
      %4367 = vmatmul.mubr.bf16.gmra.mxu0 %v1127
      %v4368 = vpop.f32.mrf.mxu0
      %v4369 = vadd.f32 0.0, %v4368
      %v4370 = vpop.f32.mrf.mxu0
      %v4371 = vpop.f32.mrf.mxu0
      %v4372 = vadd.f32 0.0, %v4371
      %v4373 = vpop.f32.mrf.mxu0
      %4374 = vmatprep.mubr.bf16.mxu0 %v1297
      %4375 = vmatmul.mubr.bf16.gmra.mxu0 %v1137
      %v4376 = vpop.f32.mrf.mxu0
      %v4377 = vadd.f32 0.0, %v4376
      %v4378 = vpop.f32.mrf.mxu0
      %v4379 = vpop.f32.mrf.mxu0
      %v4380 = vadd.f32 0.0, %v4379
      %v4381 = vpop.f32.mrf.mxu0
      %4382 = vmatprep.mubr.bf16.mxu0 %v1300
      %4383 = vmatmul.mubr.bf16.gmra.mxu0 %v1147
      %v4384 = vpop.f32.mrf.mxu0
      %v4385 = vadd.f32 0.0, %v4384
      %v4386 = vpop.f32.mrf.mxu0
      %v4387 = vpop.f32.mrf.mxu0
      %v4388 = vadd.f32 0.0, %v4387
      %v4389 = vpop.f32.mrf.mxu0
      %4390 = vmatprep.mubr.bf16.mxu0 %v1303
      %4391 = vmatmul.mubr.bf16.gmra.mxu0 %v1157
      %v4392 = vpop.f32.mrf.mxu0
      %v4393 = vadd.f32 0.0, %v4392
      %v4394 = vpop.f32.mrf.mxu0
      %v4395 = vpop.f32.mrf.mxu0
      %v4396 = vadd.f32 0.0, %v4395
      %v4397 = vpop.f32.mrf.mxu0
      %4398 = vmatprep.mubr.bf16.mxu0 %v1306
      %4399 = vmatmul.mubr.bf16.gmra.mxu0 %v1167
      %v4400 = vpop.f32.mrf.mxu0
      %v4401 = vadd.f32 0.0, %v4400
      %v4402 = vpop.f32.mrf.mxu0
      %v4403 = vpop.f32.mrf.mxu0
      %v4404 = vadd.f32 0.0, %v4403
      %v4405 = vpop.f32.mrf.mxu0
      %4406 = vmatprep.mubr.bf16.mxu0 %v1309
      %4407 = vmatmul.mubr.bf16.gmra.mxu0 %v1177
      %v4408 = vpop.f32.mrf.mxu0
      %v4409 = vadd.f32 0.0, %v4408
      %v4410 = vpop.f32.mrf.mxu0
      %v4411 = vpop.f32.mrf.mxu0
      %v4412 = vadd.f32 0.0, %v4411
      %v4413 = vpop.f32.mrf.mxu0
      %4414 = vmatprep.mubr.bf16.mxu0 %v1312
      %4415 = vmatmul.mubr.bf16.gmra.mxu0 %v1187
      %v4416 = vpop.f32.mrf.mxu0
      %v4417 = vadd.f32 0.0, %v4416
      %v4418 = vpop.f32.mrf.mxu0
      %v4419 = vpop.f32.mrf.mxu0
      %v4420 = vadd.f32 0.0, %v4419
      %v4421 = vpop.f32.mrf.mxu0
      %4422 = vmatprep.mubr.bf16.mxu0 %v1315
      %4423 = vmatmul.mubr.bf16.gmra.mxu0 %v1197
      %v4424 = vpop.f32.mrf.mxu0
      %v4425 = vadd.f32 0.0, %v4424
      %v4426 = vpop.f32.mrf.mxu0
      %v4427 = vpop.f32.mrf.mxu0
      %v4428 = vadd.f32 0.0, %v4427
      %v4429 = vpop.f32.mrf.mxu0
      %4430 = vmatprep.mubr.bf16.mxu0 %v1318
      %4431 = vmatmul.mubr.bf16.gmra.mxu0 %v1207
      %v4432 = vpop.f32.mrf.mxu0
      %v4433 = vadd.f32 0.0, %v4432
      %v4434 = vpop.f32.mrf.mxu0
      %v4435 = vpop.f32.mrf.mxu0
      %v4436 = vadd.f32 0.0, %v4435
      %v4437 = vpop.f32.mrf.mxu0
      %4438 = vmatprep.mubr.bf16.mxu0 %v1321
      %4439 = vmatmul.mubr.bf16.gmra.mxu0 %v1217
      %v4440 = vpop.f32.mrf.mxu0
      %v4441 = vadd.f32 0.0, %v4440
      %v4442 = vpop.f32.mrf.mxu0
      %v4443 = vpop.f32.mrf.mxu0
      %v4444 = vadd.f32 0.0, %v4443
      %v4445 = vpop.f32.mrf.mxu0
      %4446 = vmatprep.mubr.bf16.mxu0 %v1324
      %4447 = vmatmul.mubr.bf16.gmra.mxu0 %v1227
      %v4448 = vpop.f32.mrf.mxu0
      %v4449 = vadd.f32 0.0, %v4448
      %v4450 = vpop.f32.mrf.mxu0
      %v4451 = vpop.f32.mrf.mxu0
      %v4452 = vadd.f32 0.0, %v4451
      %v4453 = vpop.f32.mrf.mxu0
      %4454 = vmatprep.mubr.bf16.mxu0 %v1662
      %4455 = vmatmul.mubr.bf16.gmra.mxu0 %v1656
      %v4456 = vpop.f32.mrf.mxu0
      %v4457 = vadd.f32 0.0, %v4456
      %v4458 = vpop.f32.mrf.mxu0
      %v4459 = vpop.f32.mrf.mxu0
      %v4460 = vadd.f32 0.0, %v4459
      %v4461 = vpop.f32.mrf.mxu0
      %4462 = vmatprep.mubr.bf16.mxu0 %v3267
      %4463 = vmatmul.mubr.bf16.gmra.mxu0 %v3261
      %v4464 = vpop.f32.mrf.mxu0
      %v4465 = vadd.f32 0.0, %v4464
      %v4466 = vpop.f32.mrf.mxu0
      %v4467 = vpop.f32.mrf.mxu0
      %v4468 = vadd.f32 0.0, %v4467
      %v4469 = vpop.f32.mrf.mxu0
      %4470 = vdwg.mxu0
      %4471 = vmatprep.subr.bf16.mxu0 0
      %4472 = vmatpush1.bf16.msra.mxu0 %v4285
      %4473 = vmatprep.subr.bf16.mxu0 0
      %4474 = vmatpush1.bf16.msra.mxu0 %v4284
      %4475 = vmatprep.subr.bf16.mxu0 0
      %4476 = vmatpush1.bf16.msra.mxu0 %v4283
      %4477 = vmatprep.subr.bf16.mxu0 0
      %4478 = vmatpush1.bf16.msra.mxu0 %v4282
      %4479 = vmatprep.subr.bf16.mxu0 0
      %4480 = vmatpush1.bf16.msra.mxu0 %v4281
      %4481 = vmatprep.subr.bf16.mxu0 0
      %4482 = vmatpush1.bf16.msra.mxu0 %v4280
      %4483 = vmatprep.subr.bf16.mxu0 0
      %4484 = vmatpush1.bf16.msra.mxu0 %v4279
      %4485 = vmatprep.subr.bf16.mxu0 0
      %4486 = vmatpush1.bf16.msra.mxu0 %v4278
      %4487 = vmatprep.subr.bf16.mxu0 0
      %4488 = vmatpush2.bf16.msra.mxu0 0
      %4489 = vmatprep.subr.bf16.mxu0 0
      %4490 = vmatpush2.bf16.msra.mxu0 0
      %4491 = vmatprep.subr.bf16.mxu0 0
      %4492 = vmatpush2.bf16.msra.mxu0 0
      %4493 = vmatprep.subr.bf16.mxu0 0
      %4494 = vmatpush2.bf16.msra.mxu0 0
      %4495 = vmatprep.subr.bf16.mxu0 0
      %4496 = vmatpush2.bf16.msra.mxu0 0
      %4497 = vmatprep.subr.bf16.mxu0 0
      %4498 = vmatpush2.bf16.msra.mxu0 0
      %4499 = vmatprep.subr.bf16.mxu0 0
      %4500 = vmatpush2.bf16.msra.mxu0 0
      %4501 = vmatprep.subr.bf16.mxu0 0
      %4502 = vmatpush2.bf16.msra.mxu0 0
      %4503 = vmatprep.mubr.bf16.mxu0 0
      %4504 = vmatmul.mubr.bf16.gmra.mxu0 %v1368
      %v4505 = vpop.f32.mrf.mxu0
      %v4506 = vadd.f32 %v4345, %v4505
      %v4507 = vpop.f32.mrf.mxu0
      %v4508 = vpop.f32.mrf.mxu0
      %v4509 = vadd.f32 %v4348, %v4508
      %v4510 = vpop.f32.mrf.mxu0
      %4511 = vmatprep.mubr.bf16.mxu0 0
      %4512 = vmatmul.mubr.bf16.gmra.mxu0 %v1377
      %v4513 = vpop.f32.mrf.mxu0
      %v4514 = vadd.f32 %v4353, %v4513
      %v4515 = vpop.f32.mrf.mxu0
      %v4516 = vpop.f32.mrf.mxu0
      %v4517 = vadd.f32 %v4356, %v4516
      %v4518 = vpop.f32.mrf.mxu0
      %4519 = vmatprep.mubr.bf16.mxu0 0
      %4520 = vmatmul.mubr.bf16.gmra.mxu0 %v1386
      %v4521 = vpop.f32.mrf.mxu0
      %v4522 = vadd.f32 %v4361, %v4521
      %v4523 = vpop.f32.mrf.mxu0
      %v4524 = vpop.f32.mrf.mxu0
      %v4525 = vadd.f32 %v4364, %v4524
      %v4526 = vpop.f32.mrf.mxu0
      %4527 = vmatprep.mubr.bf16.mxu0 0
      %4528 = vmatmul.mubr.bf16.gmra.mxu0 %v1395
      %v4529 = vpop.f32.mrf.mxu0
      %v4530 = vadd.f32 %v4369, %v4529
      %v4531 = vpop.f32.mrf.mxu0
      %v4532 = vpop.f32.mrf.mxu0
      %v4533 = vadd.f32 %v4372, %v4532
      %v4534 = vpop.f32.mrf.mxu0
      %4535 = vmatprep.mubr.bf16.mxu0 0
      %4536 = vmatmul.mubr.bf16.gmra.mxu0 %v1404
      %v4537 = vpop.f32.mrf.mxu0
      %v4538 = vadd.f32 %v4377, %v4537
      %v4539 = vpop.f32.mrf.mxu0
      %v4540 = vpop.f32.mrf.mxu0
      %v4541 = vadd.f32 %v4380, %v4540
      %v4542 = vpop.f32.mrf.mxu0
      %4543 = vmatprep.mubr.bf16.mxu0 0
      %4544 = vmatmul.mubr.bf16.gmra.mxu0 %v1413
      %v4545 = vpop.f32.mrf.mxu0
      %v4546 = vadd.f32 %v4385, %v4545
      %v4547 = vpop.f32.mrf.mxu0
      %v4548 = vpop.f32.mrf.mxu0
      %v4549 = vadd.f32 %v4388, %v4548
      %v4550 = vpop.f32.mrf.mxu0
      %4551 = vmatprep.mubr.bf16.mxu0 0
      %4552 = vmatmul.mubr.bf16.gmra.mxu0 %v1422
      %v4553 = vpop.f32.mrf.mxu0
      %v4554 = vadd.f32 %v4393, %v4553
      %v4555 = vpop.f32.mrf.mxu0
      %v4556 = vpop.f32.mrf.mxu0
      %v4557 = vadd.f32 %v4396, %v4556
      %v4558 = vpop.f32.mrf.mxu0
      %4559 = vmatprep.mubr.bf16.mxu0 0
      %4560 = vmatmul.mubr.bf16.gmra.mxu0 %v1431
      %v4561 = vpop.f32.mrf.mxu0
      %v4562 = vadd.f32 %v4401, %v4561
      %v4563 = vpop.f32.mrf.mxu0
      %v4564 = vpop.f32.mrf.mxu0
      %v4565 = vadd.f32 %v4404, %v4564
      %v4566 = vpop.f32.mrf.mxu0
      %4567 = vmatprep.mubr.bf16.mxu0 0
      %4568 = vmatmul.mubr.bf16.gmra.mxu0 %v1440
      %v4569 = vpop.f32.mrf.mxu0
      %v4570 = vadd.f32 %v4409, %v4569
      %v4571 = vpop.f32.mrf.mxu0
      %v4572 = vpop.f32.mrf.mxu0
      %v4573 = vadd.f32 %v4412, %v4572
      %v4574 = vpop.f32.mrf.mxu0
      %4575 = vmatprep.mubr.bf16.mxu0 0
      %4576 = vmatmul.mubr.bf16.gmra.mxu0 %v1449
      %v4577 = vpop.f32.mrf.mxu0
      %v4578 = vadd.f32 %v4417, %v4577
      %v4579 = vpop.f32.mrf.mxu0
      %v4580 = vpop.f32.mrf.mxu0
      %v4581 = vadd.f32 %v4420, %v4580
      %v4582 = vpop.f32.mrf.mxu0
      %4583 = vmatprep.mubr.bf16.mxu0 0
      %4584 = vmatmul.mubr.bf16.gmra.mxu0 %v1458
      %v4585 = vpop.f32.mrf.mxu0
      %v4586 = vadd.f32 %v4425, %v4585
      %v4587 = vpop.f32.mrf.mxu0
      %v4588 = vpop.f32.mrf.mxu0
      %v4589 = vadd.f32 %v4428, %v4588
      %v4590 = vpop.f32.mrf.mxu0
      %4591 = vmatprep.mubr.bf16.mxu0 0
      %4592 = vmatmul.mubr.bf16.gmra.mxu0 %v1467
      %v4593 = vpop.f32.mrf.mxu0
      %v4594 = vadd.f32 %v4433, %v4593
      %v4595 = vpop.f32.mrf.mxu0
      %v4596 = vpop.f32.mrf.mxu0
      %v4597 = vadd.f32 %v4436, %v4596
      %v4598 = vpop.f32.mrf.mxu0
      %4599 = vmatprep.mubr.bf16.mxu0 0
      %4600 = vmatmul.mubr.bf16.gmra.mxu0 %v1476
      %v4601 = vpop.f32.mrf.mxu0
      %v4602 = vadd.f32 %v4441, %v4601
      %v4603 = vpop.f32.mrf.mxu0
      %v4604 = vpop.f32.mrf.mxu0
      %v4605 = vadd.f32 %v4444, %v4604
      %v4606 = vpop.f32.mrf.mxu0
      %4607 = vmatprep.mubr.bf16.mxu0 0
      %4608 = vmatmul.mubr.bf16.gmra.mxu0 %v1485
      %v4609 = vpop.f32.mrf.mxu0
      %v4610 = vadd.f32 %v4449, %v4609
      %v4611 = vpop.f32.mrf.mxu0
      %v4612 = vpop.f32.mrf.mxu0
      %v4613 = vadd.f32 %v4452, %v4612
      %v4614 = vpop.f32.mrf.mxu0
      %4615 = vmatprep.mubr.bf16.mxu0 0
      %4616 = vmatmul.mubr.bf16.gmra.mxu0 %v1672
      %v4617 = vpop.f32.mrf.mxu0
      %v4618 = vadd.f32 %v4457, %v4617
      %v4619 = vpop.f32.mrf.mxu0
      %v4620 = vpop.f32.mrf.mxu0
      %v4621 = vadd.f32 %v4460, %v4620
      %v4622 = vpop.f32.mrf.mxu0
      %4623 = vmatprep.mubr.bf16.mxu0 0
      %4624 = vmatmul.mubr.bf16.gmra.mxu0 %v3277
      %v4625 = vpop.f32.mrf.mxu0
      %v4626 = vadd.f32 %v4465, %v4625
      %v4627 = vpop.f32.mrf.mxu0
      %v4628 = vpop.f32.mrf.mxu0
      %v4629 = vadd.f32 %v4468, %v4628
      %v4630 = vpop.f32.mrf.mxu0
      %4631 = vdwg.mxu0
      %v4680 = vunpack.c.l.b16 %v3204
      %v4681 = vunpack.c.l.b16 %v3205
      %v4682 = vunpack.c.l.b16 %v3206
      %v4683 = vunpack.c.l.b16 %v3207
      %v4684 = vunpack.c.l.b16 %v3208
      %v4685 = vunpack.c.l.b16 %v3209
      %v4686 = vunpack.c.l.b16 %v3210
      %v4687 = vunpack.c.l.b16 %v3211
      %v4688 = vunpack.c.l.b16 %v3212
      %v4689 = vunpack.c.l.b16 %v3213
      %v4690 = vunpack.c.l.b16 %v3214
      %v4691 = vunpack.c.l.b16 %v3215
      %v4692 = vunpack.c.l.b16 %v3216
      %v4693 = vunpack.c.l.b16 %v3217
      %v4694 = vunpack.c.l.b16 %v3218
      %v4695 = vunpack.c.l.b16 %v3219
      %v4696 = vunpack.c.l.b16 %v3220
      %v4697 = vunpack.c.l.b16 %v3221
      %v4698 = vunpack.c.l.b16 %v3222
      %v4699 = vunpack.c.l.b16 %v3223
      %v4700 = vunpack.c.l.b16 %v3224
      %v4701 = vunpack.c.l.b16 %v3225
      %v4702 = vunpack.c.l.b16 %v3226
      %v4703 = vunpack.c.l.b16 %v3227
      %v4704 = vunpack.c.l.b16 %v3228
      %v4705 = vunpack.c.l.b16 %v3229
      %v4706 = vunpack.c.l.b16 %v3230
      %v4707 = vunpack.c.l.b16 %v3231
      %v4708 = vunpack.c.l.b16 %v3232
      %v4709 = vunpack.c.l.b16 %v3233
      %v4710 = vunpack.c.l.b16 %v3234
      %v4711 = vunpack.c.l.b16 %v3235
      %v4712 = vunpack.c.l.b16 %v3236
      %v4713 = vunpack.c.l.b16 %v3237
      %v4714 = vunpack.c.l.b16 %v3238
      %v4715 = vunpack.c.l.b16 %v3239
      %v4716 = vunpack.c.l.b16 %v3240
      %v4717 = vunpack.c.l.b16 %v3241
      %v4718 = vunpack.c.l.b16 %v3242
      %v4719 = vunpack.c.l.b16 %v3243
      %v4720 = vunpack.c.l.b16 %v3244
      %v4721 = vunpack.c.l.b16 %v3245
      %v4722 = vunpack.c.l.b16 %v3246
      %v4723 = vunpack.c.l.b16 %v3247
      %v4724 = vunpack.c.l.b16 %v3248
      %v4725 = vunpack.c.l.b16 %v3249
      %v4726 = vunpack.c.l.b16 %v3250
      %v4727 = vunpack.c.l.b16 %v3251
      %v4728 = vpack.c.b16 %v4681, %v4680
      %v4729 = vpack.c.b16 %v4683, %v4682
      %v4730 = vpack.c.b16 %v4685, %v4684
      %v4731 = vpack.c.b16 %v4687, %v4686
      %v4732 = vpack.c.b16 %v4689, %v4688
      %v4733 = vpack.c.b16 %v4691, %v4690
      %v4734 = vpack.c.b16 %v4693, %v4692
      %v4735 = vpack.c.b16 %v4695, %v4694
      %v4736 = vpack.c.b16 %v4697, %v4696
      %v4737 = vpack.c.b16 %v4699, %v4698
      %v4738 = vpack.c.b16 %v4701, %v4700
      %v4739 = vpack.c.b16 %v4703, %v4702
      %v4740 = vpack.c.b16 %v4705, %v4704
      %v4741 = vpack.c.b16 %v4707, %v4706
      %v4742 = vpack.c.b16 %v4709, %v4708
      %v4743 = vpack.c.b16 %v4711, %v4710
      %v4744 = vpack.c.b16 %v4713, %v4712
      %v4745 = vpack.c.b16 %v4715, %v4714
      %v4746 = vpack.c.b16 %v4717, %v4716
      %v4747 = vpack.c.b16 %v4719, %v4718
      %v4748 = vpack.c.b16 %v4721, %v4720
      %v4749 = vpack.c.b16 %v4723, %v4722
      %v4750 = vpack.c.b16 %v4725, %v4724
      %v4751 = vpack.c.b16 %v4727, %v4726
      %4776 = vmatprep.subr.bf16.mxu0 0
      %4777 = vmatpush1.bf16.msra.mxu0 %v4735
      %4778 = vmatprep.subr.bf16.mxu0 0
      %4779 = vmatpush1.bf16.msra.mxu0 %v4734
      %4780 = vmatprep.subr.bf16.mxu0 0
      %4781 = vmatpush1.bf16.msra.mxu0 %v4733
      %4782 = vmatprep.subr.bf16.mxu0 0
      %4783 = vmatpush1.bf16.msra.mxu0 %v4732
      %4784 = vmatprep.subr.bf16.mxu0 0
      %4785 = vmatpush1.bf16.msra.mxu0 %v4731
      %4786 = vmatprep.subr.bf16.mxu0 0
      %4787 = vmatpush1.bf16.msra.mxu0 %v4730
      %4788 = vmatprep.subr.bf16.mxu0 0
      %4789 = vmatpush1.bf16.msra.mxu0 %v4729
      %4790 = vmatprep.subr.bf16.mxu0 0
      %4791 = vmatpush1.bf16.msra.mxu0 %v4728
      %4792 = vmatprep.subr.bf16.mxu0 0
      %4793 = vmatpush2.bf16.msra.mxu0 %v4743
      %4794 = vmatprep.subr.bf16.mxu0 0
      %4795 = vmatpush2.bf16.msra.mxu0 %v4742
      %4796 = vmatprep.subr.bf16.mxu0 0
      %4797 = vmatpush2.bf16.msra.mxu0 %v4741
      %4798 = vmatprep.subr.bf16.mxu0 0
      %4799 = vmatpush2.bf16.msra.mxu0 %v4740
      %4800 = vmatprep.subr.bf16.mxu0 0
      %4801 = vmatpush2.bf16.msra.mxu0 %v4739
      %4802 = vmatprep.subr.bf16.mxu0 0
      %4803 = vmatpush2.bf16.msra.mxu0 %v4738
      %4804 = vmatprep.subr.bf16.mxu0 0
      %4805 = vmatpush2.bf16.msra.mxu0 %v4737
      %4806 = vmatprep.subr.bf16.mxu0 0
      %4807 = vmatpush2.bf16.msra.mxu0 %v4736
      %4808 = vmatprep.mubr.bf16.mxu0 %v1282
      %4809 = vmatmul.mubr.bf16.gmra.mxu0 %v1087
      %v4810 = vpop.f32.mrf.mxu0
      %v4811 = vadd.f32 %v4506, %v4810
      %v4812 = vpop.f32.mrf.mxu0
      %v4813 = vpop.f32.mrf.mxu0
      %v4814 = vadd.f32 %v4509, %v4813
      %v4815 = vpop.f32.mrf.mxu0
      %4816 = vmatprep.mubr.bf16.mxu0 %v1285
      %4817 = vmatmul.mubr.bf16.gmra.mxu0 %v1097
      %v4818 = vpop.f32.mrf.mxu0
      %v4819 = vadd.f32 %v4514, %v4818
      %v4820 = vpop.f32.mrf.mxu0
      %v4821 = vpop.f32.mrf.mxu0
      %v4822 = vadd.f32 %v4517, %v4821
      %v4823 = vpop.f32.mrf.mxu0
      %4824 = vmatprep.mubr.bf16.mxu0 %v1288
      %4825 = vmatmul.mubr.bf16.gmra.mxu0 %v1107
      %v4826 = vpop.f32.mrf.mxu0
      %v4827 = vadd.f32 %v4522, %v4826
      %v4828 = vpop.f32.mrf.mxu0
      %v4829 = vpop.f32.mrf.mxu0
      %v4830 = vadd.f32 %v4525, %v4829
      %v4831 = vpop.f32.mrf.mxu0
      %4832 = vmatprep.mubr.bf16.mxu0 %v1291
      %4833 = vmatmul.mubr.bf16.gmra.mxu0 %v1117
      %v4834 = vpop.f32.mrf.mxu0
      %v4835 = vadd.f32 %v4530, %v4834
      %v4836 = vpop.f32.mrf.mxu0
      %v4837 = vpop.f32.mrf.mxu0
      %v4838 = vadd.f32 %v4533, %v4837
      %v4839 = vpop.f32.mrf.mxu0
      %4840 = vmatprep.mubr.bf16.mxu0 %v1294
      %4841 = vmatmul.mubr.bf16.gmra.mxu0 %v1127
      %v4842 = vpop.f32.mrf.mxu0
      %v4843 = vadd.f32 %v4538, %v4842
      %v4844 = vpop.f32.mrf.mxu0
      %v4845 = vpop.f32.mrf.mxu0
      %v4846 = vadd.f32 %v4541, %v4845
      %v4847 = vpop.f32.mrf.mxu0
      %4848 = vmatprep.mubr.bf16.mxu0 %v1297
      %4849 = vmatmul.mubr.bf16.gmra.mxu0 %v1137
      %v4850 = vpop.f32.mrf.mxu0
      %v4851 = vadd.f32 %v4546, %v4850
      %v4852 = vpop.f32.mrf.mxu0
      %v4853 = vpop.f32.mrf.mxu0
      %v4854 = vadd.f32 %v4549, %v4853
      %v4855 = vpop.f32.mrf.mxu0
      %4856 = vmatprep.mubr.bf16.mxu0 %v1300
      %4857 = vmatmul.mubr.bf16.gmra.mxu0 %v1147
      %v4858 = vpop.f32.mrf.mxu0
      %v4859 = vadd.f32 %v4554, %v4858
      %v4860 = vpop.f32.mrf.mxu0
      %v4861 = vpop.f32.mrf.mxu0
      %v4862 = vadd.f32 %v4557, %v4861
      %v4863 = vpop.f32.mrf.mxu0
      %4864 = vmatprep.mubr.bf16.mxu0 %v1303
      %4865 = vmatmul.mubr.bf16.gmra.mxu0 %v1157
      %v4866 = vpop.f32.mrf.mxu0
      %v4867 = vadd.f32 %v4562, %v4866
      %v4868 = vpop.f32.mrf.mxu0
      %v4869 = vpop.f32.mrf.mxu0
      %v4870 = vadd.f32 %v4565, %v4869
      %v4871 = vpop.f32.mrf.mxu0
      %4872 = vmatprep.mubr.bf16.mxu0 %v1306
      %4873 = vmatmul.mubr.bf16.gmra.mxu0 %v1167
      %v4874 = vpop.f32.mrf.mxu0
      %v4875 = vadd.f32 %v4570, %v4874
      %v4876 = vpop.f32.mrf.mxu0
      %v4877 = vpop.f32.mrf.mxu0
      %v4878 = vadd.f32 %v4573, %v4877
      %v4879 = vpop.f32.mrf.mxu0
      %4880 = vmatprep.mubr.bf16.mxu0 %v1309
      %4881 = vmatmul.mubr.bf16.gmra.mxu0 %v1177
      %v4882 = vpop.f32.mrf.mxu0
      %v4883 = vadd.f32 %v4578, %v4882
      %v4884 = vpop.f32.mrf.mxu0
      %v4885 = vpop.f32.mrf.mxu0
      %v4886 = vadd.f32 %v4581, %v4885
      %v4887 = vpop.f32.mrf.mxu0
      %4888 = vmatprep.mubr.bf16.mxu0 %v1312
      %4889 = vmatmul.mubr.bf16.gmra.mxu0 %v1187
      %v4890 = vpop.f32.mrf.mxu0
      %v4891 = vadd.f32 %v4586, %v4890
      %v4892 = vpop.f32.mrf.mxu0
      %v4893 = vpop.f32.mrf.mxu0
      %v4894 = vadd.f32 %v4589, %v4893
      %v4895 = vpop.f32.mrf.mxu0
      %4896 = vmatprep.mubr.bf16.mxu0 %v1315
      %4897 = vmatmul.mubr.bf16.gmra.mxu0 %v1197
      %v4898 = vpop.f32.mrf.mxu0
      %v4899 = vadd.f32 %v4594, %v4898
      %v4900 = vpop.f32.mrf.mxu0
      %v4901 = vpop.f32.mrf.mxu0
      %v4902 = vadd.f32 %v4597, %v4901
      %v4903 = vpop.f32.mrf.mxu0
      %4904 = vmatprep.mubr.bf16.mxu0 %v1318
      %4905 = vmatmul.mubr.bf16.gmra.mxu0 %v1207
      %v4906 = vpop.f32.mrf.mxu0
      %v4907 = vadd.f32 %v4602, %v4906
      %v4908 = vpop.f32.mrf.mxu0
      %v4909 = vpop.f32.mrf.mxu0
      %v4910 = vadd.f32 %v4605, %v4909
      %v4911 = vpop.f32.mrf.mxu0
      %4912 = vmatprep.mubr.bf16.mxu0 %v1321
      %4913 = vmatmul.mubr.bf16.gmra.mxu0 %v1217
      %v4914 = vpop.f32.mrf.mxu0
      %v4915 = vadd.f32 %v4610, %v4914
      %v4916 = vpop.f32.mrf.mxu0
      %v4917 = vpop.f32.mrf.mxu0
      %v4918 = vadd.f32 %v4613, %v4917
      %v4919 = vpop.f32.mrf.mxu0
      %4920 = vmatprep.mubr.bf16.mxu0 %v1324
      %4921 = vmatmul.mubr.bf16.gmra.mxu0 %v1227
      %v4922 = vpop.f32.mrf.mxu0
      %v4923 = vadd.f32 %v4618, %v4922
      %v4924 = vpop.f32.mrf.mxu0
      %v4925 = vpop.f32.mrf.mxu0
      %v4926 = vadd.f32 %v4621, %v4925
      %v4927 = vpop.f32.mrf.mxu0
      %4928 = vmatprep.mubr.bf16.mxu0 %v1662
      %4929 = vmatmul.mubr.bf16.gmra.mxu0 %v1656
      %v4930 = vpop.f32.mrf.mxu0
      %v4931 = vadd.f32 %v4626, %v4930
      %v4932 = vpop.f32.mrf.mxu0
      %v4933 = vpop.f32.mrf.mxu0
      %v4934 = vadd.f32 %v4629, %v4933
      %v4935 = vpop.f32.mrf.mxu0
      %4936 = vdwg.mxu0
      %4937 = vmatprep.subr.bf16.mxu0 0
      %4938 = vmatpush1.bf16.msra.mxu0 %v4751
      %4939 = vmatprep.subr.bf16.mxu0 0
      %4940 = vmatpush1.bf16.msra.mxu0 %v4750
      %4941 = vmatprep.subr.bf16.mxu0 0
      %4942 = vmatpush1.bf16.msra.mxu0 %v4749
      %4943 = vmatprep.subr.bf16.mxu0 0
      %4944 = vmatpush1.bf16.msra.mxu0 %v4748
      %4945 = vmatprep.subr.bf16.mxu0 0
      %4946 = vmatpush1.bf16.msra.mxu0 %v4747
      %4947 = vmatprep.subr.bf16.mxu0 0
      %4948 = vmatpush1.bf16.msra.mxu0 %v4746
      %4949 = vmatprep.subr.bf16.mxu0 0
      %4950 = vmatpush1.bf16.msra.mxu0 %v4745
      %4951 = vmatprep.subr.bf16.mxu0 0
      %4952 = vmatpush1.bf16.msra.mxu0 %v4744
      %4953 = vmatprep.subr.bf16.mxu0 0
      %4954 = vmatpush2.bf16.msra.mxu0 0
      %4955 = vmatprep.subr.bf16.mxu0 0
      %4956 = vmatpush2.bf16.msra.mxu0 0
      %4957 = vmatprep.subr.bf16.mxu0 0
      %4958 = vmatpush2.bf16.msra.mxu0 0
      %4959 = vmatprep.subr.bf16.mxu0 0
      %4960 = vmatpush2.bf16.msra.mxu0 0
      %4961 = vmatprep.subr.bf16.mxu0 0
      %4962 = vmatpush2.bf16.msra.mxu0 0
      %4963 = vmatprep.subr.bf16.mxu0 0
      %4964 = vmatpush2.bf16.msra.mxu0 0
      %4965 = vmatprep.subr.bf16.mxu0 0
      %4966 = vmatpush2.bf16.msra.mxu0 0
      %4967 = vmatprep.subr.bf16.mxu0 0
      %4968 = vmatpush2.bf16.msra.mxu0 0
      %4969 = vmatprep.mubr.bf16.mxu0 0
      %4970 = vmatmul.mubr.bf16.gmra.mxu0 %v1359
      %v4971 = vpop.f32.mrf.mxu0
      %v4972 = vadd.f32 %v4811, %v4971
      %v4973 = vpop.f32.mrf.mxu0
      %v4974 = vpop.f32.mrf.mxu0
      %v4975 = vadd.f32 %v4814, %v4974
      %v4976 = vpop.f32.mrf.mxu0
      %4977 = vmatprep.mubr.bf16.mxu0 0
      %4978 = vmatmul.mubr.bf16.gmra.mxu0 %v1368
      %v4979 = vpop.f32.mrf.mxu0
      %v4980 = vadd.f32 %v4819, %v4979
      %v4981 = vpop.f32.mrf.mxu0
      %v4982 = vpop.f32.mrf.mxu0
      %v4983 = vadd.f32 %v4822, %v4982
      %v4984 = vpop.f32.mrf.mxu0
      %4985 = vmatprep.mubr.bf16.mxu0 0
      %4986 = vmatmul.mubr.bf16.gmra.mxu0 %v1377
      %v4987 = vpop.f32.mrf.mxu0
      %v4988 = vadd.f32 %v4827, %v4987
      %v4989 = vpop.f32.mrf.mxu0
      %v4990 = vpop.f32.mrf.mxu0
      %v4991 = vadd.f32 %v4830, %v4990
      %v4992 = vpop.f32.mrf.mxu0
      %4993 = vmatprep.mubr.bf16.mxu0 0
      %4994 = vmatmul.mubr.bf16.gmra.mxu0 %v1386
      %v4995 = vpop.f32.mrf.mxu0
      %v4996 = vadd.f32 %v4835, %v4995
      %v4997 = vpop.f32.mrf.mxu0
      %v4998 = vpop.f32.mrf.mxu0
      %v4999 = vadd.f32 %v4838, %v4998
      %v5000 = vpop.f32.mrf.mxu0
      %5001 = vmatprep.mubr.bf16.mxu0 0
      %5002 = vmatmul.mubr.bf16.gmra.mxu0 %v1395
      %v5003 = vpop.f32.mrf.mxu0
      %v5004 = vadd.f32 %v4843, %v5003
      %v5005 = vpop.f32.mrf.mxu0
      %v5006 = vpop.f32.mrf.mxu0
      %v5007 = vadd.f32 %v4846, %v5006
      %v5008 = vpop.f32.mrf.mxu0
      %5009 = vmatprep.mubr.bf16.mxu0 0
      %5010 = vmatmul.mubr.bf16.gmra.mxu0 %v1404
      %v5011 = vpop.f32.mrf.mxu0
      %v5012 = vadd.f32 %v4851, %v5011
      %v5013 = vpop.f32.mrf.mxu0
      %v5014 = vpop.f32.mrf.mxu0
      %v5015 = vadd.f32 %v4854, %v5014
      %v5016 = vpop.f32.mrf.mxu0
      %5017 = vmatprep.mubr.bf16.mxu0 0
      %5018 = vmatmul.mubr.bf16.gmra.mxu0 %v1413
      %v5019 = vpop.f32.mrf.mxu0
      %v5020 = vadd.f32 %v4859, %v5019
      %v5021 = vpop.f32.mrf.mxu0
      %v5022 = vpop.f32.mrf.mxu0
      %v5023 = vadd.f32 %v4862, %v5022
      %v5024 = vpop.f32.mrf.mxu0
      %5025 = vmatprep.mubr.bf16.mxu0 0
      %5026 = vmatmul.mubr.bf16.gmra.mxu0 %v1422
      %v5027 = vpop.f32.mrf.mxu0
      %v5028 = vadd.f32 %v4867, %v5027
      %v5029 = vpop.f32.mrf.mxu0
      %v5030 = vpop.f32.mrf.mxu0
      %v5031 = vadd.f32 %v4870, %v5030
      %v5032 = vpop.f32.mrf.mxu0
      %5033 = vmatprep.mubr.bf16.mxu0 0
      %5034 = vmatmul.mubr.bf16.gmra.mxu0 %v1431
      %v5035 = vpop.f32.mrf.mxu0
      %v5036 = vadd.f32 %v4875, %v5035
      %v5037 = vpop.f32.mrf.mxu0
      %v5038 = vpop.f32.mrf.mxu0
      %v5039 = vadd.f32 %v4878, %v5038
      %v5040 = vpop.f32.mrf.mxu0
      %5041 = vmatprep.mubr.bf16.mxu0 0
      %5042 = vmatmul.mubr.bf16.gmra.mxu0 %v1440
      %v5043 = vpop.f32.mrf.mxu0
      %v5044 = vadd.f32 %v4883, %v5043
      %v5045 = vpop.f32.mrf.mxu0
      %v5046 = vpop.f32.mrf.mxu0
      %v5047 = vadd.f32 %v4886, %v5046
      %v5048 = vpop.f32.mrf.mxu0
      %5049 = vmatprep.mubr.bf16.mxu0 0
      %5050 = vmatmul.mubr.bf16.gmra.mxu0 %v1449
      %v5051 = vpop.f32.mrf.mxu0
      %v5052 = vadd.f32 %v4891, %v5051
      %v5053 = vpop.f32.mrf.mxu0
      %v5054 = vpop.f32.mrf.mxu0
      %v5055 = vadd.f32 %v4894, %v5054
      %v5056 = vpop.f32.mrf.mxu0
      %5057 = vmatprep.mubr.bf16.mxu0 0
      %5058 = vmatmul.mubr.bf16.gmra.mxu0 %v1458
      %v5059 = vpop.f32.mrf.mxu0
      %v5060 = vadd.f32 %v4899, %v5059
      %v5061 = vpop.f32.mrf.mxu0
      %v5062 = vpop.f32.mrf.mxu0
      %v5063 = vadd.f32 %v4902, %v5062
      %v5064 = vpop.f32.mrf.mxu0
      %5065 = vmatprep.mubr.bf16.mxu0 0
      %5066 = vmatmul.mubr.bf16.gmra.mxu0 %v1467
      %v5067 = vpop.f32.mrf.mxu0
      %v5068 = vadd.f32 %v4907, %v5067
      %v5069 = vpop.f32.mrf.mxu0
      %v5070 = vpop.f32.mrf.mxu0
      %v5071 = vadd.f32 %v4910, %v5070
      %v5072 = vpop.f32.mrf.mxu0
      %5073 = vmatprep.mubr.bf16.mxu0 0
      %5074 = vmatmul.mubr.bf16.gmra.mxu0 %v1476
      %v5075 = vpop.f32.mrf.mxu0
      %v5076 = vadd.f32 %v4915, %v5075
      %v5077 = vpop.f32.mrf.mxu0
      %v5078 = vpop.f32.mrf.mxu0
      %v5079 = vadd.f32 %v4918, %v5078
      %v5080 = vpop.f32.mrf.mxu0
      %5081 = vmatprep.mubr.bf16.mxu0 0
      %5082 = vmatmul.mubr.bf16.gmra.mxu0 %v1485
      %v5083 = vpop.f32.mrf.mxu0
      %v5084 = vadd.f32 %v4923, %v5083
      %v5085 = vpop.f32.mrf.mxu0
      %v5086 = vpop.f32.mrf.mxu0
      %v5087 = vadd.f32 %v4926, %v5086
      %v5088 = vpop.f32.mrf.mxu0
      %5089 = vmatprep.mubr.bf16.mxu0 0
      %5090 = vmatmul.mubr.bf16.gmra.mxu0 %v1672
      %v5091 = vpop.f32.mrf.mxu0
      %v5092 = vadd.f32 %v4931, %v5091
      %v5093 = vpop.f32.mrf.mxu0
      %v5094 = vpop.f32.mrf.mxu0
      %v5095 = vadd.f32 %v4934, %v5094
      %v5096 = vpop.f32.mrf.mxu0
      %5097 = vdwg.mxu0
      %v5098 = vshrl.u32 %v1042, 16
      %v5100 = vshll.u32 %v1042, 16
      %v5102 = vrot.slane %v5100, 1
      %v5103 = vor.u32 %v5098, %v5102
      %v5104 = vshll.u32 %v1065, 16
      %v5106 = vrot.slane %v5104, 1
      %v5107 = vsel %vm1067, %v5103, %v5106
      %v5111 = vrot.slane %v1042, 1
      %v5112 = vrot.slane %v1065, 1
      %v5113 = vsel %vm1276, %v5111, %v5112
      %v5115 = vrot.slane %v5098, 1
      %v5116 = vrot.slane %v5100, 2
      %v5117 = vor.u32 %v5115, %v5116
      %v5118 = vshrl.u32 %v1065, 16
      %v5120 = vrot.slane %v5118, 1
      %v5121 = vrot.slane %v5104, 2
      %v5122 = vor.u32 %v5120, %v5121
      %v5123 = vsel %vm1341, %v5117, %v5122
      %v5125 = vrot.slane %v1042, 2
      %v5126 = vrot.slane %v1065, 2
      %v5127 = vsel %vm1502, %v5125, %v5126
      %v5129 = vld [vmem:[%s3 + $0x3c0] sm:$0xf]
      %v5130 = vld [vmem:[%s3 + $0x3c4] sm:$0xf]
      %v5131 = vld [vmem:[%s3 + $0x3c8] sm:$0xf]
      %v5132 = vld [vmem:[%s3 + $0x3cc] sm:$0xf]
      %v5133 = vld [vmem:[%s3 + $0x3d0] sm:$0xf]
      %v5134 = vld [vmem:[%s3 + $0x3d4] sm:$0xf]
      %v5135 = vld [vmem:[%s3 + $0x3d8] sm:$0xf]
      %v5136 = vld [vmem:[%s3 + $0x3dc] sm:$0xf]
      %v5137 = vld [vmem:[%s3 + $0x3e0] sm:$0xf]
      %v5138 = vld [vmem:[%s3 + $0x3e4] sm:$0xf]
      %v5139 = vld [vmem:[%s3 + $0x3e8] sm:$0xf]
      %v5140 = vld [vmem:[%s3 + $0x3ec] sm:$0xf]
      %v5141 = vld [vmem:[%s3 + $0x3f0] sm:$0xf]
      %v5142 = vld [vmem:[%s3 + $0x3f4] sm:$0xf]
      %v5143 = vld [vmem:[%s3 + $0x3f8] sm:$0xf]
      %v5144 = vld [vmem:[%s3 + $0x3fc] sm:$0xf]
      %v5145 = vld [vmem:[%s3 + $0x400] sm:$0xf]
      %v5146 = vld [vmem:[%s3 + $0x404] sm:$0xf]
      %v5147 = vld [vmem:[%s3 + $0x408] sm:$0xf]
      %v5148 = vld [vmem:[%s3 + $0x40c] sm:$0xf]
      %v5149 = vld [vmem:[%s3 + $0x410] sm:$0xf]
      %v5150 = vld [vmem:[%s3 + $0x414] sm:$0xf]
      %v5151 = vld [vmem:[%s3 + $0x418] sm:$0xf]
      %v5152 = vld [vmem:[%s3 + $0x41c] sm:$0xf]
      %v5153 = vld [vmem:[%s3 + $0x420] sm:$0xf]
      %v5154 = vld [vmem:[%s3 + $0x424] sm:$0xf]
      %v5155 = vld [vmem:[%s3 + $0x428] sm:$0xf]
      %v5156 = vld [vmem:[%s3 + $0x42c] sm:$0xf]
      %v5157 = vld [vmem:[%s3 + $0x430] sm:$0xf]
      %v5158 = vld [vmem:[%s3 + $0x434] sm:$0xf]
      %v5159 = vld [vmem:[%s3 + $0x438] sm:$0xf]
      %v5160 = vld [vmem:[%s3 + $0x43c] sm:$0xf]
      %v5161 = vld [vmem:[%s3 + $0x440] sm:$0xf]
      %v5162 = vld [vmem:[%s3 + $0x444] sm:$0xf]
      %v5163 = vld [vmem:[%s3 + $0x448] sm:$0xf]
      %v5164 = vld [vmem:[%s3 + $0x44c] sm:$0xf]
      %v5165 = vld [vmem:[%s3 + $0x450] sm:$0xf]
      %v5166 = vld [vmem:[%s3 + $0x454] sm:$0xf]
      %v5167 = vld [vmem:[%s3 + $0x458] sm:$0xf]
      %v5168 = vld [vmem:[%s3 + $0x45c] sm:$0xf]
      %v5169 = vld [vmem:[%s3 + $0x460] sm:$0xf]
      %v5170 = vld [vmem:[%s3 + $0x464] sm:$0xf]
      %v5171 = vld [vmem:[%s3 + $0x468] sm:$0xf]
      %v5172 = vld [vmem:[%s3 + $0x46c] sm:$0xf]
      %v5173 = vld [vmem:[%s3 + $0x470] sm:$0xf]
      %v5174 = vld [vmem:[%s3 + $0x474] sm:$0xf]
      %v5175 = vld [vmem:[%s3 + $0x478] sm:$0xf]
      %v5176 = vld [vmem:[%s3 + $0x47c] sm:$0xf]
      %v5177 = vld [vmem:[%s3 + $0x480] sm:$0xf]
      %v5178 = vld [vmem:[%s3 + $0x484] sm:$0xf]
      %v5179 = vld [vmem:[%s3 + $0x488] sm:$0xf]
      %v5180 = vld [vmem:[%s3 + $0x48c] sm:$0xf]
      %v5181 = vld [vmem:[%s3 + $0x490] sm:$0xf]
      %v5182 = vld [vmem:[%s3 + $0x494] sm:$0xf]
      %v5183 = vld [vmem:[%s3 + $0x498] sm:$0xf]
      %v5184 = vld [vmem:[%s3 + $0x49c] sm:$0xf]
      %v5185 = vld [vmem:[%s3 + $0x4a0] sm:$0xf]
      %v5186 = vld [vmem:[%s3 + $0x4a4] sm:$0xf]
      %v5187 = vld [vmem:[%s3 + $0x4a8] sm:$0xf]
      %v5188 = vld [vmem:[%s3 + $0x4ac] sm:$0xf]
      %v5189 = vld [vmem:[%s3 + $0x4b0] sm:$0xf]
      %v5190 = vld [vmem:[%s3 + $0x4b4] sm:$0xf]
      %v5191 = vld [vmem:[%s3 + $0x4b8] sm:$0xf]
      %v5192 = vld [vmem:[%s3 + $0x4bc] sm:$0xf]
      %v5193 = vld [vmem:[%s3 + $0x4c0] sm:$0xf]
      %v5194 = vld [vmem:[%s3 + $0x4c4] sm:$0xf]
      %v5195 = vld [vmem:[%s3 + $0x4c8] sm:$0xf]
      %v5196 = vld [vmem:[%s3 + $0x4cc] sm:$0xf]
      %v5197 = vld [vmem:[%s3 + $0x4d0] sm:$0xf]
      %v5198 = vld [vmem:[%s3 + $0x4d4] sm:$0xf]
      %v5199 = vld [vmem:[%s3 + $0x4d8] sm:$0xf]
      %v5200 = vld [vmem:[%s3 + $0x4dc] sm:$0xf]
      %v5201 = vld [vmem:[%s3 + $0x4e0] sm:$0xf]
      %v5202 = vld [vmem:[%s3 + $0x4e4] sm:$0xf]
      %v5203 = vld [vmem:[%s3 + $0x4e8] sm:$0xf]
      %v5204 = vld [vmem:[%s3 + $0x4ec] sm:$0xf]
      %v5205 = vld [vmem:[%s3 + $0x4f0] sm:$0xf]
      %v5206 = vld [vmem:[%s3 + $0x4f4] sm:$0xf]
      %v5207 = vld [vmem:[%s3 + $0x4f8] sm:$0xf]
      %v5208 = vld [vmem:[%s3 + $0x4fc] sm:$0xf]
      %v5289 = vunpack.c.l.b16 %v5129
      %v5290 = vunpack.c.l.b16 %v5130
      %v5291 = vunpack.c.l.b16 %v5131
      %v5292 = vunpack.c.l.b16 %v5132
      %v5293 = vunpack.c.l.b16 %v5133
      %v5294 = vunpack.c.l.b16 %v5134
      %v5295 = vunpack.c.l.b16 %v5135
      %v5296 = vunpack.c.l.b16 %v5136
      %v5297 = vunpack.c.l.b16 %v5137
      %v5298 = vunpack.c.l.b16 %v5138
      %v5299 = vunpack.c.l.b16 %v5139
      %v5300 = vunpack.c.l.b16 %v5140
      %v5301 = vunpack.c.l.b16 %v5141
      %v5302 = vunpack.c.l.b16 %v5142
      %v5303 = vunpack.c.l.b16 %v5143
      %v5304 = vunpack.c.l.b16 %v5144
      %v5305 = vunpack.c.l.b16 %v5145
      %v5306 = vunpack.c.l.b16 %v5146
      %v5307 = vunpack.c.l.b16 %v5147
      %v5308 = vunpack.c.l.b16 %v5148
      %v5309 = vunpack.c.l.b16 %v5149
      %v5310 = vunpack.c.l.b16 %v5150
      %v5311 = vunpack.c.l.b16 %v5151
      %v5312 = vunpack.c.l.b16 %v5152
      %v5313 = vunpack.c.l.b16 %v5153
      %v5314 = vunpack.c.l.b16 %v5154
      %v5315 = vunpack.c.l.b16 %v5155
      %v5316 = vunpack.c.l.b16 %v5156
      %v5317 = vunpack.c.l.b16 %v5157
      %v5318 = vunpack.c.l.b16 %v5158
      %v5319 = vunpack.c.l.b16 %v5159
      %v5320 = vunpack.c.l.b16 %v5160
      %v5321 = vunpack.c.l.b16 %v5161
      %v5322 = vunpack.c.l.b16 %v5162
      %v5323 = vunpack.c.l.b16 %v5163
      %v5324 = vunpack.c.l.b16 %v5164
      %v5325 = vunpack.c.l.b16 %v5165
      %v5326 = vunpack.c.l.b16 %v5166
      %v5327 = vunpack.c.l.b16 %v5167
      %v5328 = vunpack.c.l.b16 %v5168
      %v5329 = vunpack.c.l.b16 %v5169
      %v5330 = vunpack.c.l.b16 %v5170
      %v5331 = vunpack.c.l.b16 %v5171
      %v5332 = vunpack.c.l.b16 %v5172
      %v5333 = vunpack.c.l.b16 %v5173
      %v5334 = vunpack.c.l.b16 %v5174
      %v5335 = vunpack.c.l.b16 %v5175
      %v5336 = vunpack.c.l.b16 %v5176
      %v5337 = vunpack.c.l.b16 %v5177
      %v5338 = vunpack.c.l.b16 %v5178
      %v5339 = vunpack.c.l.b16 %v5179
      %v5340 = vunpack.c.l.b16 %v5180
      %v5341 = vunpack.c.l.b16 %v5181
      %v5342 = vunpack.c.l.b16 %v5182
      %v5343 = vunpack.c.l.b16 %v5183
      %v5344 = vunpack.c.l.b16 %v5184
      %v5345 = vunpack.c.l.b16 %v5185
      %v5346 = vunpack.c.l.b16 %v5186
      %v5347 = vunpack.c.l.b16 %v5187
      %v5348 = vunpack.c.l.b16 %v5188
      %v5349 = vunpack.c.l.b16 %v5189
      %v5350 = vunpack.c.l.b16 %v5190
      %v5351 = vunpack.c.l.b16 %v5191
      %v5352 = vunpack.c.l.b16 %v5192
      %v5353 = vunpack.c.l.b16 %v5193
      %v5354 = vunpack.c.l.b16 %v5194
      %v5355 = vunpack.c.l.b16 %v5195
      %v5356 = vunpack.c.l.b16 %v5196
      %v5357 = vunpack.c.l.b16 %v5197
      %v5358 = vunpack.c.l.b16 %v5198
      %v5359 = vunpack.c.l.b16 %v5199
      %v5360 = vunpack.c.l.b16 %v5200
      %v5361 = vunpack.c.l.b16 %v5201
      %v5362 = vunpack.c.l.b16 %v5202
      %v5363 = vunpack.c.l.b16 %v5203
      %v5364 = vunpack.c.l.b16 %v5204
      %v5365 = vunpack.c.l.b16 %v5205
      %v5366 = vunpack.c.l.b16 %v5206
      %v5367 = vunpack.c.l.b16 %v5207
      %v5368 = vunpack.c.l.b16 %v5208
      %v5369 = vpack.c.b16 %v5290, %v5289
      %v5370 = vpack.c.b16 %v5292, %v5291
      %v5371 = vpack.c.b16 %v5294, %v5293
      %v5372 = vpack.c.b16 %v5296, %v5295
      %v5373 = vpack.c.b16 %v5298, %v5297
      %v5374 = vpack.c.b16 %v5300, %v5299
      %v5375 = vpack.c.b16 %v5302, %v5301
      %v5376 = vpack.c.b16 %v5304, %v5303
      %v5377 = vpack.c.b16 %v5306, %v5305
      %v5378 = vpack.c.b16 %v5308, %v5307
      %v5379 = vpack.c.b16 %v5310, %v5309
      %v5380 = vpack.c.b16 %v5312, %v5311
      %v5381 = vpack.c.b16 %v5314, %v5313
      %v5382 = vpack.c.b16 %v5316, %v5315
      %v5383 = vpack.c.b16 %v5318, %v5317
      %v5384 = vpack.c.b16 %v5320, %v5319
      %v5385 = vpack.c.b16 %v5322, %v5321
      %v5386 = vpack.c.b16 %v5324, %v5323
      %v5387 = vpack.c.b16 %v5326, %v5325
      %v5388 = vpack.c.b16 %v5328, %v5327
      %v5389 = vpack.c.b16 %v5330, %v5329
      %v5390 = vpack.c.b16 %v5332, %v5331
      %v5391 = vpack.c.b16 %v5334, %v5333
      %v5392 = vpack.c.b16 %v5336, %v5335
      %v5393 = vpack.c.b16 %v5338, %v5337
      %v5394 = vpack.c.b16 %v5340, %v5339
      %v5395 = vpack.c.b16 %v5342, %v5341
      %v5396 = vpack.c.b16 %v5344, %v5343
      %v5397 = vpack.c.b16 %v5346, %v5345
      %v5398 = vpack.c.b16 %v5348, %v5347
      %v5399 = vpack.c.b16 %v5350, %v5349
      %v5400 = vpack.c.b16 %v5352, %v5351
      %v5401 = vpack.c.b16 %v5354, %v5353
      %v5402 = vpack.c.b16 %v5356, %v5355
      %v5403 = vpack.c.b16 %v5358, %v5357
      %v5404 = vpack.c.b16 %v5360, %v5359
      %v5405 = vpack.c.b16 %v5362, %v5361
      %v5406 = vpack.c.b16 %v5364, %v5363
      %v5407 = vpack.c.b16 %v5366, %v5365
      %v5408 = vpack.c.b16 %v5368, %v5367
      %5449 = vmatprep.subr.bf16.mxu0 0
      %5450 = vmatpush1.bf16.msra.mxu0 %v5376
      %5451 = vmatprep.subr.bf16.mxu0 0
      %5452 = vmatpush1.bf16.msra.mxu0 %v5375
      %5453 = vmatprep.subr.bf16.mxu0 0
      %5454 = vmatpush1.bf16.msra.mxu0 %v5374
      %5455 = vmatprep.subr.bf16.mxu0 0
      %5456 = vmatpush1.bf16.msra.mxu0 %v5373
      %5457 = vmatprep.subr.bf16.mxu0 0
      %5458 = vmatpush1.bf16.msra.mxu0 %v5372
      %5459 = vmatprep.subr.bf16.mxu0 0
      %5460 = vmatpush1.bf16.msra.mxu0 %v5371
      %5461 = vmatprep.subr.bf16.mxu0 0
      %5462 = vmatpush1.bf16.msra.mxu0 %v5370
      %5463 = vmatprep.subr.bf16.mxu0 0
      %5464 = vmatpush1.bf16.msra.mxu0 %v5369
      %5465 = vmatprep.subr.bf16.mxu0 0
      %5466 = vmatpush2.bf16.msra.mxu0 %v5384
      %5467 = vmatprep.subr.bf16.mxu0 0
      %5468 = vmatpush2.bf16.msra.mxu0 %v5383
      %5469 = vmatprep.subr.bf16.mxu0 0
      %5470 = vmatpush2.bf16.msra.mxu0 %v5382
      %5471 = vmatprep.subr.bf16.mxu0 0
      %5472 = vmatpush2.bf16.msra.mxu0 %v5381
      %5473 = vmatprep.subr.bf16.mxu0 0
      %5474 = vmatpush2.bf16.msra.mxu0 %v5380
      %5475 = vmatprep.subr.bf16.mxu0 0
      %5476 = vmatpush2.bf16.msra.mxu0 %v5379
      %5477 = vmatprep.subr.bf16.mxu0 0
      %5478 = vmatpush2.bf16.msra.mxu0 %v5378
      %5479 = vmatprep.subr.bf16.mxu0 0
      %5480 = vmatpush2.bf16.msra.mxu0 %v5377
      %5481 = vmatprep.mubr.bf16.mxu0 %v1107
      %5482 = vmatmul.mubr.bf16.gmra.mxu0 %v997
      %v5483 = vpop.f32.mrf.mxu0
      %v5484 = vadd.f32 0.0, %v5483
      %v5485 = vpop.f32.mrf.mxu0
      %v5486 = vpop.f32.mrf.mxu0
      %v5487 = vadd.f32 0.0, %v5486
      %v5488 = vpop.f32.mrf.mxu0
      %5489 = vmatprep.mubr.bf16.mxu0 %v1117
      %5490 = vmatmul.mubr.bf16.gmra.mxu0 %v1000
      %v5491 = vpop.f32.mrf.mxu0
      %v5492 = vadd.f32 0.0, %v5491
      %v5493 = vpop.f32.mrf.mxu0
      %v5494 = vpop.f32.mrf.mxu0
      %v5495 = vadd.f32 0.0, %v5494
      %v5496 = vpop.f32.mrf.mxu0
      %5497 = vmatprep.mubr.bf16.mxu0 %v1127
      %5498 = vmatmul.mubr.bf16.gmra.mxu0 %v1003
      %v5499 = vpop.f32.mrf.mxu0
      %v5500 = vadd.f32 0.0, %v5499
      %v5501 = vpop.f32.mrf.mxu0
      %v5502 = vpop.f32.mrf.mxu0
      %v5503 = vadd.f32 0.0, %v5502
      %v5504 = vpop.f32.mrf.mxu0
      %5505 = vmatprep.mubr.bf16.mxu0 %v1137
      %5506 = vmatmul.mubr.bf16.gmra.mxu0 %v1006
      %v5507 = vpop.f32.mrf.mxu0
      %v5508 = vadd.f32 0.0, %v5507
      %v5509 = vpop.f32.mrf.mxu0
      %v5510 = vpop.f32.mrf.mxu0
      %v5511 = vadd.f32 0.0, %v5510
      %v5512 = vpop.f32.mrf.mxu0
      %5513 = vmatprep.mubr.bf16.mxu0 %v1147
      %5514 = vmatmul.mubr.bf16.gmra.mxu0 %v1009
      %v5515 = vpop.f32.mrf.mxu0
      %v5516 = vadd.f32 0.0, %v5515
      %v5517 = vpop.f32.mrf.mxu0
      %v5518 = vpop.f32.mrf.mxu0
      %v5519 = vadd.f32 0.0, %v5518
      %v5520 = vpop.f32.mrf.mxu0
      %5521 = vmatprep.mubr.bf16.mxu0 %v1157
      %5522 = vmatmul.mubr.bf16.gmra.mxu0 %v1012
      %v5523 = vpop.f32.mrf.mxu0
      %v5524 = vadd.f32 0.0, %v5523
      %v5525 = vpop.f32.mrf.mxu0
      %v5526 = vpop.f32.mrf.mxu0
      %v5527 = vadd.f32 0.0, %v5526
      %v5528 = vpop.f32.mrf.mxu0
      %5529 = vmatprep.mubr.bf16.mxu0 %v1167
      %5530 = vmatmul.mubr.bf16.gmra.mxu0 %v1015
      %v5531 = vpop.f32.mrf.mxu0
      %v5532 = vadd.f32 0.0, %v5531
      %v5533 = vpop.f32.mrf.mxu0
      %v5534 = vpop.f32.mrf.mxu0
      %v5535 = vadd.f32 0.0, %v5534
      %v5536 = vpop.f32.mrf.mxu0
      %5537 = vmatprep.mubr.bf16.mxu0 %v1177
      %5538 = vmatmul.mubr.bf16.gmra.mxu0 %v1018
      %v5539 = vpop.f32.mrf.mxu0
      %v5540 = vadd.f32 0.0, %v5539
      %v5541 = vpop.f32.mrf.mxu0
      %v5542 = vpop.f32.mrf.mxu0
      %v5543 = vadd.f32 0.0, %v5542
      %v5544 = vpop.f32.mrf.mxu0
      %5545 = vmatprep.mubr.bf16.mxu0 %v1187
      %5546 = vmatmul.mubr.bf16.gmra.mxu0 %v1021
      %v5547 = vpop.f32.mrf.mxu0
      %v5548 = vadd.f32 0.0, %v5547
      %v5549 = vpop.f32.mrf.mxu0
      %v5550 = vpop.f32.mrf.mxu0
      %v5551 = vadd.f32 0.0, %v5550
      %v5552 = vpop.f32.mrf.mxu0
      %5553 = vmatprep.mubr.bf16.mxu0 %v1197
      %5554 = vmatmul.mubr.bf16.gmra.mxu0 %v1024
      %v5555 = vpop.f32.mrf.mxu0
      %v5556 = vadd.f32 0.0, %v5555
      %v5557 = vpop.f32.mrf.mxu0
      %v5558 = vpop.f32.mrf.mxu0
      %v5559 = vadd.f32 0.0, %v5558
      %v5560 = vpop.f32.mrf.mxu0
      %5561 = vmatprep.mubr.bf16.mxu0 %v1207
      %5562 = vmatmul.mubr.bf16.gmra.mxu0 %v1027
      %v5563 = vpop.f32.mrf.mxu0
      %v5564 = vadd.f32 0.0, %v5563
      %v5565 = vpop.f32.mrf.mxu0
      %v5566 = vpop.f32.mrf.mxu0
      %v5567 = vadd.f32 0.0, %v5566
      %v5568 = vpop.f32.mrf.mxu0
      %5569 = vmatprep.mubr.bf16.mxu0 %v1217
      %5570 = vmatmul.mubr.bf16.gmra.mxu0 %v1030
      %v5571 = vpop.f32.mrf.mxu0
      %v5572 = vadd.f32 0.0, %v5571
      %v5573 = vpop.f32.mrf.mxu0
      %v5574 = vpop.f32.mrf.mxu0
      %v5575 = vadd.f32 0.0, %v5574
      %v5576 = vpop.f32.mrf.mxu0
      %5577 = vmatprep.mubr.bf16.mxu0 %v1227
      %5578 = vmatmul.mubr.bf16.gmra.mxu0 %v1033
      %v5579 = vpop.f32.mrf.mxu0
      %v5580 = vadd.f32 0.0, %v5579
      %v5581 = vpop.f32.mrf.mxu0
      %v5582 = vpop.f32.mrf.mxu0
      %v5583 = vadd.f32 0.0, %v5582
      %v5584 = vpop.f32.mrf.mxu0
      %5585 = vmatprep.mubr.bf16.mxu0 %v1656
      %5586 = vmatmul.mubr.bf16.gmra.mxu0 %v1036
      %v5587 = vpop.f32.mrf.mxu0
      %v5588 = vadd.f32 0.0, %v5587
      %v5589 = vpop.f32.mrf.mxu0
      %v5590 = vpop.f32.mrf.mxu0
      %v5591 = vadd.f32 0.0, %v5590
      %v5592 = vpop.f32.mrf.mxu0
      %5593 = vmatprep.mubr.bf16.mxu0 %v3261
      %5594 = vmatmul.mubr.bf16.gmra.mxu0 %v1039
      %v5595 = vpop.f32.mrf.mxu0
      %v5596 = vadd.f32 0.0, %v5595
      %v5597 = vpop.f32.mrf.mxu0
      %v5598 = vpop.f32.mrf.mxu0
      %v5599 = vadd.f32 0.0, %v5598
      %v5600 = vpop.f32.mrf.mxu0
      %5601 = vmatprep.mubr.bf16.mxu0 %v5107
      %5602 = vmatmul.mubr.bf16.gmra.mxu0 %v1042
      %v5603 = vpop.f32.mrf.mxu0
      %v5604 = vadd.f32 0.0, %v5603
      %v5605 = vpop.f32.mrf.mxu0
      %v5606 = vpop.f32.mrf.mxu0
      %v5607 = vadd.f32 0.0, %v5606
      %v5608 = vpop.f32.mrf.mxu0
      %5609 = vdwg.mxu0
      %5610 = vmatprep.subr.bf16.mxu0 0
      %5611 = vmatpush1.bf16.msra.mxu0 %v5392
      %5612 = vmatprep.subr.bf16.mxu0 0
      %5613 = vmatpush1.bf16.msra.mxu0 %v5391
      %5614 = vmatprep.subr.bf16.mxu0 0
      %5615 = vmatpush1.bf16.msra.mxu0 %v5390
      %5616 = vmatprep.subr.bf16.mxu0 0
      %5617 = vmatpush1.bf16.msra.mxu0 %v5389
      %5618 = vmatprep.subr.bf16.mxu0 0
      %5619 = vmatpush1.bf16.msra.mxu0 %v5388
      %5620 = vmatprep.subr.bf16.mxu0 0
      %5621 = vmatpush1.bf16.msra.mxu0 %v5387
      %5622 = vmatprep.subr.bf16.mxu0 0
      %5623 = vmatpush1.bf16.msra.mxu0 %v5386
      %5624 = vmatprep.subr.bf16.mxu0 0
      %5625 = vmatpush1.bf16.msra.mxu0 %v5385
      %5626 = vmatprep.subr.bf16.mxu0 0
      %5627 = vmatpush2.bf16.msra.mxu0 %v5400
      %5628 = vmatprep.subr.bf16.mxu0 0
      %5629 = vmatpush2.bf16.msra.mxu0 %v5399
      %5630 = vmatprep.subr.bf16.mxu0 0
      %5631 = vmatpush2.bf16.msra.mxu0 %v5398
      %5632 = vmatprep.subr.bf16.mxu0 0
      %5633 = vmatpush2.bf16.msra.mxu0 %v5397
      %5634 = vmatprep.subr.bf16.mxu0 0
      %5635 = vmatpush2.bf16.msra.mxu0 %v5396
      %5636 = vmatprep.subr.bf16.mxu0 0
      %5637 = vmatpush2.bf16.msra.mxu0 %v5395
      %5638 = vmatprep.subr.bf16.mxu0 0
      %5639 = vmatpush2.bf16.msra.mxu0 %v5394
      %5640 = vmatprep.subr.bf16.mxu0 0
      %5641 = vmatpush2.bf16.msra.mxu0 %v5393
      %5642 = vmatprep.mubr.bf16.mxu0 %v1377
      %5643 = vmatmul.mubr.bf16.gmra.mxu0 %v1288
      %v5644 = vpop.f32.mrf.mxu0
      %v5645 = vadd.f32 %v5484, %v5644
      %v5646 = vpop.f32.mrf.mxu0
      %v5647 = vpop.f32.mrf.mxu0
      %v5648 = vadd.f32 %v5487, %v5647
      %v5649 = vpop.f32.mrf.mxu0
      %5650 = vmatprep.mubr.bf16.mxu0 %v1386
      %5651 = vmatmul.mubr.bf16.gmra.mxu0 %v1291
      %v5652 = vpop.f32.mrf.mxu0
      %v5653 = vadd.f32 %v5492, %v5652
      %v5654 = vpop.f32.mrf.mxu0
      %v5655 = vpop.f32.mrf.mxu0
      %v5656 = vadd.f32 %v5495, %v5655
      %v5657 = vpop.f32.mrf.mxu0
      %5658 = vmatprep.mubr.bf16.mxu0 %v1395
      %5659 = vmatmul.mubr.bf16.gmra.mxu0 %v1294
      %v5660 = vpop.f32.mrf.mxu0
      %v5661 = vadd.f32 %v5500, %v5660
      %v5662 = vpop.f32.mrf.mxu0
      %v5663 = vpop.f32.mrf.mxu0
      %v5664 = vadd.f32 %v5503, %v5663
      %v5665 = vpop.f32.mrf.mxu0
      %5666 = vmatprep.mubr.bf16.mxu0 %v1404
      %5667 = vmatmul.mubr.bf16.gmra.mxu0 %v1297
      %v5668 = vpop.f32.mrf.mxu0
      %v5669 = vadd.f32 %v5508, %v5668
      %v5670 = vpop.f32.mrf.mxu0
      %v5671 = vpop.f32.mrf.mxu0
      %v5672 = vadd.f32 %v5511, %v5671
      %v5673 = vpop.f32.mrf.mxu0
      %5674 = vmatprep.mubr.bf16.mxu0 %v1413
      %5675 = vmatmul.mubr.bf16.gmra.mxu0 %v1300
      %v5676 = vpop.f32.mrf.mxu0
      %v5677 = vadd.f32 %v5516, %v5676
      %v5678 = vpop.f32.mrf.mxu0
      %v5679 = vpop.f32.mrf.mxu0
      %v5680 = vadd.f32 %v5519, %v5679
      %v5681 = vpop.f32.mrf.mxu0
      %5682 = vmatprep.mubr.bf16.mxu0 %v1422
      %5683 = vmatmul.mubr.bf16.gmra.mxu0 %v1303
      %v5684 = vpop.f32.mrf.mxu0
      %v5685 = vadd.f32 %v5524, %v5684
      %v5686 = vpop.f32.mrf.mxu0
      %v5687 = vpop.f32.mrf.mxu0
      %v5688 = vadd.f32 %v5527, %v5687
      %v5689 = vpop.f32.mrf.mxu0
      %5690 = vmatprep.mubr.bf16.mxu0 %v1431
      %5691 = vmatmul.mubr.bf16.gmra.mxu0 %v1306
      %v5692 = vpop.f32.mrf.mxu0
      %v5693 = vadd.f32 %v5532, %v5692
      %v5694 = vpop.f32.mrf.mxu0
      %v5695 = vpop.f32.mrf.mxu0
      %v5696 = vadd.f32 %v5535, %v5695
      %v5697 = vpop.f32.mrf.mxu0
      %5698 = vmatprep.mubr.bf16.mxu0 %v1440
      %5699 = vmatmul.mubr.bf16.gmra.mxu0 %v1309
      %v5700 = vpop.f32.mrf.mxu0
      %v5701 = vadd.f32 %v5540, %v5700
      %v5702 = vpop.f32.mrf.mxu0
      %v5703 = vpop.f32.mrf.mxu0
      %v5704 = vadd.f32 %v5543, %v5703
      %v5705 = vpop.f32.mrf.mxu0
      %5706 = vmatprep.mubr.bf16.mxu0 %v1449
      %5707 = vmatmul.mubr.bf16.gmra.mxu0 %v1312
      %v5708 = vpop.f32.mrf.mxu0
      %v5709 = vadd.f32 %v5548, %v5708
      %v5710 = vpop.f32.mrf.mxu0
      %v5711 = vpop.f32.mrf.mxu0
      %v5712 = vadd.f32 %v5551, %v5711
      %v5713 = vpop.f32.mrf.mxu0
      %5714 = vmatprep.mubr.bf16.mxu0 %v1458
      %5715 = vmatmul.mubr.bf16.gmra.mxu0 %v1315
      %v5716 = vpop.f32.mrf.mxu0
      %v5717 = vadd.f32 %v5556, %v5716
      %v5718 = vpop.f32.mrf.mxu0
      %v5719 = vpop.f32.mrf.mxu0
      %v5720 = vadd.f32 %v5559, %v5719
      %v5721 = vpop.f32.mrf.mxu0
      %5722 = vmatprep.mubr.bf16.mxu0 %v1467
      %5723 = vmatmul.mubr.bf16.gmra.mxu0 %v1318
      %v5724 = vpop.f32.mrf.mxu0
      %v5725 = vadd.f32 %v5564, %v5724
      %v5726 = vpop.f32.mrf.mxu0
      %v5727 = vpop.f32.mrf.mxu0
      %v5728 = vadd.f32 %v5567, %v5727
      %v5729 = vpop.f32.mrf.mxu0
      %5730 = vmatprep.mubr.bf16.mxu0 %v1476
      %5731 = vmatmul.mubr.bf16.gmra.mxu0 %v1321
      %v5732 = vpop.f32.mrf.mxu0
      %v5733 = vadd.f32 %v5572, %v5732
      %v5734 = vpop.f32.mrf.mxu0
      %v5735 = vpop.f32.mrf.mxu0
      %v5736 = vadd.f32 %v5575, %v5735
      %v5737 = vpop.f32.mrf.mxu0
      %5738 = vmatprep.mubr.bf16.mxu0 %v1485
      %5739 = vmatmul.mubr.bf16.gmra.mxu0 %v1324
      %v5740 = vpop.f32.mrf.mxu0
      %v5741 = vadd.f32 %v5580, %v5740
      %v5742 = vpop.f32.mrf.mxu0
      %v5743 = vpop.f32.mrf.mxu0
      %v5744 = vadd.f32 %v5583, %v5743
      %v5745 = vpop.f32.mrf.mxu0
      %5746 = vmatprep.mubr.bf16.mxu0 %v1672
      %5747 = vmatmul.mubr.bf16.gmra.mxu0 %v1662
      %v5748 = vpop.f32.mrf.mxu0
      %v5749 = vadd.f32 %v5588, %v5748
      %v5750 = vpop.f32.mrf.mxu0
      %v5751 = vpop.f32.mrf.mxu0
      %v5752 = vadd.f32 %v5591, %v5751
      %v5753 = vpop.f32.mrf.mxu0
      %5754 = vmatprep.mubr.bf16.mxu0 %v3277
      %5755 = vmatmul.mubr.bf16.gmra.mxu0 %v3267
      %v5756 = vpop.f32.mrf.mxu0
      %v5757 = vadd.f32 %v5596, %v5756
      %v5758 = vpop.f32.mrf.mxu0
      %v5759 = vpop.f32.mrf.mxu0
      %v5760 = vadd.f32 %v5599, %v5759
      %v5761 = vpop.f32.mrf.mxu0
      %5762 = vmatprep.mubr.bf16.mxu0 %v5123
      %5763 = vmatmul.mubr.bf16.gmra.mxu0 %v5113
      %v5764 = vpop.f32.mrf.mxu0
      %v5765 = vadd.f32 %v5604, %v5764
      %v5766 = vpop.f32.mrf.mxu0
      %v5767 = vpop.f32.mrf.mxu0
      %v5768 = vadd.f32 %v5607, %v5767
      %v5769 = vpop.f32.mrf.mxu0
      %5770 = vdwg.mxu0
      %5771 = vmatprep.subr.bf16.mxu0 0
      %5772 = vmatpush1.bf16.msra.mxu0 %v5408
      %5773 = vmatprep.subr.bf16.mxu0 0
      %5774 = vmatpush1.bf16.msra.mxu0 %v5407
      %5775 = vmatprep.subr.bf16.mxu0 0
      %5776 = vmatpush1.bf16.msra.mxu0 %v5406
      %5777 = vmatprep.subr.bf16.mxu0 0
      %5778 = vmatpush1.bf16.msra.mxu0 %v5405
      %5779 = vmatprep.subr.bf16.mxu0 0
      %5780 = vmatpush1.bf16.msra.mxu0 %v5404
      %5781 = vmatprep.subr.bf16.mxu0 0
      %5782 = vmatpush1.bf16.msra.mxu0 %v5403
      %5783 = vmatprep.subr.bf16.mxu0 0
      %5784 = vmatpush1.bf16.msra.mxu0 %v5402
      %5785 = vmatprep.subr.bf16.mxu0 0
      %5786 = vmatpush1.bf16.msra.mxu0 %v5401
      %5787 = vmatprep.subr.bf16.mxu0 0
      %5788 = vmatpush2.bf16.msra.mxu0 0
      %5789 = vmatprep.subr.bf16.mxu0 0
      %5790 = vmatpush2.bf16.msra.mxu0 0
      %5791 = vmatprep.subr.bf16.mxu0 0
      %5792 = vmatpush2.bf16.msra.mxu0 0
      %5793 = vmatprep.subr.bf16.mxu0 0
      %5794 = vmatpush2.bf16.msra.mxu0 0
      %5795 = vmatprep.subr.bf16.mxu0 0
      %5796 = vmatpush2.bf16.msra.mxu0 0
      %5797 = vmatprep.subr.bf16.mxu0 0
      %5798 = vmatpush2.bf16.msra.mxu0 0
      %5799 = vmatprep.subr.bf16.mxu0 0
      %5800 = vmatpush2.bf16.msra.mxu0 0
      %5801 = vmatprep.subr.bf16.mxu0 0
      %5802 = vmatpush2.bf16.msra.mxu0 0
      %5803 = vmatprep.mubr.bf16.mxu0 0
      %5804 = vmatmul.mubr.bf16.gmra.mxu0 %v1514
      %v5805 = vpop.f32.mrf.mxu0
      %v5806 = vadd.f32 %v5645, %v5805
      %v5807 = vpop.f32.mrf.mxu0
      %v5808 = vpop.f32.mrf.mxu0
      %v5809 = vadd.f32 %v5648, %v5808
      %v5810 = vpop.f32.mrf.mxu0
      %5811 = vmatprep.mubr.bf16.mxu0 0
      %5812 = vmatmul.mubr.bf16.gmra.mxu0 %v1517
      %v5813 = vpop.f32.mrf.mxu0
      %v5814 = vadd.f32 %v5653, %v5813
      %v5815 = vpop.f32.mrf.mxu0
      %v5816 = vpop.f32.mrf.mxu0
      %v5817 = vadd.f32 %v5656, %v5816
      %v5818 = vpop.f32.mrf.mxu0
      %5819 = vmatprep.mubr.bf16.mxu0 0
      %5820 = vmatmul.mubr.bf16.gmra.mxu0 %v1520
      %v5821 = vpop.f32.mrf.mxu0
      %v5822 = vadd.f32 %v5661, %v5821
      %v5823 = vpop.f32.mrf.mxu0
      %v5824 = vpop.f32.mrf.mxu0
      %v5825 = vadd.f32 %v5664, %v5824
      %v5826 = vpop.f32.mrf.mxu0
      %5827 = vmatprep.mubr.bf16.mxu0 0
      %5828 = vmatmul.mubr.bf16.gmra.mxu0 %v1523
      %v5829 = vpop.f32.mrf.mxu0
      %v5830 = vadd.f32 %v5669, %v5829
      %v5831 = vpop.f32.mrf.mxu0
      %v5832 = vpop.f32.mrf.mxu0
      %v5833 = vadd.f32 %v5672, %v5832
      %v5834 = vpop.f32.mrf.mxu0
      %5835 = vmatprep.mubr.bf16.mxu0 0
      %5836 = vmatmul.mubr.bf16.gmra.mxu0 %v1526
      %v5837 = vpop.f32.mrf.mxu0
      %v5838 = vadd.f32 %v5677, %v5837
      %v5839 = vpop.f32.mrf.mxu0
      %v5840 = vpop.f32.mrf.mxu0
      %v5841 = vadd.f32 %v5680, %v5840
      %v5842 = vpop.f32.mrf.mxu0
      %5843 = vmatprep.mubr.bf16.mxu0 0
      %5844 = vmatmul.mubr.bf16.gmra.mxu0 %v1529
      %v5845 = vpop.f32.mrf.mxu0
      %v5846 = vadd.f32 %v5685, %v5845
      %v5847 = vpop.f32.mrf.mxu0
      %v5848 = vpop.f32.mrf.mxu0
      %v5849 = vadd.f32 %v5688, %v5848
      %v5850 = vpop.f32.mrf.mxu0
      %5851 = vmatprep.mubr.bf16.mxu0 0
      %5852 = vmatmul.mubr.bf16.gmra.mxu0 %v1532
      %v5853 = vpop.f32.mrf.mxu0
      %v5854 = vadd.f32 %v5693, %v5853
      %v5855 = vpop.f32.mrf.mxu0
      %v5856 = vpop.f32.mrf.mxu0
      %v5857 = vadd.f32 %v5696, %v5856
      %v5858 = vpop.f32.mrf.mxu0
      %5859 = vmatprep.mubr.bf16.mxu0 0
      %5860 = vmatmul.mubr.bf16.gmra.mxu0 %v1535
      %v5861 = vpop.f32.mrf.mxu0
      %v5862 = vadd.f32 %v5701, %v5861
      %v5863 = vpop.f32.mrf.mxu0
      %v5864 = vpop.f32.mrf.mxu0
      %v5865 = vadd.f32 %v5704, %v5864
      %v5866 = vpop.f32.mrf.mxu0
      %5867 = vmatprep.mubr.bf16.mxu0 0
      %5868 = vmatmul.mubr.bf16.gmra.mxu0 %v1538
      %v5869 = vpop.f32.mrf.mxu0
      %v5870 = vadd.f32 %v5709, %v5869
      %v5871 = vpop.f32.mrf.mxu0
      %v5872 = vpop.f32.mrf.mxu0
      %v5873 = vadd.f32 %v5712, %v5872
      %v5874 = vpop.f32.mrf.mxu0
      %5875 = vmatprep.mubr.bf16.mxu0 0
      %5876 = vmatmul.mubr.bf16.gmra.mxu0 %v1541
      %v5877 = vpop.f32.mrf.mxu0
      %v5878 = vadd.f32 %v5717, %v5877
      %v5879 = vpop.f32.mrf.mxu0
      %v5880 = vpop.f32.mrf.mxu0
      %v5881 = vadd.f32 %v5720, %v5880
      %v5882 = vpop.f32.mrf.mxu0
      %5883 = vmatprep.mubr.bf16.mxu0 0
      %5884 = vmatmul.mubr.bf16.gmra.mxu0 %v1544
      %v5885 = vpop.f32.mrf.mxu0
      %v5886 = vadd.f32 %v5725, %v5885
      %v5887 = vpop.f32.mrf.mxu0
      %v5888 = vpop.f32.mrf.mxu0
      %v5889 = vadd.f32 %v5728, %v5888
      %v5890 = vpop.f32.mrf.mxu0
      %5891 = vmatprep.mubr.bf16.mxu0 0
      %5892 = vmatmul.mubr.bf16.gmra.mxu0 %v1547
      %v5893 = vpop.f32.mrf.mxu0
      %v5894 = vadd.f32 %v5733, %v5893
      %v5895 = vpop.f32.mrf.mxu0
      %v5896 = vpop.f32.mrf.mxu0
      %v5897 = vadd.f32 %v5736, %v5896
      %v5898 = vpop.f32.mrf.mxu0
      %5899 = vmatprep.mubr.bf16.mxu0 0
      %5900 = vmatmul.mubr.bf16.gmra.mxu0 %v1550
      %v5901 = vpop.f32.mrf.mxu0
      %v5902 = vadd.f32 %v5741, %v5901
      %v5903 = vpop.f32.mrf.mxu0
      %v5904 = vpop.f32.mrf.mxu0
      %v5905 = vadd.f32 %v5744, %v5904
      %v5906 = vpop.f32.mrf.mxu0
      %5907 = vmatprep.mubr.bf16.mxu0 0
      %5908 = vmatmul.mubr.bf16.gmra.mxu0 %v1676
      %v5909 = vpop.f32.mrf.mxu0
      %v5910 = vadd.f32 %v5749, %v5909
      %v5911 = vpop.f32.mrf.mxu0
      %v5912 = vpop.f32.mrf.mxu0
      %v5913 = vadd.f32 %v5752, %v5912
      %v5914 = vpop.f32.mrf.mxu0
      %5915 = vmatprep.mubr.bf16.mxu0 0
      %5916 = vmatmul.mubr.bf16.gmra.mxu0 %v3281
      %v5917 = vpop.f32.mrf.mxu0
      %v5918 = vadd.f32 %v5757, %v5917
      %v5919 = vpop.f32.mrf.mxu0
      %v5920 = vpop.f32.mrf.mxu0
      %v5921 = vadd.f32 %v5760, %v5920
      %v5922 = vpop.f32.mrf.mxu0
      %5923 = vmatprep.mubr.bf16.mxu0 0
      %5924 = vmatmul.mubr.bf16.gmra.mxu0 %v5127
      %v5925 = vpop.f32.mrf.mxu0
      %v5926 = vadd.f32 %v5765, %v5925
      %v5927 = vpop.f32.mrf.mxu0
      %v5928 = vpop.f32.mrf.mxu0
      %v5929 = vadd.f32 %v5768, %v5928
      %v5930 = vpop.f32.mrf.mxu0
      %5931 = vdwg.mxu0
      %v5932 = vadd.f32 %v4086, %v5806
      %v5933 = vadd.f32 %v4087, %v5809
      %v5934 = vadd.f32 %v4088, %v5814
      %v5935 = vadd.f32 %v4089, %v5817
      %v5936 = vadd.f32 %v4090, %v5822
      %v5937 = vadd.f32 %v4091, %v5825
      %v5938 = vadd.f32 %v4092, %v5830
      %v5939 = vadd.f32 %v4093, %v5833
      %v5940 = vadd.f32 %v4094, %v5838
      %v5941 = vadd.f32 %v4095, %v5841
      %v5942 = vadd.f32 %v4096, %v5846
      %v5943 = vadd.f32 %v4097, %v5849
      %v5944 = vadd.f32 %v4098, %v5854
      %v5945 = vadd.f32 %v4099, %v5857
      %v5946 = vadd.f32 %v4100, %v5862
      %v5947 = vadd.f32 %v4101, %v5865
      %v5948 = vadd.f32 %v4102, %v5870
      %v5949 = vadd.f32 %v4103, %v5873
      %v5950 = vadd.f32 %v4104, %v5878
      %v5951 = vadd.f32 %v4105, %v5881
      %v5952 = vadd.f32 %v4106, %v5886
      %v5953 = vadd.f32 %v4107, %v5889
      %v5954 = vadd.f32 %v4108, %v5894
      %v5955 = vadd.f32 %v4109, %v5897
      %v5956 = vadd.f32 %v4110, %v5902
      %v5957 = vadd.f32 %v4111, %v5905
      %v5958 = vadd.f32 %v4112, %v5910
      %v5959 = vadd.f32 %v4113, %v5913
      %v5960 = vadd.f32 %v4114, %v5918
      %v5961 = vadd.f32 %v4115, %v5921
      %v5962 = vadd.f32 %v4116, %v5926
      %v5963 = vadd.f32 %v4117, %v5929
      %v5964 = vld [vmem:[%s5 + $0x180] sm:$0xf]
      %v5965 = vld [vmem:[%s5 + $0x184] sm:$0xf]
      %v5966 = vld [vmem:[%s5 + $0x188] sm:$0xf]
      %v5967 = vld [vmem:[%s5 + $0x18c] sm:$0xf]
      %v5968 = vld [vmem:[%s5 + $0x190] sm:$0xf]
      %v5969 = vld [vmem:[%s5 + $0x194] sm:$0xf]
      %v5970 = vld [vmem:[%s5 + $0x198] sm:$0xf]
      %v5971 = vld [vmem:[%s5 + $0x19c] sm:$0xf]
      %v5972 = vld [vmem:[%s5 + $0x1a0] sm:$0xf]
      %v5973 = vld [vmem:[%s5 + $0x1a4] sm:$0xf]
      %v5974 = vld [vmem:[%s5 + $0x1a8] sm:$0xf]
      %v5975 = vld [vmem:[%s5 + $0x1ac] sm:$0xf]
      %v5976 = vld [vmem:[%s5 + $0x1b0] sm:$0xf]
      %v5977 = vld [vmem:[%s5 + $0x1b4] sm:$0xf]
      %v5978 = vld [vmem:[%s5 + $0x1b8] sm:$0xf]
      %v5979 = vld [vmem:[%s5 + $0x1bc] sm:$0xf]
      %v5980 = vld [vmem:[%s5 + $0x1c0] sm:$0xf]
      %v5981 = vld [vmem:[%s5 + $0x1c4] sm:$0xf]
      %v5982 = vld [vmem:[%s5 + $0x1c8] sm:$0xf]
      %v5983 = vld [vmem:[%s5 + $0x1cc] sm:$0xf]
      %v5984 = vld [vmem:[%s5 + $0x1d0] sm:$0xf]
      %v5985 = vld [vmem:[%s5 + $0x1d4] sm:$0xf]
      %v5986 = vld [vmem:[%s5 + $0x1d8] sm:$0xf]
      %v5987 = vld [vmem:[%s5 + $0x1dc] sm:$0xf]
      %v5988 = vld [vmem:[%s5 + $0x1e0] sm:$0xf]
      %v5989 = vld [vmem:[%s5 + $0x1e4] sm:$0xf]
      %v5990 = vld [vmem:[%s5 + $0x1e8] sm:$0xf]
      %v5991 = vld [vmem:[%s5 + $0x1ec] sm:$0xf]
      %v5992 = vld [vmem:[%s5 + $0x1f0] sm:$0xf]
      %v5993 = vld [vmem:[%s5 + $0x1f4] sm:$0xf]
      %v5994 = vld [vmem:[%s5 + $0x1f8] sm:$0xf]
      %v5995 = vld [vmem:[%s5 + $0x1fc] sm:$0xf]
      %v5996 = vld [vmem:[%s5 + $0x200] sm:$0xf]
      %v5997 = vld [vmem:[%s5 + $0x204] sm:$0xf]
      %v5998 = vld [vmem:[%s5 + $0x208] sm:$0xf]
      %v5999 = vld [vmem:[%s5 + $0x20c] sm:$0xf]
      %v6000 = vld [vmem:[%s5 + $0x210] sm:$0xf]
      %v6001 = vld [vmem:[%s5 + $0x214] sm:$0xf]
      %v6002 = vld [vmem:[%s5 + $0x218] sm:$0xf]
      %v6003 = vld [vmem:[%s5 + $0x21c] sm:$0xf]
      %v6004 = vld [vmem:[%s5 + $0x220] sm:$0xf]
      %v6005 = vld [vmem:[%s5 + $0x224] sm:$0xf]
      %v6006 = vld [vmem:[%s5 + $0x228] sm:$0xf]
      %v6007 = vld [vmem:[%s5 + $0x22c] sm:$0xf]
      %v6008 = vld [vmem:[%s5 + $0x230] sm:$0xf]
      %v6009 = vld [vmem:[%s5 + $0x234] sm:$0xf]
      %v6010 = vld [vmem:[%s5 + $0x238] sm:$0xf]
      %v6011 = vld [vmem:[%s5 + $0x23c] sm:$0xf]
      %v6060 = vunpack.c.l.b16 %v5964
      %v6061 = vunpack.c.l.b16 %v5965
      %v6062 = vunpack.c.l.b16 %v5966
      %v6063 = vunpack.c.l.b16 %v5967
      %v6064 = vunpack.c.l.b16 %v5968
      %v6065 = vunpack.c.l.b16 %v5969
      %v6066 = vunpack.c.l.b16 %v5970
      %v6067 = vunpack.c.l.b16 %v5971
      %v6068 = vunpack.c.l.b16 %v5972
      %v6069 = vunpack.c.l.b16 %v5973
      %v6070 = vunpack.c.l.b16 %v5974
      %v6071 = vunpack.c.l.b16 %v5975
      %v6072 = vunpack.c.l.b16 %v5976
      %v6073 = vunpack.c.l.b16 %v5977
      %v6074 = vunpack.c.l.b16 %v5978
      %v6075 = vunpack.c.l.b16 %v5979
      %v6076 = vunpack.c.l.b16 %v5980
      %v6077 = vunpack.c.l.b16 %v5981
      %v6078 = vunpack.c.l.b16 %v5982
      %v6079 = vunpack.c.l.b16 %v5983
      %v6080 = vunpack.c.l.b16 %v5984
      %v6081 = vunpack.c.l.b16 %v5985
      %v6082 = vunpack.c.l.b16 %v5986
      %v6083 = vunpack.c.l.b16 %v5987
      %v6084 = vunpack.c.l.b16 %v5988
      %v6085 = vunpack.c.l.b16 %v5989
      %v6086 = vunpack.c.l.b16 %v5990
      %v6087 = vunpack.c.l.b16 %v5991
      %v6088 = vunpack.c.l.b16 %v5992
      %v6089 = vunpack.c.l.b16 %v5993
      %v6090 = vunpack.c.l.b16 %v5994
      %v6091 = vunpack.c.l.b16 %v5995
      %v6092 = vunpack.c.l.b16 %v5996
      %v6093 = vunpack.c.l.b16 %v5997
      %v6094 = vunpack.c.l.b16 %v5998
      %v6095 = vunpack.c.l.b16 %v5999
      %v6096 = vunpack.c.l.b16 %v6000
      %v6097 = vunpack.c.l.b16 %v6001
      %v6098 = vunpack.c.l.b16 %v6002
      %v6099 = vunpack.c.l.b16 %v6003
      %v6100 = vunpack.c.l.b16 %v6004
      %v6101 = vunpack.c.l.b16 %v6005
      %v6102 = vunpack.c.l.b16 %v6006
      %v6103 = vunpack.c.l.b16 %v6007
      %v6104 = vunpack.c.l.b16 %v6008
      %v6105 = vunpack.c.l.b16 %v6009
      %v6106 = vunpack.c.l.b16 %v6010
      %v6107 = vunpack.c.l.b16 %v6011
      %v6108 = vpack.c.b16 %v6061, %v6060
      %v6109 = vpack.c.b16 %v6063, %v6062
      %v6110 = vpack.c.b16 %v6065, %v6064
      %v6111 = vpack.c.b16 %v6067, %v6066
      %v6112 = vpack.c.b16 %v6069, %v6068
      %v6113 = vpack.c.b16 %v6071, %v6070
      %v6114 = vpack.c.b16 %v6073, %v6072
      %v6115 = vpack.c.b16 %v6075, %v6074
      %v6116 = vpack.c.b16 %v6077, %v6076
      %v6117 = vpack.c.b16 %v6079, %v6078
      %v6118 = vpack.c.b16 %v6081, %v6080
      %v6119 = vpack.c.b16 %v6083, %v6082
      %v6120 = vpack.c.b16 %v6085, %v6084
      %v6121 = vpack.c.b16 %v6087, %v6086
      %v6122 = vpack.c.b16 %v6089, %v6088
      %v6123 = vpack.c.b16 %v6091, %v6090
      %v6124 = vpack.c.b16 %v6093, %v6092
      %v6125 = vpack.c.b16 %v6095, %v6094
      %v6126 = vpack.c.b16 %v6097, %v6096
      %v6127 = vpack.c.b16 %v6099, %v6098
      %v6128 = vpack.c.b16 %v6101, %v6100
      %v6129 = vpack.c.b16 %v6103, %v6102
      %v6130 = vpack.c.b16 %v6105, %v6104
      %v6131 = vpack.c.b16 %v6107, %v6106
      %6156 = vmatprep.subr.bf16.mxu0 0
      %6157 = vmatpush1.bf16.msra.mxu0 %v6115
      %6158 = vmatprep.subr.bf16.mxu0 0
      %6159 = vmatpush1.bf16.msra.mxu0 %v6114
      %6160 = vmatprep.subr.bf16.mxu0 0
      %6161 = vmatpush1.bf16.msra.mxu0 %v6113
      %6162 = vmatprep.subr.bf16.mxu0 0
      %6163 = vmatpush1.bf16.msra.mxu0 %v6112
      %6164 = vmatprep.subr.bf16.mxu0 0
      %6165 = vmatpush1.bf16.msra.mxu0 %v6111
      %6166 = vmatprep.subr.bf16.mxu0 0
      %6167 = vmatpush1.bf16.msra.mxu0 %v6110
      %6168 = vmatprep.subr.bf16.mxu0 0
      %6169 = vmatpush1.bf16.msra.mxu0 %v6109
      %6170 = vmatprep.subr.bf16.mxu0 0
      %6171 = vmatpush1.bf16.msra.mxu0 %v6108
      %6172 = vmatprep.subr.bf16.mxu0 0
      %6173 = vmatpush2.bf16.msra.mxu0 %v6123
      %6174 = vmatprep.subr.bf16.mxu0 0
      %6175 = vmatpush2.bf16.msra.mxu0 %v6122
      %6176 = vmatprep.subr.bf16.mxu0 0
      %6177 = vmatpush2.bf16.msra.mxu0 %v6121
      %6178 = vmatprep.subr.bf16.mxu0 0
      %6179 = vmatpush2.bf16.msra.mxu0 %v6120
      %6180 = vmatprep.subr.bf16.mxu0 0
      %6181 = vmatpush2.bf16.msra.mxu0 %v6119
      %6182 = vmatprep.subr.bf16.mxu0 0
      %6183 = vmatpush2.bf16.msra.mxu0 %v6118
      %6184 = vmatprep.subr.bf16.mxu0 0
      %6185 = vmatpush2.bf16.msra.mxu0 %v6117
      %6186 = vmatprep.subr.bf16.mxu0 0
      %6187 = vmatpush2.bf16.msra.mxu0 %v6116
      %6188 = vmatprep.mubr.bf16.mxu0 %v1288
      %6189 = vmatmul.mubr.bf16.gmra.mxu0 %v1107
      %v6190 = vpop.f32.mrf.mxu0
      %v6191 = vadd.f32 0.0, %v6190
      %v6192 = vpop.f32.mrf.mxu0
      %v6193 = vpop.f32.mrf.mxu0
      %v6194 = vadd.f32 0.0, %v6193
      %v6195 = vpop.f32.mrf.mxu0
      %6196 = vmatprep.mubr.bf16.mxu0 %v1291
      %6197 = vmatmul.mubr.bf16.gmra.mxu0 %v1117
      %v6198 = vpop.f32.mrf.mxu0
      %v6199 = vadd.f32 0.0, %v6198
      %v6200 = vpop.f32.mrf.mxu0
      %v6201 = vpop.f32.mrf.mxu0
      %v6202 = vadd.f32 0.0, %v6201
      %v6203 = vpop.f32.mrf.mxu0
      %6204 = vmatprep.mubr.bf16.mxu0 %v1294
      %6205 = vmatmul.mubr.bf16.gmra.mxu0 %v1127
      %v6206 = vpop.f32.mrf.mxu0
      %v6207 = vadd.f32 0.0, %v6206
      %v6208 = vpop.f32.mrf.mxu0
      %v6209 = vpop.f32.mrf.mxu0
      %v6210 = vadd.f32 0.0, %v6209
      %v6211 = vpop.f32.mrf.mxu0
      %6212 = vmatprep.mubr.bf16.mxu0 %v1297
      %6213 = vmatmul.mubr.bf16.gmra.mxu0 %v1137
      %v6214 = vpop.f32.mrf.mxu0
      %v6215 = vadd.f32 0.0, %v6214
      %v6216 = vpop.f32.mrf.mxu0
      %v6217 = vpop.f32.mrf.mxu0
      %v6218 = vadd.f32 0.0, %v6217
      %v6219 = vpop.f32.mrf.mxu0
      %6220 = vmatprep.mubr.bf16.mxu0 %v1300
      %6221 = vmatmul.mubr.bf16.gmra.mxu0 %v1147
      %v6222 = vpop.f32.mrf.mxu0
      %v6223 = vadd.f32 0.0, %v6222
      %v6224 = vpop.f32.mrf.mxu0
      %v6225 = vpop.f32.mrf.mxu0
      %v6226 = vadd.f32 0.0, %v6225
      %v6227 = vpop.f32.mrf.mxu0
      %6228 = vmatprep.mubr.bf16.mxu0 %v1303
      %6229 = vmatmul.mubr.bf16.gmra.mxu0 %v1157
      %v6230 = vpop.f32.mrf.mxu0
      %v6231 = vadd.f32 0.0, %v6230
      %v6232 = vpop.f32.mrf.mxu0
      %v6233 = vpop.f32.mrf.mxu0
      %v6234 = vadd.f32 0.0, %v6233
      %v6235 = vpop.f32.mrf.mxu0
      %6236 = vmatprep.mubr.bf16.mxu0 %v1306
      %6237 = vmatmul.mubr.bf16.gmra.mxu0 %v1167
      %v6238 = vpop.f32.mrf.mxu0
      %v6239 = vadd.f32 0.0, %v6238
      %v6240 = vpop.f32.mrf.mxu0
      %v6241 = vpop.f32.mrf.mxu0
      %v6242 = vadd.f32 0.0, %v6241
      %v6243 = vpop.f32.mrf.mxu0
      %6244 = vmatprep.mubr.bf16.mxu0 %v1309
      %6245 = vmatmul.mubr.bf16.gmra.mxu0 %v1177
      %v6246 = vpop.f32.mrf.mxu0
      %v6247 = vadd.f32 0.0, %v6246
      %v6248 = vpop.f32.mrf.mxu0
      %v6249 = vpop.f32.mrf.mxu0
      %v6250 = vadd.f32 0.0, %v6249
      %v6251 = vpop.f32.mrf.mxu0
      %6252 = vmatprep.mubr.bf16.mxu0 %v1312
      %6253 = vmatmul.mubr.bf16.gmra.mxu0 %v1187
      %v6254 = vpop.f32.mrf.mxu0
      %v6255 = vadd.f32 0.0, %v6254
      %v6256 = vpop.f32.mrf.mxu0
      %v6257 = vpop.f32.mrf.mxu0
      %v6258 = vadd.f32 0.0, %v6257
      %v6259 = vpop.f32.mrf.mxu0
      %6260 = vmatprep.mubr.bf16.mxu0 %v1315
      %6261 = vmatmul.mubr.bf16.gmra.mxu0 %v1197
      %v6262 = vpop.f32.mrf.mxu0
      %v6263 = vadd.f32 0.0, %v6262
      %v6264 = vpop.f32.mrf.mxu0
      %v6265 = vpop.f32.mrf.mxu0
      %v6266 = vadd.f32 0.0, %v6265
      %v6267 = vpop.f32.mrf.mxu0
      %6268 = vmatprep.mubr.bf16.mxu0 %v1318
      %6269 = vmatmul.mubr.bf16.gmra.mxu0 %v1207
      %v6270 = vpop.f32.mrf.mxu0
      %v6271 = vadd.f32 0.0, %v6270
      %v6272 = vpop.f32.mrf.mxu0
      %v6273 = vpop.f32.mrf.mxu0
      %v6274 = vadd.f32 0.0, %v6273
      %v6275 = vpop.f32.mrf.mxu0
      %6276 = vmatprep.mubr.bf16.mxu0 %v1321
      %6277 = vmatmul.mubr.bf16.gmra.mxu0 %v1217
      %v6278 = vpop.f32.mrf.mxu0
      %v6279 = vadd.f32 0.0, %v6278
      %v6280 = vpop.f32.mrf.mxu0
      %v6281 = vpop.f32.mrf.mxu0
      %v6282 = vadd.f32 0.0, %v6281
      %v6283 = vpop.f32.mrf.mxu0
      %6284 = vmatprep.mubr.bf16.mxu0 %v1324
      %6285 = vmatmul.mubr.bf16.gmra.mxu0 %v1227
      %v6286 = vpop.f32.mrf.mxu0
      %v6287 = vadd.f32 0.0, %v6286
      %v6288 = vpop.f32.mrf.mxu0
      %v6289 = vpop.f32.mrf.mxu0
      %v6290 = vadd.f32 0.0, %v6289
      %v6291 = vpop.f32.mrf.mxu0
      %6292 = vmatprep.mubr.bf16.mxu0 %v1662
      %6293 = vmatmul.mubr.bf16.gmra.mxu0 %v1656
      %v6294 = vpop.f32.mrf.mxu0
      %v6295 = vadd.f32 0.0, %v6294
      %v6296 = vpop.f32.mrf.mxu0
      %v6297 = vpop.f32.mrf.mxu0
      %v6298 = vadd.f32 0.0, %v6297
      %v6299 = vpop.f32.mrf.mxu0
      %6300 = vmatprep.mubr.bf16.mxu0 %v3267
      %6301 = vmatmul.mubr.bf16.gmra.mxu0 %v3261
      %v6302 = vpop.f32.mrf.mxu0
      %v6303 = vadd.f32 0.0, %v6302
      %v6304 = vpop.f32.mrf.mxu0
      %v6305 = vpop.f32.mrf.mxu0
      %v6306 = vadd.f32 0.0, %v6305
      %v6307 = vpop.f32.mrf.mxu0
      %6308 = vmatprep.mubr.bf16.mxu0 %v5113
      %6309 = vmatmul.mubr.bf16.gmra.mxu0 %v5107
      %v6310 = vpop.f32.mrf.mxu0
      %v6311 = vadd.f32 0.0, %v6310
      %v6312 = vpop.f32.mrf.mxu0
      %v6313 = vpop.f32.mrf.mxu0
      %v6314 = vadd.f32 0.0, %v6313
      %v6315 = vpop.f32.mrf.mxu0
      %6316 = vdwg.mxu0
      %6317 = vmatprep.subr.bf16.mxu0 0
      %6318 = vmatpush1.bf16.msra.mxu0 %v6131
      %6319 = vmatprep.subr.bf16.mxu0 0
      %6320 = vmatpush1.bf16.msra.mxu0 %v6130
      %6321 = vmatprep.subr.bf16.mxu0 0
      %6322 = vmatpush1.bf16.msra.mxu0 %v6129
      %6323 = vmatprep.subr.bf16.mxu0 0
      %6324 = vmatpush1.bf16.msra.mxu0 %v6128
      %6325 = vmatprep.subr.bf16.mxu0 0
      %6326 = vmatpush1.bf16.msra.mxu0 %v6127
      %6327 = vmatprep.subr.bf16.mxu0 0
      %6328 = vmatpush1.bf16.msra.mxu0 %v6126
      %6329 = vmatprep.subr.bf16.mxu0 0
      %6330 = vmatpush1.bf16.msra.mxu0 %v6125
      %6331 = vmatprep.subr.bf16.mxu0 0
      %6332 = vmatpush1.bf16.msra.mxu0 %v6124
      %6333 = vmatprep.subr.bf16.mxu0 0
      %6334 = vmatpush2.bf16.msra.mxu0 0
      %6335 = vmatprep.subr.bf16.mxu0 0
      %6336 = vmatpush2.bf16.msra.mxu0 0
      %6337 = vmatprep.subr.bf16.mxu0 0
      %6338 = vmatpush2.bf16.msra.mxu0 0
      %6339 = vmatprep.subr.bf16.mxu0 0
      %6340 = vmatpush2.bf16.msra.mxu0 0
      %6341 = vmatprep.subr.bf16.mxu0 0
      %6342 = vmatpush2.bf16.msra.mxu0 0
      %6343 = vmatprep.subr.bf16.mxu0 0
      %6344 = vmatpush2.bf16.msra.mxu0 0
      %6345 = vmatprep.subr.bf16.mxu0 0
      %6346 = vmatpush2.bf16.msra.mxu0 0
      %6347 = vmatprep.subr.bf16.mxu0 0
      %6348 = vmatpush2.bf16.msra.mxu0 0
      %6349 = vmatprep.mubr.bf16.mxu0 0
      %6350 = vmatmul.mubr.bf16.gmra.mxu0 %v1377
      %v6351 = vpop.f32.mrf.mxu0
      %v6352 = vadd.f32 %v6191, %v6351
      %v6353 = vpop.f32.mrf.mxu0
      %v6354 = vpop.f32.mrf.mxu0
      %v6355 = vadd.f32 %v6194, %v6354
      %v6356 = vpop.f32.mrf.mxu0
      %6357 = vmatprep.mubr.bf16.mxu0 0
      %6358 = vmatmul.mubr.bf16.gmra.mxu0 %v1386
      %v6359 = vpop.f32.mrf.mxu0
      %v6360 = vadd.f32 %v6199, %v6359
      %v6361 = vpop.f32.mrf.mxu0
      %v6362 = vpop.f32.mrf.mxu0
      %v6363 = vadd.f32 %v6202, %v6362
      %v6364 = vpop.f32.mrf.mxu0
      %6365 = vmatprep.mubr.bf16.mxu0 0
      %6366 = vmatmul.mubr.bf16.gmra.mxu0 %v1395
      %v6367 = vpop.f32.mrf.mxu0
      %v6368 = vadd.f32 %v6207, %v6367
      %v6369 = vpop.f32.mrf.mxu0
      %v6370 = vpop.f32.mrf.mxu0
      %v6371 = vadd.f32 %v6210, %v6370
      %v6372 = vpop.f32.mrf.mxu0
      %6373 = vmatprep.mubr.bf16.mxu0 0
      %6374 = vmatmul.mubr.bf16.gmra.mxu0 %v1404
      %v6375 = vpop.f32.mrf.mxu0
      %v6376 = vadd.f32 %v6215, %v6375
      %v6377 = vpop.f32.mrf.mxu0
      %v6378 = vpop.f32.mrf.mxu0
      %v6379 = vadd.f32 %v6218, %v6378
      %v6380 = vpop.f32.mrf.mxu0
      %6381 = vmatprep.mubr.bf16.mxu0 0
      %6382 = vmatmul.mubr.bf16.gmra.mxu0 %v1413
      %v6383 = vpop.f32.mrf.mxu0
      %v6384 = vadd.f32 %v6223, %v6383
      %v6385 = vpop.f32.mrf.mxu0
      %v6386 = vpop.f32.mrf.mxu0
      %v6387 = vadd.f32 %v6226, %v6386
      %v6388 = vpop.f32.mrf.mxu0
      %6389 = vmatprep.mubr.bf16.mxu0 0
      %6390 = vmatmul.mubr.bf16.gmra.mxu0 %v1422
      %v6391 = vpop.f32.mrf.mxu0
      %v6392 = vadd.f32 %v6231, %v6391
      %v6393 = vpop.f32.mrf.mxu0
      %v6394 = vpop.f32.mrf.mxu0
      %v6395 = vadd.f32 %v6234, %v6394
      %v6396 = vpop.f32.mrf.mxu0
      %6397 = vmatprep.mubr.bf16.mxu0 0
      %6398 = vmatmul.mubr.bf16.gmra.mxu0 %v1431
      %v6399 = vpop.f32.mrf.mxu0
      %v6400 = vadd.f32 %v6239, %v6399
      %v6401 = vpop.f32.mrf.mxu0
      %v6402 = vpop.f32.mrf.mxu0
      %v6403 = vadd.f32 %v6242, %v6402
      %v6404 = vpop.f32.mrf.mxu0
      %6405 = vmatprep.mubr.bf16.mxu0 0
      %6406 = vmatmul.mubr.bf16.gmra.mxu0 %v1440
      %v6407 = vpop.f32.mrf.mxu0
      %v6408 = vadd.f32 %v6247, %v6407
      %v6409 = vpop.f32.mrf.mxu0
      %v6410 = vpop.f32.mrf.mxu0
      %v6411 = vadd.f32 %v6250, %v6410
      %v6412 = vpop.f32.mrf.mxu0
      %6413 = vmatprep.mubr.bf16.mxu0 0
      %6414 = vmatmul.mubr.bf16.gmra.mxu0 %v1449
      %v6415 = vpop.f32.mrf.mxu0
      %v6416 = vadd.f32 %v6255, %v6415
      %v6417 = vpop.f32.mrf.mxu0
      %v6418 = vpop.f32.mrf.mxu0
      %v6419 = vadd.f32 %v6258, %v6418
      %v6420 = vpop.f32.mrf.mxu0
      %6421 = vmatprep.mubr.bf16.mxu0 0
      %6422 = vmatmul.mubr.bf16.gmra.mxu0 %v1458
      %v6423 = vpop.f32.mrf.mxu0
      %v6424 = vadd.f32 %v6263, %v6423
      %v6425 = vpop.f32.mrf.mxu0
      %v6426 = vpop.f32.mrf.mxu0
      %v6427 = vadd.f32 %v6266, %v6426
      %v6428 = vpop.f32.mrf.mxu0
      %6429 = vmatprep.mubr.bf16.mxu0 0
      %6430 = vmatmul.mubr.bf16.gmra.mxu0 %v1467
      %v6431 = vpop.f32.mrf.mxu0
      %v6432 = vadd.f32 %v6271, %v6431
      %v6433 = vpop.f32.mrf.mxu0
      %v6434 = vpop.f32.mrf.mxu0
      %v6435 = vadd.f32 %v6274, %v6434
      %v6436 = vpop.f32.mrf.mxu0
      %6437 = vmatprep.mubr.bf16.mxu0 0
      %6438 = vmatmul.mubr.bf16.gmra.mxu0 %v1476
      %v6439 = vpop.f32.mrf.mxu0
      %v6440 = vadd.f32 %v6279, %v6439
      %v6441 = vpop.f32.mrf.mxu0
      %v6442 = vpop.f32.mrf.mxu0
      %v6443 = vadd.f32 %v6282, %v6442
      %v6444 = vpop.f32.mrf.mxu0
      %6445 = vmatprep.mubr.bf16.mxu0 0
      %6446 = vmatmul.mubr.bf16.gmra.mxu0 %v1485
      %v6447 = vpop.f32.mrf.mxu0
      %v6448 = vadd.f32 %v6287, %v6447
      %v6449 = vpop.f32.mrf.mxu0
      %v6450 = vpop.f32.mrf.mxu0
      %v6451 = vadd.f32 %v6290, %v6450
      %v6452 = vpop.f32.mrf.mxu0
      %6453 = vmatprep.mubr.bf16.mxu0 0
      %6454 = vmatmul.mubr.bf16.gmra.mxu0 %v1672
      %v6455 = vpop.f32.mrf.mxu0
      %v6456 = vadd.f32 %v6295, %v6455
      %v6457 = vpop.f32.mrf.mxu0
      %v6458 = vpop.f32.mrf.mxu0
      %v6459 = vadd.f32 %v6298, %v6458
      %v6460 = vpop.f32.mrf.mxu0
      %6461 = vmatprep.mubr.bf16.mxu0 0
      %6462 = vmatmul.mubr.bf16.gmra.mxu0 %v3277
      %v6463 = vpop.f32.mrf.mxu0
      %v6464 = vadd.f32 %v6303, %v6463
      %v6465 = vpop.f32.mrf.mxu0
      %v6466 = vpop.f32.mrf.mxu0
      %v6467 = vadd.f32 %v6306, %v6466
      %v6468 = vpop.f32.mrf.mxu0
      %6469 = vmatprep.mubr.bf16.mxu0 0
      %6470 = vmatmul.mubr.bf16.gmra.mxu0 %v5123
      %v6471 = vpop.f32.mrf.mxu0
      %v6472 = vadd.f32 %v6311, %v6471
      %v6473 = vpop.f32.mrf.mxu0
      %v6474 = vpop.f32.mrf.mxu0
      %v6475 = vadd.f32 %v6314, %v6474
      %v6476 = vpop.f32.mrf.mxu0
      %6477 = vdwg.mxu0
      %v6478 = vadd.f32 %v4972, %v6352
      %v6479 = vadd.f32 %v4975, %v6355
      %v6480 = vadd.f32 %v4980, %v6360
      %v6481 = vadd.f32 %v4983, %v6363
      %v6482 = vadd.f32 %v4988, %v6368
      %v6483 = vadd.f32 %v4991, %v6371
      %v6484 = vadd.f32 %v4996, %v6376
      %v6485 = vadd.f32 %v4999, %v6379
      %v6486 = vadd.f32 %v5004, %v6384
      %v6487 = vadd.f32 %v5007, %v6387
      %v6488 = vadd.f32 %v5012, %v6392
      %v6489 = vadd.f32 %v5015, %v6395
      %v6490 = vadd.f32 %v5020, %v6400
      %v6491 = vadd.f32 %v5023, %v6403
      %v6492 = vadd.f32 %v5028, %v6408
      %v6493 = vadd.f32 %v5031, %v6411
      %v6494 = vadd.f32 %v5036, %v6416
      %v6495 = vadd.f32 %v5039, %v6419
      %v6496 = vadd.f32 %v5044, %v6424
      %v6497 = vadd.f32 %v5047, %v6427
      %v6498 = vadd.f32 %v5052, %v6432
      %v6499 = vadd.f32 %v5055, %v6435
      %v6500 = vadd.f32 %v5060, %v6440
      %v6501 = vadd.f32 %v5063, %v6443
      %v6502 = vadd.f32 %v5068, %v6448
      %v6503 = vadd.f32 %v5071, %v6451
      %v6504 = vadd.f32 %v5076, %v6456
      %v6505 = vadd.f32 %v5079, %v6459
      %v6506 = vadd.f32 %v5084, %v6464
      %v6507 = vadd.f32 %v5087, %v6467
      %v6508 = vadd.f32 %v5092, %v6472
      %v6509 = vadd.f32 %v5095, %v6475
      %v6510 = vshrl.u32 %v1045, 16
      %v6512 = vshll.u32 %v1045, 16
      %v6514 = vrot.slane %v6512, 1
      %v6515 = vor.u32 %v6510, %v6514
      %v6516 = vshll.u32 %v1066, 16
      %v6518 = vrot.slane %v6516, 1
      %v6519 = vsel %vm1067, %v6515, %v6518
      %v6523 = vrot.slane %v1045, 1
      %v6524 = vrot.slane %v1066, 1
      %v6525 = vsel %vm1276, %v6523, %v6524
      %v6527 = vrot.slane %v6510, 1
      %v6528 = vrot.slane %v6512, 2
      %v6529 = vor.u32 %v6527, %v6528
      %v6530 = vshrl.u32 %v1066, 16
      %v6532 = vrot.slane %v6530, 1
      %v6533 = vrot.slane %v6516, 2
      %v6534 = vor.u32 %v6532, %v6533
      %v6535 = vsel %vm1341, %v6529, %v6534
      %v6537 = vrot.slane %v1045, 2
      %v6538 = vrot.slane %v1066, 2
      %v6539 = vsel %vm1502, %v6537, %v6538
      %v6541 = vld [vmem:[%s3 + $0x500] sm:$0xf]
      %v6542 = vld [vmem:[%s3 + $0x504] sm:$0xf]
      %v6543 = vld [vmem:[%s3 + $0x508] sm:$0xf]
      %v6544 = vld [vmem:[%s3 + $0x50c] sm:$0xf]
      %v6545 = vld [vmem:[%s3 + $0x510] sm:$0xf]
      %v6546 = vld [vmem:[%s3 + $0x514] sm:$0xf]
      %v6547 = vld [vmem:[%s3 + $0x518] sm:$0xf]
      %v6548 = vld [vmem:[%s3 + $0x51c] sm:$0xf]
      %v6549 = vld [vmem:[%s3 + $0x520] sm:$0xf]
      %v6550 = vld [vmem:[%s3 + $0x524] sm:$0xf]
      %v6551 = vld [vmem:[%s3 + $0x528] sm:$0xf]
      %v6552 = vld [vmem:[%s3 + $0x52c] sm:$0xf]
      %v6553 = vld [vmem:[%s3 + $0x530] sm:$0xf]
      %v6554 = vld [vmem:[%s3 + $0x534] sm:$0xf]
      %v6555 = vld [vmem:[%s3 + $0x538] sm:$0xf]
      %v6556 = vld [vmem:[%s3 + $0x53c] sm:$0xf]
      %v6557 = vld [vmem:[%s3 + $0x540] sm:$0xf]
      %v6558 = vld [vmem:[%s3 + $0x544] sm:$0xf]
      %v6559 = vld [vmem:[%s3 + $0x548] sm:$0xf]
      %v6560 = vld [vmem:[%s3 + $0x54c] sm:$0xf]
      %v6561 = vld [vmem:[%s3 + $0x550] sm:$0xf]
      %v6562 = vld [vmem:[%s3 + $0x554] sm:$0xf]
      %v6563 = vld [vmem:[%s3 + $0x558] sm:$0xf]
      %v6564 = vld [vmem:[%s3 + $0x55c] sm:$0xf]
      %v6565 = vld [vmem:[%s3 + $0x560] sm:$0xf]
      %v6566 = vld [vmem:[%s3 + $0x564] sm:$0xf]
      %v6567 = vld [vmem:[%s3 + $0x568] sm:$0xf]
      %v6568 = vld [vmem:[%s3 + $0x56c] sm:$0xf]
      %v6569 = vld [vmem:[%s3 + $0x570] sm:$0xf]
      %v6570 = vld [vmem:[%s3 + $0x574] sm:$0xf]
      %v6571 = vld [vmem:[%s3 + $0x578] sm:$0xf]
      %v6572 = vld [vmem:[%s3 + $0x57c] sm:$0xf]
      %v6573 = vld [vmem:[%s3 + $0x580] sm:$0xf]
      %v6574 = vld [vmem:[%s3 + $0x584] sm:$0xf]
      %v6575 = vld [vmem:[%s3 + $0x588] sm:$0xf]
      %v6576 = vld [vmem:[%s3 + $0x58c] sm:$0xf]
      %v6577 = vld [vmem:[%s3 + $0x590] sm:$0xf]
      %v6578 = vld [vmem:[%s3 + $0x594] sm:$0xf]
      %v6579 = vld [vmem:[%s3 + $0x598] sm:$0xf]
      %v6580 = vld [vmem:[%s3 + $0x59c] sm:$0xf]
      %v6581 = vld [vmem:[%s3 + $0x5a0] sm:$0xf]
      %v6582 = vld [vmem:[%s3 + $0x5a4] sm:$0xf]
      %v6583 = vld [vmem:[%s3 + $0x5a8] sm:$0xf]
      %v6584 = vld [vmem:[%s3 + $0x5ac] sm:$0xf]
      %v6585 = vld [vmem:[%s3 + $0x5b0] sm:$0xf]
      %v6586 = vld [vmem:[%s3 + $0x5b4] sm:$0xf]
      %v6587 = vld [vmem:[%s3 + $0x5b8] sm:$0xf]
      %v6588 = vld [vmem:[%s3 + $0x5bc] sm:$0xf]
      %v6589 = vld [vmem:[%s3 + $0x5c0] sm:$0xf]
      %v6590 = vld [vmem:[%s3 + $0x5c4] sm:$0xf]
      %v6591 = vld [vmem:[%s3 + $0x5c8] sm:$0xf]
      %v6592 = vld [vmem:[%s3 + $0x5cc] sm:$0xf]
      %v6593 = vld [vmem:[%s3 + $0x5d0] sm:$0xf]
      %v6594 = vld [vmem:[%s3 + $0x5d4] sm:$0xf]
      %v6595 = vld [vmem:[%s3 + $0x5d8] sm:$0xf]
      %v6596 = vld [vmem:[%s3 + $0x5dc] sm:$0xf]
      %v6597 = vld [vmem:[%s3 + $0x5e0] sm:$0xf]
      %v6598 = vld [vmem:[%s3 + $0x5e4] sm:$0xf]
      %v6599 = vld [vmem:[%s3 + $0x5e8] sm:$0xf]
      %v6600 = vld [vmem:[%s3 + $0x5ec] sm:$0xf]
      %v6601 = vld [vmem:[%s3 + $0x5f0] sm:$0xf]
      %v6602 = vld [vmem:[%s3 + $0x5f4] sm:$0xf]
      %v6603 = vld [vmem:[%s3 + $0x5f8] sm:$0xf]
      %v6604 = vld [vmem:[%s3 + $0x5fc] sm:$0xf]
      %v6605 = vld [vmem:[%s3 + $0x600] sm:$0xf]
      %v6606 = vld [vmem:[%s3 + $0x604] sm:$0xf]
      %v6607 = vld [vmem:[%s3 + $0x608] sm:$0xf]
      %v6608 = vld [vmem:[%s3 + $0x60c] sm:$0xf]
      %v6609 = vld [vmem:[%s3 + $0x610] sm:$0xf]
      %v6610 = vld [vmem:[%s3 + $0x614] sm:$0xf]
      %v6611 = vld [vmem:[%s3 + $0x618] sm:$0xf]
      %v6612 = vld [vmem:[%s3 + $0x61c] sm:$0xf]
      %v6613 = vld [vmem:[%s3 + $0x620] sm:$0xf]
      %v6614 = vld [vmem:[%s3 + $0x624] sm:$0xf]
      %v6615 = vld [vmem:[%s3 + $0x628] sm:$0xf]
      %v6616 = vld [vmem:[%s3 + $0x62c] sm:$0xf]
      %v6617 = vld [vmem:[%s3 + $0x630] sm:$0xf]
      %v6618 = vld [vmem:[%s3 + $0x634] sm:$0xf]
      %v6619 = vld [vmem:[%s3 + $0x638] sm:$0xf]
      %v6620 = vld [vmem:[%s3 + $0x63c] sm:$0xf]
      %v6701 = vunpack.c.l.b16 %v6541
      %v6702 = vunpack.c.l.b16 %v6542
      %v6703 = vunpack.c.l.b16 %v6543
      %v6704 = vunpack.c.l.b16 %v6544
      %v6705 = vunpack.c.l.b16 %v6545
      %v6706 = vunpack.c.l.b16 %v6546
      %v6707 = vunpack.c.l.b16 %v6547
      %v6708 = vunpack.c.l.b16 %v6548
      %v6709 = vunpack.c.l.b16 %v6549
      %v6710 = vunpack.c.l.b16 %v6550
      %v6711 = vunpack.c.l.b16 %v6551
      %v6712 = vunpack.c.l.b16 %v6552
      %v6713 = vunpack.c.l.b16 %v6553
      %v6714 = vunpack.c.l.b16 %v6554
      %v6715 = vunpack.c.l.b16 %v6555
      %v6716 = vunpack.c.l.b16 %v6556
      %v6717 = vunpack.c.l.b16 %v6557
      %v6718 = vunpack.c.l.b16 %v6558
      %v6719 = vunpack.c.l.b16 %v6559
      %v6720 = vunpack.c.l.b16 %v6560
      %v6721 = vunpack.c.l.b16 %v6561
      %v6722 = vunpack.c.l.b16 %v6562
      %v6723 = vunpack.c.l.b16 %v6563
      %v6724 = vunpack.c.l.b16 %v6564
      %v6725 = vunpack.c.l.b16 %v6565
      %v6726 = vunpack.c.l.b16 %v6566
      %v6727 = vunpack.c.l.b16 %v6567
      %v6728 = vunpack.c.l.b16 %v6568
      %v6729 = vunpack.c.l.b16 %v6569
      %v6730 = vunpack.c.l.b16 %v6570
      %v6731 = vunpack.c.l.b16 %v6571
      %v6732 = vunpack.c.l.b16 %v6572
      %v6733 = vunpack.c.l.b16 %v6573
      %v6734 = vunpack.c.l.b16 %v6574
      %v6735 = vunpack.c.l.b16 %v6575
      %v6736 = vunpack.c.l.b16 %v6576
      %v6737 = vunpack.c.l.b16 %v6577
      %v6738 = vunpack.c.l.b16 %v6578
      %v6739 = vunpack.c.l.b16 %v6579
      %v6740 = vunpack.c.l.b16 %v6580
      %v6741 = vunpack.c.l.b16 %v6581
      %v6742 = vunpack.c.l.b16 %v6582
      %v6743 = vunpack.c.l.b16 %v6583
      %v6744 = vunpack.c.l.b16 %v6584
      %v6745 = vunpack.c.l.b16 %v6585
      %v6746 = vunpack.c.l.b16 %v6586
      %v6747 = vunpack.c.l.b16 %v6587
      %v6748 = vunpack.c.l.b16 %v6588
      %v6749 = vunpack.c.l.b16 %v6589
      %v6750 = vunpack.c.l.b16 %v6590
      %v6751 = vunpack.c.l.b16 %v6591
      %v6752 = vunpack.c.l.b16 %v6592
      %v6753 = vunpack.c.l.b16 %v6593
      %v6754 = vunpack.c.l.b16 %v6594
      %v6755 = vunpack.c.l.b16 %v6595
      %v6756 = vunpack.c.l.b16 %v6596
      %v6757 = vunpack.c.l.b16 %v6597
      %v6758 = vunpack.c.l.b16 %v6598
      %v6759 = vunpack.c.l.b16 %v6599
      %v6760 = vunpack.c.l.b16 %v6600
      %v6761 = vunpack.c.l.b16 %v6601
      %v6762 = vunpack.c.l.b16 %v6602
      %v6763 = vunpack.c.l.b16 %v6603
      %v6764 = vunpack.c.l.b16 %v6604
      %v6765 = vunpack.c.l.b16 %v6605
      %v6766 = vunpack.c.l.b16 %v6606
      %v6767 = vunpack.c.l.b16 %v6607
      %v6768 = vunpack.c.l.b16 %v6608
      %v6769 = vunpack.c.l.b16 %v6609
      %v6770 = vunpack.c.l.b16 %v6610
      %v6771 = vunpack.c.l.b16 %v6611
      %v6772 = vunpack.c.l.b16 %v6612
      %v6773 = vunpack.c.l.b16 %v6613
      %v6774 = vunpack.c.l.b16 %v6614
      %v6775 = vunpack.c.l.b16 %v6615
      %v6776 = vunpack.c.l.b16 %v6616
      %v6777 = vunpack.c.l.b16 %v6617
      %v6778 = vunpack.c.l.b16 %v6618
      %v6779 = vunpack.c.l.b16 %v6619
      %v6780 = vunpack.c.l.b16 %v6620
      %v6781 = vpack.c.b16 %v6702, %v6701
      %v6782 = vpack.c.b16 %v6704, %v6703
      %v6783 = vpack.c.b16 %v6706, %v6705
      %v6784 = vpack.c.b16 %v6708, %v6707
      %v6785 = vpack.c.b16 %v6710, %v6709
      %v6786 = vpack.c.b16 %v6712, %v6711
      %v6787 = vpack.c.b16 %v6714, %v6713
      %v6788 = vpack.c.b16 %v6716, %v6715
      %v6789 = vpack.c.b16 %v6718, %v6717
      %v6790 = vpack.c.b16 %v6720, %v6719
      %v6791 = vpack.c.b16 %v6722, %v6721
      %v6792 = vpack.c.b16 %v6724, %v6723
      %v6793 = vpack.c.b16 %v6726, %v6725
      %v6794 = vpack.c.b16 %v6728, %v6727
      %v6795 = vpack.c.b16 %v6730, %v6729
      %v6796 = vpack.c.b16 %v6732, %v6731
      %v6797 = vpack.c.b16 %v6734, %v6733
      %v6798 = vpack.c.b16 %v6736, %v6735
      %v6799 = vpack.c.b16 %v6738, %v6737
      %v6800 = vpack.c.b16 %v6740, %v6739
      %v6801 = vpack.c.b16 %v6742, %v6741
      %v6802 = vpack.c.b16 %v6744, %v6743
      %v6803 = vpack.c.b16 %v6746, %v6745
      %v6804 = vpack.c.b16 %v6748, %v6747
      %v6805 = vpack.c.b16 %v6750, %v6749
      %v6806 = vpack.c.b16 %v6752, %v6751
      %v6807 = vpack.c.b16 %v6754, %v6753
      %v6808 = vpack.c.b16 %v6756, %v6755
      %v6809 = vpack.c.b16 %v6758, %v6757
      %v6810 = vpack.c.b16 %v6760, %v6759
      %v6811 = vpack.c.b16 %v6762, %v6761
      %v6812 = vpack.c.b16 %v6764, %v6763
      %v6813 = vpack.c.b16 %v6766, %v6765
      %v6814 = vpack.c.b16 %v6768, %v6767
      %v6815 = vpack.c.b16 %v6770, %v6769
      %v6816 = vpack.c.b16 %v6772, %v6771
      %v6817 = vpack.c.b16 %v6774, %v6773
      %v6818 = vpack.c.b16 %v6776, %v6775
      %v6819 = vpack.c.b16 %v6778, %v6777
      %v6820 = vpack.c.b16 %v6780, %v6779
      %6861 = vmatprep.subr.bf16.mxu0 0
      %6862 = vmatpush1.bf16.msra.mxu0 %v6788
      %6863 = vmatprep.subr.bf16.mxu0 0
      %6864 = vmatpush1.bf16.msra.mxu0 %v6787
      %6865 = vmatprep.subr.bf16.mxu0 0
      %6866 = vmatpush1.bf16.msra.mxu0 %v6786
      %6867 = vmatprep.subr.bf16.mxu0 0
      %6868 = vmatpush1.bf16.msra.mxu0 %v6785
      %6869 = vmatprep.subr.bf16.mxu0 0
      %6870 = vmatpush1.bf16.msra.mxu0 %v6784
      %6871 = vmatprep.subr.bf16.mxu0 0
      %6872 = vmatpush1.bf16.msra.mxu0 %v6783
      %6873 = vmatprep.subr.bf16.mxu0 0
      %6874 = vmatpush1.bf16.msra.mxu0 %v6782
      %6875 = vmatprep.subr.bf16.mxu0 0
      %6876 = vmatpush1.bf16.msra.mxu0 %v6781
      %6877 = vmatprep.subr.bf16.mxu0 0
      %6878 = vmatpush2.bf16.msra.mxu0 %v6796
      %6879 = vmatprep.subr.bf16.mxu0 0
      %6880 = vmatpush2.bf16.msra.mxu0 %v6795
      %6881 = vmatprep.subr.bf16.mxu0 0
      %6882 = vmatpush2.bf16.msra.mxu0 %v6794
      %6883 = vmatprep.subr.bf16.mxu0 0
      %6884 = vmatpush2.bf16.msra.mxu0 %v6793
      %6885 = vmatprep.subr.bf16.mxu0 0
      %6886 = vmatpush2.bf16.msra.mxu0 %v6792
      %6887 = vmatprep.subr.bf16.mxu0 0
      %6888 = vmatpush2.bf16.msra.mxu0 %v6791
      %6889 = vmatprep.subr.bf16.mxu0 0
      %6890 = vmatpush2.bf16.msra.mxu0 %v6790
      %6891 = vmatprep.subr.bf16.mxu0 0
      %6892 = vmatpush2.bf16.msra.mxu0 %v6789
      %6893 = vmatprep.mubr.bf16.mxu0 %v1117
      %6894 = vmatmul.mubr.bf16.gmra.mxu0 %v1000
      %v6895 = vpop.f32.mrf.mxu0
      %v6896 = vadd.f32 0.0, %v6895
      %v6897 = vpop.f32.mrf.mxu0
      %v6898 = vpop.f32.mrf.mxu0
      %v6899 = vadd.f32 0.0, %v6898
      %v6900 = vpop.f32.mrf.mxu0
      %6901 = vmatprep.mubr.bf16.mxu0 %v1127
      %6902 = vmatmul.mubr.bf16.gmra.mxu0 %v1003
      %v6903 = vpop.f32.mrf.mxu0
      %v6904 = vadd.f32 0.0, %v6903
      %v6905 = vpop.f32.mrf.mxu0
      %v6906 = vpop.f32.mrf.mxu0
      %v6907 = vadd.f32 0.0, %v6906
      %v6908 = vpop.f32.mrf.mxu0
      %6909 = vmatprep.mubr.bf16.mxu0 %v1137
      %6910 = vmatmul.mubr.bf16.gmra.mxu0 %v1006
      %v6911 = vpop.f32.mrf.mxu0
      %v6912 = vadd.f32 0.0, %v6911
      %v6913 = vpop.f32.mrf.mxu0
      %v6914 = vpop.f32.mrf.mxu0
      %v6915 = vadd.f32 0.0, %v6914
      %v6916 = vpop.f32.mrf.mxu0
      %6917 = vmatprep.mubr.bf16.mxu0 %v1147
      %6918 = vmatmul.mubr.bf16.gmra.mxu0 %v1009
      %v6919 = vpop.f32.mrf.mxu0
      %v6920 = vadd.f32 0.0, %v6919
      %v6921 = vpop.f32.mrf.mxu0
      %v6922 = vpop.f32.mrf.mxu0
      %v6923 = vadd.f32 0.0, %v6922
      %v6924 = vpop.f32.mrf.mxu0
      %6925 = vmatprep.mubr.bf16.mxu0 %v1157
      %6926 = vmatmul.mubr.bf16.gmra.mxu0 %v1012
      %v6927 = vpop.f32.mrf.mxu0
      %v6928 = vadd.f32 0.0, %v6927
      %v6929 = vpop.f32.mrf.mxu0
      %v6930 = vpop.f32.mrf.mxu0
      %v6931 = vadd.f32 0.0, %v6930
      %v6932 = vpop.f32.mrf.mxu0
      %6933 = vmatprep.mubr.bf16.mxu0 %v1167
      %6934 = vmatmul.mubr.bf16.gmra.mxu0 %v1015
      %v6935 = vpop.f32.mrf.mxu0
      %v6936 = vadd.f32 0.0, %v6935
      %v6937 = vpop.f32.mrf.mxu0
      %v6938 = vpop.f32.mrf.mxu0
      %v6939 = vadd.f32 0.0, %v6938
      %v6940 = vpop.f32.mrf.mxu0
      %6941 = vmatprep.mubr.bf16.mxu0 %v1177
      %6942 = vmatmul.mubr.bf16.gmra.mxu0 %v1018
      %v6943 = vpop.f32.mrf.mxu0
      %v6944 = vadd.f32 0.0, %v6943
      %v6945 = vpop.f32.mrf.mxu0
      %v6946 = vpop.f32.mrf.mxu0
      %v6947 = vadd.f32 0.0, %v6946
      %v6948 = vpop.f32.mrf.mxu0
      %6949 = vmatprep.mubr.bf16.mxu0 %v1187
      %6950 = vmatmul.mubr.bf16.gmra.mxu0 %v1021
      %v6951 = vpop.f32.mrf.mxu0
      %v6952 = vadd.f32 0.0, %v6951
      %v6953 = vpop.f32.mrf.mxu0
      %v6954 = vpop.f32.mrf.mxu0
      %v6955 = vadd.f32 0.0, %v6954
      %v6956 = vpop.f32.mrf.mxu0
      %6957 = vmatprep.mubr.bf16.mxu0 %v1197
      %6958 = vmatmul.mubr.bf16.gmra.mxu0 %v1024
      %v6959 = vpop.f32.mrf.mxu0
      %v6960 = vadd.f32 0.0, %v6959
      %v6961 = vpop.f32.mrf.mxu0
      %v6962 = vpop.f32.mrf.mxu0
      %v6963 = vadd.f32 0.0, %v6962
      %v6964 = vpop.f32.mrf.mxu0
      %6965 = vmatprep.mubr.bf16.mxu0 %v1207
      %6966 = vmatmul.mubr.bf16.gmra.mxu0 %v1027
      %v6967 = vpop.f32.mrf.mxu0
      %v6968 = vadd.f32 0.0, %v6967
      %v6969 = vpop.f32.mrf.mxu0
      %v6970 = vpop.f32.mrf.mxu0
      %v6971 = vadd.f32 0.0, %v6970
      %v6972 = vpop.f32.mrf.mxu0
      %6973 = vmatprep.mubr.bf16.mxu0 %v1217
      %6974 = vmatmul.mubr.bf16.gmra.mxu0 %v1030
      %v6975 = vpop.f32.mrf.mxu0
      %v6976 = vadd.f32 0.0, %v6975
      %v6977 = vpop.f32.mrf.mxu0
      %v6978 = vpop.f32.mrf.mxu0
      %v6979 = vadd.f32 0.0, %v6978
      %v6980 = vpop.f32.mrf.mxu0
      %6981 = vmatprep.mubr.bf16.mxu0 %v1227
      %6982 = vmatmul.mubr.bf16.gmra.mxu0 %v1033
      %v6983 = vpop.f32.mrf.mxu0
      %v6984 = vadd.f32 0.0, %v6983
      %v6985 = vpop.f32.mrf.mxu0
      %v6986 = vpop.f32.mrf.mxu0
      %v6987 = vadd.f32 0.0, %v6986
      %v6988 = vpop.f32.mrf.mxu0
      %6989 = vmatprep.mubr.bf16.mxu0 %v1656
      %6990 = vmatmul.mubr.bf16.gmra.mxu0 %v1036
      %v6991 = vpop.f32.mrf.mxu0
      %v6992 = vadd.f32 0.0, %v6991
      %v6993 = vpop.f32.mrf.mxu0
      %v6994 = vpop.f32.mrf.mxu0
      %v6995 = vadd.f32 0.0, %v6994
      %v6996 = vpop.f32.mrf.mxu0
      %6997 = vmatprep.mubr.bf16.mxu0 %v3261
      %6998 = vmatmul.mubr.bf16.gmra.mxu0 %v1039
      %v6999 = vpop.f32.mrf.mxu0
      %v7000 = vadd.f32 0.0, %v6999
      %v7001 = vpop.f32.mrf.mxu0
      %v7002 = vpop.f32.mrf.mxu0
      %v7003 = vadd.f32 0.0, %v7002
      %v7004 = vpop.f32.mrf.mxu0
      %7005 = vmatprep.mubr.bf16.mxu0 %v5107
      %7006 = vmatmul.mubr.bf16.gmra.mxu0 %v1042
      %v7007 = vpop.f32.mrf.mxu0
      %v7008 = vadd.f32 0.0, %v7007
      %v7009 = vpop.f32.mrf.mxu0
      %v7010 = vpop.f32.mrf.mxu0
      %v7011 = vadd.f32 0.0, %v7010
      %v7012 = vpop.f32.mrf.mxu0
      %7013 = vmatprep.mubr.bf16.mxu0 %v6519
      %7014 = vmatmul.mubr.bf16.gmra.mxu0 %v1045
      %v7015 = vpop.f32.mrf.mxu0
      %v7016 = vadd.f32 0.0, %v7015
      %v7017 = vpop.f32.mrf.mxu0
      %v7018 = vpop.f32.mrf.mxu0
      %v7019 = vadd.f32 0.0, %v7018
      %v7020 = vpop.f32.mrf.mxu0
      %7021 = vdwg.mxu0
      %7022 = vmatprep.subr.bf16.mxu0 0
      %7023 = vmatpush1.bf16.msra.mxu0 %v6804
      %7024 = vmatprep.subr.bf16.mxu0 0
      %7025 = vmatpush1.bf16.msra.mxu0 %v6803
      %7026 = vmatprep.subr.bf16.mxu0 0
      %7027 = vmatpush1.bf16.msra.mxu0 %v6802
      %7028 = vmatprep.subr.bf16.mxu0 0
      %7029 = vmatpush1.bf16.msra.mxu0 %v6801
      %7030 = vmatprep.subr.bf16.mxu0 0
      %7031 = vmatpush1.bf16.msra.mxu0 %v6800
      %7032 = vmatprep.subr.bf16.mxu0 0
      %7033 = vmatpush1.bf16.msra.mxu0 %v6799
      %7034 = vmatprep.subr.bf16.mxu0 0
      %7035 = vmatpush1.bf16.msra.mxu0 %v6798
      %7036 = vmatprep.subr.bf16.mxu0 0
      %7037 = vmatpush1.bf16.msra.mxu0 %v6797
      %7038 = vmatprep.subr.bf16.mxu0 0
      %7039 = vmatpush2.bf16.msra.mxu0 %v6812
      %7040 = vmatprep.subr.bf16.mxu0 0
      %7041 = vmatpush2.bf16.msra.mxu0 %v6811
      %7042 = vmatprep.subr.bf16.mxu0 0
      %7043 = vmatpush2.bf16.msra.mxu0 %v6810
      %7044 = vmatprep.subr.bf16.mxu0 0
      %7045 = vmatpush2.bf16.msra.mxu0 %v6809
      %7046 = vmatprep.subr.bf16.mxu0 0
      %7047 = vmatpush2.bf16.msra.mxu0 %v6808
      %7048 = vmatprep.subr.bf16.mxu0 0
      %7049 = vmatpush2.bf16.msra.mxu0 %v6807
      %7050 = vmatprep.subr.bf16.mxu0 0
      %7051 = vmatpush2.bf16.msra.mxu0 %v6806
      %7052 = vmatprep.subr.bf16.mxu0 0
      %7053 = vmatpush2.bf16.msra.mxu0 %v6805
      %7054 = vmatprep.mubr.bf16.mxu0 %v1386
      %7055 = vmatmul.mubr.bf16.gmra.mxu0 %v1291
      %v7056 = vpop.f32.mrf.mxu0
      %v7057 = vadd.f32 %v6896, %v7056
      %v7058 = vpop.f32.mrf.mxu0
      %v7059 = vpop.f32.mrf.mxu0
      %v7060 = vadd.f32 %v6899, %v7059
      %v7061 = vpop.f32.mrf.mxu0
      %7062 = vmatprep.mubr.bf16.mxu0 %v1395
      %7063 = vmatmul.mubr.bf16.gmra.mxu0 %v1294
      %v7064 = vpop.f32.mrf.mxu0
      %v7065 = vadd.f32 %v6904, %v7064
      %v7066 = vpop.f32.mrf.mxu0
      %v7067 = vpop.f32.mrf.mxu0
      %v7068 = vadd.f32 %v6907, %v7067
      %v7069 = vpop.f32.mrf.mxu0
      %7070 = vmatprep.mubr.bf16.mxu0 %v1404
      %7071 = vmatmul.mubr.bf16.gmra.mxu0 %v1297
      %v7072 = vpop.f32.mrf.mxu0
      %v7073 = vadd.f32 %v6912, %v7072
      %v7074 = vpop.f32.mrf.mxu0
      %v7075 = vpop.f32.mrf.mxu0
      %v7076 = vadd.f32 %v6915, %v7075
      %v7077 = vpop.f32.mrf.mxu0
      %7078 = vmatprep.mubr.bf16.mxu0 %v1413
      %7079 = vmatmul.mubr.bf16.gmra.mxu0 %v1300
      %v7080 = vpop.f32.mrf.mxu0
      %v7081 = vadd.f32 %v6920, %v7080
      %v7082 = vpop.f32.mrf.mxu0
      %v7083 = vpop.f32.mrf.mxu0
      %v7084 = vadd.f32 %v6923, %v7083
      %v7085 = vpop.f32.mrf.mxu0
      %7086 = vmatprep.mubr.bf16.mxu0 %v1422
      %7087 = vmatmul.mubr.bf16.gmra.mxu0 %v1303
      %v7088 = vpop.f32.mrf.mxu0
      %v7089 = vadd.f32 %v6928, %v7088
      %v7090 = vpop.f32.mrf.mxu0
      %v7091 = vpop.f32.mrf.mxu0
      %v7092 = vadd.f32 %v6931, %v7091
      %v7093 = vpop.f32.mrf.mxu0
      %7094 = vmatprep.mubr.bf16.mxu0 %v1431
      %7095 = vmatmul.mubr.bf16.gmra.mxu0 %v1306
      %v7096 = vpop.f32.mrf.mxu0
      %v7097 = vadd.f32 %v6936, %v7096
      %v7098 = vpop.f32.mrf.mxu0
      %v7099 = vpop.f32.mrf.mxu0
      %v7100 = vadd.f32 %v6939, %v7099
      %v7101 = vpop.f32.mrf.mxu0
      %7102 = vmatprep.mubr.bf16.mxu0 %v1440
      %7103 = vmatmul.mubr.bf16.gmra.mxu0 %v1309
      %v7104 = vpop.f32.mrf.mxu0
      %v7105 = vadd.f32 %v6944, %v7104
      %v7106 = vpop.f32.mrf.mxu0
      %v7107 = vpop.f32.mrf.mxu0
      %v7108 = vadd.f32 %v6947, %v7107
      %v7109 = vpop.f32.mrf.mxu0
      %7110 = vmatprep.mubr.bf16.mxu0 %v1449
      %7111 = vmatmul.mubr.bf16.gmra.mxu0 %v1312
      %v7112 = vpop.f32.mrf.mxu0
      %v7113 = vadd.f32 %v6952, %v7112
      %v7114 = vpop.f32.mrf.mxu0
      %v7115 = vpop.f32.mrf.mxu0
      %v7116 = vadd.f32 %v6955, %v7115
      %v7117 = vpop.f32.mrf.mxu0
      %7118 = vmatprep.mubr.bf16.mxu0 %v1458
      %7119 = vmatmul.mubr.bf16.gmra.mxu0 %v1315
      %v7120 = vpop.f32.mrf.mxu0
      %v7121 = vadd.f32 %v6960, %v7120
      %v7122 = vpop.f32.mrf.mxu0
      %v7123 = vpop.f32.mrf.mxu0
      %v7124 = vadd.f32 %v6963, %v7123
      %v7125 = vpop.f32.mrf.mxu0
      %7126 = vmatprep.mubr.bf16.mxu0 %v1467
      %7127 = vmatmul.mubr.bf16.gmra.mxu0 %v1318
      %v7128 = vpop.f32.mrf.mxu0
      %v7129 = vadd.f32 %v6968, %v7128
      %v7130 = vpop.f32.mrf.mxu0
      %v7131 = vpop.f32.mrf.mxu0
      %v7132 = vadd.f32 %v6971, %v7131
      %v7133 = vpop.f32.mrf.mxu0
      %7134 = vmatprep.mubr.bf16.mxu0 %v1476
      %7135 = vmatmul.mubr.bf16.gmra.mxu0 %v1321
      %v7136 = vpop.f32.mrf.mxu0
      %v7137 = vadd.f32 %v6976, %v7136
      %v7138 = vpop.f32.mrf.mxu0
      %v7139 = vpop.f32.mrf.mxu0
      %v7140 = vadd.f32 %v6979, %v7139
      %v7141 = vpop.f32.mrf.mxu0
      %7142 = vmatprep.mubr.bf16.mxu0 %v1485
      %7143 = vmatmul.mubr.bf16.gmra.mxu0 %v1324
      %v7144 = vpop.f32.mrf.mxu0
      %v7145 = vadd.f32 %v6984, %v7144
      %v7146 = vpop.f32.mrf.mxu0
      %v7147 = vpop.f32.mrf.mxu0
      %v7148 = vadd.f32 %v6987, %v7147
      %v7149 = vpop.f32.mrf.mxu0
      %7150 = vmatprep.mubr.bf16.mxu0 %v1672
      %7151 = vmatmul.mubr.bf16.gmra.mxu0 %v1662
      %v7152 = vpop.f32.mrf.mxu0
      %v7153 = vadd.f32 %v6992, %v7152
      %v7154 = vpop.f32.mrf.mxu0
      %v7155 = vpop.f32.mrf.mxu0
      %v7156 = vadd.f32 %v6995, %v7155
      %v7157 = vpop.f32.mrf.mxu0
      %7158 = vmatprep.mubr.bf16.mxu0 %v3277
      %7159 = vmatmul.mubr.bf16.gmra.mxu0 %v3267
      %v7160 = vpop.f32.mrf.mxu0
      %v7161 = vadd.f32 %v7000, %v7160
      %v7162 = vpop.f32.mrf.mxu0
      %v7163 = vpop.f32.mrf.mxu0
      %v7164 = vadd.f32 %v7003, %v7163
      %v7165 = vpop.f32.mrf.mxu0
      %7166 = vmatprep.mubr.bf16.mxu0 %v5123
      %7167 = vmatmul.mubr.bf16.gmra.mxu0 %v5113
      %v7168 = vpop.f32.mrf.mxu0
      %v7169 = vadd.f32 %v7008, %v7168
      %v7170 = vpop.f32.mrf.mxu0
      %v7171 = vpop.f32.mrf.mxu0
      %v7172 = vadd.f32 %v7011, %v7171
      %v7173 = vpop.f32.mrf.mxu0
      %7174 = vmatprep.mubr.bf16.mxu0 %v6535
      %7175 = vmatmul.mubr.bf16.gmra.mxu0 %v6525
      %v7176 = vpop.f32.mrf.mxu0
      %v7177 = vadd.f32 %v7016, %v7176
      %v7178 = vpop.f32.mrf.mxu0
      %v7179 = vpop.f32.mrf.mxu0
      %v7180 = vadd.f32 %v7019, %v7179
      %v7181 = vpop.f32.mrf.mxu0
      %7182 = vdwg.mxu0
      %7183 = vmatprep.subr.bf16.mxu0 0
      %7184 = vmatpush1.bf16.msra.mxu0 %v6820
      %7185 = vmatprep.subr.bf16.mxu0 0
      %7186 = vmatpush1.bf16.msra.mxu0 %v6819
      %7187 = vmatprep.subr.bf16.mxu0 0
      %7188 = vmatpush1.bf16.msra.mxu0 %v6818
      %7189 = vmatprep.subr.bf16.mxu0 0
      %7190 = vmatpush1.bf16.msra.mxu0 %v6817
      %7191 = vmatprep.subr.bf16.mxu0 0
      %7192 = vmatpush1.bf16.msra.mxu0 %v6816
      %7193 = vmatprep.subr.bf16.mxu0 0
      %7194 = vmatpush1.bf16.msra.mxu0 %v6815
      %7195 = vmatprep.subr.bf16.mxu0 0
      %7196 = vmatpush1.bf16.msra.mxu0 %v6814
      %7197 = vmatprep.subr.bf16.mxu0 0
      %7198 = vmatpush1.bf16.msra.mxu0 %v6813
      %7199 = vmatprep.subr.bf16.mxu0 0
      %7200 = vmatpush2.bf16.msra.mxu0 0
      %7201 = vmatprep.subr.bf16.mxu0 0
      %7202 = vmatpush2.bf16.msra.mxu0 0
      %7203 = vmatprep.subr.bf16.mxu0 0
      %7204 = vmatpush2.bf16.msra.mxu0 0
      %7205 = vmatprep.subr.bf16.mxu0 0
      %7206 = vmatpush2.bf16.msra.mxu0 0
      %7207 = vmatprep.subr.bf16.mxu0 0
      %7208 = vmatpush2.bf16.msra.mxu0 0
      %7209 = vmatprep.subr.bf16.mxu0 0
      %7210 = vmatpush2.bf16.msra.mxu0 0
      %7211 = vmatprep.subr.bf16.mxu0 0
      %7212 = vmatpush2.bf16.msra.mxu0 0
      %7213 = vmatprep.subr.bf16.mxu0 0
      %7214 = vmatpush2.bf16.msra.mxu0 0
      %7215 = vmatprep.mubr.bf16.mxu0 0
      %7216 = vmatmul.mubr.bf16.gmra.mxu0 %v1517
      %v7217 = vpop.f32.mrf.mxu0
      %v7218 = vadd.f32 %v7057, %v7217
      %v7219 = vpop.f32.mrf.mxu0
      %v7220 = vpop.f32.mrf.mxu0
      %v7221 = vadd.f32 %v7060, %v7220
      %v7222 = vpop.f32.mrf.mxu0
      %7223 = vmatprep.mubr.bf16.mxu0 0
      %7224 = vmatmul.mubr.bf16.gmra.mxu0 %v1520
      %v7225 = vpop.f32.mrf.mxu0
      %v7226 = vadd.f32 %v7065, %v7225
      %v7227 = vpop.f32.mrf.mxu0
      %v7228 = vpop.f32.mrf.mxu0
      %v7229 = vadd.f32 %v7068, %v7228
      %v7230 = vpop.f32.mrf.mxu0
      %7231 = vmatprep.mubr.bf16.mxu0 0
      %7232 = vmatmul.mubr.bf16.gmra.mxu0 %v1523
      %v7233 = vpop.f32.mrf.mxu0
      %v7234 = vadd.f32 %v7073, %v7233
      %v7235 = vpop.f32.mrf.mxu0
      %v7236 = vpop.f32.mrf.mxu0
      %v7237 = vadd.f32 %v7076, %v7236
      %v7238 = vpop.f32.mrf.mxu0
      %7239 = vmatprep.mubr.bf16.mxu0 0
      %7240 = vmatmul.mubr.bf16.gmra.mxu0 %v1526
      %v7241 = vpop.f32.mrf.mxu0
      %v7242 = vadd.f32 %v7081, %v7241
      %v7243 = vpop.f32.mrf.mxu0
      %v7244 = vpop.f32.mrf.mxu0
      %v7245 = vadd.f32 %v7084, %v7244
      %v7246 = vpop.f32.mrf.mxu0
      %7247 = vmatprep.mubr.bf16.mxu0 0
      %7248 = vmatmul.mubr.bf16.gmra.mxu0 %v1529
      %v7249 = vpop.f32.mrf.mxu0
      %v7250 = vadd.f32 %v7089, %v7249
      %v7251 = vpop.f32.mrf.mxu0
      %v7252 = vpop.f32.mrf.mxu0
      %v7253 = vadd.f32 %v7092, %v7252
      %v7254 = vpop.f32.mrf.mxu0
      %7255 = vmatprep.mubr.bf16.mxu0 0
      %7256 = vmatmul.mubr.bf16.gmra.mxu0 %v1532
      %v7257 = vpop.f32.mrf.mxu0
      %v7258 = vadd.f32 %v7097, %v7257
      %v7259 = vpop.f32.mrf.mxu0
      %v7260 = vpop.f32.mrf.mxu0
      %v7261 = vadd.f32 %v7100, %v7260
      %v7262 = vpop.f32.mrf.mxu0
      %7263 = vmatprep.mubr.bf16.mxu0 0
      %7264 = vmatmul.mubr.bf16.gmra.mxu0 %v1535
      %v7265 = vpop.f32.mrf.mxu0
      %v7266 = vadd.f32 %v7105, %v7265
      %v7267 = vpop.f32.mrf.mxu0
      %v7268 = vpop.f32.mrf.mxu0
      %v7269 = vadd.f32 %v7108, %v7268
      %v7270 = vpop.f32.mrf.mxu0
      %7271 = vmatprep.mubr.bf16.mxu0 0
      %7272 = vmatmul.mubr.bf16.gmra.mxu0 %v1538
      %v7273 = vpop.f32.mrf.mxu0
      %v7274 = vadd.f32 %v7113, %v7273
      %v7275 = vpop.f32.mrf.mxu0
      %v7276 = vpop.f32.mrf.mxu0
      %v7277 = vadd.f32 %v7116, %v7276
      %v7278 = vpop.f32.mrf.mxu0
      %7279 = vmatprep.mubr.bf16.mxu0 0
      %7280 = vmatmul.mubr.bf16.gmra.mxu0 %v1541
      %v7281 = vpop.f32.mrf.mxu0
      %v7282 = vadd.f32 %v7121, %v7281
      %v7283 = vpop.f32.mrf.mxu0
      %v7284 = vpop.f32.mrf.mxu0
      %v7285 = vadd.f32 %v7124, %v7284
      %v7286 = vpop.f32.mrf.mxu0
      %7287 = vmatprep.mubr.bf16.mxu0 0
      %7288 = vmatmul.mubr.bf16.gmra.mxu0 %v1544
      %v7289 = vpop.f32.mrf.mxu0
      %v7290 = vadd.f32 %v7129, %v7289
      %v7291 = vpop.f32.mrf.mxu0
      %v7292 = vpop.f32.mrf.mxu0
      %v7293 = vadd.f32 %v7132, %v7292
      %v7294 = vpop.f32.mrf.mxu0
      %7295 = vmatprep.mubr.bf16.mxu0 0
      %7296 = vmatmul.mubr.bf16.gmra.mxu0 %v1547
      %v7297 = vpop.f32.mrf.mxu0
      %v7298 = vadd.f32 %v7137, %v7297
      %v7299 = vpop.f32.mrf.mxu0
      %v7300 = vpop.f32.mrf.mxu0
      %v7301 = vadd.f32 %v7140, %v7300
      %v7302 = vpop.f32.mrf.mxu0
      %7303 = vmatprep.mubr.bf16.mxu0 0
      %7304 = vmatmul.mubr.bf16.gmra.mxu0 %v1550
      %v7305 = vpop.f32.mrf.mxu0
      %v7306 = vadd.f32 %v7145, %v7305
      %v7307 = vpop.f32.mrf.mxu0
      %v7308 = vpop.f32.mrf.mxu0
      %v7309 = vadd.f32 %v7148, %v7308
      %v7310 = vpop.f32.mrf.mxu0
      %7311 = vmatprep.mubr.bf16.mxu0 0
      %7312 = vmatmul.mubr.bf16.gmra.mxu0 %v1676
      %v7313 = vpop.f32.mrf.mxu0
      %v7314 = vadd.f32 %v7153, %v7313
      %v7315 = vpop.f32.mrf.mxu0
      %v7316 = vpop.f32.mrf.mxu0
      %v7317 = vadd.f32 %v7156, %v7316
      %v7318 = vpop.f32.mrf.mxu0
      %7319 = vmatprep.mubr.bf16.mxu0 0
      %7320 = vmatmul.mubr.bf16.gmra.mxu0 %v3281
      %v7321 = vpop.f32.mrf.mxu0
      %v7322 = vadd.f32 %v7161, %v7321
      %v7323 = vpop.f32.mrf.mxu0
      %v7324 = vpop.f32.mrf.mxu0
      %v7325 = vadd.f32 %v7164, %v7324
      %v7326 = vpop.f32.mrf.mxu0
      %7327 = vmatprep.mubr.bf16.mxu0 0
      %7328 = vmatmul.mubr.bf16.gmra.mxu0 %v5127
      %v7329 = vpop.f32.mrf.mxu0
      %v7330 = vadd.f32 %v7169, %v7329
      %v7331 = vpop.f32.mrf.mxu0
      %v7332 = vpop.f32.mrf.mxu0
      %v7333 = vadd.f32 %v7172, %v7332
      %v7334 = vpop.f32.mrf.mxu0
      %7335 = vmatprep.mubr.bf16.mxu0 0
      %7336 = vmatmul.mubr.bf16.gmra.mxu0 %v6539
      %v7337 = vpop.f32.mrf.mxu0
      %v7338 = vadd.f32 %v7177, %v7337
      %v7339 = vpop.f32.mrf.mxu0
      %v7340 = vpop.f32.mrf.mxu0
      %v7341 = vadd.f32 %v7180, %v7340
      %v7342 = vpop.f32.mrf.mxu0
      %7343 = vdwg.mxu0
      %v7344 = vadd.f32 %v5932, %v7218
      %v7345 = vadd.f32 %v5933, %v7221
      %v7346 = vadd.f32 %v5934, %v7226
      %v7347 = vadd.f32 %v5935, %v7229
      %v7348 = vadd.f32 %v5936, %v7234
      %v7349 = vadd.f32 %v5937, %v7237
      %v7350 = vadd.f32 %v5938, %v7242
      %v7351 = vadd.f32 %v5939, %v7245
      %v7352 = vadd.f32 %v5940, %v7250
      %v7353 = vadd.f32 %v5941, %v7253
      %v7354 = vadd.f32 %v5942, %v7258
      %v7355 = vadd.f32 %v5943, %v7261
      %v7356 = vadd.f32 %v5944, %v7266
      %v7357 = vadd.f32 %v5945, %v7269
      %v7358 = vadd.f32 %v5946, %v7274
      %v7359 = vadd.f32 %v5947, %v7277
      %v7360 = vadd.f32 %v5948, %v7282
      %v7361 = vadd.f32 %v5949, %v7285
      %v7362 = vadd.f32 %v5950, %v7290
      %v7363 = vadd.f32 %v5951, %v7293
      %v7364 = vadd.f32 %v5952, %v7298
      %v7365 = vadd.f32 %v5953, %v7301
      %v7366 = vadd.f32 %v5954, %v7306
      %v7367 = vadd.f32 %v5955, %v7309
      %v7368 = vadd.f32 %v5956, %v7314
      %v7369 = vadd.f32 %v5957, %v7317
      %v7370 = vadd.f32 %v5958, %v7322
      %v7371 = vadd.f32 %v5959, %v7325
      %v7372 = vadd.f32 %v5960, %v7330
      %v7373 = vadd.f32 %v5961, %v7333
      %v7374 = vadd.f32 %v5962, %v7338
      %v7375 = vadd.f32 %v5963, %v7341
      %v7376 = vld [vmem:[%s4] sm:$0x1]
      %v7378 = vlaneseq
      %v7379 = vshrl.u32 %v7378, 7
      %v7380 = vsub.s32 0, %v7379
      %v7381 = vrot.slane %v7376, %v7380
      %v7383 = vadd.f32 %v7344, %v7381
      %v7384 = vadd.f32 %v7345, %v7381
      %v7385 = vadd.f32 %v7346, %v7381
      %v7386 = vadd.f32 %v7347, %v7381
      %v7387 = vadd.f32 %v7348, %v7381
      %v7388 = vadd.f32 %v7349, %v7381
      %v7389 = vadd.f32 %v7350, %v7381
      %v7390 = vadd.f32 %v7351, %v7381
      %v7391 = vadd.f32 %v7352, %v7381
      %v7392 = vadd.f32 %v7353, %v7381
      %v7393 = vadd.f32 %v7354, %v7381
      %v7394 = vadd.f32 %v7355, %v7381
      %v7395 = vadd.f32 %v7356, %v7381
      %v7396 = vadd.f32 %v7357, %v7381
      %v7397 = vadd.f32 %v7358, %v7381
      %v7398 = vadd.f32 %v7359, %v7381
      %v7399 = vadd.f32 %v7360, %v7381
      %v7400 = vadd.f32 %v7361, %v7381
      %v7401 = vadd.f32 %v7362, %v7381
      %v7402 = vadd.f32 %v7363, %v7381
      %v7403 = vadd.f32 %v7364, %v7381
      %v7404 = vadd.f32 %v7365, %v7381
      %v7405 = vadd.f32 %v7366, %v7381
      %v7406 = vadd.f32 %v7367, %v7381
      %v7407 = vadd.f32 %v7368, %v7381
      %v7408 = vadd.f32 %v7369, %v7381
      %v7409 = vadd.f32 %v7370, %v7381
      %v7410 = vadd.f32 %v7371, %v7381
      %v7411 = vadd.f32 %v7372, %v7381
      %v7412 = vadd.f32 %v7373, %v7381
      %v7413 = vadd.f32 %v7374, %v7381
      %v7414 = vadd.f32 %v7375, %v7381
      %v7415 = vmax.f32 %v7383, 0.0
      %v7416 = vmax.f32 %v7384, 0.0
      %v7417 = vmax.f32 %v7385, 0.0
      %v7418 = vmax.f32 %v7386, 0.0
      %v7419 = vmax.f32 %v7387, 0.0
      %v7420 = vmax.f32 %v7388, 0.0
      %v7421 = vmax.f32 %v7389, 0.0
      %v7422 = vmax.f32 %v7390, 0.0
      %v7423 = vmax.f32 %v7391, 0.0
      %v7424 = vmax.f32 %v7392, 0.0
      %v7425 = vmax.f32 %v7393, 0.0
      %v7426 = vmax.f32 %v7394, 0.0
      %v7427 = vmax.f32 %v7395, 0.0
      %v7428 = vmax.f32 %v7396, 0.0
      %v7429 = vmax.f32 %v7397, 0.0
      %v7430 = vmax.f32 %v7398, 0.0
      %v7431 = vmax.f32 %v7399, 0.0
      %v7432 = vmax.f32 %v7400, 0.0
      %v7433 = vmax.f32 %v7401, 0.0
      %v7434 = vmax.f32 %v7402, 0.0
      %v7435 = vmax.f32 %v7403, 0.0
      %v7436 = vmax.f32 %v7404, 0.0
      %v7437 = vmax.f32 %v7405, 0.0
      %v7438 = vmax.f32 %v7406, 0.0
      %v7439 = vmax.f32 %v7407, 0.0
      %v7440 = vmax.f32 %v7408, 0.0
      %v7441 = vmax.f32 %v7409, 0.0
      %v7442 = vmax.f32 %v7410, 0.0
      %v7443 = vmax.f32 %v7411, 0.0
      %v7444 = vmax.f32 %v7412, 0.0
      %v7445 = vmax.f32 %v7413, 0.0
      %v7446 = vmax.f32 %v7414, 0.0
      %v7447 = vld [vmem:[%s6] sm:$0x1]
      %v7449 = vlaneseq
      %v7450 = vshrl.u32 %v7449, 7
      %v7451 = vsub.s32 0, %v7450
      %v7452 = vrot.slane %v7447, %v7451
      %v7454 = vadd.f32 %v6478, %v7452
      %v7455 = vadd.f32 %v6479, %v7452
      %v7456 = vadd.f32 %v6480, %v7452
      %v7457 = vadd.f32 %v6481, %v7452
      %v7458 = vadd.f32 %v6482, %v7452
      %v7459 = vadd.f32 %v6483, %v7452
      %v7460 = vadd.f32 %v6484, %v7452
      %v7461 = vadd.f32 %v6485, %v7452
      %v7462 = vadd.f32 %v6486, %v7452
      %v7463 = vadd.f32 %v6487, %v7452
      %v7464 = vadd.f32 %v6488, %v7452
      %v7465 = vadd.f32 %v6489, %v7452
      %v7466 = vadd.f32 %v6490, %v7452
      %v7467 = vadd.f32 %v6491, %v7452
      %v7468 = vadd.f32 %v6492, %v7452
      %v7469 = vadd.f32 %v6493, %v7452
      %v7470 = vadd.f32 %v6494, %v7452
      %v7471 = vadd.f32 %v6495, %v7452
      %v7472 = vadd.f32 %v6496, %v7452
      %v7473 = vadd.f32 %v6497, %v7452
      %v7474 = vadd.f32 %v6498, %v7452
      %v7475 = vadd.f32 %v6499, %v7452
      %v7476 = vadd.f32 %v6500, %v7452
      %v7477 = vadd.f32 %v6501, %v7452
      %v7478 = vadd.f32 %v6502, %v7452
      %v7479 = vadd.f32 %v6503, %v7452
      %v7480 = vadd.f32 %v6504, %v7452
      %v7481 = vadd.f32 %v6505, %v7452
      %v7482 = vadd.f32 %v6506, %v7452
      %v7483 = vadd.f32 %v6507, %v7452
      %v7484 = vadd.f32 %v6508, %v7452
      %v7485 = vadd.f32 %v6509, %v7452
      %v7486 = vmax.f32 %v7454, 0.0
      %v7487 = vmax.f32 %v7455, 0.0
      %v7488 = vmax.f32 %v7456, 0.0
      %v7489 = vmax.f32 %v7457, 0.0
      %v7490 = vmax.f32 %v7458, 0.0
      %v7491 = vmax.f32 %v7459, 0.0
      %v7492 = vmax.f32 %v7460, 0.0
      %v7493 = vmax.f32 %v7461, 0.0
      %v7494 = vmax.f32 %v7462, 0.0
      %v7495 = vmax.f32 %v7463, 0.0
      %v7496 = vmax.f32 %v7464, 0.0
      %v7497 = vmax.f32 %v7465, 0.0
      %v7498 = vmax.f32 %v7466, 0.0
      %v7499 = vmax.f32 %v7467, 0.0
      %v7500 = vmax.f32 %v7468, 0.0
      %v7501 = vmax.f32 %v7469, 0.0
      %v7502 = vmax.f32 %v7470, 0.0
      %v7503 = vmax.f32 %v7471, 0.0
      %v7504 = vmax.f32 %v7472, 0.0
      %v7505 = vmax.f32 %v7473, 0.0
      %v7506 = vmax.f32 %v7474, 0.0
      %v7507 = vmax.f32 %v7475, 0.0
      %v7508 = vmax.f32 %v7476, 0.0
      %v7509 = vmax.f32 %v7477, 0.0
      %v7510 = vmax.f32 %v7478, 0.0
      %v7511 = vmax.f32 %v7479, 0.0
      %v7512 = vmax.f32 %v7480, 0.0
      %v7513 = vmax.f32 %v7481, 0.0
      %v7514 = vmax.f32 %v7482, 0.0
      %v7515 = vmax.f32 %v7483, 0.0
      %v7516 = vmax.f32 %v7484, 0.0
      %v7517 = vmax.f32 %v7485, 0.0
      %7518 = vst [vmem:[%s383] sm:$0xff] %v7415
      %7519 = vst [vmem:[%s383 + $0x8] sm:$0xff] %v7416
      %7520 = vst [vmem:[%s383 + $0x10] sm:$0xff] %v7417
      %7521 = vst [vmem:[%s383 + $0x18] sm:$0xff] %v7418
      %7522 = vst [vmem:[%s383 + $0x20] sm:$0xff] %v7419
      %7523 = vst [vmem:[%s383 + $0x28] sm:$0xff] %v7420
      %7524 = vst [vmem:[%s383 + $0x30] sm:$0xff] %v7421
      %7525 = vst [vmem:[%s383 + $0x38] sm:$0xff] %v7422
      %7526 = vst [vmem:[%s383 + $0x40] sm:$0xff] %v7423
      %7527 = vst [vmem:[%s383 + $0x48] sm:$0xff] %v7424
      %7528 = vst [vmem:[%s383 + $0x50] sm:$0xff] %v7425
      %7529 = vst [vmem:[%s383 + $0x58] sm:$0xff] %v7426
      %7530 = vst [vmem:[%s383 + $0x60] sm:$0xff] %v7427
      %7531 = vst [vmem:[%s383 + $0x68] sm:$0xff] %v7428
      %7532 = vst [vmem:[%s383 + $0x70] sm:$0xff] %v7429
      %7533 = vst [vmem:[%s383 + $0x78] sm:$0xff] %v7430
      %7534 = vst [vmem:[%s383 + $0x80] sm:$0xff] %v7431
      %7535 = vst [vmem:[%s383 + $0x88] sm:$0xff] %v7432
      %7536 = vst [vmem:[%s383 + $0x90] sm:$0xff] %v7433
      %7537 = vst [vmem:[%s383 + $0x98] sm:$0xff] %v7434
      %7538 = vst [vmem:[%s383 + $0xa0] sm:$0xff] %v7435
      %7539 = vst [vmem:[%s383 + $0xa8] sm:$0xff] %v7436
      %7540 = vst [vmem:[%s383 + $0xb0] sm:$0xff] %v7437
      %7541 = vst [vmem:[%s383 + $0xb8] sm:$0xff] %v7438
      %7542 = vst [vmem:[%s383 + $0xc0] sm:$0xff] %v7439
      %7543 = vst [vmem:[%s383 + $0xc8] sm:$0xff] %v7440
      %7544 = vst [vmem:[%s383 + $0xd0] sm:$0xff] %v7441
      %7545 = vst [vmem:[%s383 + $0xd8] sm:$0xff] %v7442
      %7546 = vst [vmem:[%s383 + $0xe0] sm:$0xff] %v7443
      %7547 = vst [vmem:[%s383 + $0xe8] sm:$0xff] %v7444
      %7548 = vst [vmem:[%s383 + $0xf0] sm:$0xff] %v7445
      %7549 = vst [vmem:[%s383 + $0xf8] sm:$0xff] %v7446
      %7550 = vst [vmem:[%s394] sm:$0xff] %v7486
      %7551 = vst [vmem:[%s394 + $0x8] sm:$0xff] %v7487
      %7552 = vst [vmem:[%s394 + $0x10] sm:$0xff] %v7488
      %7553 = vst [vmem:[%s394 + $0x18] sm:$0xff] %v7489
      %7554 = vst [vmem:[%s394 + $0x20] sm:$0xff] %v7490
      %7555 = vst [vmem:[%s394 + $0x28] sm:$0xff] %v7491
      %7556 = vst [vmem:[%s394 + $0x30] sm:$0xff] %v7492
      %7557 = vst [vmem:[%s394 + $0x38] sm:$0xff] %v7493
      %7558 = vst [vmem:[%s394 + $0x40] sm:$0xff] %v7494
      %7559 = vst [vmem:[%s394 + $0x48] sm:$0xff] %v7495
      %7560 = vst [vmem:[%s394 + $0x50] sm:$0xff] %v7496
      %7561 = vst [vmem:[%s394 + $0x58] sm:$0xff] %v7497
      %7562 = vst [vmem:[%s394 + $0x60] sm:$0xff] %v7498
      %7563 = vst [vmem:[%s394 + $0x68] sm:$0xff] %v7499
      %7564 = vst [vmem:[%s394 + $0x70] sm:$0xff] %v7500
      %7565 = vst [vmem:[%s394 + $0x78] sm:$0xff] %v7501
      %7566 = vst [vmem:[%s394 + $0x80] sm:$0xff] %v7502
      %7567 = vst [vmem:[%s394 + $0x88] sm:$0xff] %v7503
      %7568 = vst [vmem:[%s394 + $0x90] sm:$0xff] %v7504
      %7569 = vst [vmem:[%s394 + $0x98] sm:$0xff] %v7505
      %7570 = vst [vmem:[%s394 + $0xa0] sm:$0xff] %v7506
      %7571 = vst [vmem:[%s394 + $0xa8] sm:$0xff] %v7507
      %7572 = vst [vmem:[%s394 + $0xb0] sm:$0xff] %v7508
      %7573 = vst [vmem:[%s394 + $0xb8] sm:$0xff] %v7509
      %7574 = vst [vmem:[%s394 + $0xc0] sm:$0xff] %v7510
      %7575 = vst [vmem:[%s394 + $0xc8] sm:$0xff] %v7511
      %7576 = vst [vmem:[%s394 + $0xd0] sm:$0xff] %v7512
      %7577 = vst [vmem:[%s394 + $0xd8] sm:$0xff] %v7513
      %7578 = vst [vmem:[%s394 + $0xe0] sm:$0xff] %v7514
      %7579 = vst [vmem:[%s394 + $0xe8] sm:$0xff] %v7515
      %7580 = vst [vmem:[%s394 + $0xf0] sm:$0xff] %v7516
      %7581 = vst [vmem:[%s394 + $0xf8] sm:$0xff] %v7517
      %p7582 = scmp.eq.s32.totalorder %s26, 0
      // Predicated region
      $region49: #{skblock_pallas.2} parent=47 // pred_check
        %p7583 = pneg %p7582
      $region50: #{skblock_pallas.2} parent=47 // pred_check_branch
        %7585 = sbr.rel (%p7583) target = $region52
      $region51: #{skblock_pallas.2} parent=47 // pred_region
        %7586 = vst [vmem:[%s398] sm:$0x1] 0.0
      $region52: #{skblock_pallas.2} parent=47 // pred_fallthru
        _
      %v7587 = vld [vmem:[%s398] sm:$0x1]
      %v7588 = vadd.f32 %v7415, %v7486
      %v7589 = vadd.f32 %v7416, %v7487
      %v7590 = vadd.f32 %v7417, %v7488
      %v7591 = vadd.f32 %v7418, %v7489
      %v7592 = vadd.f32 %v7419, %v7490
      %v7593 = vadd.f32 %v7420, %v7491
      %v7594 = vadd.f32 %v7421, %v7492
      %v7595 = vadd.f32 %v7422, %v7493
      %v7596 = vadd.f32 %v7423, %v7494
      %v7597 = vadd.f32 %v7424, %v7495
      %v7598 = vadd.f32 %v7425, %v7496
      %v7599 = vadd.f32 %v7426, %v7497
      %v7600 = vadd.f32 %v7427, %v7498
      %v7601 = vadd.f32 %v7428, %v7499
      %v7602 = vadd.f32 %v7429, %v7500
      %v7603 = vadd.f32 %v7430, %v7501
      %v7604 = vadd.f32 %v7431, %v7502
      %v7605 = vadd.f32 %v7432, %v7503
      %v7606 = vadd.f32 %v7433, %v7504
      %v7607 = vadd.f32 %v7434, %v7505
      %v7608 = vadd.f32 %v7435, %v7506
      %v7609 = vadd.f32 %v7436, %v7507
      %v7610 = vadd.f32 %v7437, %v7508
      %v7611 = vadd.f32 %v7438, %v7509
      %v7612 = vadd.f32 %v7439, %v7510
      %v7613 = vadd.f32 %v7440, %v7511
      %v7614 = vadd.f32 %v7441, %v7512
      %v7615 = vadd.f32 %v7442, %v7513
      %v7616 = vadd.f32 %v7443, %v7514
      %v7617 = vadd.f32 %v7444, %v7515
      %v7618 = vadd.f32 %v7445, %v7516
      %v7619 = vadd.f32 %v7446, %v7517
      %v7620 = vadd.f32 %v7588, %v7589
      %v7621 = vadd.f32 %v7620, %v7590
      %v7622 = vadd.f32 %v7621, %v7591
      %v7623 = vadd.f32 %v7622, %v7592
      %v7624 = vadd.f32 %v7623, %v7593
      %v7625 = vadd.f32 %v7624, %v7594
      %v7626 = vadd.f32 %v7625, %v7595
      %v7627 = vadd.f32 %v7626, %v7596
      %v7628 = vadd.f32 %v7627, %v7597
      %v7629 = vadd.f32 %v7628, %v7598
      %v7630 = vadd.f32 %v7629, %v7599
      %v7631 = vadd.f32 %v7630, %v7600
      %v7632 = vadd.f32 %v7631, %v7601
      %v7633 = vadd.f32 %v7632, %v7602
      %v7634 = vadd.f32 %v7633, %v7603
      %v7635 = vadd.f32 %v7634, %v7604
      %v7636 = vadd.f32 %v7635, %v7605
      %v7637 = vadd.f32 %v7636, %v7606
      %v7638 = vadd.f32 %v7637, %v7607
      %v7639 = vadd.f32 %v7638, %v7608
      %v7640 = vadd.f32 %v7639, %v7609
      %v7641 = vadd.f32 %v7640, %v7610
      %v7642 = vadd.f32 %v7641, %v7611
      %v7643 = vadd.f32 %v7642, %v7612
      %v7644 = vadd.f32 %v7643, %v7613
      %v7645 = vadd.f32 %v7644, %v7614
      %v7646 = vadd.f32 %v7645, %v7615
      %v7647 = vadd.f32 %v7646, %v7616
      %v7648 = vadd.f32 %v7647, %v7617
      %v7649 = vadd.f32 %v7648, %v7618
      %v7650 = vadd.f32 %v7649, %v7619
      %v7651 = vrot.slane %v7650, 4
      %v7652 = vadd.f32 %v7650, %v7651
      %v7653 = vrot.slane %v7652, 2
      %v7654 = vadd.f32 %v7652, %v7653
      %v7655 = vrot.slane %v7654, 1
      %v7656 = vadd.f32 %v7654, %v7655
      %v7657 = vadd.f32 %v7587, %v7656
      %7658 = vst [vmem:[%s398] sm:$0x1] %v7657
      %s7659 = smul.u32 16, %s26
      %p7660 = scmp.lt.s32.totalorder %s25, 1
      %s7661 = scalar_select %p7660, %s25, 1
      %p7662 = scmp.lt.s32.totalorder %s7659, 15
      %s7663 = scalar_select %p7662, %s7659, 15
      %s7664 = smul.addr %s7663, 2
      %s7665 = smul.addr %s7661, 32
      %s7666 = sadd.s32 %s7664, %s7665
      %s7667 = smul.addr %s7666, 8
      %s7668 = scalar_lea.vmem %s7, %s7667
      %s7669 = smul.u32 16, %s26
      %p7670 = scmp.lt.s32.totalorder %s25, 1
      %s7671 = scalar_select %p7670, %s25, 1
      %p7672 = scmp.lt.s32.totalorder %s7669, 15
      %s7673 = scalar_select %p7672, %s7669, 15
      %s7674 = smul.addr %s7673, 2
      %s7675 = smul.addr %s7671, 32
      %s7676 = sadd.s32 %s7674, %s7675
      %s7677 = smul.addr %s7676, 8
      %s7678 = scalar_lea.vmem %s8, %s7677
      %p7679 = scmp.lt.s32.totalorder %s25, 1
      %s7680 = scalar_select %p7679, %s25, 1
      %s7681 = scalar_lea.vmem %s9, %s7680
      // Predicated region
      $region53: #{skblock_pallas.2} parent=47 // pred_check
        %p7682 = pneg %p207
      $region54: #{skblock_pallas.2} parent=47 // pred_check_branch
        %7684 = sbr.rel (%p7682) target = $region56
      $region55: #{skblock_pallas.2} parent=47 // pred_region
        %s7685 = smul.u32 16, %s26
      $region56: #{skblock_pallas.2} parent=47 // pred_fallthru
        _
      // Predicated region
      $region57: #{skblock_pallas.2} parent=47 // pred_check
        %p7686 = pneg %p235
      $region58: #{skblock_pallas.2} parent=47 // pred_check_branch
        %7688 = sbr.rel (%p7686) target = $region60
      $region59: #{skblock_pallas.2} parent=47 // pred_region
        %s7689 = smul.u32 16, %s26
      $region60: #{skblock_pallas.2} parent=47 // pred_fallthru
        _
      // Predicated region
      $region61: #{skblock_pallas.2} parent=47 // pred_check
        %p7690 = pneg %p261
      $region62: #{skblock_pallas.2} parent=47 // pred_check_branch
        %7692 = sbr.rel (%p7690) target = $region64
      $region63: #{skblock_pallas.2} parent=47 // pred_region
        _
      $region64: #{skblock_pallas.2} parent=47 // pred_fallthru
        _
    $region48: #{skblock_pallas.2} parent=5 // pred_fallthru
      _
    %p7693 = scmp.le.s32.totalorder 2, %s16
    // Predicated region
    $region65: #{skblock_pallas.2} parent=5 // pred_check
      %p7694 = pneg %p7693
    $region66: #{skblock_pallas.2} parent=5 // pred_check_branch
      %7696 = sbr.rel (%p7694) target = $region68
    $region67: #{skblock_pallas.2} parent=5 // pred_region
      %s7697 = ssub.s32 %s16, 2
      // Predicated region
      $region69: #{skblock_pallas.2} parent=67 // pred_check
        %p7698 = pneg %p213
      $region70: #{skblock_pallas.2} parent=67 // pred_check_branch
        %7700 = sbr.rel (%p7698) target = $region72
      $region71: #{skblock_pallas.2} parent=67 // pred_region
        %s7701 = smul.u32 16, %s28
        %p7702 = scmp.lt.s32.totalorder %s27, 1
        %s7703 = scalar_select %p7702, %s27, 1
        %p7704 = scmp.lt.s32.totalorder %s7701, 15
        %s7705 = scalar_select %p7704, %s7701, 15
        %s7706 = smul.addr %s7705, 2
        %s7707 = smul.addr %s7703, 32
        %s7708 = sadd.s32 %s7706, %s7707
        %s7709 = smul.addr %s7708, 8
        %s7710 = scalar_lea.vmem %s7, %s7709
      $region72: #{skblock_pallas.2} parent=67 // pred_fallthru
        _
      // Predicated region
      $region73: #{skblock_pallas.2} parent=67 // pred_check
        %p7711 = pneg %p241
      $region74: #{skblock_pallas.2} parent=67 // pred_check_branch
        %7713 = sbr.rel (%p7711) target = $region76
      $region75: #{skblock_pallas.2} parent=67 // pred_region
        %s7714 = smul.u32 16, %s28
        %p7715 = scmp.lt.s32.totalorder %s27, 1
        %s7716 = scalar_select %p7715, %s27, 1
        %p7717 = scmp.lt.s32.totalorder %s7714, 15
        %s7718 = scalar_select %p7717, %s7714, 15
        %s7719 = smul.addr %s7718, 2
        %s7720 = smul.addr %s7716, 32
        %s7721 = sadd.s32 %s7719, %s7720
        %s7722 = smul.addr %s7721, 8
        %s7723 = scalar_lea.vmem %s8, %s7722
      $region76: #{skblock_pallas.2} parent=67 // pred_fallthru
        _
      // Predicated region
      $region77: #{skblock_pallas.2} parent=67 // pred_check
        %p7724 = pneg %p267
      $region78: #{skblock_pallas.2} parent=67 // pred_check_branch
        %7726 = sbr.rel (%p7724) target = $region80
      $region79: #{skblock_pallas.2} parent=67 // pred_region
        %p7727 = scmp.lt.s32.totalorder %s27, 1
        %s7728 = scalar_select %p7727, %s27, 1
        %s7729 = scalar_lea.vmem %s9, %s7728
      $region80: #{skblock_pallas.2} parent=67 // pred_fallthru
        _
    $region68: #{skblock_pallas.2} parent=5 // pred_fallthru
      _
  $region6: #{skblock_pallas.2} parent=0 // loop_footer
    %s20 = sadd.s32 1, %s16
  $region7: #{skblock_pallas.2} parent=0 // loop_footer_branch
    %15 = sbr.rel target = $region3
  $region8: #{skblock_pallas.2} parent=0 // loop_exit
    _

</llo_original>
